<compile_context>
chip_gen: v7x
topology: tpu7x:2x2x1
jax: 0.10.0
libtpu: 0.0.40
codegen_flags: <defaults>
</compile_context>

<pallas_src>
import functools
from typing import NamedTuple

import jax
import jax.numpy as jnp
import numpy as np
from jax import lax
from jax.experimental import pallas as pl
from jax.experimental.pallas import tpu as pltpu

_HP = jax.lax.Precision.HIGHEST  # exact f32 matmuls everywhere (kernel + reference)


# --------------------------------------------------------------------------- #
# Static metadata describing the packed weight slab (hashable -> lru_cache)
# --------------------------------------------------------------------------- #
class TaggerMeta(NamedTuple):
    Cp: int     # padded char hidden width (4*Cp is a multiple of 128)
    H: int      # word hidden width (4*H must be a multiple of 128)
    T: int      # real tagset size
    TP: int     # lane-padded tagset size (multiple of 128)
    CSP: int    # padded charset rows in the char gate table
    VSP: int    # padded vocab rows in the word gate table
    offs: tuple  # row offsets of (ctbl, wtbl, cwhh, wih_hc, wwhh, lin_w, lin_b)


def _round_up(x, m):
    return ((x + m - 1) // m) * m


# --------------------------------------------------------------------------- #
# Fused Pallas kernel: gather (one-hot) -> char LSTM -> word LSTM -> Linear
#                      -> log_softmax, all in one dispatch.
# --------------------------------------------------------------------------- #
def fused_tagger_kernel(idx_ref, w_ref, out_ref, gxc_ref, gxw_ref, hall_ref,
                        *, meta: TaggerMeta, S: int, L: int):
    """
    idx_ref:  (Np, 1)  int32  rows [0,L*S): char ids (time-major t*S+s),
                               rows [LSp, LSp+S): word ids.
    w_ref:    (R, W)   f32    packed weight slab (see pack_params for layout).
    out_ref:  (S, TP)  f32    log-softmax tag scores (padded lanes; wrapper slices).
    gxc_ref:  (L*S, 4*Cp)     scratch: char input->gate activations (all positions).
    gxw_ref:  (S, 4*H)        scratch: word input->gate activations.
    hall_ref: (S, H)          scratch: word-LSTM hidden state per word.
    """
    Cp, H, TP = meta.Cp, meta.H, meta.TP
    CSP, VSP = meta.CSP, meta.VSP
    offs = meta.offs
    LS = L * S
    LSp = _round_up(LS, 8)

    # ---- word input gates (embedding part): issued FIRST so this MXU work hides
    #      under the char recurrence. Gather is a one-hot @ precomputed gate table.
    widx = idx_ref[LSp:LSp + S, :]                                        # (S,1)
    onehot_w = jnp.where(
        widx == lax.broadcasted_iota(jnp.int32, (S, VSP), 1), 1.0, 0.0
    ).astype(jnp.float32)
    wtbl = w_ref[offs[1]:offs[1] + VSP, :4 * H]          # word_emb @ W_ih_we + b
    gxw_ref[...] = jnp.dot(onehot_w, wtbl,
                           preferred_element_type=jnp.float32, precision=_HP)

    # ---- char input gates for ALL (char t, word s) positions: one MXU dot.
    cidx = idx_ref[0:LS, :]                                               # (LS,1)
    onehot_c = jnp.where(
        cidx == lax.broadcasted_iota(jnp.int32, (LS, CSP), 1), 1.0, 0.0
    ).astype(jnp.float32)
    ctbl = w_ref[offs[0]:offs[0] + CSP, :4 * Cp]         # char_emb @ W_ih_c + b
    gxc_ref[...] = jnp.dot(onehot_c, ctbl,
                           preferred_element_type=jnp.float32, precision=_HP)

    # ---- char LSTM recurrence (batched over the S words), fully unrolled -----
    cwhh = w_ref[offs[2]:offs[2] + Cp, :4 * Cp]          # hoisted recurrent weight

    def char_step(t, carry):
        h, c = carry
        gates = (gxc_ref[pl.ds(t * S, S), :]
                 + jnp.dot(h, cwhh, preferred_element_type=jnp.float32,
                           precision=_HP))
        sg = jax.nn.sigmoid(gates)      # ONE EUP pass over all 4*Cp lanes
        tg = jnp.tanh(gates)            # ONE EUP pass
        i = sg[:, 0 * Cp:1 * Cp]
        f = sg[:, 1 * Cp:2 * Cp]
        g = tg[:, 2 * Cp:3 * Cp]
        o_ = sg[:, 3 * Cp:4 * Cp]
        c = f * c + i * g
        h = o_ * jnp.tanh(c)
        return (h, c)

    ch0 = jnp.zeros((S, Cp), jnp.float32)
    cc0 = jnp.zeros((S, Cp), jnp.float32)
    h_char, _ = lax.fori_loop(0, L, char_step, (ch0, cc0), unroll=True)

    # ---- add the char-hidden contribution to the word input gates ------------
    wih_hc = w_ref[offs[3]:offs[3] + Cp, :4 * H]
    gxw_ref[...] = gxw_ref[...] + jnp.dot(h_char, wih_hc,
                                          preferred_element_type=jnp.float32,
                                          precision=_HP)

    # ---- word LSTM recurrence, fully unrolled --------------------------------
    wwhh = w_ref[offs[4]:offs[4] + H, :4 * H]

    def word_step(t, carry):
        h, c = carry
        gates = (gxw_ref[pl.ds(t, 1), :]
                 + jnp.dot(h, wwhh, preferred_element_type=jnp.float32,
                           precision=_HP))
        sg = jax.nn.sigmoid(gates)
        tg = jnp.tanh(gates)
        i = sg[:, 0 * H:1 * H]
        f = sg[:, 1 * H:2 * H]
        g = tg[:, 2 * H:3 * H]
        o_ = sg[:, 3 * H:4 * H]
        c = f * c + i * g
        h = o_ * jnp.tanh(c)
        hall_ref[pl.ds(t, 1), :] = h
        return (h, c)

    wh0 = jnp.zeros((1, H), jnp.float32)
    wc0 = jnp.zeros((1, H), jnp.float32)
    lax.fori_loop(0, S, word_step, (wh0, wc0), unroll=True)

    # ---- hidden2tag + log_softmax (lane-dense TP output) ---------------------
    lin_w = w_ref[offs[5]:offs[5] + H, :TP]
    lin_b = w_ref[offs[6]:offs[6] + 1, :TP]              # padded cols hold -1e30
    tag = jnp.dot(hall_ref[...], lin_w, preferred_element_type=jnp.float32,
                  precision=_HP) + lin_b
    m = jnp.max(tag, axis=1, keepdims=True)
    z = tag - m
    lse = jnp.log(jnp.sum(jnp.exp(z), axis=1, keepdims=True))
    out_ref[...] = z - lse


# --------------------------------------------------------------------------- #
# One-time weight packing (hoisted out of the per-call path)
# --------------------------------------------------------------------------- #
def _pad_gate_cols(w, c, cp):
    """(..., 4*c) with PyTorch gate blocks [i,f,g,o] -> (..., 4*cp), zero-padded."""
    lead = w.shape[:-1]
    w4 = w.reshape(*lead, 4, c)
    out = jnp.zeros((*lead, 4, cp), w.dtype).at[..., :c].set(w4)
    return out.reshape(*lead, 4 * cp)


def _pad_rows(w, r, rp):
    return jnp.zeros((rp,) + w.shape[1:], w.dtype).at[:r].set(w)


def pack_params(params):
    """Build the single lane-dense weight slab + static metadata. Call once."""
    C = params["char_emb"].shape[1]
    E = params["word_emb"].shape[1]
    H = params["w_whh"].shape[1]
    T = params["lin_w"].shape[0]
    CS = params["char_emb"].shape[0]
    VS = params["word_emb"].shape[0]

    assert (4 * H) % 128 == 0, "word hidden_dim must be a multiple of 32"
    Cp = _round_up(C, 32)         # 4*Cp multiple of 128 (lane-dense char gates)
    TP = _round_up(T, 128)
    CSP = _round_up(CS, 8)
    VSP = _round_up(VS, 8)
    W = max(4 * Cp, 4 * H, TP)

    # char LSTM: fold embedding + bias into a per-character input->gate table
    c_wih = _pad_gate_cols(params["c_wih"].T, C, Cp)                       # (C,4Cp)
    c_b = _pad_gate_cols((params["c_bih"] + params["c_bhh"])[None, :], C, Cp)
    c_emb = jnp.zeros((CSP, C), jnp.float32).at[:CS].set(params["char_emb"])
    ctbl = jnp.dot(c_emb, c_wih, precision=_HP) + c_b                      # (CSP,4Cp)
    c_whh = _pad_rows(_pad_gate_cols(params["c_whh"].T, C, Cp), C, Cp)     # (Cp,4Cp)

    # word LSTM: fold word embedding + bias into a per-word input->gate table;
    # the char-hidden rows of W_ih stay separate (applied in-kernel to h_char).
    w_wih_t = params["w_wih"].T                                            # (E+C,4H)
    wih_we = w_wih_t[:E]
    wih_hc = _pad_rows(w_wih_t[E:], C, Cp)                                 # (Cp,4H)
    w_b = (params["w_bih"] + params["w_bhh"])[None, :]
    w_emb = jnp.zeros((VSP, E), jnp.float32).at[:VS].set(params["word_emb"])
    wtbl = jnp.dot(w_emb, wih_we, precision=_HP) + w_b                     # (VSP,4H)
    w_whh = params["w_whh"].T                                              # (H,4H)

    # hidden2tag, lane padded; padded bias at -1e30 so log_softmax ignores pads
    lin_w = jnp.zeros((H, TP), jnp.float32).at[:, :T].set(params["lin_w"].T)
    lin_b = jnp.full((1, TP), -1e30, jnp.float32).at[0, :T].set(params["lin_b"])
    lin_b8 = jnp.zeros((8, TP), jnp.float32).at[0:1].set(lin_b)

    blocks = [(ctbl, CSP, 4 * Cp), (wtbl, VSP, 4 * H), (c_whh, Cp, 4 * Cp),
              (wih_hc, Cp, 4 * H), (w_whh, H, 4 * H), (lin_w, H, TP),
              (lin_b8, 8, TP)]
    rows_total = sum(nr for _, nr, _ in blocks)
    wslab = jnp.zeros((rows_total, W), jnp.float32)
    offs, r = [], 0
    for blk, nr, nc in blocks:
        offs.append(r)
        wslab = wslab.at[r:r + nr, :nc].set(blk)
        r += nr

    meta = TaggerMeta(Cp=Cp, H=H, T=T, TP=TP, CSP=CSP, VSP=VSP, offs=tuple(offs))
    return {"wslab": jax.device_put(wslab), "meta": meta}


# --------------------------------------------------------------------------- #
# Per-call input packing (host-side numpy; no device glue ops)
# --------------------------------------------------------------------------- #
def pack_inputs(char_sentence, sentence):
    cs = np.asarray(char_sentence).astype(np.int32)     # (S, L)
    ws = np.asarray(sentence).astype(np.int32)          # (S,)
    S, L = cs.shape
    LS = L * S
    LSp = _round_up(LS, 8)
    n = _round_up(LSp + S, 8)
    idx = np.zeros((n, 1), np.int32)
    idx[:LS, 0] = cs.T.reshape(-1)                      # time-major: row = t*S + s
    idx[LSp:LSp + S, 0] = ws
    return jnp.asarray(idx), S, L


# --------------------------------------------------------------------------- #
# Cached, jitted forward: exactly one pallas_call (+ a tiny output slice)
# --------------------------------------------------------------------------- #
@functools.lru_cache(maxsize=None)
def _get_forward(meta: TaggerMeta, S: int, L: int):
    LS = L * S
    vmem = pl.BlockSpec(memory_space=pltpu.MemorySpace.VMEM)
    call = pl.pallas_call(
        functools.partial(fused_tagger_kernel, meta=meta, S=S, L=L),
        out_shape=jax.ShapeDtypeStruct((S, meta.TP), jnp.float32),
        in_specs=[vmem, vmem],                 # idx slab, weight slab (2 DMAs total)
        out_specs=vmem,
        scratch_shapes=[
            pltpu.VMEM((LS, 4 * meta.Cp), jnp.float32),   # char input->gate acts
            pltpu.VMEM((S, 4 * meta.H), jnp.float32),     # word input->gate acts
            pltpu.VMEM((S, meta.H), jnp.float32),         # word hidden states
        ],
    )

    @jax.jit
    def fwd(wslab, idx_slab):
        return call(idx_slab, wslab)[:, :meta.T]

    return fwd


def char_emb_lstm_tagger(packed, char_sentence, sentence):
    idx_slab, S, L = pack_inputs(char_sentence, sentence)
    fwd = _get_forward(packed["meta"], S, L)
    return fwd(packed["wslab"], idx_slab)


# --------------------------------------------------------------------------- #
# Parameters (deterministic synthetic init, mirroring nn.Module shapes)
# --------------------------------------------------------------------------- #
def init_params(key, embedding_dim, char_embedding_dim, hidden_dim,
                charset_size, vocab_size, tagset_size):
    E, C, H = embedding_dim, char_embedding_dim, hidden_dim
    ks = jax.random.split(key, 12)

    def u(k, shape, scale):
        return jax.random.uniform(k, shape, jnp.float32, -scale, scale)

    return dict(
        char_emb=u(ks[0], (charset_size, C), 1.0),
        word_emb=u(ks[1], (vocab_size, E), 1.0),
        c_wih=u(ks[2], (4 * C, C), 1.0 / np.sqrt(C)),
        c_whh=u(ks[3], (4 * C, C), 1.0 / np.sqrt(C)),
        c_bih=u(ks[4], (4 * C,), 1.0 / np.sqrt(C)),
        c_bhh=u(ks[5], (4 * C,), 1.0 / np.sqrt(C)),
        w_wih=u(ks[6], (4 * H, E + C), 1.0 / np.sqrt(H)),
        w_whh=u(ks[7], (4 * H, H), 1.0 / np.sqrt(H)),
        w_bih=u(ks[8], (4 * H,), 1.0 / np.sqrt(H)),
        w_bhh=u(ks[9], (4 * H,), 1.0 / np.sqrt(H)),
        lin_w=u(ks[10], (tagset_size, H), 1.0 / np.sqrt(H)),
        lin_b=u(ks[11], (tagset_size,), 1.0 / np.sqrt(H)),
    )


# --------------------------------------------------------------------------- #
# Pure-JAX reference (PyTorch LSTM semantics, gate order i,f,g,o)
# --------------------------------------------------------------------------- #
def _lstm_scan(x_seq, wih_t, whh_t, b, H):
    def step(carry, x_t):
        h, c = carry
        gates = (jnp.dot(x_t, wih_t, precision=_HP)
                 + jnp.dot(h, whh_t, precision=_HP) + b)
        i = jax.nn.sigmoid(gates[:, 0 * H:1 * H])
        f = jax.nn.sigmoid(gates[:, 1 * H:2 * H])
        g = jnp.tanh(gates[:, 2 * H:3 * H])
        o = jax.nn.sigmoid(gates[:, 3 * H:4 * H])
        c = f * c + i * g
        h = o * jnp.tanh(c)
        return (h, c), h

    B = x_seq.shape[1]
    init = (jnp.zeros((B, H), jnp.float32), jnp.zeros((B, H), jnp.float32))
    (h_n, _), h_all = lax.scan(step, init, x_seq)
    return h_all, h_n


def reference(params, char_sentence, sentence):
    C = params["char_emb"].shape[1]
    H = params["w_whh"].shape[1]
    char_embeds = jnp.take(params["char_emb"], char_sentence, axis=0)
    char_embeds_tm = jnp.transpose(char_embeds, (1, 0, 2))              # (L, S, C)
    _, h_char = _lstm_scan(char_embeds_tm, params["c_wih"].T, params["c_whh"].T,
                           params["c_bih"] + params["c_bhh"], C)        # (S, C)
    word_embeds = jnp.take(params["word_emb"], sentence, axis=0)
    x = jnp.concatenate([word_embeds, h_char], axis=1)
    h_all, _ = _lstm_scan(x[:, None, :], params["w_wih"].T, params["w_whh"].T,
                          params["w_bih"] + params["w_bhh"], H)         # (S, 1, H)
    tag = jnp.dot(h_all[:, 0, :], params["lin_w"].T, precision=_HP) + params["lin_b"]
    return jax.nn.log_softmax(tag, axis=1)


# --------------------------------------------------------------------------- #
if __name__ == "__main__":
    embedding_dim = 16
    char_embedding_dim = 8
    hidden_dim = 32
    charset_size = 26
    vocab_size = 20
    tagset_size = 5
    seq_len = 8          # words per sentence (multiple of 8 keeps slices tile-aligned)
    char_len = 6         # characters per word (fixed width)

    key = jax.random.PRNGKey(0)
    pkey, ckey, skey = jax.random.split(key, 3)

    params = init_params(pkey, embedding_dim, char_embedding_dim, hidden_dim,
                         charset_size, vocab_size, tagset_size)
    packed = pack_params(params)          # one-time weight prep, NOT per call

    char_sentence = jax.random.randint(ckey, (seq_len, char_len), 0, charset_size,
                                       dtype=jnp.int32)
    sentence = jax.random.randint(skey, (seq_len,), 0, vocab_size, dtype=jnp.int32)

    tag_scores = char_emb_lstm_tagger(packed, char_sentence, sentence)
    tag_scores = jax.block_until_ready(tag_scores)

    ref = jax.block_until_ready(reference(params, char_sentence, sentence))

    assert tag_scores.shape == (seq_len, tagset_size)
    np.testing.assert_allclose(np.asarray(tag_scores), np.asarray(ref),
                               rtol=1e-5, atol=1e-5)
    np.testing.assert_allclose(np.exp(np.asarray(tag_scores)).sum(axis=1),
                               np.ones(seq_len), rtol=1e-5, atol=1e-5)

    print("KERNEL_OK")
</pallas_src>

<mosaic_0001>
module attributes {stable_mosaic.version = 11 : i64} {
  func.func @fused_tagger_kernel(%arg0: memref<56x1xi32, #tpu.memory_space<vmem>>, %arg1: memref<192x128xf32, #tpu.memory_space<vmem>>, %arg2: memref<8x128xf32, #tpu.memory_space<vmem>>, %arg3: memref<48x128xf32, #tpu.memory_space<vmem>>, %arg4: memref<8x128xf32, #tpu.memory_space<vmem>>, %arg5: memref<8x32xf32, #tpu.memory_space<vmem>>) attributes {dimension_semantics = [], scalar_prefetch = 0 : i64, scratch_operands = 3 : i64, tpu.core_type = #tpu.core_type<tc>} {
    %c48 = arith.constant 48 : index
    %c0 = arith.constant 0 : index
    %0 = vector.load %arg0[%c48, %c0] : memref<56x1xi32, #tpu.memory_space<vmem>>, vector<8x1xi32>
    %1 = tpu.iota {dimensions = array<i32: 1>} : vector<8x24xi32>
    %2 = vector.broadcast %0 : vector<8x1xi32> to vector<8x24xi32>
    %3 = arith.cmpi eq, %2, %1 : vector<8x24xi32>
    %cst = arith.constant 1.000000e+00 : f32
    %cst_0 = arith.constant 0.000000e+00 : f32
    %4 = vector.broadcast %cst : f32 to vector<8x24xf32>
    %5 = vector.broadcast %cst_0 : f32 to vector<8x24xf32>
    %6 = arith.select %3, %4, %5 : vector<8x24xi1>, vector<8x24xf32>
    %c32 = arith.constant 32 : index
    %c0_1 = arith.constant 0 : index
    %7 = vector.load %arg1[%c32, %c0_1] : memref<192x128xf32, #tpu.memory_space<vmem>>, vector<24x128xf32>
    %cst_2 = arith.constant dense<0.000000e+00> : vector<8x128xf32>
    %8 = tpu.matmul %6, %7, %cst_2 {dimension_numbers = #tpu.dot_dimension_numbers<[1], [0], [0], [1], [0, 0, 1, 1], [], []>, precision = #tpu.contract_precision<fp32>} : vector<8x24xf32>, vector<24x128xf32>, vector<8x128xf32> -> vector<8x128xf32>
    %c0_3 = arith.constant 0 : index
    %c0_4 = arith.constant 0 : index
    %9 = vector.load %arg4[%c0_3, %c0_4] : memref<8x128xf32, #tpu.memory_space<vmem>>, vector<8x128xf32>
    tpu.vector_store %arg4[%c0_3, %c0_4], %8 {strides = array<i32>} : memref<8x128xf32, #tpu.memory_space<vmem>>, vector<8x128xf32>,
    %c0_5 = arith.constant 0 : index
    %c0_6 = arith.constant 0 : index
    %10 = vector.load %arg0[%c0_5, %c0_6] : memref<56x1xi32, #tpu.memory_space<vmem>>, vector<48x1xi32>
    %11 = tpu.iota {dimensions = array<i32: 1>} : vector<48x32xi32>
    %12 = vector.broadcast %10 : vector<48x1xi32> to vector<48x32xi32>
    %13 = arith.cmpi eq, %12, %11 : vector<48x32xi32>
    %cst_7 = arith.constant 1.000000e+00 : f32
    %cst_8 = arith.constant 0.000000e+00 : f32
    %14 = vector.broadcast %cst_7 : f32 to vector<48x32xf32>
    %15 = vector.broadcast %cst_8 : f32 to vector<48x32xf32>
    %16 = arith.select %13, %14, %15 : vector<48x32xi1>, vector<48x32xf32>
    %c0_9 = arith.constant 0 : index
    %c0_10 = arith.constant 0 : index
    %17 = vector.load %arg1[%c0_9, %c0_10] : memref<192x128xf32, #tpu.memory_space<vmem>>, vector<32x128xf32>
    %cst_11 = arith.constant dense<0.000000e+00> : vector<48x128xf32>
    %18 = tpu.matmul %16, %17, %cst_11 {dimension_numbers = #tpu.dot_dimension_numbers<[1], [0], [0], [1], [0, 0, 1, 1], [], []>, precision = #tpu.contract_precision<fp32>} : vector<48x32xf32>, vector<32x128xf32>, vector<48x128xf32> -> vector<48x128xf32>
    %c0_12 = arith.constant 0 : index
    %c0_13 = arith.constant 0 : index
    %19 = vector.load %arg3[%c0_12, %c0_13] : memref<48x128xf32, #tpu.memory_space<vmem>>, vector<48x128xf32>
    tpu.vector_store %arg3[%c0_12, %c0_13], %18 {strides = array<i32>} : memref<48x128xf32, #tpu.memory_space<vmem>>, vector<48x128xf32>,
    %c56 = arith.constant 56 : index
    %c0_14 = arith.constant 0 : index
    %20 = vector.load %arg1[%c56, %c0_14] : memref<192x128xf32, #tpu.memory_space<vmem>>, vector<32x128xf32>
    %cst_15 = arith.constant 0.000000e+00 : f32
    %21 = vector.broadcast %cst_15 : f32 to vector<8x32xf32>
    %cst_16 = arith.constant 0.000000e+00 : f32
    %22 = vector.broadcast %cst_16 : f32 to vector<8x32xf32>
    %c0_i32 = arith.constant 0 : i32
    %c8_i32 = arith.constant 8 : i32
    %23 = arith.muli %c0_i32, %c8_i32 : i32
    %24 = arith.index_cast %23 : i32 to index
    %c0_17 = arith.constant 0 : index
    %25 = vector.load %arg3[%24, %c0_17] : memref<48x128xf32, #tpu.memory_space<vmem>>, vector<8x128xf32>
    %cst_18 = arith.constant dense<0.000000e+00> : vector<8x128xf32>
    %26 = tpu.matmul %21, %20, %cst_18 {dimension_numbers = #tpu.dot_dimension_numbers<[1], [0], [0], [1], [0, 0, 1, 1], [], []>, precision = #tpu.contract_precision<fp32>} : vector<8x32xf32>, vector<32x128xf32>, vector<8x128xf32> -> vector<8x128xf32>
    %27 = arith.addf %25, %26 : vector<8x128xf32>
    %28 = arith.negf %27 : vector<8x128xf32>
    %29 = math.exp %28 : vector<8x128xf32>
    %cst_19 = arith.constant 1.000000e+00 : f32
    %30 = vector.broadcast %cst_19 : f32 to vector<8x128xf32>
    %31 = arith.addf %30, %29 : vector<8x128xf32>
    %32 = arith.divf %30, %31 : vector<8x128xf32>
    %33 = math.tanh %27 : vector<8x128xf32>
    %34 = vector.extract_strided_slice %32 {offsets = [0, 0], sizes = [8, 32], strides = [1, 1]} : vector<8x128xf32> to vector<8x32xf32>
    %35 = vector.extract_strided_slice %32 {offsets = [0, 32], sizes = [8, 32], strides = [1, 1]} : vector<8x128xf32> to vector<8x32xf32>
    %36 = vector.extract_strided_slice %33 {offsets = [0, 64], sizes = [8, 32], strides = [1, 1]} : vector<8x128xf32> to vector<8x32xf32>
    %37 = vector.extract_strided_slice %32 {offsets = [0, 96], sizes = [8, 32], strides = [1, 1]} : vector<8x128xf32> to vector<8x32xf32>
    %38 = arith.mulf %35, %22 : vector<8x32xf32>
    %39 = arith.mulf %34, %36 : vector<8x32xf32>
    %40 = arith.addf %38, %39 : vector<8x32xf32>
    %41 = math.tanh %40 : vector<8x32xf32>
    %42 = arith.mulf %37, %41 : vector<8x32xf32>
    %c1_i32 = arith.constant 1 : i32
    %c8_i32_20 = arith.constant 8 : i32
    %43 = arith.muli %c1_i32, %c8_i32_20 : i32
    %44 = arith.index_cast %43 : i32 to index
    %c0_21 = arith.constant 0 : index
    %45 = vector.load %arg3[%44, %c0_21] : memref<48x128xf32, #tpu.memory_space<vmem>>, vector<8x128xf32>
    %cst_22 = arith.constant dense<0.000000e+00> : vector<8x128xf32>
    %46 = tpu.matmul %42, %20, %cst_22 {dimension_numbers = #tpu.dot_dimension_numbers<[1], [0], [0], [1], [0, 0, 1, 1], [], []>, precision = #tpu.contract_precision<fp32>} : vector<8x32xf32>, vector<32x128xf32>, vector<8x128xf32> -> vector<8x128xf32>
    %47 = arith.addf %45, %46 : vector<8x128xf32>
    %48 = arith.negf %47 : vector<8x128xf32>
    %49 = math.exp %48 : vector<8x128xf32>
    %cst_23 = arith.constant 1.000000e+00 : f32
    %50 = vector.broadcast %cst_23 : f32 to vector<8x128xf32>
    %51 = arith.addf %50, %49 : vector<8x128xf32>
    %52 = arith.divf %50, %51 : vector<8x128xf32>
    %53 = math.tanh %47 : vector<8x128xf32>
    %54 = vector.extract_strided_slice %52 {offsets = [0, 0], sizes = [8, 32], strides = [1, 1]} : vector<8x128xf32> to vector<8x32xf32>
    %55 = vector.extract_strided_slice %52 {offsets = [0, 32], sizes = [8, 32], strides = [1, 1]} : vector<8x128xf32> to vector<8x32xf32>
    %56 = vector.extract_strided_slice %53 {offsets = [0, 64], sizes = [8, 32], strides = [1, 1]} : vector<8x128xf32> to vector<8x32xf32>
    %57 = vector.extract_strided_slice %52 {offsets = [0, 96], sizes = [8, 32], strides = [1, 1]} : vector<8x128xf32> to vector<8x32xf32>
    %58 = arith.mulf %55, %40 : vector<8x32xf32>
    %59 = arith.mulf %54, %56 : vector<8x32xf32>
    %60 = arith.addf %58, %59 : vector<8x32xf32>
    %61 = math.tanh %60 : vector<8x32xf32>
    %62 = arith.mulf %57, %61 : vector<8x32xf32>
    %c2_i32 = arith.constant 2 : i32
    %c8_i32_24 = arith.constant 8 : i32
    %63 = arith.muli %c2_i32, %c8_i32_24 : i32
    %64 = arith.index_cast %63 : i32 to index
    %c0_25 = arith.constant 0 : index
    %65 = vector.load %arg3[%64, %c0_25] : memref<48x128xf32, #tpu.memory_space<vmem>>, vector<8x128xf32>
    %cst_26 = arith.constant dense<0.000000e+00> : vector<8x128xf32>
    %66 = tpu.matmul %62, %20, %cst_26 {dimension_numbers = #tpu.dot_dimension_numbers<[1], [0], [0], [1], [0, 0, 1, 1], [], []>, precision = #tpu.contract_precision<fp32>} : vector<8x32xf32>, vector<32x128xf32>, vector<8x128xf32> -> vector<8x128xf32>
    %67 = arith.addf %65, %66 : vector<8x128xf32>
    %68 = arith.negf %67 : vector<8x128xf32>
    %69 = math.exp %68 : vector<8x128xf32>
    %cst_27 = arith.constant 1.000000e+00 : f32
    %70 = vector.broadcast %cst_27 : f32 to vector<8x128xf32>
    %71 = arith.addf %70, %69 : vector<8x128xf32>
    %72 = arith.divf %70, %71 : vector<8x128xf32>
    %73 = math.tanh %67 : vector<8x128xf32>
    %74 = vector.extract_strided_slice %72 {offsets = [0, 0], sizes = [8, 32], strides = [1, 1]} : vector<8x128xf32> to vector<8x32xf32>
    %75 = vector.extract_strided_slice %72 {offsets = [0, 32], sizes = [8, 32], strides = [1, 1]} : vector<8x128xf32> to vector<8x32xf32>
    %76 = vector.extract_strided_slice %73 {offsets = [0, 64], sizes = [8, 32], strides = [1, 1]} : vector<8x128xf32> to vector<8x32xf32>
    %77 = vector.extract_strided_slice %72 {offsets = [0, 96], sizes = [8, 32], strides = [1, 1]} : vector<8x128xf32> to vector<8x32xf32>
    %78 = arith.mulf %75, %60 : vector<8x32xf32>
    %79 = arith.mulf %74, %76 : vector<8x32xf32>
    %80 = arith.addf %78, %79 : vector<8x32xf32>
    %81 = math.tanh %80 : vector<8x32xf32>
    %82 = arith.mulf %77, %81 : vector<8x32xf32>
    %c3_i32 = arith.constant 3 : i32
    %c8_i32_28 = arith.constant 8 : i32
    %83 = arith.muli %c3_i32, %c8_i32_28 : i32
    %84 = arith.index_cast %83 : i32 to index
    %c0_29 = arith.constant 0 : index
    %85 = vector.load %arg3[%84, %c0_29] : memref<48x128xf32, #tpu.memory_space<vmem>>, vector<8x128xf32>
    %cst_30 = arith.constant dense<0.000000e+00> : vector<8x128xf32>
    %86 = tpu.matmul %82, %20, %cst_30 {dimension_numbers = #tpu.dot_dimension_numbers<[1], [0], [0], [1], [0, 0, 1, 1], [], []>, precision = #tpu.contract_precision<fp32>} : vector<8x32xf32>, vector<32x128xf32>, vector<8x128xf32> -> vector<8x128xf32>
    %87 = arith.addf %85, %86 : vector<8x128xf32>
    %88 = arith.negf %87 : vector<8x128xf32>
    %89 = math.exp %88 : vector<8x128xf32>
    %cst_31 = arith.constant 1.000000e+00 : f32
    %90 = vector.broadcast %cst_31 : f32 to vector<8x128xf32>
    %91 = arith.addf %90, %89 : vector<8x128xf32>
    %92 = arith.divf %90, %91 : vector<8x128xf32>
    %93 = math.tanh %87 : vector<8x128xf32>
    %94 = vector.extract_strided_slice %92 {offsets = [0, 0], sizes = [8, 32], strides = [1, 1]} : vector<8x128xf32> to vector<8x32xf32>
    %95 = vector.extract_strided_slice %92 {offsets = [0, 32], sizes = [8, 32], strides = [1, 1]} : vector<8x128xf32> to vector<8x32xf32>
    %96 = vector.extract_strided_slice %93 {offsets = [0, 64], sizes = [8, 32], strides = [1, 1]} : vector<8x128xf32> to vector<8x32xf32>
    %97 = vector.extract_strided_slice %92 {offsets = [0, 96], sizes = [8, 32], strides = [1, 1]} : vector<8x128xf32> to vector<8x32xf32>
    %98 = arith.mulf %95, %80 : vector<8x32xf32>
    %99 = arith.mulf %94, %96 : vector<8x32xf32>
    %100 = arith.addf %98, %99 : vector<8x32xf32>
    %101 = math.tanh %100 : vector<8x32xf32>
    %102 = arith.mulf %97, %101 : vector<8x32xf32>
    %c4_i32 = arith.constant 4 : i32
    %c8_i32_32 = arith.constant 8 : i32
    %103 = arith.muli %c4_i32, %c8_i32_32 : i32
    %104 = arith.index_cast %103 : i32 to index
    %c0_33 = arith.constant 0 : index
    %105 = vector.load %arg3[%104, %c0_33] : memref<48x128xf32, #tpu.memory_space<vmem>>, vector<8x128xf32>
    %cst_34 = arith.constant dense<0.000000e+00> : vector<8x128xf32>
    %106 = tpu.matmul %102, %20, %cst_34 {dimension_numbers = #tpu.dot_dimension_numbers<[1], [0], [0], [1], [0, 0, 1, 1], [], []>, precision = #tpu.contract_precision<fp32>} : vector<8x32xf32>, vector<32x128xf32>, vector<8x128xf32> -> vector<8x128xf32>
    %107 = arith.addf %105, %106 : vector<8x128xf32>
    %108 = arith.negf %107 : vector<8x128xf32>
    %109 = math.exp %108 : vector<8x128xf32>
    %cst_35 = arith.constant 1.000000e+00 : f32
    %110 = vector.broadcast %cst_35 : f32 to vector<8x128xf32>
    %111 = arith.addf %110, %109 : vector<8x128xf32>
    %112 = arith.divf %110, %111 : vector<8x128xf32>
    %113 = math.tanh %107 : vector<8x128xf32>
    %114 = vector.extract_strided_slice %112 {offsets = [0, 0], sizes = [8, 32], strides = [1, 1]} : vector<8x128xf32> to vector<8x32xf32>
    %115 = vector.extract_strided_slice %112 {offsets = [0, 32], sizes = [8, 32], strides = [1, 1]} : vector<8x128xf32> to vector<8x32xf32>
    %116 = vector.extract_strided_slice %113 {offsets = [0, 64], sizes = [8, 32], strides = [1, 1]} : vector<8x128xf32> to vector<8x32xf32>
    %117 = vector.extract_strided_slice %112 {offsets = [0, 96], sizes = [8, 32], strides = [1, 1]} : vector<8x128xf32> to vector<8x32xf32>
    %118 = arith.mulf %115, %100 : vector<8x32xf32>
    %119 = arith.mulf %114, %116 : vector<8x32xf32>
    %120 = arith.addf %118, %119 : vector<8x32xf32>
    %121 = math.tanh %120 : vector<8x32xf32>
    %122 = arith.mulf %117, %121 : vector<8x32xf32>
    %c5_i32 = arith.constant 5 : i32
    %c8_i32_36 = arith.constant 8 : i32
    %123 = arith.muli %c5_i32, %c8_i32_36 : i32
    %124 = arith.index_cast %123 : i32 to index
    %c0_37 = arith.constant 0 : index
    %125 = vector.load %arg3[%124, %c0_37] : memref<48x128xf32, #tpu.memory_space<vmem>>, vector<8x128xf32>
    %cst_38 = arith.constant dense<0.000000e+00> : vector<8x128xf32>
    %126 = tpu.matmul %122, %20, %cst_38 {dimension_numbers = #tpu.dot_dimension_numbers<[1], [0], [0], [1], [0, 0, 1, 1], [], []>, precision = #tpu.contract_precision<fp32>} : vector<8x32xf32>, vector<32x128xf32>, vector<8x128xf32> -> vector<8x128xf32>
    %127 = arith.addf %125, %126 : vector<8x128xf32>
    %128 = arith.negf %127 : vector<8x128xf32>
    %129 = math.exp %128 : vector<8x128xf32>
    %cst_39 = arith.constant 1.000000e+00 : f32
    %130 = vector.broadcast %cst_39 : f32 to vector<8x128xf32>
    %131 = arith.addf %130, %129 : vector<8x128xf32>
    %132 = arith.divf %130, %131 : vector<8x128xf32>
    %133 = math.tanh %127 : vector<8x128xf32>
    %134 = vector.extract_strided_slice %132 {offsets = [0, 0], sizes = [8, 32], strides = [1, 1]} : vector<8x128xf32> to vector<8x32xf32>
    %135 = vector.extract_strided_slice %132 {offsets = [0, 32], sizes = [8, 32], strides = [1, 1]} : vector<8x128xf32> to vector<8x32xf32>
    %136 = vector.extract_strided_slice %133 {offsets = [0, 64], sizes = [8, 32], strides = [1, 1]} : vector<8x128xf32> to vector<8x32xf32>
    %137 = vector.extract_strided_slice %132 {offsets = [0, 96], sizes = [8, 32], strides = [1, 1]} : vector<8x128xf32> to vector<8x32xf32>
    %138 = arith.mulf %135, %120 : vector<8x32xf32>
    %139 = arith.mulf %134, %136 : vector<8x32xf32>
    %140 = arith.addf %138, %139 : vector<8x32xf32>
    %141 = math.tanh %140 : vector<8x32xf32>
    %142 = arith.mulf %137, %141 : vector<8x32xf32>
    %c6_i32 = arith.constant 6 : i32
    %c88 = arith.constant 88 : index
    %c0_40 = arith.constant 0 : index
    %143 = vector.load %arg1[%c88, %c0_40] : memref<192x128xf32, #tpu.memory_space<vmem>>, vector<32x128xf32>
    %c0_41 = arith.constant 0 : index
    %c0_42 = arith.constant 0 : index
    %144 = vector.load %arg4[%c0_41, %c0_42] : memref<8x128xf32, #tpu.memory_space<vmem>>, vector<8x128xf32>
    %cst_43 = arith.constant dense<0.000000e+00> : vector<8x128xf32>
    %145 = tpu.matmul %142, %143, %cst_43 {dimension_numbers = #tpu.dot_dimension_numbers<[1], [0], [0], [1], [0, 0, 1, 1], [], []>, precision = #tpu.contract_precision<fp32>} : vector<8x32xf32>, vector<32x128xf32>, vector<8x128xf32> -> vector<8x128xf32>
    %146 = arith.addf %144, %145 : vector<8x128xf32>
    %c0_44 = arith.constant 0 : index
    %c0_45 = arith.constant 0 : index
    %147 = vector.load %arg4[%c0_44, %c0_45] : memref<8x128xf32, #tpu.memory_space<vmem>>, vector<8x128xf32>
    tpu.vector_store %arg4[%c0_44, %c0_45], %146 {strides = array<i32>} : memref<8x128xf32, #tpu.memory_space<vmem>>, vector<8x128xf32>,
    %c120 = arith.constant 120 : index
    %c0_46 = arith.constant 0 : index
    %148 = vector.load %arg1[%c120, %c0_46] : memref<192x128xf32, #tpu.memory_space<vmem>>, vector<32x128xf32>
    %cst_47 = arith.constant 0.000000e+00 : f32
    %149 = vector.broadcast %cst_47 : f32 to vector<1x32xf32>
    %cst_48 = arith.constant 0.000000e+00 : f32
    %150 = vector.broadcast %cst_48 : f32 to vector<1x32xf32>
    %c0_i32_49 = arith.constant 0 : i32
    %151 = arith.index_cast %c0_i32_49 : i32 to index
    %c0_50 = arith.constant 0 : index
    %152 = vector.load %arg4[%151, %c0_50] : memref<8x128xf32, #tpu.memory_space<vmem>>, vector<1x128xf32>
    %cst_51 = arith.constant dense<0.000000e+00> : vector<1x128xf32>
    %153 = tpu.matmul %149, %148, %cst_51 {dimension_numbers = #tpu.dot_dimension_numbers<[1], [0], [0], [1], [0, 0, 1, 1], [], []>, precision = #tpu.contract_precision<fp32>} : vector<1x32xf32>, vector<32x128xf32>, vector<1x128xf32> -> vector<1x128xf32>
    %154 = arith.addf %152, %153 : vector<1x128xf32>
    %155 = arith.negf %154 : vector<1x128xf32>
    %156 = math.exp %155 : vector<1x128xf32>
    %cst_52 = arith.constant 1.000000e+00 : f32
    %157 = vector.broadcast %cst_52 : f32 to vector<1x128xf32>
    %158 = arith.addf %157, %156 : vector<1x128xf32>
    %159 = arith.divf %157, %158 : vector<1x128xf32>
    %160 = math.tanh %154 : vector<1x128xf32>
    %161 = vector.extract_strided_slice %159 {offsets = [0, 0], sizes = [1, 32], strides = [1, 1]} : vector<1x128xf32> to vector<1x32xf32>
    %162 = vector.extract_strided_slice %159 {offsets = [0, 32], sizes = [1, 32], strides = [1, 1]} : vector<1x128xf32> to vector<1x32xf32>
    %163 = vector.extract_strided_slice %160 {offsets = [0, 64], sizes = [1, 32], strides = [1, 1]} : vector<1x128xf32> to vector<1x32xf32>
    %164 = vector.extract_strided_slice %159 {offsets = [0, 96], sizes = [1, 32], strides = [1, 1]} : vector<1x128xf32> to vector<1x32xf32>
    %165 = arith.mulf %162, %150 : vector<1x32xf32>
    %166 = arith.mulf %161, %163 : vector<1x32xf32>
    %167 = arith.addf %165, %166 : vector<1x32xf32>
    %168 = math.tanh %167 : vector<1x32xf32>
    %169 = arith.mulf %164, %168 : vector<1x32xf32>
    %170 = arith.index_cast %c0_i32_49 : i32 to index
    %c0_53 = arith.constant 0 : index
    %171 = vector.load %arg5[%170, %c0_53] : memref<8x32xf32, #tpu.memory_space<vmem>>, vector<1x32xf32>
    tpu.vector_store %arg5[%170, %c0_53], %169 {strides = array<i32>} : memref<8x32xf32, #tpu.memory_space<vmem>>, vector<1x32xf32>,
    %c1_i32_54 = arith.constant 1 : i32
    %172 = arith.index_cast %c1_i32_54 : i32 to index
    %c0_55 = arith.constant 0 : index
    %173 = vector.load %arg4[%172, %c0_55] : memref<8x128xf32, #tpu.memory_space<vmem>>, vector<1x128xf32>
    %cst_56 = arith.constant dense<0.000000e+00> : vector<1x128xf32>
    %174 = tpu.matmul %169, %148, %cst_56 {dimension_numbers = #tpu.dot_dimension_numbers<[1], [0], [0], [1], [0, 0, 1, 1], [], []>, precision = #tpu.contract_precision<fp32>} : vector<1x32xf32>, vector<32x128xf32>, vector<1x128xf32> -> vector<1x128xf32>
    %175 = arith.addf %173, %174 : vector<1x128xf32>
    %176 = arith.negf %175 : vector<1x128xf32>
    %177 = math.exp %176 : vector<1x128xf32>
    %cst_57 = arith.constant 1.000000e+00 : f32
    %178 = vector.broadcast %cst_57 : f32 to vector<1x128xf32>
    %179 = arith.addf %178, %177 : vector<1x128xf32>
    %180 = arith.divf %178, %179 : vector<1x128xf32>
    %181 = math.tanh %175 : vector<1x128xf32>
    %182 = vector.extract_strided_slice %180 {offsets = [0, 0], sizes = [1, 32], strides = [1, 1]} : vector<1x128xf32> to vector<1x32xf32>
    %183 = vector.extract_strided_slice %180 {offsets = [0, 32], sizes = [1, 32], strides = [1, 1]} : vector<1x128xf32> to vector<1x32xf32>
    %184 = vector.extract_strided_slice %181 {offsets = [0, 64], sizes = [1, 32], strides = [1, 1]} : vector<1x128xf32> to vector<1x32xf32>
    %185 = vector.extract_strided_slice %180 {offsets = [0, 96], sizes = [1, 32], strides = [1, 1]} : vector<1x128xf32> to vector<1x32xf32>
    %186 = arith.mulf %183, %167 : vector<1x32xf32>
    %187 = arith.mulf %182, %184 : vector<1x32xf32>
    %188 = arith.addf %186, %187 : vector<1x32xf32>
    %189 = math.tanh %188 : vector<1x32xf32>
    %190 = arith.mulf %185, %189 : vector<1x32xf32>
    %191 = arith.index_cast %c1_i32_54 : i32 to index
    %c0_58 = arith.constant 0 : index
    %192 = vector.load %arg5[%191, %c0_58] : memref<8x32xf32, #tpu.memory_space<vmem>>, vector<1x32xf32>
    tpu.vector_store %arg5[%191, %c0_58], %190 {strides = array<i32>} : memref<8x32xf32, #tpu.memory_space<vmem>>, vector<1x32xf32>,
    %c2_i32_59 = arith.constant 2 : i32
    %193 = arith.index_cast %c2_i32_59 : i32 to index
    %c0_60 = arith.constant 0 : index
    %194 = vector.load %arg4[%193, %c0_60] : memref<8x128xf32, #tpu.memory_space<vmem>>, vector<1x128xf32>
    %cst_61 = arith.constant dense<0.000000e+00> : vector<1x128xf32>
    %195 = tpu.matmul %190, %148, %cst_61 {dimension_numbers = #tpu.dot_dimension_numbers<[1], [0], [0], [1], [0, 0, 1, 1], [], []>, precision = #tpu.contract_precision<fp32>} : vector<1x32xf32>, vector<32x128xf32>, vector<1x128xf32> -> vector<1x128xf32>
    %196 = arith.addf %194, %195 : vector<1x128xf32>
    %197 = arith.negf %196 : vector<1x128xf32>
    %198 = math.exp %197 : vector<1x128xf32>
    %cst_62 = arith.constant 1.000000e+00 : f32
    %199 = vector.broadcast %cst_62 : f32 to vector<1x128xf32>
    %200 = arith.addf %199, %198 : vector<1x128xf32>
    %201 = arith.divf %199, %200 : vector<1x128xf32>
    %202 = math.tanh %196 : vector<1x128xf32>
    %203 = vector.extract_strided_slice %201 {offsets = [0, 0], sizes = [1, 32], strides = [1, 1]} : vector<1x128xf32> to vector<1x32xf32>
    %204 = vector.extract_strided_slice %201 {offsets = [0, 32], sizes = [1, 32], strides = [1, 1]} : vector<1x128xf32> to vector<1x32xf32>
    %205 = vector.extract_strided_slice %202 {offsets = [0, 64], sizes = [1, 32], strides = [1, 1]} : vector<1x128xf32> to vector<1x32xf32>
    %206 = vector.extract_strided_slice %201 {offsets = [0, 96], sizes = [1, 32], strides = [1, 1]} : vector<1x128xf32> to vector<1x32xf32>
    %207 = arith.mulf %204, %188 : vector<1x32xf32>
    %208 = arith.mulf %203, %205 : vector<1x32xf32>
    %209 = arith.addf %207, %208 : vector<1x32xf32>
    %210 = math.tanh %209 : vector<1x32xf32>
    %211 = arith.mulf %206, %210 : vector<1x32xf32>
    %212 = arith.index_cast %c2_i32_59 : i32 to index
    %c0_63 = arith.constant 0 : index
    %213 = vector.load %arg5[%212, %c0_63] : memref<8x32xf32, #tpu.memory_space<vmem>>, vector<1x32xf32>
    tpu.vector_store %arg5[%212, %c0_63], %211 {strides = array<i32>} : memref<8x32xf32, #tpu.memory_space<vmem>>, vector<1x32xf32>,
    %c3_i32_64 = arith.constant 3 : i32
    %214 = arith.index_cast %c3_i32_64 : i32 to index
    %c0_65 = arith.constant 0 : index
    %215 = vector.load %arg4[%214, %c0_65] : memref<8x128xf32, #tpu.memory_space<vmem>>, vector<1x128xf32>
    %cst_66 = arith.constant dense<0.000000e+00> : vector<1x128xf32>
    %216 = tpu.matmul %211, %148, %cst_66 {dimension_numbers = #tpu.dot_dimension_numbers<[1], [0], [0], [1], [0, 0, 1, 1], [], []>, precision = #tpu.contract_precision<fp32>} : vector<1x32xf32>, vector<32x128xf32>, vector<1x128xf32> -> vector<1x128xf32>
    %217 = arith.addf %215, %216 : vector<1x128xf32>
    %218 = arith.negf %217 : vector<1x128xf32>
    %219 = math.exp %218 : vector<1x128xf32>
    %cst_67 = arith.constant 1.000000e+00 : f32
    %220 = vector.broadcast %cst_67 : f32 to vector<1x128xf32>
    %221 = arith.addf %220, %219 : vector<1x128xf32>
    %222 = arith.divf %220, %221 : vector<1x128xf32>
    %223 = math.tanh %217 : vector<1x128xf32>
    %224 = vector.extract_strided_slice %222 {offsets = [0, 0], sizes = [1, 32], strides = [1, 1]} : vector<1x128xf32> to vector<1x32xf32>
    %225 = vector.extract_strided_slice %222 {offsets = [0, 32], sizes = [1, 32], strides = [1, 1]} : vector<1x128xf32> to vector<1x32xf32>
    %226 = vector.extract_strided_slice %223 {offsets = [0, 64], sizes = [1, 32], strides = [1, 1]} : vector<1x128xf32> to vector<1x32xf32>
    %227 = vector.extract_strided_slice %222 {offsets = [0, 96], sizes = [1, 32], strides = [1, 1]} : vector<1x128xf32> to vector<1x32xf32>
    %228 = arith.mulf %225, %209 : vector<1x32xf32>
    %229 = arith.mulf %224, %226 : vector<1x32xf32>
    %230 = arith.addf %228, %229 : vector<1x32xf32>
    %231 = math.tanh %230 : vector<1x32xf32>
    %232 = arith.mulf %227, %231 : vector<1x32xf32>
    %233 = arith.index_cast %c3_i32_64 : i32 to index
    %c0_68 = arith.constant 0 : index
    %234 = vector.load %arg5[%233, %c0_68] : memref<8x32xf32, #tpu.memory_space<vmem>>, vector<1x32xf32>
    tpu.vector_store %arg5[%233, %c0_68], %232 {strides = array<i32>} : memref<8x32xf32, #tpu.memory_space<vmem>>, vector<1x32xf32>,
    %c4_i32_69 = arith.constant 4 : i32
    %235 = arith.index_cast %c4_i32_69 : i32 to index
    %c0_70 = arith.constant 0 : index
    %236 = vector.load %arg4[%235, %c0_70] : memref<8x128xf32, #tpu.memory_space<vmem>>, vector<1x128xf32>
    %cst_71 = arith.constant dense<0.000000e+00> : vector<1x128xf32>
    %237 = tpu.matmul %232, %148, %cst_71 {dimension_numbers = #tpu.dot_dimension_numbers<[1], [0], [0], [1], [0, 0, 1, 1], [], []>, precision = #tpu.contract_precision<fp32>} : vector<1x32xf32>, vector<32x128xf32>, vector<1x128xf32> -> vector<1x128xf32>
    %238 = arith.addf %236, %237 : vector<1x128xf32>
    %239 = arith.negf %238 : vector<1x128xf32>
    %240 = math.exp %239 : vector<1x128xf32>
    %cst_72 = arith.constant 1.000000e+00 : f32
    %241 = vector.broadcast %cst_72 : f32 to vector<1x128xf32>
    %242 = arith.addf %241, %240 : vector<1x128xf32>
    %243 = arith.divf %241, %242 : vector<1x128xf32>
    %244 = math.tanh %238 : vector<1x128xf32>
    %245 = vector.extract_strided_slice %243 {offsets = [0, 0], sizes = [1, 32], strides = [1, 1]} : vector<1x128xf32> to vector<1x32xf32>
    %246 = vector.extract_strided_slice %243 {offsets = [0, 32], sizes = [1, 32], strides = [1, 1]} : vector<1x128xf32> to vector<1x32xf32>
    %247 = vector.extract_strided_slice %244 {offsets = [0, 64], sizes = [1, 32], strides = [1, 1]} : vector<1x128xf32> to vector<1x32xf32>
    %248 = vector.extract_strided_slice %243 {offsets = [0, 96], sizes = [1, 32], strides = [1, 1]} : vector<1x128xf32> to vector<1x32xf32>
    %249 = arith.mulf %246, %230 : vector<1x32xf32>
    %250 = arith.mulf %245, %247 : vector<1x32xf32>
    %251 = arith.addf %249, %250 : vector<1x32xf32>
    %252 = math.tanh %251 : vector<1x32xf32>
    %253 = arith.mulf %248, %252 : vector<1x32xf32>
    %254 = arith.index_cast %c4_i32_69 : i32 to index
    %c0_73 = arith.constant 0 : index
    %255 = vector.load %arg5[%254, %c0_73] : memref<8x32xf32, #tpu.memory_space<vmem>>, vector<1x32xf32>
    tpu.vector_store %arg5[%254, %c0_73], %253 {strides = array<i32>} : memref<8x32xf32, #tpu.memory_space<vmem>>, vector<1x32xf32>,
    %c5_i32_74 = arith.constant 5 : i32
    %256 = arith.index_cast %c5_i32_74 : i32 to index
    %c0_75 = arith.constant 0 : index
    %257 = vector.load %arg4[%256, %c0_75] : memref<8x128xf32, #tpu.memory_space<vmem>>, vector<1x128xf32>
    %cst_76 = arith.constant dense<0.000000e+00> : vector<1x128xf32>
    %258 = tpu.matmul %253, %148, %cst_76 {dimension_numbers = #tpu.dot_dimension_numbers<[1], [0], [0], [1], [0, 0, 1, 1], [], []>, precision = #tpu.contract_precision<fp32>} : vector<1x32xf32>, vector<32x128xf32>, vector<1x128xf32> -> vector<1x128xf32>
    %259 = arith.addf %257, %258 : vector<1x128xf32>
    %260 = arith.negf %259 : vector<1x128xf32>
    %261 = math.exp %260 : vector<1x128xf32>
    %cst_77 = arith.constant 1.000000e+00 : f32
    %262 = vector.broadcast %cst_77 : f32 to vector<1x128xf32>
    %263 = arith.addf %262, %261 : vector<1x128xf32>
    %264 = arith.divf %262, %263 : vector<1x128xf32>
    %265 = math.tanh %259 : vector<1x128xf32>
    %266 = vector.extract_strided_slice %264 {offsets = [0, 0], sizes = [1, 32], strides = [1, 1]} : vector<1x128xf32> to vector<1x32xf32>
    %267 = vector.extract_strided_slice %264 {offsets = [0, 32], sizes = [1, 32], strides = [1, 1]} : vector<1x128xf32> to vector<1x32xf32>
    %268 = vector.extract_strided_slice %265 {offsets = [0, 64], sizes = [1, 32], strides = [1, 1]} : vector<1x128xf32> to vector<1x32xf32>
    %269 = vector.extract_strided_slice %264 {offsets = [0, 96], sizes = [1, 32], strides = [1, 1]} : vector<1x128xf32> to vector<1x32xf32>
    %270 = arith.mulf %267, %251 : vector<1x32xf32>
    %271 = arith.mulf %266, %268 : vector<1x32xf32>
    %272 = arith.addf %270, %271 : vector<1x32xf32>
    %273 = math.tanh %272 : vector<1x32xf32>
    %274 = arith.mulf %269, %273 : vector<1x32xf32>
    %275 = arith.index_cast %c5_i32_74 : i32 to index
    %c0_78 = arith.constant 0 : index
    %276 = vector.load %arg5[%275, %c0_78] : memref<8x32xf32, #tpu.memory_space<vmem>>, vector<1x32xf32>
    tpu.vector_store %arg5[%275, %c0_78], %274 {strides = array<i32>} : memref<8x32xf32, #tpu.memory_space<vmem>>, vector<1x32xf32>,
    %c6_i32_79 = arith.constant 6 : i32
    %277 = arith.index_cast %c6_i32_79 : i32 to index
    %c0_80 = arith.constant 0 : index
    %278 = vector.load %arg4[%277, %c0_80] : memref<8x128xf32, #tpu.memory_space<vmem>>, vector<1x128xf32>
    %cst_81 = arith.constant dense<0.000000e+00> : vector<1x128xf32>
    %279 = tpu.matmul %274, %148, %cst_81 {dimension_numbers = #tpu.dot_dimension_numbers<[1], [0], [0], [1], [0, 0, 1, 1], [], []>, precision = #tpu.contract_precision<fp32>} : vector<1x32xf32>, vector<32x128xf32>, vector<1x128xf32> -> vector<1x128xf32>
    %280 = arith.addf %278, %279 : vector<1x128xf32>
    %281 = arith.negf %280 : vector<1x128xf32>
    %282 = math.exp %281 : vector<1x128xf32>
    %cst_82 = arith.constant 1.000000e+00 : f32
    %283 = vector.broadcast %cst_82 : f32 to vector<1x128xf32>
    %284 = arith.addf %283, %282 : vector<1x128xf32>
    %285 = arith.divf %283, %284 : vector<1x128xf32>
    %286 = math.tanh %280 : vector<1x128xf32>
    %287 = vector.extract_strided_slice %285 {offsets = [0, 0], sizes = [1, 32], strides = [1, 1]} : vector<1x128xf32> to vector<1x32xf32>
    %288 = vector.extract_strided_slice %285 {offsets = [0, 32], sizes = [1, 32], strides = [1, 1]} : vector<1x128xf32> to vector<1x32xf32>
    %289 = vector.extract_strided_slice %286 {offsets = [0, 64], sizes = [1, 32], strides = [1, 1]} : vector<1x128xf32> to vector<1x32xf32>
    %290 = vector.extract_strided_slice %285 {offsets = [0, 96], sizes = [1, 32], strides = [1, 1]} : vector<1x128xf32> to vector<1x32xf32>
    %291 = arith.mulf %288, %272 : vector<1x32xf32>
    %292 = arith.mulf %287, %289 : vector<1x32xf32>
    %293 = arith.addf %291, %292 : vector<1x32xf32>
    %294 = math.tanh %293 : vector<1x32xf32>
    %295 = arith.mulf %290, %294 : vector<1x32xf32>
    %296 = arith.index_cast %c6_i32_79 : i32 to index
    %c0_83 = arith.constant 0 : index
    %297 = vector.load %arg5[%296, %c0_83] : memref<8x32xf32, #tpu.memory_space<vmem>>, vector<1x32xf32>
    tpu.vector_store %arg5[%296, %c0_83], %295 {strides = array<i32>} : memref<8x32xf32, #tpu.memory_space<vmem>>, vector<1x32xf32>,
    %c7_i32 = arith.constant 7 : i32
    %298 = arith.index_cast %c7_i32 : i32 to index
    %c0_84 = arith.constant 0 : index
    %299 = vector.load %arg4[%298, %c0_84] : memref<8x128xf32, #tpu.memory_space<vmem>>, vector<1x128xf32>
    %cst_85 = arith.constant dense<0.000000e+00> : vector<1x128xf32>
    %300 = tpu.matmul %295, %148, %cst_85 {dimension_numbers = #tpu.dot_dimension_numbers<[1], [0], [0], [1], [0, 0, 1, 1], [], []>, precision = #tpu.contract_precision<fp32>} : vector<1x32xf32>, vector<32x128xf32>, vector<1x128xf32> -> vector<1x128xf32>
    %301 = arith.addf %299, %300 : vector<1x128xf32>
    %302 = arith.negf %301 : vector<1x128xf32>
    %303 = math.exp %302 : vector<1x128xf32>
    %cst_86 = arith.constant 1.000000e+00 : f32
    %304 = vector.broadcast %cst_86 : f32 to vector<1x128xf32>
    %305 = arith.addf %304, %303 : vector<1x128xf32>
    %306 = arith.divf %304, %305 : vector<1x128xf32>
    %307 = math.tanh %301 : vector<1x128xf32>
    %308 = vector.extract_strided_slice %306 {offsets = [0, 0], sizes = [1, 32], strides = [1, 1]} : vector<1x128xf32> to vector<1x32xf32>
    %309 = vector.extract_strided_slice %306 {offsets = [0, 32], sizes = [1, 32], strides = [1, 1]} : vector<1x128xf32> to vector<1x32xf32>
    %310 = vector.extract_strided_slice %307 {offsets = [0, 64], sizes = [1, 32], strides = [1, 1]} : vector<1x128xf32> to vector<1x32xf32>
    %311 = vector.extract_strided_slice %306 {offsets = [0, 96], sizes = [1, 32], strides = [1, 1]} : vector<1x128xf32> to vector<1x32xf32>
    %312 = arith.mulf %309, %293 : vector<1x32xf32>
    %313 = arith.mulf %308, %310 : vector<1x32xf32>
    %314 = arith.addf %312, %313 : vector<1x32xf32>
    %315 = math.tanh %314 : vector<1x32xf32>
    %316 = arith.mulf %311, %315 : vector<1x32xf32>
    %317 = arith.index_cast %c7_i32 : i32 to index
    %c0_87 = arith.constant 0 : index
    %318 = vector.load %arg5[%317, %c0_87] : memref<8x32xf32, #tpu.memory_space<vmem>>, vector<1x32xf32>
    tpu.vector_store %arg5[%317, %c0_87], %316 {strides = array<i32>} : memref<8x32xf32, #tpu.memory_space<vmem>>, vector<1x32xf32>,
    %c8_i32_88 = arith.constant 8 : i32
    %c152 = arith.constant 152 : index
    %c0_89 = arith.constant 0 : index
    %319 = vector.load %arg1[%c152, %c0_89] : memref<192x128xf32, #tpu.memory_space<vmem>>, vector<32x128xf32>
    %c184 = arith.constant 184 : index
    %c0_90 = arith.constant 0 : index
    %320 = vector.load %arg1[%c184, %c0_90] : memref<192x128xf32, #tpu.memory_space<vmem>>, vector<1x128xf32>
    %c0_91 = arith.constant 0 : index
    %c0_92 = arith.constant 0 : index
    %321 = vector.load %arg5[%c0_91, %c0_92] : memref<8x32xf32, #tpu.memory_space<vmem>>, vector<8x32xf32>
    %cst_93 = arith.constant dense<0.000000e+00> : vector<8x128xf32>
    %322 = tpu.matmul %321, %319, %cst_93 {dimension_numbers = #tpu.dot_dimension_numbers<[1], [0], [0], [1], [0, 0, 1, 1], [], []>, precision = #tpu.contract_precision<fp32>} : vector<8x32xf32>, vector<32x128xf32>, vector<8x128xf32> -> vector<8x128xf32>
    %323 = vector.broadcast %320 : vector<1x128xf32> to vector<8x128xf32>
    %324 = arith.addf %322, %323 : vector<8x128xf32>
    %cst_94 = arith.constant dense<0xFF800000> : vector<8xf32>
    %325 = vector.multi_reduction <maximumf>, %324, %cst_94 [1] : vector<8x128xf32> to vector<8xf32>
    %326 = vector.shape_cast %325 : vector<8xf32> to vector<8x1xf32>
    %327 = vector.broadcast %326 : vector<8x1xf32> to vector<8x128xf32>
    %328 = arith.subf %324, %327 : vector<8x128xf32>
    %329 = math.exp %328 : vector<8x128xf32>
    %cst_95 = arith.constant dense<0.000000e+00> : vector<8xf32>
    %330 = vector.multi_reduction <add>, %329, %cst_95 [1] : vector<8x128xf32> to vector<8xf32>
    %331 = vector.shape_cast %330 : vector<8xf32> to vector<8x1xf32>
    %332 = math.log %331 : vector<8x1xf32>
    %333 = vector.broadcast %332 : vector<8x1xf32> to vector<8x128xf32>
    %334 = arith.subf %328, %333 : vector<8x128xf32>
    %c0_96 = arith.constant 0 : index
    %c0_97 = arith.constant 0 : index
    %335 = vector.load %arg2[%c0_96, %c0_97] : memref<8x128xf32, #tpu.memory_space<vmem>>, vector<8x128xf32>
    tpu.vector_store %arg2[%c0_96, %c0_97], %334 {strides = array<i32>} : memref<8x128xf32, #tpu.memory_space<vmem>>, vector<8x128xf32>,
    return
  }
}

</mosaic_0001>

<llo_original>
// kernel: fwd.1
$region0: #{fwd.1}
  #allocation0 [shape = 'u32[]', space=smem, size = 0x4, offset = 0x4, fixed_abs, tag = 'smem constant byte address 0x4 - core index']
  #allocation1 [shape = 'u32[144,128]{1,0:T(1,128)}', space=vmem, size = 0x12000, scoped, tag = 'internal scratch']
  #allocation2 [shape = 'f32[48,128]{1,0:T(8,128)}', space=vmem, size = 0x6000, scoped, tag = 'scratch operand']
  #allocation3 [shape = 'f32[8,128]{1,0:T(8,128)}', space=vmem, size = 0x1000, scoped, tag = 'scratch operand']
  #allocation4 [shape = 'f32[8,32]{1,0:T(8,128)}', space=vmem, size = 0x1000, scoped, tag = 'scratch operand']
  %s0 = inlined_call_operand.vmem [shape: s32[56,1], index: 0, kind: input, shape index: {}]
  %s1 = inlined_call_operand.hbm [shape: f32[192,128], index: 1, kind: input, shape index: {}]
  %s2 = inlined_call_operand.hbm [shape: f32[8,128], index: 2, kind: output, shape index: {}]
  %s3 = sld [smem:[#allocation0]]
  $region22: #{fwd.1} parent=0
    _
  %s5 = ssub.s32 1, %s3
  %s6 = scalar_select 0, %s5, %s3
  $region1: #{fwd.1} parent=0
    #allocation5 [shape = 'u8[98304]{0}', space=vmem, size = 0x18000, scoped, tag = 'input window, operand 1, single buffered']
    #allocation6 [shape = 's32[1]{0}', space=sflag, size = 0x4, scoped, tag = 'scoped memory for fwd.1']
    #allocation7 [shape = 's32[1]{0}', space=sflag, size = 0x4, scoped, tag = 'scoped memory for fwd.1']
    #allocation8 [shape = 'u8[4096]{0}', space=vmem, size = 0x1000, scoped, tag = 'output window, operand 0, single buffered']
    %7 = vsyncpa [#allocation6], 0
    %8 = vsyncpa [#allocation7], 0
    // Predicated region
    $region2: #{fwd.1} parent=1 // pred_check
      _
    $region3: #{fwd.1} parent=1 // pred_check_branch
      %10 = sbr.rel (0) target = $region5
    $region4: #{fwd.1} parent=1 // pred_region
      _
    $region5: #{fwd.1} parent=1 // pred_fallthru
      _
    // Predicated region
    $region6: #{fwd.1} parent=1 // pred_check
      _
    $region7: #{fwd.1} parent=1 // pred_check_branch
      %12 = sbr.rel (0) target = $region9
    $region8: #{fwd.1} parent=1 // pred_region
      %s14 = ssub.s32 3072, 3072
      %15 = vsyncadd [#allocation6], %s14
      %s16 = sshll.u32 [#allocation5], 4
      %s17 = int_to_ptr.vmem [resolvable:$true] %s16
      %22 = dma.hbm_to_vmem [thread:$0]  %s1, 3072, %s17, [#allocation6], 128, 128, 8
    $region9: #{fwd.1} parent=1 // pred_fallthru
      _
    // Predicated region
    $region10: #{fwd.1} parent=1 // pred_check
      _
    $region11: #{fwd.1} parent=1 // pred_check_branch
      %24 = sbr.rel (0) target = $region13
    $region12: #{fwd.1} parent=1 // pred_region
      %25 = dma.done [#allocation6], 3072
    $region13: #{fwd.1} parent=1 // pred_fallthru
      _
    %v26 = vld [vmem:[%s0 + $0x30] sm:$0xff]
    %v27 = vlaneseq
    %v28 = vand.u32 %v27, 127
    %29 = vset.pattern.permute.xlu0 0
    %30 = vperm.xlu0 %29, %v26
    %v31 = vpop.permute.xlu0 %30
    %vm32 = vcmp.eq.s32.totalorder %v31, %v28
    %v33 = vsel %vm32, 1.0, 0.0
    %v34 = vld [vmem:[#allocation5 + $0x20] sm:$0xff]
    %v35 = vld [vmem:[#allocation5 + $0x28] sm:$0xff]
    %v36 = vld [vmem:[#allocation5 + $0x30] sm:$0xff]
    %vm37 = vcmask 195584
    %v39 = vsel %vm37, %v33, 0
    %41 = vmatprep.subr.mxu0 0.0
    %v42 = vand.u32 %v34, 4294901760
    %43 = vmatpush1.msra.mxu0 %v42
    %44 = vmatprep.subr.mxu0 0.0
    %v45 = vand.u32 %v35, 4294901760
    %46 = vmatpush1.msra.mxu0 %v45
    %47 = vmatprep.subr.mxu0 0.0
    %v48 = vand.u32 %v36, 4294901760
    %49 = vmatpush1.msra.mxu0 %v48
    %50 = vmatprep.subr.mxu0 0.0
    %51 = vmatpush1.msra.mxu0 0.0
    %52 = vmatprep.subr.mxu0 0.0
    %53 = vmatpush1.msra.mxu0 0.0
    %54 = vmatprep.subr.mxu0 0.0
    %55 = vmatpush1.msra.mxu0 0.0
    %56 = vmatprep.subr.mxu0 0.0
    %57 = vmatpush1.msra.mxu0 0.0
    %58 = vmatprep.subr.mxu0 0.0
    %59 = vmatpush1.msra.mxu0 0.0
    %60 = vmatprep.subr.mxu0 0.0
    %61 = vmatpush1.msra.mxu0 0.0
    %62 = vmatprep.subr.mxu0 0.0
    %63 = vmatpush1.msra.mxu0 0.0
    %64 = vmatprep.subr.mxu0 0.0
    %65 = vmatpush1.msra.mxu0 0.0
    %66 = vmatprep.subr.mxu0 0.0
    %67 = vmatpush1.msra.mxu0 0.0
    %68 = vmatprep.subr.mxu0 0.0
    %69 = vmatpush1.msra.mxu0 0.0
    %70 = vmatprep.subr.mxu0 0.0
    %71 = vmatpush1.msra.mxu0 0.0
    %72 = vmatprep.subr.mxu0 0.0
    %73 = vmatpush1.msra.mxu0 0.0
    %74 = vmatprep.subr.mxu0 0.0
    %75 = vmatpush1.msra.mxu0 0.0
    %76 = vmatprep.subr.mxu0 0.0
    %77 = vmatpush1.msra.mxu0 0.0
    %78 = vmatprep.subr.mxu0 0.0
    %79 = vmatpush1.msra.mxu0 0.0
    %80 = vmatprep.subr.mxu0 0.0
    %81 = vmatpush1.msra.mxu0 0.0
    %82 = vmatprep.subr.mxu0 0.0
    %83 = vmatpush1.msra.mxu0 0.0
    %84 = vmatprep.subr.mxu0 0.0
    %85 = vmatpush1.msra.mxu0 0.0
    %86 = vmatprep.subr.mxu0 0.0
    %87 = vmatpush1.msra.mxu0 0.0
    %88 = vmatprep.subr.mxu0 0.0
    %89 = vmatpush1.msra.mxu0 0.0
    %90 = vmatprep.subr.mxu0 0.0
    %91 = vmatpush1.msra.mxu0 0.0
    %92 = vmatprep.subr.mxu0 0.0
    %93 = vmatpush1.msra.mxu0 0.0
    %94 = vmatprep.subr.mxu0 0.0
    %95 = vmatpush1.msra.mxu0 0.0
    %96 = vmatprep.subr.mxu0 0.0
    %97 = vmatpush1.msra.mxu0 0.0
    %98 = vmatprep.subr.mxu0 0.0
    %99 = vmatpush1.msra.mxu0 0.0
    %100 = vmatprep.subr.mxu0 0.0
    %101 = vmatpush1.msra.mxu0 0.0
    %102 = vmatprep.subr.mxu0 0.0
    %103 = vmatpush1.msra.mxu0 0.0
    %104 = vmatprep.subr.mxu0 0.0
    %105 = vmatpush1.msra.mxu0 0.0
    %106 = vmatprep.subr.mxu0 0.0
    %107 = vmatpush1.msra.mxu0 0.0
    %108 = vmatprep.mubr.f32.mxu0 0.0
    %v109 = vand.u32 %v39, 4294901760
    %v110 = vsub.f32 %v39, %v109
    %v111 = vand.u32 %v110, 4294901760
    %v112 = vsub.f32 %v110, %v111
    %v113 = vand.u32 %v112, 4294901760
    %114 = vmatmul.mubr.f32.gmra.mrb[0].mxu0 %v113
    %v115 = vpop.f32.mrb[0].mxu0
    %v116 = vadd.f32 0.0, %v115
    %v117 = vpop.f32.mrb[0].mxu0
    %118 = vdwg.mxu0
    %119 = vmatprep.subr.mxu0 0.0
    %v120 = vand.u32 %v34, 4294901760
    %v121 = vsub.f32 %v34, %v120
    %v122 = vand.u32 %v121, 4294901760
    %v123 = vsub.f32 %v121, %v122
    %v124 = vand.u32 %v123, 4294901760
    %125 = vmatpush1.msra.mxu0 %v124
    %126 = vmatprep.subr.mxu0 0.0
    %v127 = vand.u32 %v35, 4294901760
    %v128 = vsub.f32 %v35, %v127
    %v129 = vand.u32 %v128, 4294901760
    %v130 = vsub.f32 %v128, %v129
    %v131 = vand.u32 %v130, 4294901760
    %132 = vmatpush1.msra.mxu0 %v131
    %133 = vmatprep.subr.mxu0 0.0
    %v134 = vand.u32 %v36, 4294901760
    %v135 = vsub.f32 %v36, %v134
    %v136 = vand.u32 %v135, 4294901760
    %v137 = vsub.f32 %v135, %v136
    %v138 = vand.u32 %v137, 4294901760
    %139 = vmatpush1.msra.mxu0 %v138
    %140 = vmatprep.subr.mxu0 0.0
    %141 = vmatpush1.msra.mxu0 0.0
    %142 = vmatprep.subr.mxu0 0.0
    %143 = vmatpush1.msra.mxu0 0.0
    %144 = vmatprep.subr.mxu0 0.0
    %145 = vmatpush1.msra.mxu0 0.0
    %146 = vmatprep.subr.mxu0 0.0
    %147 = vmatpush1.msra.mxu0 0.0
    %148 = vmatprep.subr.mxu0 0.0
    %149 = vmatpush1.msra.mxu0 0.0
    %150 = vmatprep.subr.mxu0 0.0
    %151 = vmatpush1.msra.mxu0 0.0
    %152 = vmatprep.subr.mxu0 0.0
    %153 = vmatpush1.msra.mxu0 0.0
    %154 = vmatprep.subr.mxu0 0.0
    %155 = vmatpush1.msra.mxu0 0.0
    %156 = vmatprep.subr.mxu0 0.0
    %157 = vmatpush1.msra.mxu0 0.0
    %158 = vmatprep.subr.mxu0 0.0
    %159 = vmatpush1.msra.mxu0 0.0
    %160 = vmatprep.subr.mxu0 0.0
    %161 = vmatpush1.msra.mxu0 0.0
    %162 = vmatprep.subr.mxu0 0.0
    %163 = vmatpush1.msra.mxu0 0.0
    %164 = vmatprep.subr.mxu0 0.0
    %165 = vmatpush1.msra.mxu0 0.0
    %166 = vmatprep.subr.mxu0 0.0
    %167 = vmatpush1.msra.mxu0 0.0
    %168 = vmatprep.subr.mxu0 0.0
    %169 = vmatpush1.msra.mxu0 0.0
    %170 = vmatprep.subr.mxu0 0.0
    %171 = vmatpush1.msra.mxu0 0.0
    %172 = vmatprep.subr.mxu0 0.0
    %173 = vmatpush1.msra.mxu0 0.0
    %174 = vmatprep.subr.mxu0 0.0
    %175 = vmatpush1.msra.mxu0 0.0
    %176 = vmatprep.subr.mxu0 0.0
    %177 = vmatpush1.msra.mxu0 0.0
    %178 = vmatprep.subr.mxu0 0.0
    %179 = vmatpush1.msra.mxu0 0.0
    %180 = vmatprep.subr.mxu0 0.0
    %181 = vmatpush1.msra.mxu0 0.0
    %182 = vmatprep.subr.mxu0 0.0
    %183 = vmatpush1.msra.mxu0 0.0
    %184 = vmatprep.subr.mxu0 0.0
    %185 = vmatpush1.msra.mxu0 0.0
    %186 = vmatprep.subr.mxu0 0.0
    %187 = vmatpush1.msra.mxu0 0.0
    %188 = vmatprep.subr.mxu0 0.0
    %189 = vmatpush1.msra.mxu0 0.0
    %190 = vmatprep.subr.mxu0 0.0
    %191 = vmatpush1.msra.mxu0 0.0
    %192 = vmatprep.subr.mxu0 0.0
    %193 = vmatpush1.msra.mxu0 0.0
    %194 = vmatprep.subr.mxu0 0.0
    %195 = vmatpush1.msra.mxu0 0.0
    %196 = vmatprep.subr.mxu0 0.0
    %197 = vmatpush1.msra.mxu0 0.0
    %198 = vmatprep.mubr.f32.mxu0 0.0
    %v199 = vand.u32 %v39, 4294901760
    %200 = vmatmul.mubr.f32.gmra.mrb[0].mxu0 %v199
    %v201 = vpop.f32.mrb[0].mxu0
    %v202 = vadd.f32 %v116, %v201
    %v203 = vpop.f32.mrb[0].mxu0
    %204 = vdwg.mxu0
    %205 = vmatprep.subr.mxu0 0.0
    %v206 = vand.u32 %v34, 4294901760
    %v207 = vsub.f32 %v34, %v206
    %208 = vmatpush1.msra.mxu0 %v207
    %209 = vmatprep.subr.mxu0 0.0
    %v210 = vand.u32 %v35, 4294901760
    %v211 = vsub.f32 %v35, %v210
    %212 = vmatpush1.msra.mxu0 %v211
    %213 = vmatprep.subr.mxu0 0.0
    %v214 = vand.u32 %v36, 4294901760
    %v215 = vsub.f32 %v36, %v214
    %216 = vmatpush1.msra.mxu0 %v215
    %217 = vmatprep.subr.mxu0 0.0
    %218 = vmatpush1.msra.mxu0 0.0
    %219 = vmatprep.subr.mxu0 0.0
    %220 = vmatpush1.msra.mxu0 0.0
    %221 = vmatprep.subr.mxu0 0.0
    %222 = vmatpush1.msra.mxu0 0.0
    %223 = vmatprep.subr.mxu0 0.0
    %224 = vmatpush1.msra.mxu0 0.0
    %225 = vmatprep.subr.mxu0 0.0
    %226 = vmatpush1.msra.mxu0 0.0
    %227 = vmatprep.subr.mxu0 0.0
    %228 = vmatpush1.msra.mxu0 0.0
    %229 = vmatprep.subr.mxu0 0.0
    %230 = vmatpush1.msra.mxu0 0.0
    %231 = vmatprep.subr.mxu0 0.0
    %232 = vmatpush1.msra.mxu0 0.0
    %233 = vmatprep.subr.mxu0 0.0
    %234 = vmatpush1.msra.mxu0 0.0
    %235 = vmatprep.subr.mxu0 0.0
    %236 = vmatpush1.msra.mxu0 0.0
    %237 = vmatprep.subr.mxu0 0.0
    %238 = vmatpush1.msra.mxu0 0.0
    %239 = vmatprep.subr.mxu0 0.0
    %240 = vmatpush1.msra.mxu0 0.0
    %241 = vmatprep.subr.mxu0 0.0
    %242 = vmatpush1.msra.mxu0 0.0
    %243 = vmatprep.subr.mxu0 0.0
    %244 = vmatpush1.msra.mxu0 0.0
    %245 = vmatprep.subr.mxu0 0.0
    %246 = vmatpush1.msra.mxu0 0.0
    %247 = vmatprep.subr.mxu0 0.0
    %248 = vmatpush1.msra.mxu0 0.0
    %249 = vmatprep.subr.mxu0 0.0
    %250 = vmatpush1.msra.mxu0 0.0
    %251 = vmatprep.subr.mxu0 0.0
    %252 = vmatpush1.msra.mxu0 0.0
    %253 = vmatprep.subr.mxu0 0.0
    %254 = vmatpush1.msra.mxu0 0.0
    %255 = vmatprep.subr.mxu0 0.0
    %256 = vmatpush1.msra.mxu0 0.0
    %257 = vmatprep.subr.mxu0 0.0
    %258 = vmatpush1.msra.mxu0 0.0
    %259 = vmatprep.subr.mxu0 0.0
    %260 = vmatpush1.msra.mxu0 0.0
    %261 = vmatprep.subr.mxu0 0.0
    %262 = vmatpush1.msra.mxu0 0.0
    %263 = vmatprep.subr.mxu0 0.0
    %264 = vmatpush1.msra.mxu0 0.0
    %265 = vmatprep.subr.mxu0 0.0
    %266 = vmatpush1.msra.mxu0 0.0
    %267 = vmatprep.subr.mxu0 0.0
    %268 = vmatpush1.msra.mxu0 0.0
    %269 = vmatprep.subr.mxu0 0.0
    %270 = vmatpush1.msra.mxu0 0.0
    %271 = vmatprep.subr.mxu0 0.0
    %272 = vmatpush1.msra.mxu0 0.0
    %273 = vmatprep.subr.mxu0 0.0
    %274 = vmatpush1.msra.mxu0 0.0
    %275 = vmatprep.mubr.f32.mxu0 0.0
    %v276 = vand.u32 %v39, 4294901760
    %v277 = vsub.f32 %v39, %v276
    %278 = vmatmul.mubr.f32.gmra.mrb[0].mxu0 %v277
    %v279 = vpop.f32.mrb[0].mxu0
    %v280 = vadd.f32 %v202, %v279
    %v281 = vpop.f32.mrb[0].mxu0
    %282 = vdwg.mxu0
    %283 = vmatprep.subr.mxu0 0.0
    %v284 = vand.u32 %v34, 4294901760
    %285 = vmatpush1.msra.mxu0 %v284
    %286 = vmatprep.subr.mxu0 0.0
    %v287 = vand.u32 %v35, 4294901760
    %288 = vmatpush1.msra.mxu0 %v287
    %289 = vmatprep.subr.mxu0 0.0
    %v290 = vand.u32 %v36, 4294901760
    %291 = vmatpush1.msra.mxu0 %v290
    %292 = vmatprep.subr.mxu0 0.0
    %293 = vmatpush1.msra.mxu0 0.0
    %294 = vmatprep.subr.mxu0 0.0
    %295 = vmatpush1.msra.mxu0 0.0
    %296 = vmatprep.subr.mxu0 0.0
    %297 = vmatpush1.msra.mxu0 0.0
    %298 = vmatprep.subr.mxu0 0.0
    %299 = vmatpush1.msra.mxu0 0.0
    %300 = vmatprep.subr.mxu0 0.0
    %301 = vmatpush1.msra.mxu0 0.0
    %302 = vmatprep.subr.mxu0 0.0
    %303 = vmatpush1.msra.mxu0 0.0
    %304 = vmatprep.subr.mxu0 0.0
    %305 = vmatpush1.msra.mxu0 0.0
    %306 = vmatprep.subr.mxu0 0.0
    %307 = vmatpush1.msra.mxu0 0.0
    %308 = vmatprep.subr.mxu0 0.0
    %309 = vmatpush1.msra.mxu0 0.0
    %310 = vmatprep.subr.mxu0 0.0
    %311 = vmatpush1.msra.mxu0 0.0
    %312 = vmatprep.subr.mxu0 0.0
    %313 = vmatpush1.msra.mxu0 0.0
    %314 = vmatprep.subr.mxu0 0.0
    %315 = vmatpush1.msra.mxu0 0.0
    %316 = vmatprep.subr.mxu0 0.0
    %317 = vmatpush1.msra.mxu0 0.0
    %318 = vmatprep.subr.mxu0 0.0
    %319 = vmatpush1.msra.mxu0 0.0
    %320 = vmatprep.subr.mxu0 0.0
    %321 = vmatpush1.msra.mxu0 0.0
    %322 = vmatprep.subr.mxu0 0.0
    %323 = vmatpush1.msra.mxu0 0.0
    %324 = vmatprep.subr.mxu0 0.0
    %325 = vmatpush1.msra.mxu0 0.0
    %326 = vmatprep.subr.mxu0 0.0
    %327 = vmatpush1.msra.mxu0 0.0
    %328 = vmatprep.subr.mxu0 0.0
    %329 = vmatpush1.msra.mxu0 0.0
    %330 = vmatprep.subr.mxu0 0.0
    %331 = vmatpush1.msra.mxu0 0.0
    %332 = vmatprep.subr.mxu0 0.0
    %333 = vmatpush1.msra.mxu0 0.0
    %334 = vmatprep.subr.mxu0 0.0
    %335 = vmatpush1.msra.mxu0 0.0
    %336 = vmatprep.subr.mxu0 0.0
    %337 = vmatpush1.msra.mxu0 0.0
    %338 = vmatprep.subr.mxu0 0.0
    %339 = vmatpush1.msra.mxu0 0.0
    %340 = vmatprep.subr.mxu0 0.0
    %341 = vmatpush1.msra.mxu0 0.0
    %342 = vmatprep.subr.mxu0 0.0
    %343 = vmatpush1.msra.mxu0 0.0
    %344 = vmatprep.subr.mxu0 0.0
    %345 = vmatpush1.msra.mxu0 0.0
    %346 = vmatprep.subr.mxu0 0.0
    %347 = vmatpush1.msra.mxu0 0.0
    %348 = vmatprep.subr.mxu0 0.0
    %349 = vmatpush1.msra.mxu0 0.0
    %350 = vmatprep.mubr.f32.mxu0 0.0
    %v351 = vand.u32 %v39, 4294901760
    %v352 = vsub.f32 %v39, %v351
    %v353 = vand.u32 %v352, 4294901760
    %354 = vmatmul.mubr.f32.gmra.mrb[0].mxu0 %v353
    %v355 = vpop.f32.mrb[0].mxu0
    %v356 = vadd.f32 %v280, %v355
    %v357 = vpop.f32.mrb[0].mxu0
    %358 = vdwg.mxu0
    %359 = vmatprep.subr.mxu0 0.0
    %v360 = vand.u32 %v34, 4294901760
    %v361 = vsub.f32 %v34, %v360
    %v362 = vand.u32 %v361, 4294901760
    %363 = vmatpush1.msra.mxu0 %v362
    %364 = vmatprep.subr.mxu0 0.0
    %v365 = vand.u32 %v35, 4294901760
    %v366 = vsub.f32 %v35, %v365
    %v367 = vand.u32 %v366, 4294901760
    %368 = vmatpush1.msra.mxu0 %v367
    %369 = vmatprep.subr.mxu0 0.0
    %v370 = vand.u32 %v36, 4294901760
    %v371 = vsub.f32 %v36, %v370
    %v372 = vand.u32 %v371, 4294901760
    %373 = vmatpush1.msra.mxu0 %v372
    %374 = vmatprep.subr.mxu0 0.0
    %375 = vmatpush1.msra.mxu0 0.0
    %376 = vmatprep.subr.mxu0 0.0
    %377 = vmatpush1.msra.mxu0 0.0
    %378 = vmatprep.subr.mxu0 0.0
    %379 = vmatpush1.msra.mxu0 0.0
    %380 = vmatprep.subr.mxu0 0.0
    %381 = vmatpush1.msra.mxu0 0.0
    %382 = vmatprep.subr.mxu0 0.0
    %383 = vmatpush1.msra.mxu0 0.0
    %384 = vmatprep.subr.mxu0 0.0
    %385 = vmatpush1.msra.mxu0 0.0
    %386 = vmatprep.subr.mxu0 0.0
    %387 = vmatpush1.msra.mxu0 0.0
    %388 = vmatprep.subr.mxu0 0.0
    %389 = vmatpush1.msra.mxu0 0.0
    %390 = vmatprep.subr.mxu0 0.0
    %391 = vmatpush1.msra.mxu0 0.0
    %392 = vmatprep.subr.mxu0 0.0
    %393 = vmatpush1.msra.mxu0 0.0
    %394 = vmatprep.subr.mxu0 0.0
    %395 = vmatpush1.msra.mxu0 0.0
    %396 = vmatprep.subr.mxu0 0.0
    %397 = vmatpush1.msra.mxu0 0.0
    %398 = vmatprep.subr.mxu0 0.0
    %399 = vmatpush1.msra.mxu0 0.0
    %400 = vmatprep.subr.mxu0 0.0
    %401 = vmatpush1.msra.mxu0 0.0
    %402 = vmatprep.subr.mxu0 0.0
    %403 = vmatpush1.msra.mxu0 0.0
    %404 = vmatprep.subr.mxu0 0.0
    %405 = vmatpush1.msra.mxu0 0.0
    %406 = vmatprep.subr.mxu0 0.0
    %407 = vmatpush1.msra.mxu0 0.0
    %408 = vmatprep.subr.mxu0 0.0
    %409 = vmatpush1.msra.mxu0 0.0
    %410 = vmatprep.subr.mxu0 0.0
    %411 = vmatpush1.msra.mxu0 0.0
    %412 = vmatprep.subr.mxu0 0.0
    %413 = vmatpush1.msra.mxu0 0.0
    %414 = vmatprep.subr.mxu0 0.0
    %415 = vmatpush1.msra.mxu0 0.0
    %416 = vmatprep.subr.mxu0 0.0
    %417 = vmatpush1.msra.mxu0 0.0
    %418 = vmatprep.subr.mxu0 0.0
    %419 = vmatpush1.msra.mxu0 0.0
    %420 = vmatprep.subr.mxu0 0.0
    %421 = vmatpush1.msra.mxu0 0.0
    %422 = vmatprep.subr.mxu0 0.0
    %423 = vmatpush1.msra.mxu0 0.0
    %424 = vmatprep.subr.mxu0 0.0
    %425 = vmatpush1.msra.mxu0 0.0
    %426 = vmatprep.subr.mxu0 0.0
    %427 = vmatpush1.msra.mxu0 0.0
    %428 = vmatprep.subr.mxu0 0.0
    %429 = vmatpush1.msra.mxu0 0.0
    %430 = vmatprep.subr.mxu0 0.0
    %431 = vmatpush1.msra.mxu0 0.0
    %432 = vmatprep.mubr.f32.mxu0 0.0
    %v433 = vand.u32 %v39, 4294901760
    %434 = vmatmul.mubr.f32.gmra.mrb[0].mxu0 %v433
    %v435 = vpop.f32.mrb[0].mxu0
    %v436 = vadd.f32 %v356, %v435
    %v437 = vpop.f32.mrb[0].mxu0
    %438 = vdwg.mxu0
    %439 = vmatprep.subr.mxu0 0.0
    %v440 = vand.u32 %v34, 4294901760
    %441 = vmatpush1.msra.mxu0 %v440
    %442 = vmatprep.subr.mxu0 0.0
    %v443 = vand.u32 %v35, 4294901760
    %444 = vmatpush1.msra.mxu0 %v443
    %445 = vmatprep.subr.mxu0 0.0
    %v446 = vand.u32 %v36, 4294901760
    %447 = vmatpush1.msra.mxu0 %v446
    %448 = vmatprep.subr.mxu0 0.0
    %449 = vmatpush1.msra.mxu0 0.0
    %450 = vmatprep.subr.mxu0 0.0
    %451 = vmatpush1.msra.mxu0 0.0
    %452 = vmatprep.subr.mxu0 0.0
    %453 = vmatpush1.msra.mxu0 0.0
    %454 = vmatprep.subr.mxu0 0.0
    %455 = vmatpush1.msra.mxu0 0.0
    %456 = vmatprep.subr.mxu0 0.0
    %457 = vmatpush1.msra.mxu0 0.0
    %458 = vmatprep.subr.mxu0 0.0
    %459 = vmatpush1.msra.mxu0 0.0
    %460 = vmatprep.subr.mxu0 0.0
    %461 = vmatpush1.msra.mxu0 0.0
    %462 = vmatprep.subr.mxu0 0.0
    %463 = vmatpush1.msra.mxu0 0.0
    %464 = vmatprep.subr.mxu0 0.0
    %465 = vmatpush1.msra.mxu0 0.0
    %466 = vmatprep.subr.mxu0 0.0
    %467 = vmatpush1.msra.mxu0 0.0
    %468 = vmatprep.subr.mxu0 0.0
    %469 = vmatpush1.msra.mxu0 0.0
    %470 = vmatprep.subr.mxu0 0.0
    %471 = vmatpush1.msra.mxu0 0.0
    %472 = vmatprep.subr.mxu0 0.0
    %473 = vmatpush1.msra.mxu0 0.0
    %474 = vmatprep.subr.mxu0 0.0
    %475 = vmatpush1.msra.mxu0 0.0
    %476 = vmatprep.subr.mxu0 0.0
    %477 = vmatpush1.msra.mxu0 0.0
    %478 = vmatprep.subr.mxu0 0.0
    %479 = vmatpush1.msra.mxu0 0.0
    %480 = vmatprep.subr.mxu0 0.0
    %481 = vmatpush1.msra.mxu0 0.0
    %482 = vmatprep.subr.mxu0 0.0
    %483 = vmatpush1.msra.mxu0 0.0
    %484 = vmatprep.subr.mxu0 0.0
    %485 = vmatpush1.msra.mxu0 0.0
    %486 = vmatprep.subr.mxu0 0.0
    %487 = vmatpush1.msra.mxu0 0.0
    %488 = vmatprep.subr.mxu0 0.0
    %489 = vmatpush1.msra.mxu0 0.0
    %490 = vmatprep.subr.mxu0 0.0
    %491 = vmatpush1.msra.mxu0 0.0
    %492 = vmatprep.subr.mxu0 0.0
    %493 = vmatpush1.msra.mxu0 0.0
    %494 = vmatprep.subr.mxu0 0.0
    %495 = vmatpush1.msra.mxu0 0.0
    %496 = vmatprep.subr.mxu0 0.0
    %497 = vmatpush1.msra.mxu0 0.0
    %498 = vmatprep.subr.mxu0 0.0
    %499 = vmatpush1.msra.mxu0 0.0
    %500 = vmatprep.subr.mxu0 0.0
    %501 = vmatpush1.msra.mxu0 0.0
    %502 = vmatprep.subr.mxu0 0.0
    %503 = vmatpush1.msra.mxu0 0.0
    %504 = vmatprep.subr.mxu0 0.0
    %505 = vmatpush1.msra.mxu0 0.0
    %506 = vmatprep.mubr.f32.mxu0 0.0
    %v507 = vand.u32 %v39, 4294901760
    %508 = vmatmul.mubr.f32.gmra.mrb[0].mxu0 %v507
    %v509 = vpop.f32.mrb[0].mxu0
    %v510 = vadd.f32 %v436, %v509
    %v511 = vpop.f32.mrb[0].mxu0
    %512 = vdwg.mxu0
    %513 = vst [vmem:[#allocation3] sm:$0xff] %v510
    %v514 = vld [vmem:[%s0] sm:$0xff]
    %v515 = vld [vmem:[%s0 + $0x8] sm:$0xff]
    %v516 = vld [vmem:[%s0 + $0x10] sm:$0xff]
    %v517 = vld [vmem:[%s0 + $0x18] sm:$0xff]
    %v518 = vld [vmem:[%s0 + $0x20] sm:$0xff]
    %v519 = vld [vmem:[%s0 + $0x28] sm:$0xff]
    %520 = vset.pattern.permute.xlu0 0
    %521 = vperm.xlu0 %520, %v514
    %v522 = vpop.permute.xlu0 %521
    %523 = vset.pattern.permute.xlu0 0
    %524 = vperm.xlu0 %523, %v515
    %v525 = vpop.permute.xlu0 %524
    %526 = vset.pattern.permute.xlu0 0
    %527 = vperm.xlu0 %526, %v516
    %v528 = vpop.permute.xlu0 %527
    %529 = vset.pattern.permute.xlu0 0
    %530 = vperm.xlu0 %529, %v517
    %v531 = vpop.permute.xlu0 %530
    %532 = vset.pattern.permute.xlu0 0
    %533 = vperm.xlu0 %532, %v518
    %v534 = vpop.permute.xlu0 %533
    %535 = vset.pattern.permute.xlu0 0
    %536 = vperm.xlu0 %535, %v519
    %v537 = vpop.permute.xlu0 %536
    %vm538 = vcmp.eq.s32.totalorder %v522, %v28
    %vm539 = vcmp.eq.s32.totalorder %v525, %v28
    %vm540 = vcmp.eq.s32.totalorder %v528, %v28
    %vm541 = vcmp.eq.s32.totalorder %v531, %v28
    %vm542 = vcmp.eq.s32.totalorder %v534, %v28
    %vm543 = vcmp.eq.s32.totalorder %v537, %v28
    %v544 = vsel %vm538, 1.0, 0.0
    %v545 = vsel %vm539, 1.0, 0.0
    %v546 = vsel %vm540, 1.0, 0.0
    %v547 = vsel %vm541, 1.0, 0.0
    %v548 = vsel %vm542, 1.0, 0.0
    %v549 = vsel %vm543, 1.0, 0.0
    %v550 = vld [vmem:[#allocation5] sm:$0xff]
    %v551 = vld [vmem:[#allocation5 + $0x8] sm:$0xff]
    %v552 = vld [vmem:[#allocation5 + $0x10] sm:$0xff]
    %v553 = vld [vmem:[#allocation5 + $0x18] sm:$0xff]
    %vm554 = vcmask 261120
    %v556 = vsel %vm554, %v544, 0
    %v559 = vsel %vm554, %v545, 0
    %v562 = vsel %vm554, %v546, 0
    %v565 = vsel %vm554, %v547, 0
    %v568 = vsel %vm554, %v548, 0
    %v571 = vsel %vm554, %v549, 0
    %573 = vmatprep.subr.mxu0 0.0
    %v574 = vand.u32 %v550, 4294901760
    %575 = vmatpush1.msra.mxu0 %v574
    %576 = vmatprep.subr.mxu0 0.0
    %v577 = vand.u32 %v551, 4294901760
    %578 = vmatpush1.msra.mxu0 %v577
    %579 = vmatprep.subr.mxu0 0.0
    %v580 = vand.u32 %v552, 4294901760
    %581 = vmatpush1.msra.mxu0 %v580
    %582 = vmatprep.subr.mxu0 0.0
    %v583 = vand.u32 %v553, 4294901760
    %584 = vmatpush1.msra.mxu0 %v583
    %585 = vmatprep.subr.mxu0 0.0
    %586 = vmatpush1.msra.mxu0 0.0
    %587 = vmatprep.subr.mxu0 0.0
    %588 = vmatpush1.msra.mxu0 0.0
    %589 = vmatprep.subr.mxu0 0.0
    %590 = vmatpush1.msra.mxu0 0.0
    %591 = vmatprep.subr.mxu0 0.0
    %592 = vmatpush1.msra.mxu0 0.0
    %593 = vmatprep.subr.mxu0 0.0
    %594 = vmatpush1.msra.mxu0 0.0
    %595 = vmatprep.subr.mxu0 0.0
    %596 = vmatpush1.msra.mxu0 0.0
    %597 = vmatprep.subr.mxu0 0.0
    %598 = vmatpush1.msra.mxu0 0.0
    %599 = vmatprep.subr.mxu0 0.0
    %600 = vmatpush1.msra.mxu0 0.0
    %601 = vmatprep.subr.mxu0 0.0
    %602 = vmatpush1.msra.mxu0 0.0
    %603 = vmatprep.subr.mxu0 0.0
    %604 = vmatpush1.msra.mxu0 0.0
    %605 = vmatprep.subr.mxu0 0.0
    %606 = vmatpush1.msra.mxu0 0.0
    %607 = vmatprep.subr.mxu0 0.0
    %608 = vmatpush1.msra.mxu0 0.0
    %609 = vmatprep.subr.mxu0 0.0
    %610 = vmatpush1.msra.mxu0 0.0
    %611 = vmatprep.subr.mxu0 0.0
    %612 = vmatpush1.msra.mxu0 0.0
    %613 = vmatprep.subr.mxu0 0.0
    %614 = vmatpush1.msra.mxu0 0.0
    %615 = vmatprep.subr.mxu0 0.0
    %616 = vmatpush1.msra.mxu0 0.0
    %617 = vmatprep.subr.mxu0 0.0
    %618 = vmatpush1.msra.mxu0 0.0
    %619 = vmatprep.subr.mxu0 0.0
    %620 = vmatpush1.msra.mxu0 0.0
    %621 = vmatprep.subr.mxu0 0.0
    %622 = vmatpush1.msra.mxu0 0.0
    %623 = vmatprep.subr.mxu0 0.0
    %624 = vmatpush1.msra.mxu0 0.0
    %625 = vmatprep.subr.mxu0 0.0
    %626 = vmatpush1.msra.mxu0 0.0
    %627 = vmatprep.subr.mxu0 0.0
    %628 = vmatpush1.msra.mxu0 0.0
    %629 = vmatprep.subr.mxu0 0.0
    %630 = vmatpush1.msra.mxu0 0.0
    %631 = vmatprep.subr.mxu0 0.0
    %632 = vmatpush1.msra.mxu0 0.0
    %633 = vmatprep.subr.mxu0 0.0
    %634 = vmatpush1.msra.mxu0 0.0
    %635 = vmatprep.subr.mxu0 0.0
    %636 = vmatpush1.msra.mxu0 0.0
    %637 = vmatprep.subr.mxu0 0.0
    %638 = vmatpush1.msra.mxu0 0.0
    %639 = vmatprep.subr.mxu0 0.0
    %640 = vmatpush1.msra.mxu0 0.0
    %641 = vmatprep.mubr.f32.mxu0 0.0
    %v642 = vand.u32 %v556, 4294901760
    %v643 = vsub.f32 %v556, %v642
    %v644 = vand.u32 %v643, 4294901760
    %v645 = vsub.f32 %v643, %v644
    %v646 = vand.u32 %v645, 4294901760
    %647 = vmatmul.mubr.f32.gmra.mrb[0].mxu0 %v646
    %v648 = vpop.f32.mrb[0].mxu0
    %v649 = vadd.f32 0.0, %v648
    %v650 = vpop.f32.mrb[0].mxu0
    %651 = vmatprep.mubr.f32.mxu0 0.0
    %v652 = vand.u32 %v559, 4294901760
    %v653 = vsub.f32 %v559, %v652
    %v654 = vand.u32 %v653, 4294901760
    %v655 = vsub.f32 %v653, %v654
    %v656 = vand.u32 %v655, 4294901760
    %657 = vmatmul.mubr.f32.gmra.mrb[0].mxu0 %v656
    %v658 = vpop.f32.mrb[0].mxu0
    %v659 = vadd.f32 0.0, %v658
    %v660 = vpop.f32.mrb[0].mxu0
    %661 = vmatprep.mubr.f32.mxu0 0.0
    %v662 = vand.u32 %v562, 4294901760
    %v663 = vsub.f32 %v562, %v662
    %v664 = vand.u32 %v663, 4294901760
    %v665 = vsub.f32 %v663, %v664
    %v666 = vand.u32 %v665, 4294901760
    %667 = vmatmul.mubr.f32.gmra.mrb[0].mxu0 %v666
    %v668 = vpop.f32.mrb[0].mxu0
    %v669 = vadd.f32 0.0, %v668
    %v670 = vpop.f32.mrb[0].mxu0
    %671 = vmatprep.mubr.f32.mxu0 0.0
    %v672 = vand.u32 %v565, 4294901760
    %v673 = vsub.f32 %v565, %v672
    %v674 = vand.u32 %v673, 4294901760
    %v675 = vsub.f32 %v673, %v674
    %v676 = vand.u32 %v675, 4294901760
    %677 = vmatmul.mubr.f32.gmra.mrb[0].mxu0 %v676
    %v678 = vpop.f32.mrb[0].mxu0
    %v679 = vadd.f32 0.0, %v678
    %v680 = vpop.f32.mrb[0].mxu0
    %681 = vmatprep.mubr.f32.mxu0 0.0
    %v682 = vand.u32 %v568, 4294901760
    %v683 = vsub.f32 %v568, %v682
    %v684 = vand.u32 %v683, 4294901760
    %v685 = vsub.f32 %v683, %v684
    %v686 = vand.u32 %v685, 4294901760
    %687 = vmatmul.mubr.f32.gmra.mrb[0].mxu0 %v686
    %v688 = vpop.f32.mrb[0].mxu0
    %v689 = vadd.f32 0.0, %v688
    %v690 = vpop.f32.mrb[0].mxu0
    %691 = vmatprep.mubr.f32.mxu0 0.0
    %v692 = vand.u32 %v571, 4294901760
    %v693 = vsub.f32 %v571, %v692
    %v694 = vand.u32 %v693, 4294901760
    %v695 = vsub.f32 %v693, %v694
    %v696 = vand.u32 %v695, 4294901760
    %697 = vmatmul.mubr.f32.gmra.mrb[0].mxu0 %v696
    %v698 = vpop.f32.mrb[0].mxu0
    %v699 = vadd.f32 0.0, %v698
    %v700 = vpop.f32.mrb[0].mxu0
    %701 = vdwg.mxu0
    %702 = vmatprep.subr.mxu0 0.0
    %v703 = vand.u32 %v550, 4294901760
    %v704 = vsub.f32 %v550, %v703
    %v705 = vand.u32 %v704, 4294901760
    %v706 = vsub.f32 %v704, %v705
    %v707 = vand.u32 %v706, 4294901760
    %708 = vmatpush1.msra.mxu0 %v707
    %709 = vmatprep.subr.mxu0 0.0
    %v710 = vand.u32 %v551, 4294901760
    %v711 = vsub.f32 %v551, %v710
    %v712 = vand.u32 %v711, 4294901760
    %v713 = vsub.f32 %v711, %v712
    %v714 = vand.u32 %v713, 4294901760
    %715 = vmatpush1.msra.mxu0 %v714
    %716 = vmatprep.subr.mxu0 0.0
    %v717 = vand.u32 %v552, 4294901760
    %v718 = vsub.f32 %v552, %v717
    %v719 = vand.u32 %v718, 4294901760
    %v720 = vsub.f32 %v718, %v719
    %v721 = vand.u32 %v720, 4294901760
    %722 = vmatpush1.msra.mxu0 %v721
    %723 = vmatprep.subr.mxu0 0.0
    %v724 = vand.u32 %v553, 4294901760
    %v725 = vsub.f32 %v553, %v724
    %v726 = vand.u32 %v725, 4294901760
    %v727 = vsub.f32 %v725, %v726
    %v728 = vand.u32 %v727, 4294901760
    %729 = vmatpush1.msra.mxu0 %v728
    %730 = vmatprep.subr.mxu0 0.0
    %731 = vmatpush1.msra.mxu0 0.0
    %732 = vmatprep.subr.mxu0 0.0
    %733 = vmatpush1.msra.mxu0 0.0
    %734 = vmatprep.subr.mxu0 0.0
    %735 = vmatpush1.msra.mxu0 0.0
    %736 = vmatprep.subr.mxu0 0.0
    %737 = vmatpush1.msra.mxu0 0.0
    %738 = vmatprep.subr.mxu0 0.0
    %739 = vmatpush1.msra.mxu0 0.0
    %740 = vmatprep.subr.mxu0 0.0
    %741 = vmatpush1.msra.mxu0 0.0
    %742 = vmatprep.subr.mxu0 0.0
    %743 = vmatpush1.msra.mxu0 0.0
    %744 = vmatprep.subr.mxu0 0.0
    %745 = vmatpush1.msra.mxu0 0.0
    %746 = vmatprep.subr.mxu0 0.0
    %747 = vmatpush1.msra.mxu0 0.0
    %748 = vmatprep.subr.mxu0 0.0
    %749 = vmatpush1.msra.mxu0 0.0
    %750 = vmatprep.subr.mxu0 0.0
    %751 = vmatpush1.msra.mxu0 0.0
    %752 = vmatprep.subr.mxu0 0.0
    %753 = vmatpush1.msra.mxu0 0.0
    %754 = vmatprep.subr.mxu0 0.0
    %755 = vmatpush1.msra.mxu0 0.0
    %756 = vmatprep.subr.mxu0 0.0
    %757 = vmatpush1.msra.mxu0 0.0
    %758 = vmatprep.subr.mxu0 0.0
    %759 = vmatpush1.msra.mxu0 0.0
    %760 = vmatprep.subr.mxu0 0.0
    %761 = vmatpush1.msra.mxu0 0.0
    %762 = vmatprep.subr.mxu0 0.0
    %763 = vmatpush1.msra.mxu0 0.0
    %764 = vmatprep.subr.mxu0 0.0
    %765 = vmatpush1.msra.mxu0 0.0
    %766 = vmatprep.subr.mxu0 0.0
    %767 = vmatpush1.msra.mxu0 0.0
    %768 = vmatprep.subr.mxu0 0.0
    %769 = vmatpush1.msra.mxu0 0.0
    %770 = vmatprep.subr.mxu0 0.0
    %771 = vmatpush1.msra.mxu0 0.0
    %772 = vmatprep.subr.mxu0 0.0
    %773 = vmatpush1.msra.mxu0 0.0
    %774 = vmatprep.subr.mxu0 0.0
    %775 = vmatpush1.msra.mxu0 0.0
    %776 = vmatprep.subr.mxu0 0.0
    %777 = vmatpush1.msra.mxu0 0.0
    %778 = vmatprep.subr.mxu0 0.0
    %779 = vmatpush1.msra.mxu0 0.0
    %780 = vmatprep.subr.mxu0 0.0
    %781 = vmatpush1.msra.mxu0 0.0
    %782 = vmatprep.subr.mxu0 0.0
    %783 = vmatpush1.msra.mxu0 0.0
    %784 = vmatprep.subr.mxu0 0.0
    %785 = vmatpush1.msra.mxu0 0.0
    %786 = vmatprep.mubr.f32.mxu0 0.0
    %v787 = vand.u32 %v556, 4294901760
    %788 = vmatmul.mubr.f32.gmra.mrb[0].mxu0 %v787
    %v789 = vpop.f32.mrb[0].mxu0
    %v790 = vadd.f32 %v649, %v789
    %v791 = vpop.f32.mrb[0].mxu0
    %792 = vmatprep.mubr.f32.mxu0 0.0
    %v793 = vand.u32 %v559, 4294901760
    %794 = vmatmul.mubr.f32.gmra.mrb[0].mxu0 %v793
    %v795 = vpop.f32.mrb[0].mxu0
    %v796 = vadd.f32 %v659, %v795
    %v797 = vpop.f32.mrb[0].mxu0
    %798 = vmatprep.mubr.f32.mxu0 0.0
    %v799 = vand.u32 %v562, 4294901760
    %800 = vmatmul.mubr.f32.gmra.mrb[0].mxu0 %v799
    %v801 = vpop.f32.mrb[0].mxu0
    %v802 = vadd.f32 %v669, %v801
    %v803 = vpop.f32.mrb[0].mxu0
    %804 = vmatprep.mubr.f32.mxu0 0.0
    %v805 = vand.u32 %v565, 4294901760
    %806 = vmatmul.mubr.f32.gmra.mrb[0].mxu0 %v805
    %v807 = vpop.f32.mrb[0].mxu0
    %v808 = vadd.f32 %v679, %v807
    %v809 = vpop.f32.mrb[0].mxu0
    %810 = vmatprep.mubr.f32.mxu0 0.0
    %v811 = vand.u32 %v568, 4294901760
    %812 = vmatmul.mubr.f32.gmra.mrb[0].mxu0 %v811
    %v813 = vpop.f32.mrb[0].mxu0
    %v814 = vadd.f32 %v689, %v813
    %v815 = vpop.f32.mrb[0].mxu0
    %816 = vmatprep.mubr.f32.mxu0 0.0
    %v817 = vand.u32 %v571, 4294901760
    %818 = vmatmul.mubr.f32.gmra.mrb[0].mxu0 %v817
    %v819 = vpop.f32.mrb[0].mxu0
    %v820 = vadd.f32 %v699, %v819
    %v821 = vpop.f32.mrb[0].mxu0
    %822 = vdwg.mxu0
    %823 = vmatprep.subr.mxu0 0.0
    %v824 = vand.u32 %v550, 4294901760
    %v825 = vsub.f32 %v550, %v824
    %826 = vmatpush1.msra.mxu0 %v825
    %827 = vmatprep.subr.mxu0 0.0
    %v828 = vand.u32 %v551, 4294901760
    %v829 = vsub.f32 %v551, %v828
    %830 = vmatpush1.msra.mxu0 %v829
    %831 = vmatprep.subr.mxu0 0.0
    %v832 = vand.u32 %v552, 4294901760
    %v833 = vsub.f32 %v552, %v832
    %834 = vmatpush1.msra.mxu0 %v833
    %835 = vmatprep.subr.mxu0 0.0
    %v836 = vand.u32 %v553, 4294901760
    %v837 = vsub.f32 %v553, %v836
    %838 = vmatpush1.msra.mxu0 %v837
    %839 = vmatprep.subr.mxu0 0.0
    %840 = vmatpush1.msra.mxu0 0.0
    %841 = vmatprep.subr.mxu0 0.0
    %842 = vmatpush1.msra.mxu0 0.0
    %843 = vmatprep.subr.mxu0 0.0
    %844 = vmatpush1.msra.mxu0 0.0
    %845 = vmatprep.subr.mxu0 0.0
    %846 = vmatpush1.msra.mxu0 0.0
    %847 = vmatprep.subr.mxu0 0.0
    %848 = vmatpush1.msra.mxu0 0.0
    %849 = vmatprep.subr.mxu0 0.0
    %850 = vmatpush1.msra.mxu0 0.0
    %851 = vmatprep.subr.mxu0 0.0
    %852 = vmatpush1.msra.mxu0 0.0
    %853 = vmatprep.subr.mxu0 0.0
    %854 = vmatpush1.msra.mxu0 0.0
    %855 = vmatprep.subr.mxu0 0.0
    %856 = vmatpush1.msra.mxu0 0.0
    %857 = vmatprep.subr.mxu0 0.0
    %858 = vmatpush1.msra.mxu0 0.0
    %859 = vmatprep.subr.mxu0 0.0
    %860 = vmatpush1.msra.mxu0 0.0
    %861 = vmatprep.subr.mxu0 0.0
    %862 = vmatpush1.msra.mxu0 0.0
    %863 = vmatprep.subr.mxu0 0.0
    %864 = vmatpush1.msra.mxu0 0.0
    %865 = vmatprep.subr.mxu0 0.0
    %866 = vmatpush1.msra.mxu0 0.0
    %867 = vmatprep.subr.mxu0 0.0
    %868 = vmatpush1.msra.mxu0 0.0
    %869 = vmatprep.subr.mxu0 0.0
    %870 = vmatpush1.msra.mxu0 0.0
    %871 = vmatprep.subr.mxu0 0.0
    %872 = vmatpush1.msra.mxu0 0.0
    %873 = vmatprep.subr.mxu0 0.0
    %874 = vmatpush1.msra.mxu0 0.0
    %875 = vmatprep.subr.mxu0 0.0
    %876 = vmatpush1.msra.mxu0 0.0
    %877 = vmatprep.subr.mxu0 0.0
    %878 = vmatpush1.msra.mxu0 0.0
    %879 = vmatprep.subr.mxu0 0.0
    %880 = vmatpush1.msra.mxu0 0.0
    %881 = vmatprep.subr.mxu0 0.0
    %882 = vmatpush1.msra.mxu0 0.0
    %883 = vmatprep.subr.mxu0 0.0
    %884 = vmatpush1.msra.mxu0 0.0
    %885 = vmatprep.subr.mxu0 0.0
    %886 = vmatpush1.msra.mxu0 0.0
    %887 = vmatprep.subr.mxu0 0.0
    %888 = vmatpush1.msra.mxu0 0.0
    %889 = vmatprep.subr.mxu0 0.0
    %890 = vmatpush1.msra.mxu0 0.0
    %891 = vmatprep.subr.mxu0 0.0
    %892 = vmatpush1.msra.mxu0 0.0
    %893 = vmatprep.subr.mxu0 0.0
    %894 = vmatpush1.msra.mxu0 0.0
    %895 = vmatprep.mubr.f32.mxu0 0.0
    %v896 = vand.u32 %v556, 4294901760
    %v897 = vsub.f32 %v556, %v896
    %898 = vmatmul.mubr.f32.gmra.mrb[0].mxu0 %v897
    %v899 = vpop.f32.mrb[0].mxu0
    %v900 = vadd.f32 %v790, %v899
    %v901 = vpop.f32.mrb[0].mxu0
    %902 = vmatprep.mubr.f32.mxu0 0.0
    %v903 = vand.u32 %v559, 4294901760
    %v904 = vsub.f32 %v559, %v903
    %905 = vmatmul.mubr.f32.gmra.mrb[0].mxu0 %v904
    %v906 = vpop.f32.mrb[0].mxu0
    %v907 = vadd.f32 %v796, %v906
    %v908 = vpop.f32.mrb[0].mxu0
    %909 = vmatprep.mubr.f32.mxu0 0.0
    %v910 = vand.u32 %v562, 4294901760
    %v911 = vsub.f32 %v562, %v910
    %912 = vmatmul.mubr.f32.gmra.mrb[0].mxu0 %v911
    %v913 = vpop.f32.mrb[0].mxu0
    %v914 = vadd.f32 %v802, %v913
    %v915 = vpop.f32.mrb[0].mxu0
    %916 = vmatprep.mubr.f32.mxu0 0.0
    %v917 = vand.u32 %v565, 4294901760
    %v918 = vsub.f32 %v565, %v917
    %919 = vmatmul.mubr.f32.gmra.mrb[0].mxu0 %v918
    %v920 = vpop.f32.mrb[0].mxu0
    %v921 = vadd.f32 %v808, %v920
    %v922 = vpop.f32.mrb[0].mxu0
    %923 = vmatprep.mubr.f32.mxu0 0.0
    %v924 = vand.u32 %v568, 4294901760
    %v925 = vsub.f32 %v568, %v924
    %926 = vmatmul.mubr.f32.gmra.mrb[0].mxu0 %v925
    %v927 = vpop.f32.mrb[0].mxu0
    %v928 = vadd.f32 %v814, %v927
    %v929 = vpop.f32.mrb[0].mxu0
    %930 = vmatprep.mubr.f32.mxu0 0.0
    %v931 = vand.u32 %v571, 4294901760
    %v932 = vsub.f32 %v571, %v931
    %933 = vmatmul.mubr.f32.gmra.mrb[0].mxu0 %v932
    %v934 = vpop.f32.mrb[0].mxu0
    %v935 = vadd.f32 %v820, %v934
    %v936 = vpop.f32.mrb[0].mxu0
    %937 = vdwg.mxu0
    %938 = vmatprep.subr.mxu0 0.0
    %v939 = vand.u32 %v550, 4294901760
    %940 = vmatpush1.msra.mxu0 %v939
    %941 = vmatprep.subr.mxu0 0.0
    %v942 = vand.u32 %v551, 4294901760
    %943 = vmatpush1.msra.mxu0 %v942
    %944 = vmatprep.subr.mxu0 0.0
    %v945 = vand.u32 %v552, 4294901760
    %946 = vmatpush1.msra.mxu0 %v945
    %947 = vmatprep.subr.mxu0 0.0
    %v948 = vand.u32 %v553, 4294901760
    %949 = vmatpush1.msra.mxu0 %v948
    %950 = vmatprep.subr.mxu0 0.0
    %951 = vmatpush1.msra.mxu0 0.0
    %952 = vmatprep.subr.mxu0 0.0
    %953 = vmatpush1.msra.mxu0 0.0
    %954 = vmatprep.subr.mxu0 0.0
    %955 = vmatpush1.msra.mxu0 0.0
    %956 = vmatprep.subr.mxu0 0.0
    %957 = vmatpush1.msra.mxu0 0.0
    %958 = vmatprep.subr.mxu0 0.0
    %959 = vmatpush1.msra.mxu0 0.0
    %960 = vmatprep.subr.mxu0 0.0
    %961 = vmatpush1.msra.mxu0 0.0
    %962 = vmatprep.subr.mxu0 0.0
    %963 = vmatpush1.msra.mxu0 0.0
    %964 = vmatprep.subr.mxu0 0.0
    %965 = vmatpush1.msra.mxu0 0.0
    %966 = vmatprep.subr.mxu0 0.0
    %967 = vmatpush1.msra.mxu0 0.0
    %968 = vmatprep.subr.mxu0 0.0
    %969 = vmatpush1.msra.mxu0 0.0
    %970 = vmatprep.subr.mxu0 0.0
    %971 = vmatpush1.msra.mxu0 0.0
    %972 = vmatprep.subr.mxu0 0.0
    %973 = vmatpush1.msra.mxu0 0.0
    %974 = vmatprep.subr.mxu0 0.0
    %975 = vmatpush1.msra.mxu0 0.0
    %976 = vmatprep.subr.mxu0 0.0
    %977 = vmatpush1.msra.mxu0 0.0
    %978 = vmatprep.subr.mxu0 0.0
    %979 = vmatpush1.msra.mxu0 0.0
    %980 = vmatprep.subr.mxu0 0.0
    %981 = vmatpush1.msra.mxu0 0.0
    %982 = vmatprep.subr.mxu0 0.0
    %983 = vmatpush1.msra.mxu0 0.0
    %984 = vmatprep.subr.mxu0 0.0
    %985 = vmatpush1.msra.mxu0 0.0
    %986 = vmatprep.subr.mxu0 0.0
    %987 = vmatpush1.msra.mxu0 0.0
    %988 = vmatprep.subr.mxu0 0.0
    %989 = vmatpush1.msra.mxu0 0.0
    %990 = vmatprep.subr.mxu0 0.0
    %991 = vmatpush1.msra.mxu0 0.0
    %992 = vmatprep.subr.mxu0 0.0
    %993 = vmatpush1.msra.mxu0 0.0
    %994 = vmatprep.subr.mxu0 0.0
    %995 = vmatpush1.msra.mxu0 0.0
    %996 = vmatprep.subr.mxu0 0.0
    %997 = vmatpush1.msra.mxu0 0.0
    %998 = vmatprep.subr.mxu0 0.0
    %999 = vmatpush1.msra.mxu0 0.0
    %1000 = vmatprep.subr.mxu0 0.0
    %1001 = vmatpush1.msra.mxu0 0.0
    %1002 = vmatprep.subr.mxu0 0.0
    %1003 = vmatpush1.msra.mxu0 0.0
    %1004 = vmatprep.subr.mxu0 0.0
    %1005 = vmatpush1.msra.mxu0 0.0
    %1006 = vmatprep.mubr.f32.mxu0 0.0
    %v1007 = vand.u32 %v556, 4294901760
    %v1008 = vsub.f32 %v556, %v1007
    %v1009 = vand.u32 %v1008, 4294901760
    %1010 = vmatmul.mubr.f32.gmra.mrb[0].mxu0 %v1009
    %v1011 = vpop.f32.mrb[0].mxu0
    %v1012 = vadd.f32 %v900, %v1011
    %v1013 = vpop.f32.mrb[0].mxu0
    %1014 = vmatprep.mubr.f32.mxu0 0.0
    %v1015 = vand.u32 %v559, 4294901760
    %v1016 = vsub.f32 %v559, %v1015
    %v1017 = vand.u32 %v1016, 4294901760
    %1018 = vmatmul.mubr.f32.gmra.mrb[0].mxu0 %v1017
    %v1019 = vpop.f32.mrb[0].mxu0
    %v1020 = vadd.f32 %v907, %v1019
    %v1021 = vpop.f32.mrb[0].mxu0
    %1022 = vmatprep.mubr.f32.mxu0 0.0
    %v1023 = vand.u32 %v562, 4294901760
    %v1024 = vsub.f32 %v562, %v1023
    %v1025 = vand.u32 %v1024, 4294901760
    %1026 = vmatmul.mubr.f32.gmra.mrb[0].mxu0 %v1025
    %v1027 = vpop.f32.mrb[0].mxu0
    %v1028 = vadd.f32 %v914, %v1027
    %v1029 = vpop.f32.mrb[0].mxu0
    %1030 = vmatprep.mubr.f32.mxu0 0.0
    %v1031 = vand.u32 %v565, 4294901760
    %v1032 = vsub.f32 %v565, %v1031
    %v1033 = vand.u32 %v1032, 4294901760
    %1034 = vmatmul.mubr.f32.gmra.mrb[0].mxu0 %v1033
    %v1035 = vpop.f32.mrb[0].mxu0
    %v1036 = vadd.f32 %v921, %v1035
    %v1037 = vpop.f32.mrb[0].mxu0
    %1038 = vmatprep.mubr.f32.mxu0 0.0
    %v1039 = vand.u32 %v568, 4294901760
    %v1040 = vsub.f32 %v568, %v1039
    %v1041 = vand.u32 %v1040, 4294901760
    %1042 = vmatmul.mubr.f32.gmra.mrb[0].mxu0 %v1041
    %v1043 = vpop.f32.mrb[0].mxu0
    %v1044 = vadd.f32 %v928, %v1043
    %v1045 = vpop.f32.mrb[0].mxu0
    %1046 = vmatprep.mubr.f32.mxu0 0.0
    %v1047 = vand.u32 %v571, 4294901760
    %v1048 = vsub.f32 %v571, %v1047
    %v1049 = vand.u32 %v1048, 4294901760
    %1050 = vmatmul.mubr.f32.gmra.mrb[0].mxu0 %v1049
    %v1051 = vpop.f32.mrb[0].mxu0
    %v1052 = vadd.f32 %v935, %v1051
    %v1053 = vpop.f32.mrb[0].mxu0
    %1054 = vdwg.mxu0
    %1055 = vmatprep.subr.mxu0 0.0
    %v1056 = vand.u32 %v550, 4294901760
    %v1057 = vsub.f32 %v550, %v1056
    %v1058 = vand.u32 %v1057, 4294901760
    %1059 = vmatpush1.msra.mxu0 %v1058
    %1060 = vmatprep.subr.mxu0 0.0
    %v1061 = vand.u32 %v551, 4294901760
    %v1062 = vsub.f32 %v551, %v1061
    %v1063 = vand.u32 %v1062, 4294901760
    %1064 = vmatpush1.msra.mxu0 %v1063
    %1065 = vmatprep.subr.mxu0 0.0
    %v1066 = vand.u32 %v552, 4294901760
    %v1067 = vsub.f32 %v552, %v1066
    %v1068 = vand.u32 %v1067, 4294901760
    %1069 = vmatpush1.msra.mxu0 %v1068
    %1070 = vmatprep.subr.mxu0 0.0
    %v1071 = vand.u32 %v553, 4294901760
    %v1072 = vsub.f32 %v553, %v1071
    %v1073 = vand.u32 %v1072, 4294901760
    %1074 = vmatpush1.msra.mxu0 %v1073
    %1075 = vmatprep.subr.mxu0 0.0
    %1076 = vmatpush1.msra.mxu0 0.0
    %1077 = vmatprep.subr.mxu0 0.0
    %1078 = vmatpush1.msra.mxu0 0.0
    %1079 = vmatprep.subr.mxu0 0.0
    %1080 = vmatpush1.msra.mxu0 0.0
    %1081 = vmatprep.subr.mxu0 0.0
    %1082 = vmatpush1.msra.mxu0 0.0
    %1083 = vmatprep.subr.mxu0 0.0
    %1084 = vmatpush1.msra.mxu0 0.0
    %1085 = vmatprep.subr.mxu0 0.0
    %1086 = vmatpush1.msra.mxu0 0.0
    %1087 = vmatprep.subr.mxu0 0.0
    %1088 = vmatpush1.msra.mxu0 0.0
    %1089 = vmatprep.subr.mxu0 0.0
    %1090 = vmatpush1.msra.mxu0 0.0
    %1091 = vmatprep.subr.mxu0 0.0
    %1092 = vmatpush1.msra.mxu0 0.0
    %1093 = vmatprep.subr.mxu0 0.0
    %1094 = vmatpush1.msra.mxu0 0.0
    %1095 = vmatprep.subr.mxu0 0.0
    %1096 = vmatpush1.msra.mxu0 0.0
    %1097 = vmatprep.subr.mxu0 0.0
    %1098 = vmatpush1.msra.mxu0 0.0
    %1099 = vmatprep.subr.mxu0 0.0
    %1100 = vmatpush1.msra.mxu0 0.0
    %1101 = vmatprep.subr.mxu0 0.0
    %1102 = vmatpush1.msra.mxu0 0.0
    %1103 = vmatprep.subr.mxu0 0.0
    %1104 = vmatpush1.msra.mxu0 0.0
    %1105 = vmatprep.subr.mxu0 0.0
    %1106 = vmatpush1.msra.mxu0 0.0
    %1107 = vmatprep.subr.mxu0 0.0
    %1108 = vmatpush1.msra.mxu0 0.0
    %1109 = vmatprep.subr.mxu0 0.0
    %1110 = vmatpush1.msra.mxu0 0.0
    %1111 = vmatprep.subr.mxu0 0.0
    %1112 = vmatpush1.msra.mxu0 0.0
    %1113 = vmatprep.subr.mxu0 0.0
    %1114 = vmatpush1.msra.mxu0 0.0
    %1115 = vmatprep.subr.mxu0 0.0
    %1116 = vmatpush1.msra.mxu0 0.0
    %1117 = vmatprep.subr.mxu0 0.0
    %1118 = vmatpush1.msra.mxu0 0.0
    %1119 = vmatprep.subr.mxu0 0.0
    %1120 = vmatpush1.msra.mxu0 0.0
    %1121 = vmatprep.subr.mxu0 0.0
    %1122 = vmatpush1.msra.mxu0 0.0
    %1123 = vmatprep.subr.mxu0 0.0
    %1124 = vmatpush1.msra.mxu0 0.0
    %1125 = vmatprep.subr.mxu0 0.0
    %1126 = vmatpush1.msra.mxu0 0.0
    %1127 = vmatprep.subr.mxu0 0.0
    %1128 = vmatpush1.msra.mxu0 0.0
    %1129 = vmatprep.subr.mxu0 0.0
    %1130 = vmatpush1.msra.mxu0 0.0
    %1131 = vmatprep.mubr.f32.mxu0 0.0
    %v1132 = vand.u32 %v556, 4294901760
    %1133 = vmatmul.mubr.f32.gmra.mrb[0].mxu0 %v1132
    %v1134 = vpop.f32.mrb[0].mxu0
    %v1135 = vadd.f32 %v1012, %v1134
    %v1136 = vpop.f32.mrb[0].mxu0
    %1137 = vmatprep.mubr.f32.mxu0 0.0
    %v1138 = vand.u32 %v559, 4294901760
    %1139 = vmatmul.mubr.f32.gmra.mrb[0].mxu0 %v1138
    %v1140 = vpop.f32.mrb[0].mxu0
    %v1141 = vadd.f32 %v1020, %v1140
    %v1142 = vpop.f32.mrb[0].mxu0
    %1143 = vmatprep.mubr.f32.mxu0 0.0
    %v1144 = vand.u32 %v562, 4294901760
    %1145 = vmatmul.mubr.f32.gmra.mrb[0].mxu0 %v1144
    %v1146 = vpop.f32.mrb[0].mxu0
    %v1147 = vadd.f32 %v1028, %v1146
    %v1148 = vpop.f32.mrb[0].mxu0
    %1149 = vmatprep.mubr.f32.mxu0 0.0
    %v1150 = vand.u32 %v565, 4294901760
    %1151 = vmatmul.mubr.f32.gmra.mrb[0].mxu0 %v1150
    %v1152 = vpop.f32.mrb[0].mxu0
    %v1153 = vadd.f32 %v1036, %v1152
    %v1154 = vpop.f32.mrb[0].mxu0
    %1155 = vmatprep.mubr.f32.mxu0 0.0
    %v1156 = vand.u32 %v568, 4294901760
    %1157 = vmatmul.mubr.f32.gmra.mrb[0].mxu0 %v1156
    %v1158 = vpop.f32.mrb[0].mxu0
    %v1159 = vadd.f32 %v1044, %v1158
    %v1160 = vpop.f32.mrb[0].mxu0
    %1161 = vmatprep.mubr.f32.mxu0 0.0
    %v1162 = vand.u32 %v571, 4294901760
    %1163 = vmatmul.mubr.f32.gmra.mrb[0].mxu0 %v1162
    %v1164 = vpop.f32.mrb[0].mxu0
    %v1165 = vadd.f32 %v1052, %v1164
    %v1166 = vpop.f32.mrb[0].mxu0
    %1167 = vdwg.mxu0
    %1168 = vmatprep.subr.mxu0 0.0
    %v1169 = vand.u32 %v550, 4294901760
    %1170 = vmatpush1.msra.mxu0 %v1169
    %1171 = vmatprep.subr.mxu0 0.0
    %v1172 = vand.u32 %v551, 4294901760
    %1173 = vmatpush1.msra.mxu0 %v1172
    %1174 = vmatprep.subr.mxu0 0.0
    %v1175 = vand.u32 %v552, 4294901760
    %1176 = vmatpush1.msra.mxu0 %v1175
    %1177 = vmatprep.subr.mxu0 0.0
    %v1178 = vand.u32 %v553, 4294901760
    %1179 = vmatpush1.msra.mxu0 %v1178
    %1180 = vmatprep.subr.mxu0 0.0
    %1181 = vmatpush1.msra.mxu0 0.0
    %1182 = vmatprep.subr.mxu0 0.0
    %1183 = vmatpush1.msra.mxu0 0.0
    %1184 = vmatprep.subr.mxu0 0.0
    %1185 = vmatpush1.msra.mxu0 0.0
    %1186 = vmatprep.subr.mxu0 0.0
    %1187 = vmatpush1.msra.mxu0 0.0
    %1188 = vmatprep.subr.mxu0 0.0
    %1189 = vmatpush1.msra.mxu0 0.0
    %1190 = vmatprep.subr.mxu0 0.0
    %1191 = vmatpush1.msra.mxu0 0.0
    %1192 = vmatprep.subr.mxu0 0.0
    %1193 = vmatpush1.msra.mxu0 0.0
    %1194 = vmatprep.subr.mxu0 0.0
    %1195 = vmatpush1.msra.mxu0 0.0
    %1196 = vmatprep.subr.mxu0 0.0
    %1197 = vmatpush1.msra.mxu0 0.0
    %1198 = vmatprep.subr.mxu0 0.0
    %1199 = vmatpush1.msra.mxu0 0.0
    %1200 = vmatprep.subr.mxu0 0.0
    %1201 = vmatpush1.msra.mxu0 0.0
    %1202 = vmatprep.subr.mxu0 0.0
    %1203 = vmatpush1.msra.mxu0 0.0
    %1204 = vmatprep.subr.mxu0 0.0
    %1205 = vmatpush1.msra.mxu0 0.0
    %1206 = vmatprep.subr.mxu0 0.0
    %1207 = vmatpush1.msra.mxu0 0.0
    %1208 = vmatprep.subr.mxu0 0.0
    %1209 = vmatpush1.msra.mxu0 0.0
    %1210 = vmatprep.subr.mxu0 0.0
    %1211 = vmatpush1.msra.mxu0 0.0
    %1212 = vmatprep.subr.mxu0 0.0
    %1213 = vmatpush1.msra.mxu0 0.0
    %1214 = vmatprep.subr.mxu0 0.0
    %1215 = vmatpush1.msra.mxu0 0.0
    %1216 = vmatprep.subr.mxu0 0.0
    %1217 = vmatpush1.msra.mxu0 0.0
    %1218 = vmatprep.subr.mxu0 0.0
    %1219 = vmatpush1.msra.mxu0 0.0
    %1220 = vmatprep.subr.mxu0 0.0
    %1221 = vmatpush1.msra.mxu0 0.0
    %1222 = vmatprep.subr.mxu0 0.0
    %1223 = vmatpush1.msra.mxu0 0.0
    %1224 = vmatprep.subr.mxu0 0.0
    %1225 = vmatpush1.msra.mxu0 0.0
    %1226 = vmatprep.subr.mxu0 0.0
    %1227 = vmatpush1.msra.mxu0 0.0
    %1228 = vmatprep.subr.mxu0 0.0
    %1229 = vmatpush1.msra.mxu0 0.0
    %1230 = vmatprep.subr.mxu0 0.0
    %1231 = vmatpush1.msra.mxu0 0.0
    %1232 = vmatprep.subr.mxu0 0.0
    %1233 = vmatpush1.msra.mxu0 0.0
    %1234 = vmatprep.subr.mxu0 0.0
    %1235 = vmatpush1.msra.mxu0 0.0
    %1236 = vmatprep.mubr.f32.mxu0 0.0
    %v1237 = vand.u32 %v556, 4294901760
    %1238 = vmatmul.mubr.f32.gmra.mrb[0].mxu0 %v1237
    %v1239 = vpop.f32.mrb[0].mxu0
    %v1240 = vadd.f32 %v1135, %v1239
    %v1241 = vpop.f32.mrb[0].mxu0
    %1242 = vmatprep.mubr.f32.mxu0 0.0
    %v1243 = vand.u32 %v559, 4294901760
    %1244 = vmatmul.mubr.f32.gmra.mrb[0].mxu0 %v1243
    %v1245 = vpop.f32.mrb[0].mxu0
    %v1246 = vadd.f32 %v1141, %v1245
    %v1247 = vpop.f32.mrb[0].mxu0
    %1248 = vmatprep.mubr.f32.mxu0 0.0
    %v1249 = vand.u32 %v562, 4294901760
    %1250 = vmatmul.mubr.f32.gmra.mrb[0].mxu0 %v1249
    %v1251 = vpop.f32.mrb[0].mxu0
    %v1252 = vadd.f32 %v1147, %v1251
    %v1253 = vpop.f32.mrb[0].mxu0
    %1254 = vmatprep.mubr.f32.mxu0 0.0
    %v1255 = vand.u32 %v565, 4294901760
    %1256 = vmatmul.mubr.f32.gmra.mrb[0].mxu0 %v1255
    %v1257 = vpop.f32.mrb[0].mxu0
    %v1258 = vadd.f32 %v1153, %v1257
    %v1259 = vpop.f32.mrb[0].mxu0
    %1260 = vmatprep.mubr.f32.mxu0 0.0
    %v1261 = vand.u32 %v568, 4294901760
    %1262 = vmatmul.mubr.f32.gmra.mrb[0].mxu0 %v1261
    %v1263 = vpop.f32.mrb[0].mxu0
    %v1264 = vadd.f32 %v1159, %v1263
    %v1265 = vpop.f32.mrb[0].mxu0
    %1266 = vmatprep.mubr.f32.mxu0 0.0
    %v1267 = vand.u32 %v571, 4294901760
    %1268 = vmatmul.mubr.f32.gmra.mrb[0].mxu0 %v1267
    %v1269 = vpop.f32.mrb[0].mxu0
    %v1270 = vadd.f32 %v1165, %v1269
    %v1271 = vpop.f32.mrb[0].mxu0
    %1272 = vdwg.mxu0
    %1273 = vst [vmem:[#allocation2] sm:$0xff] %v1240
    %1274 = vst [vmem:[#allocation2 + $0x8] sm:$0xff] %v1246
    %1275 = vst [vmem:[#allocation2 + $0x10] sm:$0xff] %v1252
    %1276 = vst [vmem:[#allocation2 + $0x18] sm:$0xff] %v1258
    %1277 = vst [vmem:[#allocation2 + $0x20] sm:$0xff] %v1264
    %1278 = vst [vmem:[#allocation2 + $0x28] sm:$0xff] %v1270
    %v1279 = vld [vmem:[#allocation5 + $0x38] sm:$0xff]
    %v1280 = vld [vmem:[#allocation5 + $0x40] sm:$0xff]
    %v1281 = vld [vmem:[#allocation5 + $0x48] sm:$0xff]
    %v1282 = vld [vmem:[#allocation5 + $0x50] sm:$0xff]
    %v1283 = vld [vmem:[#allocation2] sm:$0xff]
    %v1285 = vsel %vm554, 0.0, 0
    %1287 = vmatprep.subr.mxu0 0.0
    %v1288 = vand.u32 %v1279, 4294901760
    %1289 = vmatpush1.msra.mxu0 %v1288
    %1290 = vmatprep.subr.mxu0 0.0
    %v1291 = vand.u32 %v1280, 4294901760
    %1292 = vmatpush1.msra.mxu0 %v1291
    %1293 = vmatprep.subr.mxu0 0.0
    %v1294 = vand.u32 %v1281, 4294901760
    %1295 = vmatpush1.msra.mxu0 %v1294
    %1296 = vmatprep.subr.mxu0 0.0
    %v1297 = vand.u32 %v1282, 4294901760
    %1298 = vmatpush1.msra.mxu0 %v1297
    %1299 = vmatprep.subr.mxu0 0.0
    %1300 = vmatpush1.msra.mxu0 0.0
    %1301 = vmatprep.subr.mxu0 0.0
    %1302 = vmatpush1.msra.mxu0 0.0
    %1303 = vmatprep.subr.mxu0 0.0
    %1304 = vmatpush1.msra.mxu0 0.0
    %1305 = vmatprep.subr.mxu0 0.0
    %1306 = vmatpush1.msra.mxu0 0.0
    %1307 = vmatprep.subr.mxu0 0.0
    %1308 = vmatpush1.msra.mxu0 0.0
    %1309 = vmatprep.subr.mxu0 0.0
    %1310 = vmatpush1.msra.mxu0 0.0
    %1311 = vmatprep.subr.mxu0 0.0
    %1312 = vmatpush1.msra.mxu0 0.0
    %1313 = vmatprep.subr.mxu0 0.0
    %1314 = vmatpush1.msra.mxu0 0.0
    %1315 = vmatprep.subr.mxu0 0.0
    %1316 = vmatpush1.msra.mxu0 0.0
    %1317 = vmatprep.subr.mxu0 0.0
    %1318 = vmatpush1.msra.mxu0 0.0
    %1319 = vmatprep.subr.mxu0 0.0
    %1320 = vmatpush1.msra.mxu0 0.0
    %1321 = vmatprep.subr.mxu0 0.0
    %1322 = vmatpush1.msra.mxu0 0.0
    %1323 = vmatprep.subr.mxu0 0.0
    %1324 = vmatpush1.msra.mxu0 0.0
    %1325 = vmatprep.subr.mxu0 0.0
    %1326 = vmatpush1.msra.mxu0 0.0
    %1327 = vmatprep.subr.mxu0 0.0
    %1328 = vmatpush1.msra.mxu0 0.0
    %1329 = vmatprep.subr.mxu0 0.0
    %1330 = vmatpush1.msra.mxu0 0.0
    %1331 = vmatprep.subr.mxu0 0.0
    %1332 = vmatpush1.msra.mxu0 0.0
    %1333 = vmatprep.subr.mxu0 0.0
    %1334 = vmatpush1.msra.mxu0 0.0
    %1335 = vmatprep.subr.mxu0 0.0
    %1336 = vmatpush1.msra.mxu0 0.0
    %1337 = vmatprep.subr.mxu0 0.0
    %1338 = vmatpush1.msra.mxu0 0.0
    %1339 = vmatprep.subr.mxu0 0.0
    %1340 = vmatpush1.msra.mxu0 0.0
    %1341 = vmatprep.subr.mxu0 0.0
    %1342 = vmatpush1.msra.mxu0 0.0
    %1343 = vmatprep.subr.mxu0 0.0
    %1344 = vmatpush1.msra.mxu0 0.0
    %1345 = vmatprep.subr.mxu0 0.0
    %1346 = vmatpush1.msra.mxu0 0.0
    %1347 = vmatprep.subr.mxu0 0.0
    %1348 = vmatpush1.msra.mxu0 0.0
    %1349 = vmatprep.subr.mxu0 0.0
    %1350 = vmatpush1.msra.mxu0 0.0
    %1351 = vmatprep.subr.mxu0 0.0
    %1352 = vmatpush1.msra.mxu0 0.0
    %1353 = vmatprep.subr.mxu0 0.0
    %1354 = vmatpush1.msra.mxu0 0.0
    %1355 = vmatprep.mubr.f32.mxu0 0.0
    %v1356 = vand.u32 %v1285, 4294901760
    %v1357 = vsub.f32 %v1285, %v1356
    %v1358 = vand.u32 %v1357, 4294901760
    %v1359 = vsub.f32 %v1357, %v1358
    %v1360 = vand.u32 %v1359, 4294901760
    %1361 = vmatmul.mubr.f32.gmra.mrb[0].mxu0 %v1360
    %v1362 = vpop.f32.mrb[0].mxu0
    %v1363 = vadd.f32 0.0, %v1362
    %v1364 = vpop.f32.mrb[0].mxu0
    %1365 = vdwg.mxu0
    %1366 = vmatprep.subr.mxu0 0.0
    %v1367 = vand.u32 %v1279, 4294901760
    %v1368 = vsub.f32 %v1279, %v1367
    %v1369 = vand.u32 %v1368, 4294901760
    %v1370 = vsub.f32 %v1368, %v1369
    %v1371 = vand.u32 %v1370, 4294901760
    %1372 = vmatpush1.msra.mxu0 %v1371
    %1373 = vmatprep.subr.mxu0 0.0
    %v1374 = vand.u32 %v1280, 4294901760
    %v1375 = vsub.f32 %v1280, %v1374
    %v1376 = vand.u32 %v1375, 4294901760
    %v1377 = vsub.f32 %v1375, %v1376
    %v1378 = vand.u32 %v1377, 4294901760
    %1379 = vmatpush1.msra.mxu0 %v1378
    %1380 = vmatprep.subr.mxu0 0.0
    %v1381 = vand.u32 %v1281, 4294901760
    %v1382 = vsub.f32 %v1281, %v1381
    %v1383 = vand.u32 %v1382, 4294901760
    %v1384 = vsub.f32 %v1382, %v1383
    %v1385 = vand.u32 %v1384, 4294901760
    %1386 = vmatpush1.msra.mxu0 %v1385
    %1387 = vmatprep.subr.mxu0 0.0
    %v1388 = vand.u32 %v1282, 4294901760
    %v1389 = vsub.f32 %v1282, %v1388
    %v1390 = vand.u32 %v1389, 4294901760
    %v1391 = vsub.f32 %v1389, %v1390
    %v1392 = vand.u32 %v1391, 4294901760
    %1393 = vmatpush1.msra.mxu0 %v1392
    %1394 = vmatprep.subr.mxu0 0.0
    %1395 = vmatpush1.msra.mxu0 0.0
    %1396 = vmatprep.subr.mxu0 0.0
    %1397 = vmatpush1.msra.mxu0 0.0
    %1398 = vmatprep.subr.mxu0 0.0
    %1399 = vmatpush1.msra.mxu0 0.0
    %1400 = vmatprep.subr.mxu0 0.0
    %1401 = vmatpush1.msra.mxu0 0.0
    %1402 = vmatprep.subr.mxu0 0.0
    %1403 = vmatpush1.msra.mxu0 0.0
    %1404 = vmatprep.subr.mxu0 0.0
    %1405 = vmatpush1.msra.mxu0 0.0
    %1406 = vmatprep.subr.mxu0 0.0
    %1407 = vmatpush1.msra.mxu0 0.0
    %1408 = vmatprep.subr.mxu0 0.0
    %1409 = vmatpush1.msra.mxu0 0.0
    %1410 = vmatprep.subr.mxu0 0.0
    %1411 = vmatpush1.msra.mxu0 0.0
    %1412 = vmatprep.subr.mxu0 0.0
    %1413 = vmatpush1.msra.mxu0 0.0
    %1414 = vmatprep.subr.mxu0 0.0
    %1415 = vmatpush1.msra.mxu0 0.0
    %1416 = vmatprep.subr.mxu0 0.0
    %1417 = vmatpush1.msra.mxu0 0.0
    %1418 = vmatprep.subr.mxu0 0.0
    %1419 = vmatpush1.msra.mxu0 0.0
    %1420 = vmatprep.subr.mxu0 0.0
    %1421 = vmatpush1.msra.mxu0 0.0
    %1422 = vmatprep.subr.mxu0 0.0
    %1423 = vmatpush1.msra.mxu0 0.0
    %1424 = vmatprep.subr.mxu0 0.0
    %1425 = vmatpush1.msra.mxu0 0.0
    %1426 = vmatprep.subr.mxu0 0.0
    %1427 = vmatpush1.msra.mxu0 0.0
    %1428 = vmatprep.subr.mxu0 0.0
    %1429 = vmatpush1.msra.mxu0 0.0
    %1430 = vmatprep.subr.mxu0 0.0
    %1431 = vmatpush1.msra.mxu0 0.0
    %1432 = vmatprep.subr.mxu0 0.0
    %1433 = vmatpush1.msra.mxu0 0.0
    %1434 = vmatprep.subr.mxu0 0.0
    %1435 = vmatpush1.msra.mxu0 0.0
    %1436 = vmatprep.subr.mxu0 0.0
    %1437 = vmatpush1.msra.mxu0 0.0
    %1438 = vmatprep.subr.mxu0 0.0
    %1439 = vmatpush1.msra.mxu0 0.0
    %1440 = vmatprep.subr.mxu0 0.0
    %1441 = vmatpush1.msra.mxu0 0.0
    %1442 = vmatprep.subr.mxu0 0.0
    %1443 = vmatpush1.msra.mxu0 0.0
    %1444 = vmatprep.subr.mxu0 0.0
    %1445 = vmatpush1.msra.mxu0 0.0
    %1446 = vmatprep.subr.mxu0 0.0
    %1447 = vmatpush1.msra.mxu0 0.0
    %1448 = vmatprep.subr.mxu0 0.0
    %1449 = vmatpush1.msra.mxu0 0.0
    %1450 = vmatprep.mubr.f32.mxu0 0.0
    %v1451 = vand.u32 %v1285, 4294901760
    %1452 = vmatmul.mubr.f32.gmra.mrb[0].mxu0 %v1451
    %v1453 = vpop.f32.mrb[0].mxu0
    %v1454 = vadd.f32 %v1363, %v1453
    %v1455 = vpop.f32.mrb[0].mxu0
    %1456 = vdwg.mxu0
    %1457 = vmatprep.subr.mxu0 0.0
    %v1458 = vand.u32 %v1279, 4294901760
    %v1459 = vsub.f32 %v1279, %v1458
    %1460 = vmatpush1.msra.mxu0 %v1459
    %1461 = vmatprep.subr.mxu0 0.0
    %v1462 = vand.u32 %v1280, 4294901760
    %v1463 = vsub.f32 %v1280, %v1462
    %1464 = vmatpush1.msra.mxu0 %v1463
    %1465 = vmatprep.subr.mxu0 0.0
    %v1466 = vand.u32 %v1281, 4294901760
    %v1467 = vsub.f32 %v1281, %v1466
    %1468 = vmatpush1.msra.mxu0 %v1467
    %1469 = vmatprep.subr.mxu0 0.0
    %v1470 = vand.u32 %v1282, 4294901760
    %v1471 = vsub.f32 %v1282, %v1470
    %1472 = vmatpush1.msra.mxu0 %v1471
    %1473 = vmatprep.subr.mxu0 0.0
    %1474 = vmatpush1.msra.mxu0 0.0
    %1475 = vmatprep.subr.mxu0 0.0
    %1476 = vmatpush1.msra.mxu0 0.0
    %1477 = vmatprep.subr.mxu0 0.0
    %1478 = vmatpush1.msra.mxu0 0.0
    %1479 = vmatprep.subr.mxu0 0.0
    %1480 = vmatpush1.msra.mxu0 0.0
    %1481 = vmatprep.subr.mxu0 0.0
    %1482 = vmatpush1.msra.mxu0 0.0
    %1483 = vmatprep.subr.mxu0 0.0
    %1484 = vmatpush1.msra.mxu0 0.0
    %1485 = vmatprep.subr.mxu0 0.0
    %1486 = vmatpush1.msra.mxu0 0.0
    %1487 = vmatprep.subr.mxu0 0.0
    %1488 = vmatpush1.msra.mxu0 0.0
    %1489 = vmatprep.subr.mxu0 0.0
    %1490 = vmatpush1.msra.mxu0 0.0
    %1491 = vmatprep.subr.mxu0 0.0
    %1492 = vmatpush1.msra.mxu0 0.0
    %1493 = vmatprep.subr.mxu0 0.0
    %1494 = vmatpush1.msra.mxu0 0.0
    %1495 = vmatprep.subr.mxu0 0.0
    %1496 = vmatpush1.msra.mxu0 0.0
    %1497 = vmatprep.subr.mxu0 0.0
    %1498 = vmatpush1.msra.mxu0 0.0
    %1499 = vmatprep.subr.mxu0 0.0
    %1500 = vmatpush1.msra.mxu0 0.0
    %1501 = vmatprep.subr.mxu0 0.0
    %1502 = vmatpush1.msra.mxu0 0.0
    %1503 = vmatprep.subr.mxu0 0.0
    %1504 = vmatpush1.msra.mxu0 0.0
    %1505 = vmatprep.subr.mxu0 0.0
    %1506 = vmatpush1.msra.mxu0 0.0
    %1507 = vmatprep.subr.mxu0 0.0
    %1508 = vmatpush1.msra.mxu0 0.0
    %1509 = vmatprep.subr.mxu0 0.0
    %1510 = vmatpush1.msra.mxu0 0.0
    %1511 = vmatprep.subr.mxu0 0.0
    %1512 = vmatpush1.msra.mxu0 0.0
    %1513 = vmatprep.subr.mxu0 0.0
    %1514 = vmatpush1.msra.mxu0 0.0
    %1515 = vmatprep.subr.mxu0 0.0
    %1516 = vmatpush1.msra.mxu0 0.0
    %1517 = vmatprep.subr.mxu0 0.0
    %1518 = vmatpush1.msra.mxu0 0.0
    %1519 = vmatprep.subr.mxu0 0.0
    %1520 = vmatpush1.msra.mxu0 0.0
    %1521 = vmatprep.subr.mxu0 0.0
    %1522 = vmatpush1.msra.mxu0 0.0
    %1523 = vmatprep.subr.mxu0 0.0
    %1524 = vmatpush1.msra.mxu0 0.0
    %1525 = vmatprep.subr.mxu0 0.0
    %1526 = vmatpush1.msra.mxu0 0.0
    %1527 = vmatprep.subr.mxu0 0.0
    %1528 = vmatpush1.msra.mxu0 0.0
    %1529 = vmatprep.mubr.f32.mxu0 0.0
    %v1530 = vand.u32 %v1285, 4294901760
    %v1531 = vsub.f32 %v1285, %v1530
    %1532 = vmatmul.mubr.f32.gmra.mrb[0].mxu0 %v1531
    %v1533 = vpop.f32.mrb[0].mxu0
    %v1534 = vadd.f32 %v1454, %v1533
    %v1535 = vpop.f32.mrb[0].mxu0
    %1536 = vdwg.mxu0
    %1537 = vmatprep.subr.mxu0 0.0
    %v1538 = vand.u32 %v1279, 4294901760
    %1539 = vmatpush1.msra.mxu0 %v1538
    %1540 = vmatprep.subr.mxu0 0.0
    %v1541 = vand.u32 %v1280, 4294901760
    %1542 = vmatpush1.msra.mxu0 %v1541
    %1543 = vmatprep.subr.mxu0 0.0
    %v1544 = vand.u32 %v1281, 4294901760
    %1545 = vmatpush1.msra.mxu0 %v1544
    %1546 = vmatprep.subr.mxu0 0.0
    %v1547 = vand.u32 %v1282, 4294901760
    %1548 = vmatpush1.msra.mxu0 %v1547
    %1549 = vmatprep.subr.mxu0 0.0
    %1550 = vmatpush1.msra.mxu0 0.0
    %1551 = vmatprep.subr.mxu0 0.0
    %1552 = vmatpush1.msra.mxu0 0.0
    %1553 = vmatprep.subr.mxu0 0.0
    %1554 = vmatpush1.msra.mxu0 0.0
    %1555 = vmatprep.subr.mxu0 0.0
    %1556 = vmatpush1.msra.mxu0 0.0
    %1557 = vmatprep.subr.mxu0 0.0
    %1558 = vmatpush1.msra.mxu0 0.0
    %1559 = vmatprep.subr.mxu0 0.0
    %1560 = vmatpush1.msra.mxu0 0.0
    %1561 = vmatprep.subr.mxu0 0.0
    %1562 = vmatpush1.msra.mxu0 0.0
    %1563 = vmatprep.subr.mxu0 0.0
    %1564 = vmatpush1.msra.mxu0 0.0
    %1565 = vmatprep.subr.mxu0 0.0
    %1566 = vmatpush1.msra.mxu0 0.0
    %1567 = vmatprep.subr.mxu0 0.0
    %1568 = vmatpush1.msra.mxu0 0.0
    %1569 = vmatprep.subr.mxu0 0.0
    %1570 = vmatpush1.msra.mxu0 0.0
    %1571 = vmatprep.subr.mxu0 0.0
    %1572 = vmatpush1.msra.mxu0 0.0
    %1573 = vmatprep.subr.mxu0 0.0
    %1574 = vmatpush1.msra.mxu0 0.0
    %1575 = vmatprep.subr.mxu0 0.0
    %1576 = vmatpush1.msra.mxu0 0.0
    %1577 = vmatprep.subr.mxu0 0.0
    %1578 = vmatpush1.msra.mxu0 0.0
    %1579 = vmatprep.subr.mxu0 0.0
    %1580 = vmatpush1.msra.mxu0 0.0
    %1581 = vmatprep.subr.mxu0 0.0
    %1582 = vmatpush1.msra.mxu0 0.0
    %1583 = vmatprep.subr.mxu0 0.0
    %1584 = vmatpush1.msra.mxu0 0.0
    %1585 = vmatprep.subr.mxu0 0.0
    %1586 = vmatpush1.msra.mxu0 0.0
    %1587 = vmatprep.subr.mxu0 0.0
    %1588 = vmatpush1.msra.mxu0 0.0
    %1589 = vmatprep.subr.mxu0 0.0
    %1590 = vmatpush1.msra.mxu0 0.0
    %1591 = vmatprep.subr.mxu0 0.0
    %1592 = vmatpush1.msra.mxu0 0.0
    %1593 = vmatprep.subr.mxu0 0.0
    %1594 = vmatpush1.msra.mxu0 0.0
    %1595 = vmatprep.subr.mxu0 0.0
    %1596 = vmatpush1.msra.mxu0 0.0
    %1597 = vmatprep.subr.mxu0 0.0
    %1598 = vmatpush1.msra.mxu0 0.0
    %1599 = vmatprep.subr.mxu0 0.0
    %1600 = vmatpush1.msra.mxu0 0.0
    %1601 = vmatprep.subr.mxu0 0.0
    %1602 = vmatpush1.msra.mxu0 0.0
    %1603 = vmatprep.subr.mxu0 0.0
    %1604 = vmatpush1.msra.mxu0 0.0
    %1605 = vmatprep.mubr.f32.mxu0 0.0
    %v1606 = vand.u32 %v1285, 4294901760
    %v1607 = vsub.f32 %v1285, %v1606
    %v1608 = vand.u32 %v1607, 4294901760
    %1609 = vmatmul.mubr.f32.gmra.mrb[0].mxu0 %v1608
    %v1610 = vpop.f32.mrb[0].mxu0
    %v1611 = vadd.f32 %v1534, %v1610
    %v1612 = vpop.f32.mrb[0].mxu0
    %1613 = vdwg.mxu0
    %1614 = vmatprep.subr.mxu0 0.0
    %v1615 = vand.u32 %v1279, 4294901760
    %v1616 = vsub.f32 %v1279, %v1615
    %v1617 = vand.u32 %v1616, 4294901760
    %1618 = vmatpush1.msra.mxu0 %v1617
    %1619 = vmatprep.subr.mxu0 0.0
    %v1620 = vand.u32 %v1280, 4294901760
    %v1621 = vsub.f32 %v1280, %v1620
    %v1622 = vand.u32 %v1621, 4294901760
    %1623 = vmatpush1.msra.mxu0 %v1622
    %1624 = vmatprep.subr.mxu0 0.0
    %v1625 = vand.u32 %v1281, 4294901760
    %v1626 = vsub.f32 %v1281, %v1625
    %v1627 = vand.u32 %v1626, 4294901760
    %1628 = vmatpush1.msra.mxu0 %v1627
    %1629 = vmatprep.subr.mxu0 0.0
    %v1630 = vand.u32 %v1282, 4294901760
    %v1631 = vsub.f32 %v1282, %v1630
    %v1632 = vand.u32 %v1631, 4294901760
    %1633 = vmatpush1.msra.mxu0 %v1632
    %1634 = vmatprep.subr.mxu0 0.0
    %1635 = vmatpush1.msra.mxu0 0.0
    %1636 = vmatprep.subr.mxu0 0.0
    %1637 = vmatpush1.msra.mxu0 0.0
    %1638 = vmatprep.subr.mxu0 0.0
    %1639 = vmatpush1.msra.mxu0 0.0
    %1640 = vmatprep.subr.mxu0 0.0
    %1641 = vmatpush1.msra.mxu0 0.0
    %1642 = vmatprep.subr.mxu0 0.0
    %1643 = vmatpush1.msra.mxu0 0.0
    %1644 = vmatprep.subr.mxu0 0.0
    %1645 = vmatpush1.msra.mxu0 0.0
    %1646 = vmatprep.subr.mxu0 0.0
    %1647 = vmatpush1.msra.mxu0 0.0
    %1648 = vmatprep.subr.mxu0 0.0
    %1649 = vmatpush1.msra.mxu0 0.0
    %1650 = vmatprep.subr.mxu0 0.0
    %1651 = vmatpush1.msra.mxu0 0.0
    %1652 = vmatprep.subr.mxu0 0.0
    %1653 = vmatpush1.msra.mxu0 0.0
    %1654 = vmatprep.subr.mxu0 0.0
    %1655 = vmatpush1.msra.mxu0 0.0
    %1656 = vmatprep.subr.mxu0 0.0
    %1657 = vmatpush1.msra.mxu0 0.0
    %1658 = vmatprep.subr.mxu0 0.0
    %1659 = vmatpush1.msra.mxu0 0.0
    %1660 = vmatprep.subr.mxu0 0.0
    %1661 = vmatpush1.msra.mxu0 0.0
    %1662 = vmatprep.subr.mxu0 0.0
    %1663 = vmatpush1.msra.mxu0 0.0
    %1664 = vmatprep.subr.mxu0 0.0
    %1665 = vmatpush1.msra.mxu0 0.0
    %1666 = vmatprep.subr.mxu0 0.0
    %1667 = vmatpush1.msra.mxu0 0.0
    %1668 = vmatprep.subr.mxu0 0.0
    %1669 = vmatpush1.msra.mxu0 0.0
    %1670 = vmatprep.subr.mxu0 0.0
    %1671 = vmatpush1.msra.mxu0 0.0
    %1672 = vmatprep.subr.mxu0 0.0
    %1673 = vmatpush1.msra.mxu0 0.0
    %1674 = vmatprep.subr.mxu0 0.0
    %1675 = vmatpush1.msra.mxu0 0.0
    %1676 = vmatprep.subr.mxu0 0.0
    %1677 = vmatpush1.msra.mxu0 0.0
    %1678 = vmatprep.subr.mxu0 0.0
    %1679 = vmatpush1.msra.mxu0 0.0
    %1680 = vmatprep.subr.mxu0 0.0
    %1681 = vmatpush1.msra.mxu0 0.0
    %1682 = vmatprep.subr.mxu0 0.0
    %1683 = vmatpush1.msra.mxu0 0.0
    %1684 = vmatprep.subr.mxu0 0.0
    %1685 = vmatpush1.msra.mxu0 0.0
    %1686 = vmatprep.subr.mxu0 0.0
    %1687 = vmatpush1.msra.mxu0 0.0
    %1688 = vmatprep.subr.mxu0 0.0
    %1689 = vmatpush1.msra.mxu0 0.0
    %1690 = vmatprep.mubr.f32.mxu0 0.0
    %v1691 = vand.u32 %v1285, 4294901760
    %1692 = vmatmul.mubr.f32.gmra.mrb[0].mxu0 %v1691
    %v1693 = vpop.f32.mrb[0].mxu0
    %v1694 = vadd.f32 %v1611, %v1693
    %v1695 = vpop.f32.mrb[0].mxu0
    %1696 = vdwg.mxu0
    %1697 = vmatprep.subr.mxu0 0.0
    %v1698 = vand.u32 %v1279, 4294901760
    %1699 = vmatpush1.msra.mxu0 %v1698
    %1700 = vmatprep.subr.mxu0 0.0
    %v1701 = vand.u32 %v1280, 4294901760
    %1702 = vmatpush1.msra.mxu0 %v1701
    %1703 = vmatprep.subr.mxu0 0.0
    %v1704 = vand.u32 %v1281, 4294901760
    %1705 = vmatpush1.msra.mxu0 %v1704
    %1706 = vmatprep.subr.mxu0 0.0
    %v1707 = vand.u32 %v1282, 4294901760
    %1708 = vmatpush1.msra.mxu0 %v1707
    %1709 = vmatprep.subr.mxu0 0.0
    %1710 = vmatpush1.msra.mxu0 0.0
    %1711 = vmatprep.subr.mxu0 0.0
    %1712 = vmatpush1.msra.mxu0 0.0
    %1713 = vmatprep.subr.mxu0 0.0
    %1714 = vmatpush1.msra.mxu0 0.0
    %1715 = vmatprep.subr.mxu0 0.0
    %1716 = vmatpush1.msra.mxu0 0.0
    %1717 = vmatprep.subr.mxu0 0.0
    %1718 = vmatpush1.msra.mxu0 0.0
    %1719 = vmatprep.subr.mxu0 0.0
    %1720 = vmatpush1.msra.mxu0 0.0
    %1721 = vmatprep.subr.mxu0 0.0
    %1722 = vmatpush1.msra.mxu0 0.0
    %1723 = vmatprep.subr.mxu0 0.0
    %1724 = vmatpush1.msra.mxu0 0.0
    %1725 = vmatprep.subr.mxu0 0.0
    %1726 = vmatpush1.msra.mxu0 0.0
    %1727 = vmatprep.subr.mxu0 0.0
    %1728 = vmatpush1.msra.mxu0 0.0
    %1729 = vmatprep.subr.mxu0 0.0
    %1730 = vmatpush1.msra.mxu0 0.0
    %1731 = vmatprep.subr.mxu0 0.0
    %1732 = vmatpush1.msra.mxu0 0.0
    %1733 = vmatprep.subr.mxu0 0.0
    %1734 = vmatpush1.msra.mxu0 0.0
    %1735 = vmatprep.subr.mxu0 0.0
    %1736 = vmatpush1.msra.mxu0 0.0
    %1737 = vmatprep.subr.mxu0 0.0
    %1738 = vmatpush1.msra.mxu0 0.0
    %1739 = vmatprep.subr.mxu0 0.0
    %1740 = vmatpush1.msra.mxu0 0.0
    %1741 = vmatprep.subr.mxu0 0.0
    %1742 = vmatpush1.msra.mxu0 0.0
    %1743 = vmatprep.subr.mxu0 0.0
    %1744 = vmatpush1.msra.mxu0 0.0
    %1745 = vmatprep.subr.mxu0 0.0
    %1746 = vmatpush1.msra.mxu0 0.0
    %1747 = vmatprep.subr.mxu0 0.0
    %1748 = vmatpush1.msra.mxu0 0.0
    %1749 = vmatprep.subr.mxu0 0.0
    %1750 = vmatpush1.msra.mxu0 0.0
    %1751 = vmatprep.subr.mxu0 0.0
    %1752 = vmatpush1.msra.mxu0 0.0
    %1753 = vmatprep.subr.mxu0 0.0
    %1754 = vmatpush1.msra.mxu0 0.0
    %1755 = vmatprep.subr.mxu0 0.0
    %1756 = vmatpush1.msra.mxu0 0.0
    %1757 = vmatprep.subr.mxu0 0.0
    %1758 = vmatpush1.msra.mxu0 0.0
    %1759 = vmatprep.subr.mxu0 0.0
    %1760 = vmatpush1.msra.mxu0 0.0
    %1761 = vmatprep.subr.mxu0 0.0
    %1762 = vmatpush1.msra.mxu0 0.0
    %1763 = vmatprep.subr.mxu0 0.0
    %1764 = vmatpush1.msra.mxu0 0.0
    %1765 = vmatprep.mubr.f32.mxu0 0.0
    %v1766 = vand.u32 %v1285, 4294901760
    %1767 = vmatmul.mubr.f32.gmra.mrb[0].mxu0 %v1766
    %v1768 = vpop.f32.mrb[0].mxu0
    %v1769 = vadd.f32 %v1694, %v1768
    %v1770 = vpop.f32.mrb[0].mxu0
    %1771 = vdwg.mxu0
    %v1772 = vadd.f32 %v1283, %v1769
    %v1773 = vxor.u32 %v1772, 2147483648
    %v1774 = vmul.f32 %v1773, 1.442695
    %v1775 = vpow.pop %v1774
    %v1776 = vadd.f32 %v1775, 1.0
    %v1777 = vrcp.pop %v1776
    %v1778 = vmul.f32 1.0, %v1777
    %v1779 = vtanh.pop %v1772
    %v1780 = vmul.f32 %v1778, 0.0
    %1782 = vrot.lane.b32.xlu0 %v1779, 64
    %v1783 = vpop.permute.xlu0 %1782
    %v1785 = vmul.f32 %v1778, %v1783
    %1787 = vrot.lane.b32.xlu0 %v1785, 32
    %v1788 = vpop.permute.xlu0 %1787
    %v1790 = vadd.f32 %v1780, %v1788
    %v1791 = vtanh.pop %v1790
    %1793 = vrot.lane.b32.xlu0 %v1791, 64
    %v1794 = vpop.permute.xlu0 %1793
    %v1796 = vmul.f32 %v1778, %v1794
    %v1797 = vld [vmem:[#allocation2 + $0x8] sm:$0xff]
    %1799 = vrot.lane.b32.xlu0 %v1796, 32
    %v1800 = vpop.permute.xlu0 %1799
    %v1801 = vsel %vm554, %v1800, 0
    %1803 = vmatprep.subr.mxu0 0.0
    %v1804 = vand.u32 %v1279, 4294901760
    %1805 = vmatpush1.msra.mxu0 %v1804
    %1806 = vmatprep.subr.mxu0 0.0
    %v1807 = vand.u32 %v1280, 4294901760
    %1808 = vmatpush1.msra.mxu0 %v1807
    %1809 = vmatprep.subr.mxu0 0.0
    %v1810 = vand.u32 %v1281, 4294901760
    %1811 = vmatpush1.msra.mxu0 %v1810
    %1812 = vmatprep.subr.mxu0 0.0
    %v1813 = vand.u32 %v1282, 4294901760
    %1814 = vmatpush1.msra.mxu0 %v1813
    %1815 = vmatprep.subr.mxu0 0.0
    %1816 = vmatpush1.msra.mxu0 0.0
    %1817 = vmatprep.subr.mxu0 0.0
    %1818 = vmatpush1.msra.mxu0 0.0
    %1819 = vmatprep.subr.mxu0 0.0
    %1820 = vmatpush1.msra.mxu0 0.0
    %1821 = vmatprep.subr.mxu0 0.0
    %1822 = vmatpush1.msra.mxu0 0.0
    %1823 = vmatprep.subr.mxu0 0.0
    %1824 = vmatpush1.msra.mxu0 0.0
    %1825 = vmatprep.subr.mxu0 0.0
    %1826 = vmatpush1.msra.mxu0 0.0
    %1827 = vmatprep.subr.mxu0 0.0
    %1828 = vmatpush1.msra.mxu0 0.0
    %1829 = vmatprep.subr.mxu0 0.0
    %1830 = vmatpush1.msra.mxu0 0.0
    %1831 = vmatprep.subr.mxu0 0.0
    %1832 = vmatpush1.msra.mxu0 0.0
    %1833 = vmatprep.subr.mxu0 0.0
    %1834 = vmatpush1.msra.mxu0 0.0
    %1835 = vmatprep.subr.mxu0 0.0
    %1836 = vmatpush1.msra.mxu0 0.0
    %1837 = vmatprep.subr.mxu0 0.0
    %1838 = vmatpush1.msra.mxu0 0.0
    %1839 = vmatprep.subr.mxu0 0.0
    %1840 = vmatpush1.msra.mxu0 0.0
    %1841 = vmatprep.subr.mxu0 0.0
    %1842 = vmatpush1.msra.mxu0 0.0
    %1843 = vmatprep.subr.mxu0 0.0
    %1844 = vmatpush1.msra.mxu0 0.0
    %1845 = vmatprep.subr.mxu0 0.0
    %1846 = vmatpush1.msra.mxu0 0.0
    %1847 = vmatprep.subr.mxu0 0.0
    %1848 = vmatpush1.msra.mxu0 0.0
    %1849 = vmatprep.subr.mxu0 0.0
    %1850 = vmatpush1.msra.mxu0 0.0
    %1851 = vmatprep.subr.mxu0 0.0
    %1852 = vmatpush1.msra.mxu0 0.0
    %1853 = vmatprep.subr.mxu0 0.0
    %1854 = vmatpush1.msra.mxu0 0.0
    %1855 = vmatprep.subr.mxu0 0.0
    %1856 = vmatpush1.msra.mxu0 0.0
    %1857 = vmatprep.subr.mxu0 0.0
    %1858 = vmatpush1.msra.mxu0 0.0
    %1859 = vmatprep.subr.mxu0 0.0
    %1860 = vmatpush1.msra.mxu0 0.0
    %1861 = vmatprep.subr.mxu0 0.0
    %1862 = vmatpush1.msra.mxu0 0.0
    %1863 = vmatprep.subr.mxu0 0.0
    %1864 = vmatpush1.msra.mxu0 0.0
    %1865 = vmatprep.subr.mxu0 0.0
    %1866 = vmatpush1.msra.mxu0 0.0
    %1867 = vmatprep.subr.mxu0 0.0
    %1868 = vmatpush1.msra.mxu0 0.0
    %1869 = vmatprep.subr.mxu0 0.0
    %1870 = vmatpush1.msra.mxu0 0.0
    %1871 = vmatprep.mubr.f32.mxu0 0.0
    %v1872 = vand.u32 %v1801, 4294901760
    %v1873 = vsub.f32 %v1801, %v1872
    %v1874 = vand.u32 %v1873, 4294901760
    %v1875 = vsub.f32 %v1873, %v1874
    %v1876 = vand.u32 %v1875, 4294901760
    %1877 = vmatmul.mubr.f32.gmra.mrb[0].mxu0 %v1876
    %v1878 = vpop.f32.mrb[0].mxu0
    %v1879 = vadd.f32 0.0, %v1878
    %v1880 = vpop.f32.mrb[0].mxu0
    %1881 = vdwg.mxu0
    %1882 = vmatprep.subr.mxu0 0.0
    %v1883 = vand.u32 %v1279, 4294901760
    %v1884 = vsub.f32 %v1279, %v1883
    %v1885 = vand.u32 %v1884, 4294901760
    %v1886 = vsub.f32 %v1884, %v1885
    %v1887 = vand.u32 %v1886, 4294901760
    %1888 = vmatpush1.msra.mxu0 %v1887
    %1889 = vmatprep.subr.mxu0 0.0
    %v1890 = vand.u32 %v1280, 4294901760
    %v1891 = vsub.f32 %v1280, %v1890
    %v1892 = vand.u32 %v1891, 4294901760
    %v1893 = vsub.f32 %v1891, %v1892
    %v1894 = vand.u32 %v1893, 4294901760
    %1895 = vmatpush1.msra.mxu0 %v1894
    %1896 = vmatprep.subr.mxu0 0.0
    %v1897 = vand.u32 %v1281, 4294901760
    %v1898 = vsub.f32 %v1281, %v1897
    %v1899 = vand.u32 %v1898, 4294901760
    %v1900 = vsub.f32 %v1898, %v1899
    %v1901 = vand.u32 %v1900, 4294901760
    %1902 = vmatpush1.msra.mxu0 %v1901
    %1903 = vmatprep.subr.mxu0 0.0
    %v1904 = vand.u32 %v1282, 4294901760
    %v1905 = vsub.f32 %v1282, %v1904
    %v1906 = vand.u32 %v1905, 4294901760
    %v1907 = vsub.f32 %v1905, %v1906
    %v1908 = vand.u32 %v1907, 4294901760
    %1909 = vmatpush1.msra.mxu0 %v1908
    %1910 = vmatprep.subr.mxu0 0.0
    %1911 = vmatpush1.msra.mxu0 0.0
    %1912 = vmatprep.subr.mxu0 0.0
    %1913 = vmatpush1.msra.mxu0 0.0
    %1914 = vmatprep.subr.mxu0 0.0
    %1915 = vmatpush1.msra.mxu0 0.0
    %1916 = vmatprep.subr.mxu0 0.0
    %1917 = vmatpush1.msra.mxu0 0.0
    %1918 = vmatprep.subr.mxu0 0.0
    %1919 = vmatpush1.msra.mxu0 0.0
    %1920 = vmatprep.subr.mxu0 0.0
    %1921 = vmatpush1.msra.mxu0 0.0
    %1922 = vmatprep.subr.mxu0 0.0
    %1923 = vmatpush1.msra.mxu0 0.0
    %1924 = vmatprep.subr.mxu0 0.0
    %1925 = vmatpush1.msra.mxu0 0.0
    %1926 = vmatprep.subr.mxu0 0.0
    %1927 = vmatpush1.msra.mxu0 0.0
    %1928 = vmatprep.subr.mxu0 0.0
    %1929 = vmatpush1.msra.mxu0 0.0
    %1930 = vmatprep.subr.mxu0 0.0
    %1931 = vmatpush1.msra.mxu0 0.0
    %1932 = vmatprep.subr.mxu0 0.0
    %1933 = vmatpush1.msra.mxu0 0.0
    %1934 = vmatprep.subr.mxu0 0.0
    %1935 = vmatpush1.msra.mxu0 0.0
    %1936 = vmatprep.subr.mxu0 0.0
    %1937 = vmatpush1.msra.mxu0 0.0
    %1938 = vmatprep.subr.mxu0 0.0
    %1939 = vmatpush1.msra.mxu0 0.0
    %1940 = vmatprep.subr.mxu0 0.0
    %1941 = vmatpush1.msra.mxu0 0.0
    %1942 = vmatprep.subr.mxu0 0.0
    %1943 = vmatpush1.msra.mxu0 0.0
    %1944 = vmatprep.subr.mxu0 0.0
    %1945 = vmatpush1.msra.mxu0 0.0
    %1946 = vmatprep.subr.mxu0 0.0
    %1947 = vmatpush1.msra.mxu0 0.0
    %1948 = vmatprep.subr.mxu0 0.0
    %1949 = vmatpush1.msra.mxu0 0.0
    %1950 = vmatprep.subr.mxu0 0.0
    %1951 = vmatpush1.msra.mxu0 0.0
    %1952 = vmatprep.subr.mxu0 0.0
    %1953 = vmatpush1.msra.mxu0 0.0
    %1954 = vmatprep.subr.mxu0 0.0
    %1955 = vmatpush1.msra.mxu0 0.0
    %1956 = vmatprep.subr.mxu0 0.0
    %1957 = vmatpush1.msra.mxu0 0.0
    %1958 = vmatprep.subr.mxu0 0.0
    %1959 = vmatpush1.msra.mxu0 0.0
    %1960 = vmatprep.subr.mxu0 0.0
    %1961 = vmatpush1.msra.mxu0 0.0
    %1962 = vmatprep.subr.mxu0 0.0
    %1963 = vmatpush1.msra.mxu0 0.0
    %1964 = vmatprep.subr.mxu0 0.0
    %1965 = vmatpush1.msra.mxu0 0.0
    %1966 = vmatprep.mubr.f32.mxu0 0.0
    %v1967 = vand.u32 %v1801, 4294901760
    %1968 = vmatmul.mubr.f32.gmra.mrb[0].mxu0 %v1967
    %v1969 = vpop.f32.mrb[0].mxu0
    %v1970 = vadd.f32 %v1879, %v1969
    %v1971 = vpop.f32.mrb[0].mxu0
    %1972 = vdwg.mxu0
    %1973 = vmatprep.subr.mxu0 0.0
    %v1974 = vand.u32 %v1279, 4294901760
    %v1975 = vsub.f32 %v1279, %v1974
    %1976 = vmatpush1.msra.mxu0 %v1975
    %1977 = vmatprep.subr.mxu0 0.0
    %v1978 = vand.u32 %v1280, 4294901760
    %v1979 = vsub.f32 %v1280, %v1978
    %1980 = vmatpush1.msra.mxu0 %v1979
    %1981 = vmatprep.subr.mxu0 0.0
    %v1982 = vand.u32 %v1281, 4294901760
    %v1983 = vsub.f32 %v1281, %v1982
    %1984 = vmatpush1.msra.mxu0 %v1983
    %1985 = vmatprep.subr.mxu0 0.0
    %v1986 = vand.u32 %v1282, 4294901760
    %v1987 = vsub.f32 %v1282, %v1986
    %1988 = vmatpush1.msra.mxu0 %v1987
    %1989 = vmatprep.subr.mxu0 0.0
    %1990 = vmatpush1.msra.mxu0 0.0
    %1991 = vmatprep.subr.mxu0 0.0
    %1992 = vmatpush1.msra.mxu0 0.0
    %1993 = vmatprep.subr.mxu0 0.0
    %1994 = vmatpush1.msra.mxu0 0.0
    %1995 = vmatprep.subr.mxu0 0.0
    %1996 = vmatpush1.msra.mxu0 0.0
    %1997 = vmatprep.subr.mxu0 0.0
    %1998 = vmatpush1.msra.mxu0 0.0
    %1999 = vmatprep.subr.mxu0 0.0
    %2000 = vmatpush1.msra.mxu0 0.0
    %2001 = vmatprep.subr.mxu0 0.0
    %2002 = vmatpush1.msra.mxu0 0.0
    %2003 = vmatprep.subr.mxu0 0.0
    %2004 = vmatpush1.msra.mxu0 0.0
    %2005 = vmatprep.subr.mxu0 0.0
    %2006 = vmatpush1.msra.mxu0 0.0
    %2007 = vmatprep.subr.mxu0 0.0
    %2008 = vmatpush1.msra.mxu0 0.0
    %2009 = vmatprep.subr.mxu0 0.0
    %2010 = vmatpush1.msra.mxu0 0.0
    %2011 = vmatprep.subr.mxu0 0.0
    %2012 = vmatpush1.msra.mxu0 0.0
    %2013 = vmatprep.subr.mxu0 0.0
    %2014 = vmatpush1.msra.mxu0 0.0
    %2015 = vmatprep.subr.mxu0 0.0
    %2016 = vmatpush1.msra.mxu0 0.0
    %2017 = vmatprep.subr.mxu0 0.0
    %2018 = vmatpush1.msra.mxu0 0.0
    %2019 = vmatprep.subr.mxu0 0.0
    %2020 = vmatpush1.msra.mxu0 0.0
    %2021 = vmatprep.subr.mxu0 0.0
    %2022 = vmatpush1.msra.mxu0 0.0
    %2023 = vmatprep.subr.mxu0 0.0
    %2024 = vmatpush1.msra.mxu0 0.0
    %2025 = vmatprep.subr.mxu0 0.0
    %2026 = vmatpush1.msra.mxu0 0.0
    %2027 = vmatprep.subr.mxu0 0.0
    %2028 = vmatpush1.msra.mxu0 0.0
    %2029 = vmatprep.subr.mxu0 0.0
    %2030 = vmatpush1.msra.mxu0 0.0
    %2031 = vmatprep.subr.mxu0 0.0
    %2032 = vmatpush1.msra.mxu0 0.0
    %2033 = vmatprep.subr.mxu0 0.0
    %2034 = vmatpush1.msra.mxu0 0.0
    %2035 = vmatprep.subr.mxu0 0.0
    %2036 = vmatpush1.msra.mxu0 0.0
    %2037 = vmatprep.subr.mxu0 0.0
    %2038 = vmatpush1.msra.mxu0 0.0
    %2039 = vmatprep.subr.mxu0 0.0
    %2040 = vmatpush1.msra.mxu0 0.0
    %2041 = vmatprep.subr.mxu0 0.0
    %2042 = vmatpush1.msra.mxu0 0.0
    %2043 = vmatprep.subr.mxu0 0.0
    %2044 = vmatpush1.msra.mxu0 0.0
    %2045 = vmatprep.mubr.f32.mxu0 0.0
    %v2046 = vand.u32 %v1801, 4294901760
    %v2047 = vsub.f32 %v1801, %v2046
    %2048 = vmatmul.mubr.f32.gmra.mrb[0].mxu0 %v2047
    %v2049 = vpop.f32.mrb[0].mxu0
    %v2050 = vadd.f32 %v1970, %v2049
    %v2051 = vpop.f32.mrb[0].mxu0
    %2052 = vdwg.mxu0
    %2053 = vmatprep.subr.mxu0 0.0
    %v2054 = vand.u32 %v1279, 4294901760
    %2055 = vmatpush1.msra.mxu0 %v2054
    %2056 = vmatprep.subr.mxu0 0.0
    %v2057 = vand.u32 %v1280, 4294901760
    %2058 = vmatpush1.msra.mxu0 %v2057
    %2059 = vmatprep.subr.mxu0 0.0
    %v2060 = vand.u32 %v1281, 4294901760
    %2061 = vmatpush1.msra.mxu0 %v2060
    %2062 = vmatprep.subr.mxu0 0.0
    %v2063 = vand.u32 %v1282, 4294901760
    %2064 = vmatpush1.msra.mxu0 %v2063
    %2065 = vmatprep.subr.mxu0 0.0
    %2066 = vmatpush1.msra.mxu0 0.0
    %2067 = vmatprep.subr.mxu0 0.0
    %2068 = vmatpush1.msra.mxu0 0.0
    %2069 = vmatprep.subr.mxu0 0.0
    %2070 = vmatpush1.msra.mxu0 0.0
    %2071 = vmatprep.subr.mxu0 0.0
    %2072 = vmatpush1.msra.mxu0 0.0
    %2073 = vmatprep.subr.mxu0 0.0
    %2074 = vmatpush1.msra.mxu0 0.0
    %2075 = vmatprep.subr.mxu0 0.0
    %2076 = vmatpush1.msra.mxu0 0.0
    %2077 = vmatprep.subr.mxu0 0.0
    %2078 = vmatpush1.msra.mxu0 0.0
    %2079 = vmatprep.subr.mxu0 0.0
    %2080 = vmatpush1.msra.mxu0 0.0
    %2081 = vmatprep.subr.mxu0 0.0
    %2082 = vmatpush1.msra.mxu0 0.0
    %2083 = vmatprep.subr.mxu0 0.0
    %2084 = vmatpush1.msra.mxu0 0.0
    %2085 = vmatprep.subr.mxu0 0.0
    %2086 = vmatpush1.msra.mxu0 0.0
    %2087 = vmatprep.subr.mxu0 0.0
    %2088 = vmatpush1.msra.mxu0 0.0
    %2089 = vmatprep.subr.mxu0 0.0
    %2090 = vmatpush1.msra.mxu0 0.0
    %2091 = vmatprep.subr.mxu0 0.0
    %2092 = vmatpush1.msra.mxu0 0.0
    %2093 = vmatprep.subr.mxu0 0.0
    %2094 = vmatpush1.msra.mxu0 0.0
    %2095 = vmatprep.subr.mxu0 0.0
    %2096 = vmatpush1.msra.mxu0 0.0
    %2097 = vmatprep.subr.mxu0 0.0
    %2098 = vmatpush1.msra.mxu0 0.0
    %2099 = vmatprep.subr.mxu0 0.0
    %2100 = vmatpush1.msra.mxu0 0.0
    %2101 = vmatprep.subr.mxu0 0.0
    %2102 = vmatpush1.msra.mxu0 0.0
    %2103 = vmatprep.subr.mxu0 0.0
    %2104 = vmatpush1.msra.mxu0 0.0
    %2105 = vmatprep.subr.mxu0 0.0
    %2106 = vmatpush1.msra.mxu0 0.0
    %2107 = vmatprep.subr.mxu0 0.0
    %2108 = vmatpush1.msra.mxu0 0.0
    %2109 = vmatprep.subr.mxu0 0.0
    %2110 = vmatpush1.msra.mxu0 0.0
    %2111 = vmatprep.subr.mxu0 0.0
    %2112 = vmatpush1.msra.mxu0 0.0
    %2113 = vmatprep.subr.mxu0 0.0
    %2114 = vmatpush1.msra.mxu0 0.0
    %2115 = vmatprep.subr.mxu0 0.0
    %2116 = vmatpush1.msra.mxu0 0.0
    %2117 = vmatprep.subr.mxu0 0.0
    %2118 = vmatpush1.msra.mxu0 0.0
    %2119 = vmatprep.subr.mxu0 0.0
    %2120 = vmatpush1.msra.mxu0 0.0
    %2121 = vmatprep.mubr.f32.mxu0 0.0
    %v2122 = vand.u32 %v1801, 4294901760
    %v2123 = vsub.f32 %v1801, %v2122
    %v2124 = vand.u32 %v2123, 4294901760
    %2125 = vmatmul.mubr.f32.gmra.mrb[0].mxu0 %v2124
    %v2126 = vpop.f32.mrb[0].mxu0
    %v2127 = vadd.f32 %v2050, %v2126
    %v2128 = vpop.f32.mrb[0].mxu0
    %2129 = vdwg.mxu0
    %2130 = vmatprep.subr.mxu0 0.0
    %v2131 = vand.u32 %v1279, 4294901760
    %v2132 = vsub.f32 %v1279, %v2131
    %v2133 = vand.u32 %v2132, 4294901760
    %2134 = vmatpush1.msra.mxu0 %v2133
    %2135 = vmatprep.subr.mxu0 0.0
    %v2136 = vand.u32 %v1280, 4294901760
    %v2137 = vsub.f32 %v1280, %v2136
    %v2138 = vand.u32 %v2137, 4294901760
    %2139 = vmatpush1.msra.mxu0 %v2138
    %2140 = vmatprep.subr.mxu0 0.0
    %v2141 = vand.u32 %v1281, 4294901760
    %v2142 = vsub.f32 %v1281, %v2141
    %v2143 = vand.u32 %v2142, 4294901760
    %2144 = vmatpush1.msra.mxu0 %v2143
    %2145 = vmatprep.subr.mxu0 0.0
    %v2146 = vand.u32 %v1282, 4294901760
    %v2147 = vsub.f32 %v1282, %v2146
    %v2148 = vand.u32 %v2147, 4294901760
    %2149 = vmatpush1.msra.mxu0 %v2148
    %2150 = vmatprep.subr.mxu0 0.0
    %2151 = vmatpush1.msra.mxu0 0.0
    %2152 = vmatprep.subr.mxu0 0.0
    %2153 = vmatpush1.msra.mxu0 0.0
    %2154 = vmatprep.subr.mxu0 0.0
    %2155 = vmatpush1.msra.mxu0 0.0
    %2156 = vmatprep.subr.mxu0 0.0
    %2157 = vmatpush1.msra.mxu0 0.0
    %2158 = vmatprep.subr.mxu0 0.0
    %2159 = vmatpush1.msra.mxu0 0.0
    %2160 = vmatprep.subr.mxu0 0.0
    %2161 = vmatpush1.msra.mxu0 0.0
    %2162 = vmatprep.subr.mxu0 0.0
    %2163 = vmatpush1.msra.mxu0 0.0
    %2164 = vmatprep.subr.mxu0 0.0
    %2165 = vmatpush1.msra.mxu0 0.0
    %2166 = vmatprep.subr.mxu0 0.0
    %2167 = vmatpush1.msra.mxu0 0.0
    %2168 = vmatprep.subr.mxu0 0.0
    %2169 = vmatpush1.msra.mxu0 0.0
    %2170 = vmatprep.subr.mxu0 0.0
    %2171 = vmatpush1.msra.mxu0 0.0
    %2172 = vmatprep.subr.mxu0 0.0
    %2173 = vmatpush1.msra.mxu0 0.0
    %2174 = vmatprep.subr.mxu0 0.0
    %2175 = vmatpush1.msra.mxu0 0.0
    %2176 = vmatprep.subr.mxu0 0.0
    %2177 = vmatpush1.msra.mxu0 0.0
    %2178 = vmatprep.subr.mxu0 0.0
    %2179 = vmatpush1.msra.mxu0 0.0
    %2180 = vmatprep.subr.mxu0 0.0
    %2181 = vmatpush1.msra.mxu0 0.0
    %2182 = vmatprep.subr.mxu0 0.0
    %2183 = vmatpush1.msra.mxu0 0.0
    %2184 = vmatprep.subr.mxu0 0.0
    %2185 = vmatpush1.msra.mxu0 0.0
    %2186 = vmatprep.subr.mxu0 0.0
    %2187 = vmatpush1.msra.mxu0 0.0
    %2188 = vmatprep.subr.mxu0 0.0
    %2189 = vmatpush1.msra.mxu0 0.0
    %2190 = vmatprep.subr.mxu0 0.0
    %2191 = vmatpush1.msra.mxu0 0.0
    %2192 = vmatprep.subr.mxu0 0.0
    %2193 = vmatpush1.msra.mxu0 0.0
    %2194 = vmatprep.subr.mxu0 0.0
    %2195 = vmatpush1.msra.mxu0 0.0
    %2196 = vmatprep.subr.mxu0 0.0
    %2197 = vmatpush1.msra.mxu0 0.0
    %2198 = vmatprep.subr.mxu0 0.0
    %2199 = vmatpush1.msra.mxu0 0.0
    %2200 = vmatprep.subr.mxu0 0.0
    %2201 = vmatpush1.msra.mxu0 0.0
    %2202 = vmatprep.subr.mxu0 0.0
    %2203 = vmatpush1.msra.mxu0 0.0
    %2204 = vmatprep.subr.mxu0 0.0
    %2205 = vmatpush1.msra.mxu0 0.0
    %2206 = vmatprep.mubr.f32.mxu0 0.0
    %v2207 = vand.u32 %v1801, 4294901760
    %2208 = vmatmul.mubr.f32.gmra.mrb[0].mxu0 %v2207
    %v2209 = vpop.f32.mrb[0].mxu0
    %v2210 = vadd.f32 %v2127, %v2209
    %v2211 = vpop.f32.mrb[0].mxu0
    %2212 = vdwg.mxu0
    %2213 = vmatprep.subr.mxu0 0.0
    %v2214 = vand.u32 %v1279, 4294901760
    %2215 = vmatpush1.msra.mxu0 %v2214
    %2216 = vmatprep.subr.mxu0 0.0
    %v2217 = vand.u32 %v1280, 4294901760
    %2218 = vmatpush1.msra.mxu0 %v2217
    %2219 = vmatprep.subr.mxu0 0.0
    %v2220 = vand.u32 %v1281, 4294901760
    %2221 = vmatpush1.msra.mxu0 %v2220
    %2222 = vmatprep.subr.mxu0 0.0
    %v2223 = vand.u32 %v1282, 4294901760
    %2224 = vmatpush1.msra.mxu0 %v2223
    %2225 = vmatprep.subr.mxu0 0.0
    %2226 = vmatpush1.msra.mxu0 0.0
    %2227 = vmatprep.subr.mxu0 0.0
    %2228 = vmatpush1.msra.mxu0 0.0
    %2229 = vmatprep.subr.mxu0 0.0
    %2230 = vmatpush1.msra.mxu0 0.0
    %2231 = vmatprep.subr.mxu0 0.0
    %2232 = vmatpush1.msra.mxu0 0.0
    %2233 = vmatprep.subr.mxu0 0.0
    %2234 = vmatpush1.msra.mxu0 0.0
    %2235 = vmatprep.subr.mxu0 0.0
    %2236 = vmatpush1.msra.mxu0 0.0
    %2237 = vmatprep.subr.mxu0 0.0
    %2238 = vmatpush1.msra.mxu0 0.0
    %2239 = vmatprep.subr.mxu0 0.0
    %2240 = vmatpush1.msra.mxu0 0.0
    %2241 = vmatprep.subr.mxu0 0.0
    %2242 = vmatpush1.msra.mxu0 0.0
    %2243 = vmatprep.subr.mxu0 0.0
    %2244 = vmatpush1.msra.mxu0 0.0
    %2245 = vmatprep.subr.mxu0 0.0
    %2246 = vmatpush1.msra.mxu0 0.0
    %2247 = vmatprep.subr.mxu0 0.0
    %2248 = vmatpush1.msra.mxu0 0.0
    %2249 = vmatprep.subr.mxu0 0.0
    %2250 = vmatpush1.msra.mxu0 0.0
    %2251 = vmatprep.subr.mxu0 0.0
    %2252 = vmatpush1.msra.mxu0 0.0
    %2253 = vmatprep.subr.mxu0 0.0
    %2254 = vmatpush1.msra.mxu0 0.0
    %2255 = vmatprep.subr.mxu0 0.0
    %2256 = vmatpush1.msra.mxu0 0.0
    %2257 = vmatprep.subr.mxu0 0.0
    %2258 = vmatpush1.msra.mxu0 0.0
    %2259 = vmatprep.subr.mxu0 0.0
    %2260 = vmatpush1.msra.mxu0 0.0
    %2261 = vmatprep.subr.mxu0 0.0
    %2262 = vmatpush1.msra.mxu0 0.0
    %2263 = vmatprep.subr.mxu0 0.0
    %2264 = vmatpush1.msra.mxu0 0.0
    %2265 = vmatprep.subr.mxu0 0.0
    %2266 = vmatpush1.msra.mxu0 0.0
    %2267 = vmatprep.subr.mxu0 0.0
    %2268 = vmatpush1.msra.mxu0 0.0
    %2269 = vmatprep.subr.mxu0 0.0
    %2270 = vmatpush1.msra.mxu0 0.0
    %2271 = vmatprep.subr.mxu0 0.0
    %2272 = vmatpush1.msra.mxu0 0.0
    %2273 = vmatprep.subr.mxu0 0.0
    %2274 = vmatpush1.msra.mxu0 0.0
    %2275 = vmatprep.subr.mxu0 0.0
    %2276 = vmatpush1.msra.mxu0 0.0
    %2277 = vmatprep.subr.mxu0 0.0
    %2278 = vmatpush1.msra.mxu0 0.0
    %2279 = vmatprep.subr.mxu0 0.0
    %2280 = vmatpush1.msra.mxu0 0.0
    %2281 = vmatprep.mubr.f32.mxu0 0.0
    %v2282 = vand.u32 %v1801, 4294901760
    %2283 = vmatmul.mubr.f32.gmra.mrb[0].mxu0 %v2282
    %v2284 = vpop.f32.mrb[0].mxu0
    %v2285 = vadd.f32 %v2210, %v2284
    %v2286 = vpop.f32.mrb[0].mxu0
    %2287 = vdwg.mxu0
    %v2288 = vadd.f32 %v1797, %v2285
    %v2289 = vxor.u32 %v2288, 2147483648
    %v2290 = vmul.f32 %v2289, 1.442695
    %v2291 = vpow.pop %v2290
    %v2292 = vadd.f32 %v2291, 1.0
    %v2293 = vrcp.pop %v2292
    %v2294 = vmul.f32 1.0, %v2293
    %v2295 = vtanh.pop %v2288
    %v2296 = vmul.f32 %v2294, %v1790
    %2298 = vrot.lane.b32.xlu0 %v2295, 64
    %v2299 = vpop.permute.xlu0 %2298
    %v2301 = vmul.f32 %v2294, %v2299
    %2303 = vrot.lane.b32.xlu0 %v2301, 32
    %v2304 = vpop.permute.xlu0 %2303
    %v2306 = vadd.f32 %v2296, %v2304
    %v2307 = vtanh.pop %v2306
    %2309 = vrot.lane.b32.xlu0 %v2307, 64
    %v2310 = vpop.permute.xlu0 %2309
    %v2312 = vmul.f32 %v2294, %v2310
    %v2313 = vld [vmem:[#allocation2 + $0x10] sm:$0xff]
    %2315 = vrot.lane.b32.xlu0 %v2312, 32
    %v2316 = vpop.permute.xlu0 %2315
    %v2317 = vsel %vm554, %v2316, 0
    %2319 = vmatprep.subr.mxu0 0.0
    %v2320 = vand.u32 %v1279, 4294901760
    %2321 = vmatpush1.msra.mxu0 %v2320
    %2322 = vmatprep.subr.mxu0 0.0
    %v2323 = vand.u32 %v1280, 4294901760
    %2324 = vmatpush1.msra.mxu0 %v2323
    %2325 = vmatprep.subr.mxu0 0.0
    %v2326 = vand.u32 %v1281, 4294901760
    %2327 = vmatpush1.msra.mxu0 %v2326
    %2328 = vmatprep.subr.mxu0 0.0
    %v2329 = vand.u32 %v1282, 4294901760
    %2330 = vmatpush1.msra.mxu0 %v2329
    %2331 = vmatprep.subr.mxu0 0.0
    %2332 = vmatpush1.msra.mxu0 0.0
    %2333 = vmatprep.subr.mxu0 0.0
    %2334 = vmatpush1.msra.mxu0 0.0
    %2335 = vmatprep.subr.mxu0 0.0
    %2336 = vmatpush1.msra.mxu0 0.0
    %2337 = vmatprep.subr.mxu0 0.0
    %2338 = vmatpush1.msra.mxu0 0.0
    %2339 = vmatprep.subr.mxu0 0.0
    %2340 = vmatpush1.msra.mxu0 0.0
    %2341 = vmatprep.subr.mxu0 0.0
    %2342 = vmatpush1.msra.mxu0 0.0
    %2343 = vmatprep.subr.mxu0 0.0
    %2344 = vmatpush1.msra.mxu0 0.0
    %2345 = vmatprep.subr.mxu0 0.0
    %2346 = vmatpush1.msra.mxu0 0.0
    %2347 = vmatprep.subr.mxu0 0.0
    %2348 = vmatpush1.msra.mxu0 0.0
    %2349 = vmatprep.subr.mxu0 0.0
    %2350 = vmatpush1.msra.mxu0 0.0
    %2351 = vmatprep.subr.mxu0 0.0
    %2352 = vmatpush1.msra.mxu0 0.0
    %2353 = vmatprep.subr.mxu0 0.0
    %2354 = vmatpush1.msra.mxu0 0.0
    %2355 = vmatprep.subr.mxu0 0.0
    %2356 = vmatpush1.msra.mxu0 0.0
    %2357 = vmatprep.subr.mxu0 0.0
    %2358 = vmatpush1.msra.mxu0 0.0
    %2359 = vmatprep.subr.mxu0 0.0
    %2360 = vmatpush1.msra.mxu0 0.0
    %2361 = vmatprep.subr.mxu0 0.0
    %2362 = vmatpush1.msra.mxu0 0.0
    %2363 = vmatprep.subr.mxu0 0.0
    %2364 = vmatpush1.msra.mxu0 0.0
    %2365 = vmatprep.subr.mxu0 0.0
    %2366 = vmatpush1.msra.mxu0 0.0
    %2367 = vmatprep.subr.mxu0 0.0
    %2368 = vmatpush1.msra.mxu0 0.0
    %2369 = vmatprep.subr.mxu0 0.0
    %2370 = vmatpush1.msra.mxu0 0.0
    %2371 = vmatprep.subr.mxu0 0.0
    %2372 = vmatpush1.msra.mxu0 0.0
    %2373 = vmatprep.subr.mxu0 0.0
    %2374 = vmatpush1.msra.mxu0 0.0
    %2375 = vmatprep.subr.mxu0 0.0
    %2376 = vmatpush1.msra.mxu0 0.0
    %2377 = vmatprep.subr.mxu0 0.0
    %2378 = vmatpush1.msra.mxu0 0.0
    %2379 = vmatprep.subr.mxu0 0.0
    %2380 = vmatpush1.msra.mxu0 0.0
    %2381 = vmatprep.subr.mxu0 0.0
    %2382 = vmatpush1.msra.mxu0 0.0
    %2383 = vmatprep.subr.mxu0 0.0
    %2384 = vmatpush1.msra.mxu0 0.0
    %2385 = vmatprep.subr.mxu0 0.0
    %2386 = vmatpush1.msra.mxu0 0.0
    %2387 = vmatprep.mubr.f32.mxu0 0.0
    %v2388 = vand.u32 %v2317, 4294901760
    %v2389 = vsub.f32 %v2317, %v2388
    %v2390 = vand.u32 %v2389, 4294901760
    %v2391 = vsub.f32 %v2389, %v2390
    %v2392 = vand.u32 %v2391, 4294901760
    %2393 = vmatmul.mubr.f32.gmra.mrb[0].mxu0 %v2392
    %v2394 = vpop.f32.mrb[0].mxu0
    %v2395 = vadd.f32 0.0, %v2394
    %v2396 = vpop.f32.mrb[0].mxu0
    %2397 = vdwg.mxu0
    %2398 = vmatprep.subr.mxu0 0.0
    %v2399 = vand.u32 %v1279, 4294901760
    %v2400 = vsub.f32 %v1279, %v2399
    %v2401 = vand.u32 %v2400, 4294901760
    %v2402 = vsub.f32 %v2400, %v2401
    %v2403 = vand.u32 %v2402, 4294901760
    %2404 = vmatpush1.msra.mxu0 %v2403
    %2405 = vmatprep.subr.mxu0 0.0
    %v2406 = vand.u32 %v1280, 4294901760
    %v2407 = vsub.f32 %v1280, %v2406
    %v2408 = vand.u32 %v2407, 4294901760
    %v2409 = vsub.f32 %v2407, %v2408
    %v2410 = vand.u32 %v2409, 4294901760
    %2411 = vmatpush1.msra.mxu0 %v2410
    %2412 = vmatprep.subr.mxu0 0.0
    %v2413 = vand.u32 %v1281, 4294901760
    %v2414 = vsub.f32 %v1281, %v2413
    %v2415 = vand.u32 %v2414, 4294901760
    %v2416 = vsub.f32 %v2414, %v2415
    %v2417 = vand.u32 %v2416, 4294901760
    %2418 = vmatpush1.msra.mxu0 %v2417
    %2419 = vmatprep.subr.mxu0 0.0
    %v2420 = vand.u32 %v1282, 4294901760
    %v2421 = vsub.f32 %v1282, %v2420
    %v2422 = vand.u32 %v2421, 4294901760
    %v2423 = vsub.f32 %v2421, %v2422
    %v2424 = vand.u32 %v2423, 4294901760
    %2425 = vmatpush1.msra.mxu0 %v2424
    %2426 = vmatprep.subr.mxu0 0.0
    %2427 = vmatpush1.msra.mxu0 0.0
    %2428 = vmatprep.subr.mxu0 0.0
    %2429 = vmatpush1.msra.mxu0 0.0
    %2430 = vmatprep.subr.mxu0 0.0
    %2431 = vmatpush1.msra.mxu0 0.0
    %2432 = vmatprep.subr.mxu0 0.0
    %2433 = vmatpush1.msra.mxu0 0.0
    %2434 = vmatprep.subr.mxu0 0.0
    %2435 = vmatpush1.msra.mxu0 0.0
    %2436 = vmatprep.subr.mxu0 0.0
    %2437 = vmatpush1.msra.mxu0 0.0
    %2438 = vmatprep.subr.mxu0 0.0
    %2439 = vmatpush1.msra.mxu0 0.0
    %2440 = vmatprep.subr.mxu0 0.0
    %2441 = vmatpush1.msra.mxu0 0.0
    %2442 = vmatprep.subr.mxu0 0.0
    %2443 = vmatpush1.msra.mxu0 0.0
    %2444 = vmatprep.subr.mxu0 0.0
    %2445 = vmatpush1.msra.mxu0 0.0
    %2446 = vmatprep.subr.mxu0 0.0
    %2447 = vmatpush1.msra.mxu0 0.0
    %2448 = vmatprep.subr.mxu0 0.0
    %2449 = vmatpush1.msra.mxu0 0.0
    %2450 = vmatprep.subr.mxu0 0.0
    %2451 = vmatpush1.msra.mxu0 0.0
    %2452 = vmatprep.subr.mxu0 0.0
    %2453 = vmatpush1.msra.mxu0 0.0
    %2454 = vmatprep.subr.mxu0 0.0
    %2455 = vmatpush1.msra.mxu0 0.0
    %2456 = vmatprep.subr.mxu0 0.0
    %2457 = vmatpush1.msra.mxu0 0.0
    %2458 = vmatprep.subr.mxu0 0.0
    %2459 = vmatpush1.msra.mxu0 0.0
    %2460 = vmatprep.subr.mxu0 0.0
    %2461 = vmatpush1.msra.mxu0 0.0
    %2462 = vmatprep.subr.mxu0 0.0
    %2463 = vmatpush1.msra.mxu0 0.0
    %2464 = vmatprep.subr.mxu0 0.0
    %2465 = vmatpush1.msra.mxu0 0.0
    %2466 = vmatprep.subr.mxu0 0.0
    %2467 = vmatpush1.msra.mxu0 0.0
    %2468 = vmatprep.subr.mxu0 0.0
    %2469 = vmatpush1.msra.mxu0 0.0
    %2470 = vmatprep.subr.mxu0 0.0
    %2471 = vmatpush1.msra.mxu0 0.0
    %2472 = vmatprep.subr.mxu0 0.0
    %2473 = vmatpush1.msra.mxu0 0.0
    %2474 = vmatprep.subr.mxu0 0.0
    %2475 = vmatpush1.msra.mxu0 0.0
    %2476 = vmatprep.subr.mxu0 0.0
    %2477 = vmatpush1.msra.mxu0 0.0
    %2478 = vmatprep.subr.mxu0 0.0
    %2479 = vmatpush1.msra.mxu0 0.0
    %2480 = vmatprep.subr.mxu0 0.0
    %2481 = vmatpush1.msra.mxu0 0.0
    %2482 = vmatprep.mubr.f32.mxu0 0.0
    %v2483 = vand.u32 %v2317, 4294901760
    %2484 = vmatmul.mubr.f32.gmra.mrb[0].mxu0 %v2483
    %v2485 = vpop.f32.mrb[0].mxu0
    %v2486 = vadd.f32 %v2395, %v2485
    %v2487 = vpop.f32.mrb[0].mxu0
    %2488 = vdwg.mxu0
    %2489 = vmatprep.subr.mxu0 0.0
    %v2490 = vand.u32 %v1279, 4294901760
    %v2491 = vsub.f32 %v1279, %v2490
    %2492 = vmatpush1.msra.mxu0 %v2491
    %2493 = vmatprep.subr.mxu0 0.0
    %v2494 = vand.u32 %v1280, 4294901760
    %v2495 = vsub.f32 %v1280, %v2494
    %2496 = vmatpush1.msra.mxu0 %v2495
    %2497 = vmatprep.subr.mxu0 0.0
    %v2498 = vand.u32 %v1281, 4294901760
    %v2499 = vsub.f32 %v1281, %v2498
    %2500 = vmatpush1.msra.mxu0 %v2499
    %2501 = vmatprep.subr.mxu0 0.0
    %v2502 = vand.u32 %v1282, 4294901760
    %v2503 = vsub.f32 %v1282, %v2502
    %2504 = vmatpush1.msra.mxu0 %v2503
    %2505 = vmatprep.subr.mxu0 0.0
    %2506 = vmatpush1.msra.mxu0 0.0
    %2507 = vmatprep.subr.mxu0 0.0
    %2508 = vmatpush1.msra.mxu0 0.0
    %2509 = vmatprep.subr.mxu0 0.0
    %2510 = vmatpush1.msra.mxu0 0.0
    %2511 = vmatprep.subr.mxu0 0.0
    %2512 = vmatpush1.msra.mxu0 0.0
    %2513 = vmatprep.subr.mxu0 0.0
    %2514 = vmatpush1.msra.mxu0 0.0
    %2515 = vmatprep.subr.mxu0 0.0
    %2516 = vmatpush1.msra.mxu0 0.0
    %2517 = vmatprep.subr.mxu0 0.0
    %2518 = vmatpush1.msra.mxu0 0.0
    %2519 = vmatprep.subr.mxu0 0.0
    %2520 = vmatpush1.msra.mxu0 0.0
    %2521 = vmatprep.subr.mxu0 0.0
    %2522 = vmatpush1.msra.mxu0 0.0
    %2523 = vmatprep.subr.mxu0 0.0
    %2524 = vmatpush1.msra.mxu0 0.0
    %2525 = vmatprep.subr.mxu0 0.0
    %2526 = vmatpush1.msra.mxu0 0.0
    %2527 = vmatprep.subr.mxu0 0.0
    %2528 = vmatpush1.msra.mxu0 0.0
    %2529 = vmatprep.subr.mxu0 0.0
    %2530 = vmatpush1.msra.mxu0 0.0
    %2531 = vmatprep.subr.mxu0 0.0
    %2532 = vmatpush1.msra.mxu0 0.0
    %2533 = vmatprep.subr.mxu0 0.0
    %2534 = vmatpush1.msra.mxu0 0.0
    %2535 = vmatprep.subr.mxu0 0.0
    %2536 = vmatpush1.msra.mxu0 0.0
    %2537 = vmatprep.subr.mxu0 0.0
    %2538 = vmatpush1.msra.mxu0 0.0
    %2539 = vmatprep.subr.mxu0 0.0
    %2540 = vmatpush1.msra.mxu0 0.0
    %2541 = vmatprep.subr.mxu0 0.0
    %2542 = vmatpush1.msra.mxu0 0.0
    %2543 = vmatprep.subr.mxu0 0.0
    %2544 = vmatpush1.msra.mxu0 0.0
    %2545 = vmatprep.subr.mxu0 0.0
    %2546 = vmatpush1.msra.mxu0 0.0
    %2547 = vmatprep.subr.mxu0 0.0
    %2548 = vmatpush1.msra.mxu0 0.0
    %2549 = vmatprep.subr.mxu0 0.0
    %2550 = vmatpush1.msra.mxu0 0.0
    %2551 = vmatprep.subr.mxu0 0.0
    %2552 = vmatpush1.msra.mxu0 0.0
    %2553 = vmatprep.subr.mxu0 0.0
    %2554 = vmatpush1.msra.mxu0 0.0
    %2555 = vmatprep.subr.mxu0 0.0
    %2556 = vmatpush1.msra.mxu0 0.0
    %2557 = vmatprep.subr.mxu0 0.0
    %2558 = vmatpush1.msra.mxu0 0.0
    %2559 = vmatprep.subr.mxu0 0.0
    %2560 = vmatpush1.msra.mxu0 0.0
    %2561 = vmatprep.mubr.f32.mxu0 0.0
    %v2562 = vand.u32 %v2317, 4294901760
    %v2563 = vsub.f32 %v2317, %v2562
    %2564 = vmatmul.mubr.f32.gmra.mrb[0].mxu0 %v2563
    %v2565 = vpop.f32.mrb[0].mxu0
    %v2566 = vadd.f32 %v2486, %v2565
    %v2567 = vpop.f32.mrb[0].mxu0
    %2568 = vdwg.mxu0
    %2569 = vmatprep.subr.mxu0 0.0
    %v2570 = vand.u32 %v1279, 4294901760
    %2571 = vmatpush1.msra.mxu0 %v2570
    %2572 = vmatprep.subr.mxu0 0.0
    %v2573 = vand.u32 %v1280, 4294901760
    %2574 = vmatpush1.msra.mxu0 %v2573
    %2575 = vmatprep.subr.mxu0 0.0
    %v2576 = vand.u32 %v1281, 4294901760
    %2577 = vmatpush1.msra.mxu0 %v2576
    %2578 = vmatprep.subr.mxu0 0.0
    %v2579 = vand.u32 %v1282, 4294901760
    %2580 = vmatpush1.msra.mxu0 %v2579
    %2581 = vmatprep.subr.mxu0 0.0
    %2582 = vmatpush1.msra.mxu0 0.0
    %2583 = vmatprep.subr.mxu0 0.0
    %2584 = vmatpush1.msra.mxu0 0.0
    %2585 = vmatprep.subr.mxu0 0.0
    %2586 = vmatpush1.msra.mxu0 0.0
    %2587 = vmatprep.subr.mxu0 0.0
    %2588 = vmatpush1.msra.mxu0 0.0
    %2589 = vmatprep.subr.mxu0 0.0
    %2590 = vmatpush1.msra.mxu0 0.0
    %2591 = vmatprep.subr.mxu0 0.0
    %2592 = vmatpush1.msra.mxu0 0.0
    %2593 = vmatprep.subr.mxu0 0.0
    %2594 = vmatpush1.msra.mxu0 0.0
    %2595 = vmatprep.subr.mxu0 0.0
    %2596 = vmatpush1.msra.mxu0 0.0
    %2597 = vmatprep.subr.mxu0 0.0
    %2598 = vmatpush1.msra.mxu0 0.0
    %2599 = vmatprep.subr.mxu0 0.0
    %2600 = vmatpush1.msra.mxu0 0.0
    %2601 = vmatprep.subr.mxu0 0.0
    %2602 = vmatpush1.msra.mxu0 0.0
    %2603 = vmatprep.subr.mxu0 0.0
    %2604 = vmatpush1.msra.mxu0 0.0
    %2605 = vmatprep.subr.mxu0 0.0
    %2606 = vmatpush1.msra.mxu0 0.0
    %2607 = vmatprep.subr.mxu0 0.0
    %2608 = vmatpush1.msra.mxu0 0.0
    %2609 = vmatprep.subr.mxu0 0.0
    %2610 = vmatpush1.msra.mxu0 0.0
    %2611 = vmatprep.subr.mxu0 0.0
    %2612 = vmatpush1.msra.mxu0 0.0
    %2613 = vmatprep.subr.mxu0 0.0
    %2614 = vmatpush1.msra.mxu0 0.0
    %2615 = vmatprep.subr.mxu0 0.0
    %2616 = vmatpush1.msra.mxu0 0.0
    %2617 = vmatprep.subr.mxu0 0.0
    %2618 = vmatpush1.msra.mxu0 0.0
    %2619 = vmatprep.subr.mxu0 0.0
    %2620 = vmatpush1.msra.mxu0 0.0
    %2621 = vmatprep.subr.mxu0 0.0
    %2622 = vmatpush1.msra.mxu0 0.0
    %2623 = vmatprep.subr.mxu0 0.0
    %2624 = vmatpush1.msra.mxu0 0.0
    %2625 = vmatprep.subr.mxu0 0.0
    %2626 = vmatpush1.msra.mxu0 0.0
    %2627 = vmatprep.subr.mxu0 0.0
    %2628 = vmatpush1.msra.mxu0 0.0
    %2629 = vmatprep.subr.mxu0 0.0
    %2630 = vmatpush1.msra.mxu0 0.0
    %2631 = vmatprep.subr.mxu0 0.0
    %2632 = vmatpush1.msra.mxu0 0.0
    %2633 = vmatprep.subr.mxu0 0.0
    %2634 = vmatpush1.msra.mxu0 0.0
    %2635 = vmatprep.subr.mxu0 0.0
    %2636 = vmatpush1.msra.mxu0 0.0
    %2637 = vmatprep.mubr.f32.mxu0 0.0
    %v2638 = vand.u32 %v2317, 4294901760
    %v2639 = vsub.f32 %v2317, %v2638
    %v2640 = vand.u32 %v2639, 4294901760
    %2641 = vmatmul.mubr.f32.gmra.mrb[0].mxu0 %v2640
    %v2642 = vpop.f32.mrb[0].mxu0
    %v2643 = vadd.f32 %v2566, %v2642
    %v2644 = vpop.f32.mrb[0].mxu0
    %2645 = vdwg.mxu0
    %2646 = vmatprep.subr.mxu0 0.0
    %v2647 = vand.u32 %v1279, 4294901760
    %v2648 = vsub.f32 %v1279, %v2647
    %v2649 = vand.u32 %v2648, 4294901760
    %2650 = vmatpush1.msra.mxu0 %v2649
    %2651 = vmatprep.subr.mxu0 0.0
    %v2652 = vand.u32 %v1280, 4294901760
    %v2653 = vsub.f32 %v1280, %v2652
    %v2654 = vand.u32 %v2653, 4294901760
    %2655 = vmatpush1.msra.mxu0 %v2654
    %2656 = vmatprep.subr.mxu0 0.0
    %v2657 = vand.u32 %v1281, 4294901760
    %v2658 = vsub.f32 %v1281, %v2657
    %v2659 = vand.u32 %v2658, 4294901760
    %2660 = vmatpush1.msra.mxu0 %v2659
    %2661 = vmatprep.subr.mxu0 0.0
    %v2662 = vand.u32 %v1282, 4294901760
    %v2663 = vsub.f32 %v1282, %v2662
    %v2664 = vand.u32 %v2663, 4294901760
    %2665 = vmatpush1.msra.mxu0 %v2664
    %2666 = vmatprep.subr.mxu0 0.0
    %2667 = vmatpush1.msra.mxu0 0.0
    %2668 = vmatprep.subr.mxu0 0.0
    %2669 = vmatpush1.msra.mxu0 0.0
    %2670 = vmatprep.subr.mxu0 0.0
    %2671 = vmatpush1.msra.mxu0 0.0
    %2672 = vmatprep.subr.mxu0 0.0
    %2673 = vmatpush1.msra.mxu0 0.0
    %2674 = vmatprep.subr.mxu0 0.0
    %2675 = vmatpush1.msra.mxu0 0.0
    %2676 = vmatprep.subr.mxu0 0.0
    %2677 = vmatpush1.msra.mxu0 0.0
    %2678 = vmatprep.subr.mxu0 0.0
    %2679 = vmatpush1.msra.mxu0 0.0
    %2680 = vmatprep.subr.mxu0 0.0
    %2681 = vmatpush1.msra.mxu0 0.0
    %2682 = vmatprep.subr.mxu0 0.0
    %2683 = vmatpush1.msra.mxu0 0.0
    %2684 = vmatprep.subr.mxu0 0.0
    %2685 = vmatpush1.msra.mxu0 0.0
    %2686 = vmatprep.subr.mxu0 0.0
    %2687 = vmatpush1.msra.mxu0 0.0
    %2688 = vmatprep.subr.mxu0 0.0
    %2689 = vmatpush1.msra.mxu0 0.0
    %2690 = vmatprep.subr.mxu0 0.0
    %2691 = vmatpush1.msra.mxu0 0.0
    %2692 = vmatprep.subr.mxu0 0.0
    %2693 = vmatpush1.msra.mxu0 0.0
    %2694 = vmatprep.subr.mxu0 0.0
    %2695 = vmatpush1.msra.mxu0 0.0
    %2696 = vmatprep.subr.mxu0 0.0
    %2697 = vmatpush1.msra.mxu0 0.0
    %2698 = vmatprep.subr.mxu0 0.0
    %2699 = vmatpush1.msra.mxu0 0.0
    %2700 = vmatprep.subr.mxu0 0.0
    %2701 = vmatpush1.msra.mxu0 0.0
    %2702 = vmatprep.subr.mxu0 0.0
    %2703 = vmatpush1.msra.mxu0 0.0
    %2704 = vmatprep.subr.mxu0 0.0
    %2705 = vmatpush1.msra.mxu0 0.0
    %2706 = vmatprep.subr.mxu0 0.0
    %2707 = vmatpush1.msra.mxu0 0.0
    %2708 = vmatprep.subr.mxu0 0.0
    %2709 = vmatpush1.msra.mxu0 0.0
    %2710 = vmatprep.subr.mxu0 0.0
    %2711 = vmatpush1.msra.mxu0 0.0
    %2712 = vmatprep.subr.mxu0 0.0
    %2713 = vmatpush1.msra.mxu0 0.0
    %2714 = vmatprep.subr.mxu0 0.0
    %2715 = vmatpush1.msra.mxu0 0.0
    %2716 = vmatprep.subr.mxu0 0.0
    %2717 = vmatpush1.msra.mxu0 0.0
    %2718 = vmatprep.subr.mxu0 0.0
    %2719 = vmatpush1.msra.mxu0 0.0
    %2720 = vmatprep.subr.mxu0 0.0
    %2721 = vmatpush1.msra.mxu0 0.0
    %2722 = vmatprep.mubr.f32.mxu0 0.0
    %v2723 = vand.u32 %v2317, 4294901760
    %2724 = vmatmul.mubr.f32.gmra.mrb[0].mxu0 %v2723
    %v2725 = vpop.f32.mrb[0].mxu0
    %v2726 = vadd.f32 %v2643, %v2725
    %v2727 = vpop.f32.mrb[0].mxu0
    %2728 = vdwg.mxu0
    %2729 = vmatprep.subr.mxu0 0.0
    %v2730 = vand.u32 %v1279, 4294901760
    %2731 = vmatpush1.msra.mxu0 %v2730
    %2732 = vmatprep.subr.mxu0 0.0
    %v2733 = vand.u32 %v1280, 4294901760
    %2734 = vmatpush1.msra.mxu0 %v2733
    %2735 = vmatprep.subr.mxu0 0.0
    %v2736 = vand.u32 %v1281, 4294901760
    %2737 = vmatpush1.msra.mxu0 %v2736
    %2738 = vmatprep.subr.mxu0 0.0
    %v2739 = vand.u32 %v1282, 4294901760
    %2740 = vmatpush1.msra.mxu0 %v2739
    %2741 = vmatprep.subr.mxu0 0.0
    %2742 = vmatpush1.msra.mxu0 0.0
    %2743 = vmatprep.subr.mxu0 0.0
    %2744 = vmatpush1.msra.mxu0 0.0
    %2745 = vmatprep.subr.mxu0 0.0
    %2746 = vmatpush1.msra.mxu0 0.0
    %2747 = vmatprep.subr.mxu0 0.0
    %2748 = vmatpush1.msra.mxu0 0.0
    %2749 = vmatprep.subr.mxu0 0.0
    %2750 = vmatpush1.msra.mxu0 0.0
    %2751 = vmatprep.subr.mxu0 0.0
    %2752 = vmatpush1.msra.mxu0 0.0
    %2753 = vmatprep.subr.mxu0 0.0
    %2754 = vmatpush1.msra.mxu0 0.0
    %2755 = vmatprep.subr.mxu0 0.0
    %2756 = vmatpush1.msra.mxu0 0.0
    %2757 = vmatprep.subr.mxu0 0.0
    %2758 = vmatpush1.msra.mxu0 0.0
    %2759 = vmatprep.subr.mxu0 0.0
    %2760 = vmatpush1.msra.mxu0 0.0
    %2761 = vmatprep.subr.mxu0 0.0
    %2762 = vmatpush1.msra.mxu0 0.0
    %2763 = vmatprep.subr.mxu0 0.0
    %2764 = vmatpush1.msra.mxu0 0.0
    %2765 = vmatprep.subr.mxu0 0.0
    %2766 = vmatpush1.msra.mxu0 0.0
    %2767 = vmatprep.subr.mxu0 0.0
    %2768 = vmatpush1.msra.mxu0 0.0
    %2769 = vmatprep.subr.mxu0 0.0
    %2770 = vmatpush1.msra.mxu0 0.0
    %2771 = vmatprep.subr.mxu0 0.0
    %2772 = vmatpush1.msra.mxu0 0.0
    %2773 = vmatprep.subr.mxu0 0.0
    %2774 = vmatpush1.msra.mxu0 0.0
    %2775 = vmatprep.subr.mxu0 0.0
    %2776 = vmatpush1.msra.mxu0 0.0
    %2777 = vmatprep.subr.mxu0 0.0
    %2778 = vmatpush1.msra.mxu0 0.0
    %2779 = vmatprep.subr.mxu0 0.0
    %2780 = vmatpush1.msra.mxu0 0.0
    %2781 = vmatprep.subr.mxu0 0.0
    %2782 = vmatpush1.msra.mxu0 0.0
    %2783 = vmatprep.subr.mxu0 0.0
    %2784 = vmatpush1.msra.mxu0 0.0
    %2785 = vmatprep.subr.mxu0 0.0
    %2786 = vmatpush1.msra.mxu0 0.0
    %2787 = vmatprep.subr.mxu0 0.0
    %2788 = vmatpush1.msra.mxu0 0.0
    %2789 = vmatprep.subr.mxu0 0.0
    %2790 = vmatpush1.msra.mxu0 0.0
    %2791 = vmatprep.subr.mxu0 0.0
    %2792 = vmatpush1.msra.mxu0 0.0
    %2793 = vmatprep.subr.mxu0 0.0
    %2794 = vmatpush1.msra.mxu0 0.0
    %2795 = vmatprep.subr.mxu0 0.0
    %2796 = vmatpush1.msra.mxu0 0.0
    %2797 = vmatprep.mubr.f32.mxu0 0.0
    %v2798 = vand.u32 %v2317, 4294901760
    %2799 = vmatmul.mubr.f32.gmra.mrb[0].mxu0 %v2798
    %v2800 = vpop.f32.mrb[0].mxu0
    %v2801 = vadd.f32 %v2726, %v2800
    %v2802 = vpop.f32.mrb[0].mxu0
    %2803 = vdwg.mxu0
    %v2804 = vadd.f32 %v2313, %v2801
    %v2805 = vxor.u32 %v2804, 2147483648
    %v2806 = vmul.f32 %v2805, 1.442695
    %v2807 = vpow.pop %v2806
    %v2808 = vadd.f32 %v2807, 1.0
    %v2809 = vrcp.pop %v2808
    %v2810 = vmul.f32 1.0, %v2809
    %v2811 = vtanh.pop %v2804
    %v2812 = vmul.f32 %v2810, %v2306
    %2814 = vrot.lane.b32.xlu0 %v2811, 64
    %v2815 = vpop.permute.xlu0 %2814
    %v2817 = vmul.f32 %v2810, %v2815
    %2819 = vrot.lane.b32.xlu0 %v2817, 32
    %v2820 = vpop.permute.xlu0 %2819
    %v2822 = vadd.f32 %v2812, %v2820
    %v2823 = vtanh.pop %v2822
    %2825 = vrot.lane.b32.xlu0 %v2823, 64
    %v2826 = vpop.permute.xlu0 %2825
    %v2828 = vmul.f32 %v2810, %v2826
    %v2829 = vld [vmem:[#allocation2 + $0x18] sm:$0xff]
    %2831 = vrot.lane.b32.xlu0 %v2828, 32
    %v2832 = vpop.permute.xlu0 %2831
    %v2833 = vsel %vm554, %v2832, 0
    %2835 = vmatprep.subr.mxu0 0.0
    %v2836 = vand.u32 %v1279, 4294901760
    %2837 = vmatpush1.msra.mxu0 %v2836
    %2838 = vmatprep.subr.mxu0 0.0
    %v2839 = vand.u32 %v1280, 4294901760
    %2840 = vmatpush1.msra.mxu0 %v2839
    %2841 = vmatprep.subr.mxu0 0.0
    %v2842 = vand.u32 %v1281, 4294901760
    %2843 = vmatpush1.msra.mxu0 %v2842
    %2844 = vmatprep.subr.mxu0 0.0
    %v2845 = vand.u32 %v1282, 4294901760
    %2846 = vmatpush1.msra.mxu0 %v2845
    %2847 = vmatprep.subr.mxu0 0.0
    %2848 = vmatpush1.msra.mxu0 0.0
    %2849 = vmatprep.subr.mxu0 0.0
    %2850 = vmatpush1.msra.mxu0 0.0
    %2851 = vmatprep.subr.mxu0 0.0
    %2852 = vmatpush1.msra.mxu0 0.0
    %2853 = vmatprep.subr.mxu0 0.0
    %2854 = vmatpush1.msra.mxu0 0.0
    %2855 = vmatprep.subr.mxu0 0.0
    %2856 = vmatpush1.msra.mxu0 0.0
    %2857 = vmatprep.subr.mxu0 0.0
    %2858 = vmatpush1.msra.mxu0 0.0
    %2859 = vmatprep.subr.mxu0 0.0
    %2860 = vmatpush1.msra.mxu0 0.0
    %2861 = vmatprep.subr.mxu0 0.0
    %2862 = vmatpush1.msra.mxu0 0.0
    %2863 = vmatprep.subr.mxu0 0.0
    %2864 = vmatpush1.msra.mxu0 0.0
    %2865 = vmatprep.subr.mxu0 0.0
    %2866 = vmatpush1.msra.mxu0 0.0
    %2867 = vmatprep.subr.mxu0 0.0
    %2868 = vmatpush1.msra.mxu0 0.0
    %2869 = vmatprep.subr.mxu0 0.0
    %2870 = vmatpush1.msra.mxu0 0.0
    %2871 = vmatprep.subr.mxu0 0.0
    %2872 = vmatpush1.msra.mxu0 0.0
    %2873 = vmatprep.subr.mxu0 0.0
    %2874 = vmatpush1.msra.mxu0 0.0
    %2875 = vmatprep.subr.mxu0 0.0
    %2876 = vmatpush1.msra.mxu0 0.0
    %2877 = vmatprep.subr.mxu0 0.0
    %2878 = vmatpush1.msra.mxu0 0.0
    %2879 = vmatprep.subr.mxu0 0.0
    %2880 = vmatpush1.msra.mxu0 0.0
    %2881 = vmatprep.subr.mxu0 0.0
    %2882 = vmatpush1.msra.mxu0 0.0
    %2883 = vmatprep.subr.mxu0 0.0
    %2884 = vmatpush1.msra.mxu0 0.0
    %2885 = vmatprep.subr.mxu0 0.0
    %2886 = vmatpush1.msra.mxu0 0.0
    %2887 = vmatprep.subr.mxu0 0.0
    %2888 = vmatpush1.msra.mxu0 0.0
    %2889 = vmatprep.subr.mxu0 0.0
    %2890 = vmatpush1.msra.mxu0 0.0
    %2891 = vmatprep.subr.mxu0 0.0
    %2892 = vmatpush1.msra.mxu0 0.0
    %2893 = vmatprep.subr.mxu0 0.0
    %2894 = vmatpush1.msra.mxu0 0.0
    %2895 = vmatprep.subr.mxu0 0.0
    %2896 = vmatpush1.msra.mxu0 0.0
    %2897 = vmatprep.subr.mxu0 0.0
    %2898 = vmatpush1.msra.mxu0 0.0
    %2899 = vmatprep.subr.mxu0 0.0
    %2900 = vmatpush1.msra.mxu0 0.0
    %2901 = vmatprep.subr.mxu0 0.0
    %2902 = vmatpush1.msra.mxu0 0.0
    %2903 = vmatprep.mubr.f32.mxu0 0.0
    %v2904 = vand.u32 %v2833, 4294901760
    %v2905 = vsub.f32 %v2833, %v2904
    %v2906 = vand.u32 %v2905, 4294901760
    %v2907 = vsub.f32 %v2905, %v2906
    %v2908 = vand.u32 %v2907, 4294901760
    %2909 = vmatmul.mubr.f32.gmra.mrb[0].mxu0 %v2908
    %v2910 = vpop.f32.mrb[0].mxu0
    %v2911 = vadd.f32 0.0, %v2910
    %v2912 = vpop.f32.mrb[0].mxu0
    %2913 = vdwg.mxu0
    %2914 = vmatprep.subr.mxu0 0.0
    %v2915 = vand.u32 %v1279, 4294901760
    %v2916 = vsub.f32 %v1279, %v2915
    %v2917 = vand.u32 %v2916, 4294901760
    %v2918 = vsub.f32 %v2916, %v2917
    %v2919 = vand.u32 %v2918, 4294901760
    %2920 = vmatpush1.msra.mxu0 %v2919
    %2921 = vmatprep.subr.mxu0 0.0
    %v2922 = vand.u32 %v1280, 4294901760
    %v2923 = vsub.f32 %v1280, %v2922
    %v2924 = vand.u32 %v2923, 4294901760
    %v2925 = vsub.f32 %v2923, %v2924
    %v2926 = vand.u32 %v2925, 4294901760
    %2927 = vmatpush1.msra.mxu0 %v2926
    %2928 = vmatprep.subr.mxu0 0.0
    %v2929 = vand.u32 %v1281, 4294901760
    %v2930 = vsub.f32 %v1281, %v2929
    %v2931 = vand.u32 %v2930, 4294901760
    %v2932 = vsub.f32 %v2930, %v2931
    %v2933 = vand.u32 %v2932, 4294901760
    %2934 = vmatpush1.msra.mxu0 %v2933
    %2935 = vmatprep.subr.mxu0 0.0
    %v2936 = vand.u32 %v1282, 4294901760
    %v2937 = vsub.f32 %v1282, %v2936
    %v2938 = vand.u32 %v2937, 4294901760
    %v2939 = vsub.f32 %v2937, %v2938
    %v2940 = vand.u32 %v2939, 4294901760
    %2941 = vmatpush1.msra.mxu0 %v2940
    %2942 = vmatprep.subr.mxu0 0.0
    %2943 = vmatpush1.msra.mxu0 0.0
    %2944 = vmatprep.subr.mxu0 0.0
    %2945 = vmatpush1.msra.mxu0 0.0
    %2946 = vmatprep.subr.mxu0 0.0
    %2947 = vmatpush1.msra.mxu0 0.0
    %2948 = vmatprep.subr.mxu0 0.0
    %2949 = vmatpush1.msra.mxu0 0.0
    %2950 = vmatprep.subr.mxu0 0.0
    %2951 = vmatpush1.msra.mxu0 0.0
    %2952 = vmatprep.subr.mxu0 0.0
    %2953 = vmatpush1.msra.mxu0 0.0
    %2954 = vmatprep.subr.mxu0 0.0
    %2955 = vmatpush1.msra.mxu0 0.0
    %2956 = vmatprep.subr.mxu0 0.0
    %2957 = vmatpush1.msra.mxu0 0.0
    %2958 = vmatprep.subr.mxu0 0.0
    %2959 = vmatpush1.msra.mxu0 0.0
    %2960 = vmatprep.subr.mxu0 0.0
    %2961 = vmatpush1.msra.mxu0 0.0
    %2962 = vmatprep.subr.mxu0 0.0
    %2963 = vmatpush1.msra.mxu0 0.0
    %2964 = vmatprep.subr.mxu0 0.0
    %2965 = vmatpush1.msra.mxu0 0.0
    %2966 = vmatprep.subr.mxu0 0.0
    %2967 = vmatpush1.msra.mxu0 0.0
    %2968 = vmatprep.subr.mxu0 0.0
    %2969 = vmatpush1.msra.mxu0 0.0
    %2970 = vmatprep.subr.mxu0 0.0
    %2971 = vmatpush1.msra.mxu0 0.0
    %2972 = vmatprep.subr.mxu0 0.0
    %2973 = vmatpush1.msra.mxu0 0.0
    %2974 = vmatprep.subr.mxu0 0.0
    %2975 = vmatpush1.msra.mxu0 0.0
    %2976 = vmatprep.subr.mxu0 0.0
    %2977 = vmatpush1.msra.mxu0 0.0
    %2978 = vmatprep.subr.mxu0 0.0
    %2979 = vmatpush1.msra.mxu0 0.0
    %2980 = vmatprep.subr.mxu0 0.0
    %2981 = vmatpush1.msra.mxu0 0.0
    %2982 = vmatprep.subr.mxu0 0.0
    %2983 = vmatpush1.msra.mxu0 0.0
    %2984 = vmatprep.subr.mxu0 0.0
    %2985 = vmatpush1.msra.mxu0 0.0
    %2986 = vmatprep.subr.mxu0 0.0
    %2987 = vmatpush1.msra.mxu0 0.0
    %2988 = vmatprep.subr.mxu0 0.0
    %2989 = vmatpush1.msra.mxu0 0.0
    %2990 = vmatprep.subr.mxu0 0.0
    %2991 = vmatpush1.msra.mxu0 0.0
    %2992 = vmatprep.subr.mxu0 0.0
    %2993 = vmatpush1.msra.mxu0 0.0
    %2994 = vmatprep.subr.mxu0 0.0
    %2995 = vmatpush1.msra.mxu0 0.0
    %2996 = vmatprep.subr.mxu0 0.0
    %2997 = vmatpush1.msra.mxu0 0.0
    %2998 = vmatprep.mubr.f32.mxu0 0.0
    %v2999 = vand.u32 %v2833, 4294901760
    %3000 = vmatmul.mubr.f32.gmra.mrb[0].mxu0 %v2999
    %v3001 = vpop.f32.mrb[0].mxu0
    %v3002 = vadd.f32 %v2911, %v3001
    %v3003 = vpop.f32.mrb[0].mxu0
    %3004 = vdwg.mxu0
    %3005 = vmatprep.subr.mxu0 0.0
    %v3006 = vand.u32 %v1279, 4294901760
    %v3007 = vsub.f32 %v1279, %v3006
    %3008 = vmatpush1.msra.mxu0 %v3007
    %3009 = vmatprep.subr.mxu0 0.0
    %v3010 = vand.u32 %v1280, 4294901760
    %v3011 = vsub.f32 %v1280, %v3010
    %3012 = vmatpush1.msra.mxu0 %v3011
    %3013 = vmatprep.subr.mxu0 0.0
    %v3014 = vand.u32 %v1281, 4294901760
    %v3015 = vsub.f32 %v1281, %v3014
    %3016 = vmatpush1.msra.mxu0 %v3015
    %3017 = vmatprep.subr.mxu0 0.0
    %v3018 = vand.u32 %v1282, 4294901760
    %v3019 = vsub.f32 %v1282, %v3018
    %3020 = vmatpush1.msra.mxu0 %v3019
    %3021 = vmatprep.subr.mxu0 0.0
    %3022 = vmatpush1.msra.mxu0 0.0
    %3023 = vmatprep.subr.mxu0 0.0
    %3024 = vmatpush1.msra.mxu0 0.0
    %3025 = vmatprep.subr.mxu0 0.0
    %3026 = vmatpush1.msra.mxu0 0.0
    %3027 = vmatprep.subr.mxu0 0.0
    %3028 = vmatpush1.msra.mxu0 0.0
    %3029 = vmatprep.subr.mxu0 0.0
    %3030 = vmatpush1.msra.mxu0 0.0
    %3031 = vmatprep.subr.mxu0 0.0
    %3032 = vmatpush1.msra.mxu0 0.0
    %3033 = vmatprep.subr.mxu0 0.0
    %3034 = vmatpush1.msra.mxu0 0.0
    %3035 = vmatprep.subr.mxu0 0.0
    %3036 = vmatpush1.msra.mxu0 0.0
    %3037 = vmatprep.subr.mxu0 0.0
    %3038 = vmatpush1.msra.mxu0 0.0
    %3039 = vmatprep.subr.mxu0 0.0
    %3040 = vmatpush1.msra.mxu0 0.0
    %3041 = vmatprep.subr.mxu0 0.0
    %3042 = vmatpush1.msra.mxu0 0.0
    %3043 = vmatprep.subr.mxu0 0.0
    %3044 = vmatpush1.msra.mxu0 0.0
    %3045 = vmatprep.subr.mxu0 0.0
    %3046 = vmatpush1.msra.mxu0 0.0
    %3047 = vmatprep.subr.mxu0 0.0
    %3048 = vmatpush1.msra.mxu0 0.0
    %3049 = vmatprep.subr.mxu0 0.0
    %3050 = vmatpush1.msra.mxu0 0.0
    %3051 = vmatprep.subr.mxu0 0.0
    %3052 = vmatpush1.msra.mxu0 0.0
    %3053 = vmatprep.subr.mxu0 0.0
    %3054 = vmatpush1.msra.mxu0 0.0
    %3055 = vmatprep.subr.mxu0 0.0
    %3056 = vmatpush1.msra.mxu0 0.0
    %3057 = vmatprep.subr.mxu0 0.0
    %3058 = vmatpush1.msra.mxu0 0.0
    %3059 = vmatprep.subr.mxu0 0.0
    %3060 = vmatpush1.msra.mxu0 0.0
    %3061 = vmatprep.subr.mxu0 0.0
    %3062 = vmatpush1.msra.mxu0 0.0
    %3063 = vmatprep.subr.mxu0 0.0
    %3064 = vmatpush1.msra.mxu0 0.0
    %3065 = vmatprep.subr.mxu0 0.0
    %3066 = vmatpush1.msra.mxu0 0.0
    %3067 = vmatprep.subr.mxu0 0.0
    %3068 = vmatpush1.msra.mxu0 0.0
    %3069 = vmatprep.subr.mxu0 0.0
    %3070 = vmatpush1.msra.mxu0 0.0
    %3071 = vmatprep.subr.mxu0 0.0
    %3072 = vmatpush1.msra.mxu0 0.0
    %3073 = vmatprep.subr.mxu0 0.0
    %3074 = vmatpush1.msra.mxu0 0.0
    %3075 = vmatprep.subr.mxu0 0.0
    %3076 = vmatpush1.msra.mxu0 0.0
    %3077 = vmatprep.mubr.f32.mxu0 0.0
    %v3078 = vand.u32 %v2833, 4294901760
    %v3079 = vsub.f32 %v2833, %v3078
    %3080 = vmatmul.mubr.f32.gmra.mrb[0].mxu0 %v3079
    %v3081 = vpop.f32.mrb[0].mxu0
    %v3082 = vadd.f32 %v3002, %v3081
    %v3083 = vpop.f32.mrb[0].mxu0
    %3084 = vdwg.mxu0
    %3085 = vmatprep.subr.mxu0 0.0
    %v3086 = vand.u32 %v1279, 4294901760
    %3087 = vmatpush1.msra.mxu0 %v3086
    %3088 = vmatprep.subr.mxu0 0.0
    %v3089 = vand.u32 %v1280, 4294901760
    %3090 = vmatpush1.msra.mxu0 %v3089
    %3091 = vmatprep.subr.mxu0 0.0
    %v3092 = vand.u32 %v1281, 4294901760
    %3093 = vmatpush1.msra.mxu0 %v3092
    %3094 = vmatprep.subr.mxu0 0.0
    %v3095 = vand.u32 %v1282, 4294901760
    %3096 = vmatpush1.msra.mxu0 %v3095
    %3097 = vmatprep.subr.mxu0 0.0
    %3098 = vmatpush1.msra.mxu0 0.0
    %3099 = vmatprep.subr.mxu0 0.0
    %3100 = vmatpush1.msra.mxu0 0.0
    %3101 = vmatprep.subr.mxu0 0.0
    %3102 = vmatpush1.msra.mxu0 0.0
    %3103 = vmatprep.subr.mxu0 0.0
    %3104 = vmatpush1.msra.mxu0 0.0
    %3105 = vmatprep.subr.mxu0 0.0
    %3106 = vmatpush1.msra.mxu0 0.0
    %3107 = vmatprep.subr.mxu0 0.0
    %3108 = vmatpush1.msra.mxu0 0.0
    %3109 = vmatprep.subr.mxu0 0.0
    %3110 = vmatpush1.msra.mxu0 0.0
    %3111 = vmatprep.subr.mxu0 0.0
    %3112 = vmatpush1.msra.mxu0 0.0
    %3113 = vmatprep.subr.mxu0 0.0
    %3114 = vmatpush1.msra.mxu0 0.0
    %3115 = vmatprep.subr.mxu0 0.0
    %3116 = vmatpush1.msra.mxu0 0.0
    %3117 = vmatprep.subr.mxu0 0.0
    %3118 = vmatpush1.msra.mxu0 0.0
    %3119 = vmatprep.subr.mxu0 0.0
    %3120 = vmatpush1.msra.mxu0 0.0
    %3121 = vmatprep.subr.mxu0 0.0
    %3122 = vmatpush1.msra.mxu0 0.0
    %3123 = vmatprep.subr.mxu0 0.0
    %3124 = vmatpush1.msra.mxu0 0.0
    %3125 = vmatprep.subr.mxu0 0.0
    %3126 = vmatpush1.msra.mxu0 0.0
    %3127 = vmatprep.subr.mxu0 0.0
    %3128 = vmatpush1.msra.mxu0 0.0
    %3129 = vmatprep.subr.mxu0 0.0
    %3130 = vmatpush1.msra.mxu0 0.0
    %3131 = vmatprep.subr.mxu0 0.0
    %3132 = vmatpush1.msra.mxu0 0.0
    %3133 = vmatprep.subr.mxu0 0.0
    %3134 = vmatpush1.msra.mxu0 0.0
    %3135 = vmatprep.subr.mxu0 0.0
    %3136 = vmatpush1.msra.mxu0 0.0
    %3137 = vmatprep.subr.mxu0 0.0
    %3138 = vmatpush1.msra.mxu0 0.0
    %3139 = vmatprep.subr.mxu0 0.0
    %3140 = vmatpush1.msra.mxu0 0.0
    %3141 = vmatprep.subr.mxu0 0.0
    %3142 = vmatpush1.msra.mxu0 0.0
    %3143 = vmatprep.subr.mxu0 0.0
    %3144 = vmatpush1.msra.mxu0 0.0
    %3145 = vmatprep.subr.mxu0 0.0
    %3146 = vmatpush1.msra.mxu0 0.0
    %3147 = vmatprep.subr.mxu0 0.0
    %3148 = vmatpush1.msra.mxu0 0.0
    %3149 = vmatprep.subr.mxu0 0.0
    %3150 = vmatpush1.msra.mxu0 0.0
    %3151 = vmatprep.subr.mxu0 0.0
    %3152 = vmatpush1.msra.mxu0 0.0
    %3153 = vmatprep.mubr.f32.mxu0 0.0
    %v3154 = vand.u32 %v2833, 4294901760
    %v3155 = vsub.f32 %v2833, %v3154
    %v3156 = vand.u32 %v3155, 4294901760
    %3157 = vmatmul.mubr.f32.gmra.mrb[0].mxu0 %v3156
    %v3158 = vpop.f32.mrb[0].mxu0
    %v3159 = vadd.f32 %v3082, %v3158
    %v3160 = vpop.f32.mrb[0].mxu0
    %3161 = vdwg.mxu0
    %3162 = vmatprep.subr.mxu0 0.0
    %v3163 = vand.u32 %v1279, 4294901760
    %v3164 = vsub.f32 %v1279, %v3163
    %v3165 = vand.u32 %v3164, 4294901760
    %3166 = vmatpush1.msra.mxu0 %v3165
    %3167 = vmatprep.subr.mxu0 0.0
    %v3168 = vand.u32 %v1280, 4294901760
    %v3169 = vsub.f32 %v1280, %v3168
    %v3170 = vand.u32 %v3169, 4294901760
    %3171 = vmatpush1.msra.mxu0 %v3170
    %3172 = vmatprep.subr.mxu0 0.0
    %v3173 = vand.u32 %v1281, 4294901760
    %v3174 = vsub.f32 %v1281, %v3173
    %v3175 = vand.u32 %v3174, 4294901760
    %3176 = vmatpush1.msra.mxu0 %v3175
    %3177 = vmatprep.subr.mxu0 0.0
    %v3178 = vand.u32 %v1282, 4294901760
    %v3179 = vsub.f32 %v1282, %v3178
    %v3180 = vand.u32 %v3179, 4294901760
    %3181 = vmatpush1.msra.mxu0 %v3180
    %3182 = vmatprep.subr.mxu0 0.0
    %3183 = vmatpush1.msra.mxu0 0.0
    %3184 = vmatprep.subr.mxu0 0.0
    %3185 = vmatpush1.msra.mxu0 0.0
    %3186 = vmatprep.subr.mxu0 0.0
    %3187 = vmatpush1.msra.mxu0 0.0
    %3188 = vmatprep.subr.mxu0 0.0
    %3189 = vmatpush1.msra.mxu0 0.0
    %3190 = vmatprep.subr.mxu0 0.0
    %3191 = vmatpush1.msra.mxu0 0.0
    %3192 = vmatprep.subr.mxu0 0.0
    %3193 = vmatpush1.msra.mxu0 0.0
    %3194 = vmatprep.subr.mxu0 0.0
    %3195 = vmatpush1.msra.mxu0 0.0
    %3196 = vmatprep.subr.mxu0 0.0
    %3197 = vmatpush1.msra.mxu0 0.0
    %3198 = vmatprep.subr.mxu0 0.0
    %3199 = vmatpush1.msra.mxu0 0.0
    %3200 = vmatprep.subr.mxu0 0.0
    %3201 = vmatpush1.msra.mxu0 0.0
    %3202 = vmatprep.subr.mxu0 0.0
    %3203 = vmatpush1.msra.mxu0 0.0
    %3204 = vmatprep.subr.mxu0 0.0
    %3205 = vmatpush1.msra.mxu0 0.0
    %3206 = vmatprep.subr.mxu0 0.0
    %3207 = vmatpush1.msra.mxu0 0.0
    %3208 = vmatprep.subr.mxu0 0.0
    %3209 = vmatpush1.msra.mxu0 0.0
    %3210 = vmatprep.subr.mxu0 0.0
    %3211 = vmatpush1.msra.mxu0 0.0
    %3212 = vmatprep.subr.mxu0 0.0
    %3213 = vmatpush1.msra.mxu0 0.0
    %3214 = vmatprep.subr.mxu0 0.0
    %3215 = vmatpush1.msra.mxu0 0.0
    %3216 = vmatprep.subr.mxu0 0.0
    %3217 = vmatpush1.msra.mxu0 0.0
    %3218 = vmatprep.subr.mxu0 0.0
    %3219 = vmatpush1.msra.mxu0 0.0
    %3220 = vmatprep.subr.mxu0 0.0
    %3221 = vmatpush1.msra.mxu0 0.0
    %3222 = vmatprep.subr.mxu0 0.0
    %3223 = vmatpush1.msra.mxu0 0.0
    %3224 = vmatprep.subr.mxu0 0.0
    %3225 = vmatpush1.msra.mxu0 0.0
    %3226 = vmatprep.subr.mxu0 0.0
    %3227 = vmatpush1.msra.mxu0 0.0
    %3228 = vmatprep.subr.mxu0 0.0
    %3229 = vmatpush1.msra.mxu0 0.0
    %3230 = vmatprep.subr.mxu0 0.0
    %3231 = vmatpush1.msra.mxu0 0.0
    %3232 = vmatprep.subr.mxu0 0.0
    %3233 = vmatpush1.msra.mxu0 0.0
    %3234 = vmatprep.subr.mxu0 0.0
    %3235 = vmatpush1.msra.mxu0 0.0
    %3236 = vmatprep.subr.mxu0 0.0
    %3237 = vmatpush1.msra.mxu0 0.0
    %3238 = vmatprep.mubr.f32.mxu0 0.0
    %v3239 = vand.u32 %v2833, 4294901760
    %3240 = vmatmul.mubr.f32.gmra.mrb[0].mxu0 %v3239
    %v3241 = vpop.f32.mrb[0].mxu0
    %v3242 = vadd.f32 %v3159, %v3241
    %v3243 = vpop.f32.mrb[0].mxu0
    %3244 = vdwg.mxu0
    %3245 = vmatprep.subr.mxu0 0.0
    %v3246 = vand.u32 %v1279, 4294901760
    %3247 = vmatpush1.msra.mxu0 %v3246
    %3248 = vmatprep.subr.mxu0 0.0
    %v3249 = vand.u32 %v1280, 4294901760
    %3250 = vmatpush1.msra.mxu0 %v3249
    %3251 = vmatprep.subr.mxu0 0.0
    %v3252 = vand.u32 %v1281, 4294901760
    %3253 = vmatpush1.msra.mxu0 %v3252
    %3254 = vmatprep.subr.mxu0 0.0
    %v3255 = vand.u32 %v1282, 4294901760
    %3256 = vmatpush1.msra.mxu0 %v3255
    %3257 = vmatprep.subr.mxu0 0.0
    %3258 = vmatpush1.msra.mxu0 0.0
    %3259 = vmatprep.subr.mxu0 0.0
    %3260 = vmatpush1.msra.mxu0 0.0
    %3261 = vmatprep.subr.mxu0 0.0
    %3262 = vmatpush1.msra.mxu0 0.0
    %3263 = vmatprep.subr.mxu0 0.0
    %3264 = vmatpush1.msra.mxu0 0.0
    %3265 = vmatprep.subr.mxu0 0.0
    %3266 = vmatpush1.msra.mxu0 0.0
    %3267 = vmatprep.subr.mxu0 0.0
    %3268 = vmatpush1.msra.mxu0 0.0
    %3269 = vmatprep.subr.mxu0 0.0
    %3270 = vmatpush1.msra.mxu0 0.0
    %3271 = vmatprep.subr.mxu0 0.0
    %3272 = vmatpush1.msra.mxu0 0.0
    %3273 = vmatprep.subr.mxu0 0.0
    %3274 = vmatpush1.msra.mxu0 0.0
    %3275 = vmatprep.subr.mxu0 0.0
    %3276 = vmatpush1.msra.mxu0 0.0
    %3277 = vmatprep.subr.mxu0 0.0
    %3278 = vmatpush1.msra.mxu0 0.0
    %3279 = vmatprep.subr.mxu0 0.0
    %3280 = vmatpush1.msra.mxu0 0.0
    %3281 = vmatprep.subr.mxu0 0.0
    %3282 = vmatpush1.msra.mxu0 0.0
    %3283 = vmatprep.subr.mxu0 0.0
    %3284 = vmatpush1.msra.mxu0 0.0
    %3285 = vmatprep.subr.mxu0 0.0
    %3286 = vmatpush1.msra.mxu0 0.0
    %3287 = vmatprep.subr.mxu0 0.0
    %3288 = vmatpush1.msra.mxu0 0.0
    %3289 = vmatprep.subr.mxu0 0.0
    %3290 = vmatpush1.msra.mxu0 0.0
    %3291 = vmatprep.subr.mxu0 0.0
    %3292 = vmatpush1.msra.mxu0 0.0
    %3293 = vmatprep.subr.mxu0 0.0
    %3294 = vmatpush1.msra.mxu0 0.0
    %3295 = vmatprep.subr.mxu0 0.0
    %3296 = vmatpush1.msra.mxu0 0.0
    %3297 = vmatprep.subr.mxu0 0.0
    %3298 = vmatpush1.msra.mxu0 0.0
    %3299 = vmatprep.subr.mxu0 0.0
    %3300 = vmatpush1.msra.mxu0 0.0
    %3301 = vmatprep.subr.mxu0 0.0
    %3302 = vmatpush1.msra.mxu0 0.0
    %3303 = vmatprep.subr.mxu0 0.0
    %3304 = vmatpush1.msra.mxu0 0.0
    %3305 = vmatprep.subr.mxu0 0.0
    %3306 = vmatpush1.msra.mxu0 0.0
    %3307 = vmatprep.subr.mxu0 0.0
    %3308 = vmatpush1.msra.mxu0 0.0
    %3309 = vmatprep.subr.mxu0 0.0
    %3310 = vmatpush1.msra.mxu0 0.0
    %3311 = vmatprep.subr.mxu0 0.0
    %3312 = vmatpush1.msra.mxu0 0.0
    %3313 = vmatprep.mubr.f32.mxu0 0.0
    %v3314 = vand.u32 %v2833, 4294901760
    %3315 = vmatmul.mubr.f32.gmra.mrb[0].mxu0 %v3314
    %v3316 = vpop.f32.mrb[0].mxu0
    %v3317 = vadd.f32 %v3242, %v3316
    %v3318 = vpop.f32.mrb[0].mxu0
    %3319 = vdwg.mxu0
    %v3320 = vadd.f32 %v2829, %v3317
    %v3321 = vxor.u32 %v3320, 2147483648
    %v3322 = vmul.f32 %v3321, 1.442695
    %v3323 = vpow.pop %v3322
    %v3324 = vadd.f32 %v3323, 1.0
    %v3325 = vrcp.pop %v3324
    %v3326 = vmul.f32 1.0, %v3325
    %v3327 = vtanh.pop %v3320
    %v3328 = vmul.f32 %v3326, %v2822
    %3330 = vrot.lane.b32.xlu0 %v3327, 64
    %v3331 = vpop.permute.xlu0 %3330
    %v3333 = vmul.f32 %v3326, %v3331
    %3335 = vrot.lane.b32.xlu0 %v3333, 32
    %v3336 = vpop.permute.xlu0 %3335
    %v3338 = vadd.f32 %v3328, %v3336
    %v3339 = vtanh.pop %v3338
    %3341 = vrot.lane.b32.xlu0 %v3339, 64
    %v3342 = vpop.permute.xlu0 %3341
    %v3344 = vmul.f32 %v3326, %v3342
    %v3345 = vld [vmem:[#allocation2 + $0x20] sm:$0xff]
    %3347 = vrot.lane.b32.xlu0 %v3344, 32
    %v3348 = vpop.permute.xlu0 %3347
    %v3349 = vsel %vm554, %v3348, 0
    %3351 = vmatprep.subr.mxu0 0.0
    %v3352 = vand.u32 %v1279, 4294901760
    %3353 = vmatpush1.msra.mxu0 %v3352
    %3354 = vmatprep.subr.mxu0 0.0
    %v3355 = vand.u32 %v1280, 4294901760
    %3356 = vmatpush1.msra.mxu0 %v3355
    %3357 = vmatprep.subr.mxu0 0.0
    %v3358 = vand.u32 %v1281, 4294901760
    %3359 = vmatpush1.msra.mxu0 %v3358
    %3360 = vmatprep.subr.mxu0 0.0
    %v3361 = vand.u32 %v1282, 4294901760
    %3362 = vmatpush1.msra.mxu0 %v3361
    %3363 = vmatprep.subr.mxu0 0.0
    %3364 = vmatpush1.msra.mxu0 0.0
    %3365 = vmatprep.subr.mxu0 0.0
    %3366 = vmatpush1.msra.mxu0 0.0
    %3367 = vmatprep.subr.mxu0 0.0
    %3368 = vmatpush1.msra.mxu0 0.0
    %3369 = vmatprep.subr.mxu0 0.0
    %3370 = vmatpush1.msra.mxu0 0.0
    %3371 = vmatprep.subr.mxu0 0.0
    %3372 = vmatpush1.msra.mxu0 0.0
    %3373 = vmatprep.subr.mxu0 0.0
    %3374 = vmatpush1.msra.mxu0 0.0
    %3375 = vmatprep.subr.mxu0 0.0
    %3376 = vmatpush1.msra.mxu0 0.0
    %3377 = vmatprep.subr.mxu0 0.0
    %3378 = vmatpush1.msra.mxu0 0.0
    %3379 = vmatprep.subr.mxu0 0.0
    %3380 = vmatpush1.msra.mxu0 0.0
    %3381 = vmatprep.subr.mxu0 0.0
    %3382 = vmatpush1.msra.mxu0 0.0
    %3383 = vmatprep.subr.mxu0 0.0
    %3384 = vmatpush1.msra.mxu0 0.0
    %3385 = vmatprep.subr.mxu0 0.0
    %3386 = vmatpush1.msra.mxu0 0.0
    %3387 = vmatprep.subr.mxu0 0.0
    %3388 = vmatpush1.msra.mxu0 0.0
    %3389 = vmatprep.subr.mxu0 0.0
    %3390 = vmatpush1.msra.mxu0 0.0
    %3391 = vmatprep.subr.mxu0 0.0
    %3392 = vmatpush1.msra.mxu0 0.0
    %3393 = vmatprep.subr.mxu0 0.0
    %3394 = vmatpush1.msra.mxu0 0.0
    %3395 = vmatprep.subr.mxu0 0.0
    %3396 = vmatpush1.msra.mxu0 0.0
    %3397 = vmatprep.subr.mxu0 0.0
    %3398 = vmatpush1.msra.mxu0 0.0
    %3399 = vmatprep.subr.mxu0 0.0
    %3400 = vmatpush1.msra.mxu0 0.0
    %3401 = vmatprep.subr.mxu0 0.0
    %3402 = vmatpush1.msra.mxu0 0.0
    %3403 = vmatprep.subr.mxu0 0.0
    %3404 = vmatpush1.msra.mxu0 0.0
    %3405 = vmatprep.subr.mxu0 0.0
    %3406 = vmatpush1.msra.mxu0 0.0
    %3407 = vmatprep.subr.mxu0 0.0
    %3408 = vmatpush1.msra.mxu0 0.0
    %3409 = vmatprep.subr.mxu0 0.0
    %3410 = vmatpush1.msra.mxu0 0.0
    %3411 = vmatprep.subr.mxu0 0.0
    %3412 = vmatpush1.msra.mxu0 0.0
    %3413 = vmatprep.subr.mxu0 0.0
    %3414 = vmatpush1.msra.mxu0 0.0
    %3415 = vmatprep.subr.mxu0 0.0
    %3416 = vmatpush1.msra.mxu0 0.0
    %3417 = vmatprep.subr.mxu0 0.0
    %3418 = vmatpush1.msra.mxu0 0.0
    %3419 = vmatprep.mubr.f32.mxu0 0.0
    %v3420 = vand.u32 %v3349, 4294901760
    %v3421 = vsub.f32 %v3349, %v3420
    %v3422 = vand.u32 %v3421, 4294901760
    %v3423 = vsub.f32 %v3421, %v3422
    %v3424 = vand.u32 %v3423, 4294901760
    %3425 = vmatmul.mubr.f32.gmra.mrb[0].mxu0 %v3424
    %v3426 = vpop.f32.mrb[0].mxu0
    %v3427 = vadd.f32 0.0, %v3426
    %v3428 = vpop.f32.mrb[0].mxu0
    %3429 = vdwg.mxu0
    %3430 = vmatprep.subr.mxu0 0.0
    %v3431 = vand.u32 %v1279, 4294901760
    %v3432 = vsub.f32 %v1279, %v3431
    %v3433 = vand.u32 %v3432, 4294901760
    %v3434 = vsub.f32 %v3432, %v3433
    %v3435 = vand.u32 %v3434, 4294901760
    %3436 = vmatpush1.msra.mxu0 %v3435
    %3437 = vmatprep.subr.mxu0 0.0
    %v3438 = vand.u32 %v1280, 4294901760
    %v3439 = vsub.f32 %v1280, %v3438
    %v3440 = vand.u32 %v3439, 4294901760
    %v3441 = vsub.f32 %v3439, %v3440
    %v3442 = vand.u32 %v3441, 4294901760
    %3443 = vmatpush1.msra.mxu0 %v3442
    %3444 = vmatprep.subr.mxu0 0.0
    %v3445 = vand.u32 %v1281, 4294901760
    %v3446 = vsub.f32 %v1281, %v3445
    %v3447 = vand.u32 %v3446, 4294901760
    %v3448 = vsub.f32 %v3446, %v3447
    %v3449 = vand.u32 %v3448, 4294901760
    %3450 = vmatpush1.msra.mxu0 %v3449
    %3451 = vmatprep.subr.mxu0 0.0
    %v3452 = vand.u32 %v1282, 4294901760
    %v3453 = vsub.f32 %v1282, %v3452
    %v3454 = vand.u32 %v3453, 4294901760
    %v3455 = vsub.f32 %v3453, %v3454
    %v3456 = vand.u32 %v3455, 4294901760
    %3457 = vmatpush1.msra.mxu0 %v3456
    %3458 = vmatprep.subr.mxu0 0.0
    %3459 = vmatpush1.msra.mxu0 0.0
    %3460 = vmatprep.subr.mxu0 0.0
    %3461 = vmatpush1.msra.mxu0 0.0
    %3462 = vmatprep.subr.mxu0 0.0
    %3463 = vmatpush1.msra.mxu0 0.0
    %3464 = vmatprep.subr.mxu0 0.0
    %3465 = vmatpush1.msra.mxu0 0.0
    %3466 = vmatprep.subr.mxu0 0.0
    %3467 = vmatpush1.msra.mxu0 0.0
    %3468 = vmatprep.subr.mxu0 0.0
    %3469 = vmatpush1.msra.mxu0 0.0
    %3470 = vmatprep.subr.mxu0 0.0
    %3471 = vmatpush1.msra.mxu0 0.0
    %3472 = vmatprep.subr.mxu0 0.0
    %3473 = vmatpush1.msra.mxu0 0.0
    %3474 = vmatprep.subr.mxu0 0.0
    %3475 = vmatpush1.msra.mxu0 0.0
    %3476 = vmatprep.subr.mxu0 0.0
    %3477 = vmatpush1.msra.mxu0 0.0
    %3478 = vmatprep.subr.mxu0 0.0
    %3479 = vmatpush1.msra.mxu0 0.0
    %3480 = vmatprep.subr.mxu0 0.0
    %3481 = vmatpush1.msra.mxu0 0.0
    %3482 = vmatprep.subr.mxu0 0.0
    %3483 = vmatpush1.msra.mxu0 0.0
    %3484 = vmatprep.subr.mxu0 0.0
    %3485 = vmatpush1.msra.mxu0 0.0
    %3486 = vmatprep.subr.mxu0 0.0
    %3487 = vmatpush1.msra.mxu0 0.0
    %3488 = vmatprep.subr.mxu0 0.0
    %3489 = vmatpush1.msra.mxu0 0.0
    %3490 = vmatprep.subr.mxu0 0.0
    %3491 = vmatpush1.msra.mxu0 0.0
    %3492 = vmatprep.subr.mxu0 0.0
    %3493 = vmatpush1.msra.mxu0 0.0
    %3494 = vmatprep.subr.mxu0 0.0
    %3495 = vmatpush1.msra.mxu0 0.0
    %3496 = vmatprep.subr.mxu0 0.0
    %3497 = vmatpush1.msra.mxu0 0.0
    %3498 = vmatprep.subr.mxu0 0.0
    %3499 = vmatpush1.msra.mxu0 0.0
    %3500 = vmatprep.subr.mxu0 0.0
    %3501 = vmatpush1.msra.mxu0 0.0
    %3502 = vmatprep.subr.mxu0 0.0
    %3503 = vmatpush1.msra.mxu0 0.0
    %3504 = vmatprep.subr.mxu0 0.0
    %3505 = vmatpush1.msra.mxu0 0.0
    %3506 = vmatprep.subr.mxu0 0.0
    %3507 = vmatpush1.msra.mxu0 0.0
    %3508 = vmatprep.subr.mxu0 0.0
    %3509 = vmatpush1.msra.mxu0 0.0
    %3510 = vmatprep.subr.mxu0 0.0
    %3511 = vmatpush1.msra.mxu0 0.0
    %3512 = vmatprep.subr.mxu0 0.0
    %3513 = vmatpush1.msra.mxu0 0.0
    %3514 = vmatprep.mubr.f32.mxu0 0.0
    %v3515 = vand.u32 %v3349, 4294901760
    %3516 = vmatmul.mubr.f32.gmra.mrb[0].mxu0 %v3515
    %v3517 = vpop.f32.mrb[0].mxu0
    %v3518 = vadd.f32 %v3427, %v3517
    %v3519 = vpop.f32.mrb[0].mxu0
    %3520 = vdwg.mxu0
    %3521 = vmatprep.subr.mxu0 0.0
    %v3522 = vand.u32 %v1279, 4294901760
    %v3523 = vsub.f32 %v1279, %v3522
    %3524 = vmatpush1.msra.mxu0 %v3523
    %3525 = vmatprep.subr.mxu0 0.0
    %v3526 = vand.u32 %v1280, 4294901760
    %v3527 = vsub.f32 %v1280, %v3526
    %3528 = vmatpush1.msra.mxu0 %v3527
    %3529 = vmatprep.subr.mxu0 0.0
    %v3530 = vand.u32 %v1281, 4294901760
    %v3531 = vsub.f32 %v1281, %v3530
    %3532 = vmatpush1.msra.mxu0 %v3531
    %3533 = vmatprep.subr.mxu0 0.0
    %v3534 = vand.u32 %v1282, 4294901760
    %v3535 = vsub.f32 %v1282, %v3534
    %3536 = vmatpush1.msra.mxu0 %v3535
    %3537 = vmatprep.subr.mxu0 0.0
    %3538 = vmatpush1.msra.mxu0 0.0
    %3539 = vmatprep.subr.mxu0 0.0
    %3540 = vmatpush1.msra.mxu0 0.0
    %3541 = vmatprep.subr.mxu0 0.0
    %3542 = vmatpush1.msra.mxu0 0.0
    %3543 = vmatprep.subr.mxu0 0.0
    %3544 = vmatpush1.msra.mxu0 0.0
    %3545 = vmatprep.subr.mxu0 0.0
    %3546 = vmatpush1.msra.mxu0 0.0
    %3547 = vmatprep.subr.mxu0 0.0
    %3548 = vmatpush1.msra.mxu0 0.0
    %3549 = vmatprep.subr.mxu0 0.0
    %3550 = vmatpush1.msra.mxu0 0.0
    %3551 = vmatprep.subr.mxu0 0.0
    %3552 = vmatpush1.msra.mxu0 0.0
    %3553 = vmatprep.subr.mxu0 0.0
    %3554 = vmatpush1.msra.mxu0 0.0
    %3555 = vmatprep.subr.mxu0 0.0
    %3556 = vmatpush1.msra.mxu0 0.0
    %3557 = vmatprep.subr.mxu0 0.0
    %3558 = vmatpush1.msra.mxu0 0.0
    %3559 = vmatprep.subr.mxu0 0.0
    %3560 = vmatpush1.msra.mxu0 0.0
    %3561 = vmatprep.subr.mxu0 0.0
    %3562 = vmatpush1.msra.mxu0 0.0
    %3563 = vmatprep.subr.mxu0 0.0
    %3564 = vmatpush1.msra.mxu0 0.0
    %3565 = vmatprep.subr.mxu0 0.0
    %3566 = vmatpush1.msra.mxu0 0.0
    %3567 = vmatprep.subr.mxu0 0.0
    %3568 = vmatpush1.msra.mxu0 0.0
    %3569 = vmatprep.subr.mxu0 0.0
    %3570 = vmatpush1.msra.mxu0 0.0
    %3571 = vmatprep.subr.mxu0 0.0
    %3572 = vmatpush1.msra.mxu0 0.0
    %3573 = vmatprep.subr.mxu0 0.0
    %3574 = vmatpush1.msra.mxu0 0.0
    %3575 = vmatprep.subr.mxu0 0.0
    %3576 = vmatpush1.msra.mxu0 0.0
    %3577 = vmatprep.subr.mxu0 0.0
    %3578 = vmatpush1.msra.mxu0 0.0
    %3579 = vmatprep.subr.mxu0 0.0
    %3580 = vmatpush1.msra.mxu0 0.0
    %3581 = vmatprep.subr.mxu0 0.0
    %3582 = vmatpush1.msra.mxu0 0.0
    %3583 = vmatprep.subr.mxu0 0.0
    %3584 = vmatpush1.msra.mxu0 0.0
    %3585 = vmatprep.subr.mxu0 0.0
    %3586 = vmatpush1.msra.mxu0 0.0
    %3587 = vmatprep.subr.mxu0 0.0
    %3588 = vmatpush1.msra.mxu0 0.0
    %3589 = vmatprep.subr.mxu0 0.0
    %3590 = vmatpush1.msra.mxu0 0.0
    %3591 = vmatprep.subr.mxu0 0.0
    %3592 = vmatpush1.msra.mxu0 0.0
    %3593 = vmatprep.mubr.f32.mxu0 0.0
    %v3594 = vand.u32 %v3349, 4294901760
    %v3595 = vsub.f32 %v3349, %v3594
    %3596 = vmatmul.mubr.f32.gmra.mrb[0].mxu0 %v3595
    %v3597 = vpop.f32.mrb[0].mxu0
    %v3598 = vadd.f32 %v3518, %v3597
    %v3599 = vpop.f32.mrb[0].mxu0
    %3600 = vdwg.mxu0
    %3601 = vmatprep.subr.mxu0 0.0
    %v3602 = vand.u32 %v1279, 4294901760
    %3603 = vmatpush1.msra.mxu0 %v3602
    %3604 = vmatprep.subr.mxu0 0.0
    %v3605 = vand.u32 %v1280, 4294901760
    %3606 = vmatpush1.msra.mxu0 %v3605
    %3607 = vmatprep.subr.mxu0 0.0
    %v3608 = vand.u32 %v1281, 4294901760
    %3609 = vmatpush1.msra.mxu0 %v3608
    %3610 = vmatprep.subr.mxu0 0.0
    %v3611 = vand.u32 %v1282, 4294901760
    %3612 = vmatpush1.msra.mxu0 %v3611
    %3613 = vmatprep.subr.mxu0 0.0
    %3614 = vmatpush1.msra.mxu0 0.0
    %3615 = vmatprep.subr.mxu0 0.0
    %3616 = vmatpush1.msra.mxu0 0.0
    %3617 = vmatprep.subr.mxu0 0.0
    %3618 = vmatpush1.msra.mxu0 0.0
    %3619 = vmatprep.subr.mxu0 0.0
    %3620 = vmatpush1.msra.mxu0 0.0
    %3621 = vmatprep.subr.mxu0 0.0
    %3622 = vmatpush1.msra.mxu0 0.0
    %3623 = vmatprep.subr.mxu0 0.0
    %3624 = vmatpush1.msra.mxu0 0.0
    %3625 = vmatprep.subr.mxu0 0.0
    %3626 = vmatpush1.msra.mxu0 0.0
    %3627 = vmatprep.subr.mxu0 0.0
    %3628 = vmatpush1.msra.mxu0 0.0
    %3629 = vmatprep.subr.mxu0 0.0
    %3630 = vmatpush1.msra.mxu0 0.0
    %3631 = vmatprep.subr.mxu0 0.0
    %3632 = vmatpush1.msra.mxu0 0.0
    %3633 = vmatprep.subr.mxu0 0.0
    %3634 = vmatpush1.msra.mxu0 0.0
    %3635 = vmatprep.subr.mxu0 0.0
    %3636 = vmatpush1.msra.mxu0 0.0
    %3637 = vmatprep.subr.mxu0 0.0
    %3638 = vmatpush1.msra.mxu0 0.0
    %3639 = vmatprep.subr.mxu0 0.0
    %3640 = vmatpush1.msra.mxu0 0.0
    %3641 = vmatprep.subr.mxu0 0.0
    %3642 = vmatpush1.msra.mxu0 0.0
    %3643 = vmatprep.subr.mxu0 0.0
    %3644 = vmatpush1.msra.mxu0 0.0
    %3645 = vmatprep.subr.mxu0 0.0
    %3646 = vmatpush1.msra.mxu0 0.0
    %3647 = vmatprep.subr.mxu0 0.0
    %3648 = vmatpush1.msra.mxu0 0.0
    %3649 = vmatprep.subr.mxu0 0.0
    %3650 = vmatpush1.msra.mxu0 0.0
    %3651 = vmatprep.subr.mxu0 0.0
    %3652 = vmatpush1.msra.mxu0 0.0
    %3653 = vmatprep.subr.mxu0 0.0
    %3654 = vmatpush1.msra.mxu0 0.0
    %3655 = vmatprep.subr.mxu0 0.0
    %3656 = vmatpush1.msra.mxu0 0.0
    %3657 = vmatprep.subr.mxu0 0.0
    %3658 = vmatpush1.msra.mxu0 0.0
    %3659 = vmatprep.subr.mxu0 0.0
    %3660 = vmatpush1.msra.mxu0 0.0
    %3661 = vmatprep.subr.mxu0 0.0
    %3662 = vmatpush1.msra.mxu0 0.0
    %3663 = vmatprep.subr.mxu0 0.0
    %3664 = vmatpush1.msra.mxu0 0.0
    %3665 = vmatprep.subr.mxu0 0.0
    %3666 = vmatpush1.msra.mxu0 0.0
    %3667 = vmatprep.subr.mxu0 0.0
    %3668 = vmatpush1.msra.mxu0 0.0
    %3669 = vmatprep.mubr.f32.mxu0 0.0
    %v3670 = vand.u32 %v3349, 4294901760
    %v3671 = vsub.f32 %v3349, %v3670
    %v3672 = vand.u32 %v3671, 4294901760
    %3673 = vmatmul.mubr.f32.gmra.mrb[0].mxu0 %v3672
    %v3674 = vpop.f32.mrb[0].mxu0
    %v3675 = vadd.f32 %v3598, %v3674
    %v3676 = vpop.f32.mrb[0].mxu0
    %3677 = vdwg.mxu0
    %3678 = vmatprep.subr.mxu0 0.0
    %v3679 = vand.u32 %v1279, 4294901760
    %v3680 = vsub.f32 %v1279, %v3679
    %v3681 = vand.u32 %v3680, 4294901760
    %3682 = vmatpush1.msra.mxu0 %v3681
    %3683 = vmatprep.subr.mxu0 0.0
    %v3684 = vand.u32 %v1280, 4294901760
    %v3685 = vsub.f32 %v1280, %v3684
    %v3686 = vand.u32 %v3685, 4294901760
    %3687 = vmatpush1.msra.mxu0 %v3686
    %3688 = vmatprep.subr.mxu0 0.0
    %v3689 = vand.u32 %v1281, 4294901760
    %v3690 = vsub.f32 %v1281, %v3689
    %v3691 = vand.u32 %v3690, 4294901760
    %3692 = vmatpush1.msra.mxu0 %v3691
    %3693 = vmatprep.subr.mxu0 0.0
    %v3694 = vand.u32 %v1282, 4294901760
    %v3695 = vsub.f32 %v1282, %v3694
    %v3696 = vand.u32 %v3695, 4294901760
    %3697 = vmatpush1.msra.mxu0 %v3696
    %3698 = vmatprep.subr.mxu0 0.0
    %3699 = vmatpush1.msra.mxu0 0.0
    %3700 = vmatprep.subr.mxu0 0.0
    %3701 = vmatpush1.msra.mxu0 0.0
    %3702 = vmatprep.subr.mxu0 0.0
    %3703 = vmatpush1.msra.mxu0 0.0
    %3704 = vmatprep.subr.mxu0 0.0
    %3705 = vmatpush1.msra.mxu0 0.0
    %3706 = vmatprep.subr.mxu0 0.0
    %3707 = vmatpush1.msra.mxu0 0.0
    %3708 = vmatprep.subr.mxu0 0.0
    %3709 = vmatpush1.msra.mxu0 0.0
    %3710 = vmatprep.subr.mxu0 0.0
    %3711 = vmatpush1.msra.mxu0 0.0
    %3712 = vmatprep.subr.mxu0 0.0
    %3713 = vmatpush1.msra.mxu0 0.0
    %3714 = vmatprep.subr.mxu0 0.0
    %3715 = vmatpush1.msra.mxu0 0.0
    %3716 = vmatprep.subr.mxu0 0.0
    %3717 = vmatpush1.msra.mxu0 0.0
    %3718 = vmatprep.subr.mxu0 0.0
    %3719 = vmatpush1.msra.mxu0 0.0
    %3720 = vmatprep.subr.mxu0 0.0
    %3721 = vmatpush1.msra.mxu0 0.0
    %3722 = vmatprep.subr.mxu0 0.0
    %3723 = vmatpush1.msra.mxu0 0.0
    %3724 = vmatprep.subr.mxu0 0.0
    %3725 = vmatpush1.msra.mxu0 0.0
    %3726 = vmatprep.subr.mxu0 0.0
    %3727 = vmatpush1.msra.mxu0 0.0
    %3728 = vmatprep.subr.mxu0 0.0
    %3729 = vmatpush1.msra.mxu0 0.0
    %3730 = vmatprep.subr.mxu0 0.0
    %3731 = vmatpush1.msra.mxu0 0.0
    %3732 = vmatprep.subr.mxu0 0.0
    %3733 = vmatpush1.msra.mxu0 0.0
    %3734 = vmatprep.subr.mxu0 0.0
    %3735 = vmatpush1.msra.mxu0 0.0
    %3736 = vmatprep.subr.mxu0 0.0
    %3737 = vmatpush1.msra.mxu0 0.0
    %3738 = vmatprep.subr.mxu0 0.0
    %3739 = vmatpush1.msra.mxu0 0.0
    %3740 = vmatprep.subr.mxu0 0.0
    %3741 = vmatpush1.msra.mxu0 0.0
    %3742 = vmatprep.subr.mxu0 0.0
    %3743 = vmatpush1.msra.mxu0 0.0
    %3744 = vmatprep.subr.mxu0 0.0
    %3745 = vmatpush1.msra.mxu0 0.0
    %3746 = vmatprep.subr.mxu0 0.0
    %3747 = vmatpush1.msra.mxu0 0.0
    %3748 = vmatprep.subr.mxu0 0.0
    %3749 = vmatpush1.msra.mxu0 0.0
    %3750 = vmatprep.subr.mxu0 0.0
    %3751 = vmatpush1.msra.mxu0 0.0
    %3752 = vmatprep.subr.mxu0 0.0
    %3753 = vmatpush1.msra.mxu0 0.0
    %3754 = vmatprep.mubr.f32.mxu0 0.0
    %v3755 = vand.u32 %v3349, 4294901760
    %3756 = vmatmul.mubr.f32.gmra.mrb[0].mxu0 %v3755
    %v3757 = vpop.f32.mrb[0].mxu0
    %v3758 = vadd.f32 %v3675, %v3757
    %v3759 = vpop.f32.mrb[0].mxu0
    %3760 = vdwg.mxu0
    %3761 = vmatprep.subr.mxu0 0.0
    %v3762 = vand.u32 %v1279, 4294901760
    %3763 = vmatpush1.msra.mxu0 %v3762
    %3764 = vmatprep.subr.mxu0 0.0
    %v3765 = vand.u32 %v1280, 4294901760
    %3766 = vmatpush1.msra.mxu0 %v3765
    %3767 = vmatprep.subr.mxu0 0.0
    %v3768 = vand.u32 %v1281, 4294901760
    %3769 = vmatpush1.msra.mxu0 %v3768
    %3770 = vmatprep.subr.mxu0 0.0
    %v3771 = vand.u32 %v1282, 4294901760
    %3772 = vmatpush1.msra.mxu0 %v3771
    %3773 = vmatprep.subr.mxu0 0.0
    %3774 = vmatpush1.msra.mxu0 0.0
    %3775 = vmatprep.subr.mxu0 0.0
    %3776 = vmatpush1.msra.mxu0 0.0
    %3777 = vmatprep.subr.mxu0 0.0
    %3778 = vmatpush1.msra.mxu0 0.0
    %3779 = vmatprep.subr.mxu0 0.0
    %3780 = vmatpush1.msra.mxu0 0.0
    %3781 = vmatprep.subr.mxu0 0.0
    %3782 = vmatpush1.msra.mxu0 0.0
    %3783 = vmatprep.subr.mxu0 0.0
    %3784 = vmatpush1.msra.mxu0 0.0
    %3785 = vmatprep.subr.mxu0 0.0
    %3786 = vmatpush1.msra.mxu0 0.0
    %3787 = vmatprep.subr.mxu0 0.0
    %3788 = vmatpush1.msra.mxu0 0.0
    %3789 = vmatprep.subr.mxu0 0.0
    %3790 = vmatpush1.msra.mxu0 0.0
    %3791 = vmatprep.subr.mxu0 0.0
    %3792 = vmatpush1.msra.mxu0 0.0
    %3793 = vmatprep.subr.mxu0 0.0
    %3794 = vmatpush1.msra.mxu0 0.0
    %3795 = vmatprep.subr.mxu0 0.0
    %3796 = vmatpush1.msra.mxu0 0.0
    %3797 = vmatprep.subr.mxu0 0.0
    %3798 = vmatpush1.msra.mxu0 0.0
    %3799 = vmatprep.subr.mxu0 0.0
    %3800 = vmatpush1.msra.mxu0 0.0
    %3801 = vmatprep.subr.mxu0 0.0
    %3802 = vmatpush1.msra.mxu0 0.0
    %3803 = vmatprep.subr.mxu0 0.0
    %3804 = vmatpush1.msra.mxu0 0.0
    %3805 = vmatprep.subr.mxu0 0.0
    %3806 = vmatpush1.msra.mxu0 0.0
    %3807 = vmatprep.subr.mxu0 0.0
    %3808 = vmatpush1.msra.mxu0 0.0
    %3809 = vmatprep.subr.mxu0 0.0
    %3810 = vmatpush1.msra.mxu0 0.0
    %3811 = vmatprep.subr.mxu0 0.0
    %3812 = vmatpush1.msra.mxu0 0.0
    %3813 = vmatprep.subr.mxu0 0.0
    %3814 = vmatpush1.msra.mxu0 0.0
    %3815 = vmatprep.subr.mxu0 0.0
    %3816 = vmatpush1.msra.mxu0 0.0
    %3817 = vmatprep.subr.mxu0 0.0
    %3818 = vmatpush1.msra.mxu0 0.0
    %3819 = vmatprep.subr.mxu0 0.0
    %3820 = vmatpush1.msra.mxu0 0.0
    %3821 = vmatprep.subr.mxu0 0.0
    %3822 = vmatpush1.msra.mxu0 0.0
    %3823 = vmatprep.subr.mxu0 0.0
    %3824 = vmatpush1.msra.mxu0 0.0
    %3825 = vmatprep.subr.mxu0 0.0
    %3826 = vmatpush1.msra.mxu0 0.0
    %3827 = vmatprep.subr.mxu0 0.0
    %3828 = vmatpush1.msra.mxu0 0.0
    %3829 = vmatprep.mubr.f32.mxu0 0.0
    %v3830 = vand.u32 %v3349, 4294901760
    %3831 = vmatmul.mubr.f32.gmra.mrb[0].mxu0 %v3830
    %v3832 = vpop.f32.mrb[0].mxu0
    %v3833 = vadd.f32 %v3758, %v3832
    %v3834 = vpop.f32.mrb[0].mxu0
    %3835 = vdwg.mxu0
    %v3836 = vadd.f32 %v3345, %v3833
    %v3837 = vxor.u32 %v3836, 2147483648
    %v3838 = vmul.f32 %v3837, 1.442695
    %v3839 = vpow.pop %v3838
    %v3840 = vadd.f32 %v3839, 1.0
    %v3841 = vrcp.pop %v3840
    %v3842 = vmul.f32 1.0, %v3841
    %v3843 = vtanh.pop %v3836
    %v3844 = vmul.f32 %v3842, %v3338
    %3846 = vrot.lane.b32.xlu0 %v3843, 64
    %v3847 = vpop.permute.xlu0 %3846
    %v3849 = vmul.f32 %v3842, %v3847
    %3851 = vrot.lane.b32.xlu0 %v3849, 32
    %v3852 = vpop.permute.xlu0 %3851
    %v3854 = vadd.f32 %v3844, %v3852
    %v3855 = vtanh.pop %v3854
    %3857 = vrot.lane.b32.xlu0 %v3855, 64
    %v3858 = vpop.permute.xlu0 %3857
    %v3860 = vmul.f32 %v3842, %v3858
    %v3861 = vld [vmem:[#allocation2 + $0x28] sm:$0xff]
    %3863 = vrot.lane.b32.xlu0 %v3860, 32
    %v3864 = vpop.permute.xlu0 %3863
    %v3865 = vsel %vm554, %v3864, 0
    %3867 = vmatprep.subr.mxu0 0.0
    %v3868 = vand.u32 %v1279, 4294901760
    %3869 = vmatpush1.msra.mxu0 %v3868
    %3870 = vmatprep.subr.mxu0 0.0
    %v3871 = vand.u32 %v1280, 4294901760
    %3872 = vmatpush1.msra.mxu0 %v3871
    %3873 = vmatprep.subr.mxu0 0.0
    %v3874 = vand.u32 %v1281, 4294901760
    %3875 = vmatpush1.msra.mxu0 %v3874
    %3876 = vmatprep.subr.mxu0 0.0
    %v3877 = vand.u32 %v1282, 4294901760
    %3878 = vmatpush1.msra.mxu0 %v3877
    %3879 = vmatprep.subr.mxu0 0.0
    %3880 = vmatpush1.msra.mxu0 0.0
    %3881 = vmatprep.subr.mxu0 0.0
    %3882 = vmatpush1.msra.mxu0 0.0
    %3883 = vmatprep.subr.mxu0 0.0
    %3884 = vmatpush1.msra.mxu0 0.0
    %3885 = vmatprep.subr.mxu0 0.0
    %3886 = vmatpush1.msra.mxu0 0.0
    %3887 = vmatprep.subr.mxu0 0.0
    %3888 = vmatpush1.msra.mxu0 0.0
    %3889 = vmatprep.subr.mxu0 0.0
    %3890 = vmatpush1.msra.mxu0 0.0
    %3891 = vmatprep.subr.mxu0 0.0
    %3892 = vmatpush1.msra.mxu0 0.0
    %3893 = vmatprep.subr.mxu0 0.0
    %3894 = vmatpush1.msra.mxu0 0.0
    %3895 = vmatprep.subr.mxu0 0.0
    %3896 = vmatpush1.msra.mxu0 0.0
    %3897 = vmatprep.subr.mxu0 0.0
    %3898 = vmatpush1.msra.mxu0 0.0
    %3899 = vmatprep.subr.mxu0 0.0
    %3900 = vmatpush1.msra.mxu0 0.0
    %3901 = vmatprep.subr.mxu0 0.0
    %3902 = vmatpush1.msra.mxu0 0.0
    %3903 = vmatprep.subr.mxu0 0.0
    %3904 = vmatpush1.msra.mxu0 0.0
    %3905 = vmatprep.subr.mxu0 0.0
    %3906 = vmatpush1.msra.mxu0 0.0
    %3907 = vmatprep.subr.mxu0 0.0
    %3908 = vmatpush1.msra.mxu0 0.0
    %3909 = vmatprep.subr.mxu0 0.0
    %3910 = vmatpush1.msra.mxu0 0.0
    %3911 = vmatprep.subr.mxu0 0.0
    %3912 = vmatpush1.msra.mxu0 0.0
    %3913 = vmatprep.subr.mxu0 0.0
    %3914 = vmatpush1.msra.mxu0 0.0
    %3915 = vmatprep.subr.mxu0 0.0
    %3916 = vmatpush1.msra.mxu0 0.0
    %3917 = vmatprep.subr.mxu0 0.0
    %3918 = vmatpush1.msra.mxu0 0.0
    %3919 = vmatprep.subr.mxu0 0.0
    %3920 = vmatpush1.msra.mxu0 0.0
    %3921 = vmatprep.subr.mxu0 0.0
    %3922 = vmatpush1.msra.mxu0 0.0
    %3923 = vmatprep.subr.mxu0 0.0
    %3924 = vmatpush1.msra.mxu0 0.0
    %3925 = vmatprep.subr.mxu0 0.0
    %3926 = vmatpush1.msra.mxu0 0.0
    %3927 = vmatprep.subr.mxu0 0.0
    %3928 = vmatpush1.msra.mxu0 0.0
    %3929 = vmatprep.subr.mxu0 0.0
    %3930 = vmatpush1.msra.mxu0 0.0
    %3931 = vmatprep.subr.mxu0 0.0
    %3932 = vmatpush1.msra.mxu0 0.0
    %3933 = vmatprep.subr.mxu0 0.0
    %3934 = vmatpush1.msra.mxu0 0.0
    %3935 = vmatprep.mubr.f32.mxu0 0.0
    %v3936 = vand.u32 %v3865, 4294901760
    %v3937 = vsub.f32 %v3865, %v3936
    %v3938 = vand.u32 %v3937, 4294901760
    %v3939 = vsub.f32 %v3937, %v3938
    %v3940 = vand.u32 %v3939, 4294901760
    %3941 = vmatmul.mubr.f32.gmra.mrb[0].mxu0 %v3940
    %v3942 = vpop.f32.mrb[0].mxu0
    %v3943 = vadd.f32 0.0, %v3942
    %v3944 = vpop.f32.mrb[0].mxu0
    %3945 = vdwg.mxu0
    %3946 = vmatprep.subr.mxu0 0.0
    %v3947 = vand.u32 %v1279, 4294901760
    %v3948 = vsub.f32 %v1279, %v3947
    %v3949 = vand.u32 %v3948, 4294901760
    %v3950 = vsub.f32 %v3948, %v3949
    %v3951 = vand.u32 %v3950, 4294901760
    %3952 = vmatpush1.msra.mxu0 %v3951
    %3953 = vmatprep.subr.mxu0 0.0
    %v3954 = vand.u32 %v1280, 4294901760
    %v3955 = vsub.f32 %v1280, %v3954
    %v3956 = vand.u32 %v3955, 4294901760
    %v3957 = vsub.f32 %v3955, %v3956
    %v3958 = vand.u32 %v3957, 4294901760
    %3959 = vmatpush1.msra.mxu0 %v3958
    %3960 = vmatprep.subr.mxu0 0.0
    %v3961 = vand.u32 %v1281, 4294901760
    %v3962 = vsub.f32 %v1281, %v3961
    %v3963 = vand.u32 %v3962, 4294901760
    %v3964 = vsub.f32 %v3962, %v3963
    %v3965 = vand.u32 %v3964, 4294901760
    %3966 = vmatpush1.msra.mxu0 %v3965
    %3967 = vmatprep.subr.mxu0 0.0
    %v3968 = vand.u32 %v1282, 4294901760
    %v3969 = vsub.f32 %v1282, %v3968
    %v3970 = vand.u32 %v3969, 4294901760
    %v3971 = vsub.f32 %v3969, %v3970
    %v3972 = vand.u32 %v3971, 4294901760
    %3973 = vmatpush1.msra.mxu0 %v3972
    %3974 = vmatprep.subr.mxu0 0.0
    %3975 = vmatpush1.msra.mxu0 0.0
    %3976 = vmatprep.subr.mxu0 0.0
    %3977 = vmatpush1.msra.mxu0 0.0
    %3978 = vmatprep.subr.mxu0 0.0
    %3979 = vmatpush1.msra.mxu0 0.0
    %3980 = vmatprep.subr.mxu0 0.0
    %3981 = vmatpush1.msra.mxu0 0.0
    %3982 = vmatprep.subr.mxu0 0.0
    %3983 = vmatpush1.msra.mxu0 0.0
    %3984 = vmatprep.subr.mxu0 0.0
    %3985 = vmatpush1.msra.mxu0 0.0
    %3986 = vmatprep.subr.mxu0 0.0
    %3987 = vmatpush1.msra.mxu0 0.0
    %3988 = vmatprep.subr.mxu0 0.0
    %3989 = vmatpush1.msra.mxu0 0.0
    %3990 = vmatprep.subr.mxu0 0.0
    %3991 = vmatpush1.msra.mxu0 0.0
    %3992 = vmatprep.subr.mxu0 0.0
    %3993 = vmatpush1.msra.mxu0 0.0
    %3994 = vmatprep.subr.mxu0 0.0
    %3995 = vmatpush1.msra.mxu0 0.0
    %3996 = vmatprep.subr.mxu0 0.0
    %3997 = vmatpush1.msra.mxu0 0.0
    %3998 = vmatprep.subr.mxu0 0.0
    %3999 = vmatpush1.msra.mxu0 0.0
    %4000 = vmatprep.subr.mxu0 0.0
    %4001 = vmatpush1.msra.mxu0 0.0
    %4002 = vmatprep.subr.mxu0 0.0
    %4003 = vmatpush1.msra.mxu0 0.0
    %4004 = vmatprep.subr.mxu0 0.0
    %4005 = vmatpush1.msra.mxu0 0.0
    %4006 = vmatprep.subr.mxu0 0.0
    %4007 = vmatpush1.msra.mxu0 0.0
    %4008 = vmatprep.subr.mxu0 0.0
    %4009 = vmatpush1.msra.mxu0 0.0
    %4010 = vmatprep.subr.mxu0 0.0
    %4011 = vmatpush1.msra.mxu0 0.0
    %4012 = vmatprep.subr.mxu0 0.0
    %4013 = vmatpush1.msra.mxu0 0.0
    %4014 = vmatprep.subr.mxu0 0.0
    %4015 = vmatpush1.msra.mxu0 0.0
    %4016 = vmatprep.subr.mxu0 0.0
    %4017 = vmatpush1.msra.mxu0 0.0
    %4018 = vmatprep.subr.mxu0 0.0
    %4019 = vmatpush1.msra.mxu0 0.0
    %4020 = vmatprep.subr.mxu0 0.0
    %4021 = vmatpush1.msra.mxu0 0.0
    %4022 = vmatprep.subr.mxu0 0.0
    %4023 = vmatpush1.msra.mxu0 0.0
    %4024 = vmatprep.subr.mxu0 0.0
    %4025 = vmatpush1.msra.mxu0 0.0
    %4026 = vmatprep.subr.mxu0 0.0
    %4027 = vmatpush1.msra.mxu0 0.0
    %4028 = vmatprep.subr.mxu0 0.0
    %4029 = vmatpush1.msra.mxu0 0.0
    %4030 = vmatprep.mubr.f32.mxu0 0.0
    %v4031 = vand.u32 %v3865, 4294901760
    %4032 = vmatmul.mubr.f32.gmra.mrb[0].mxu0 %v4031
    %v4033 = vpop.f32.mrb[0].mxu0
    %v4034 = vadd.f32 %v3943, %v4033
    %v4035 = vpop.f32.mrb[0].mxu0
    %4036 = vdwg.mxu0
    %4037 = vmatprep.subr.mxu0 0.0
    %v4038 = vand.u32 %v1279, 4294901760
    %v4039 = vsub.f32 %v1279, %v4038
    %4040 = vmatpush1.msra.mxu0 %v4039
    %4041 = vmatprep.subr.mxu0 0.0
    %v4042 = vand.u32 %v1280, 4294901760
    %v4043 = vsub.f32 %v1280, %v4042
    %4044 = vmatpush1.msra.mxu0 %v4043
    %4045 = vmatprep.subr.mxu0 0.0
    %v4046 = vand.u32 %v1281, 4294901760
    %v4047 = vsub.f32 %v1281, %v4046
    %4048 = vmatpush1.msra.mxu0 %v4047
    %4049 = vmatprep.subr.mxu0 0.0
    %v4050 = vand.u32 %v1282, 4294901760
    %v4051 = vsub.f32 %v1282, %v4050
    %4052 = vmatpush1.msra.mxu0 %v4051
    %4053 = vmatprep.subr.mxu0 0.0
    %4054 = vmatpush1.msra.mxu0 0.0
    %4055 = vmatprep.subr.mxu0 0.0
    %4056 = vmatpush1.msra.mxu0 0.0
    %4057 = vmatprep.subr.mxu0 0.0
    %4058 = vmatpush1.msra.mxu0 0.0
    %4059 = vmatprep.subr.mxu0 0.0
    %4060 = vmatpush1.msra.mxu0 0.0
    %4061 = vmatprep.subr.mxu0 0.0
    %4062 = vmatpush1.msra.mxu0 0.0
    %4063 = vmatprep.subr.mxu0 0.0
    %4064 = vmatpush1.msra.mxu0 0.0
    %4065 = vmatprep.subr.mxu0 0.0
    %4066 = vmatpush1.msra.mxu0 0.0
    %4067 = vmatprep.subr.mxu0 0.0
    %4068 = vmatpush1.msra.mxu0 0.0
    %4069 = vmatprep.subr.mxu0 0.0
    %4070 = vmatpush1.msra.mxu0 0.0
    %4071 = vmatprep.subr.mxu0 0.0
    %4072 = vmatpush1.msra.mxu0 0.0
    %4073 = vmatprep.subr.mxu0 0.0
    %4074 = vmatpush1.msra.mxu0 0.0
    %4075 = vmatprep.subr.mxu0 0.0
    %4076 = vmatpush1.msra.mxu0 0.0
    %4077 = vmatprep.subr.mxu0 0.0
    %4078 = vmatpush1.msra.mxu0 0.0
    %4079 = vmatprep.subr.mxu0 0.0
    %4080 = vmatpush1.msra.mxu0 0.0
    %4081 = vmatprep.subr.mxu0 0.0
    %4082 = vmatpush1.msra.mxu0 0.0
    %4083 = vmatprep.subr.mxu0 0.0
    %4084 = vmatpush1.msra.mxu0 0.0
    %4085 = vmatprep.subr.mxu0 0.0
    %4086 = vmatpush1.msra.mxu0 0.0
    %4087 = vmatprep.subr.mxu0 0.0
    %4088 = vmatpush1.msra.mxu0 0.0
    %4089 = vmatprep.subr.mxu0 0.0
    %4090 = vmatpush1.msra.mxu0 0.0
    %4091 = vmatprep.subr.mxu0 0.0
    %4092 = vmatpush1.msra.mxu0 0.0
    %4093 = vmatprep.subr.mxu0 0.0
    %4094 = vmatpush1.msra.mxu0 0.0
    %4095 = vmatprep.subr.mxu0 0.0
    %4096 = vmatpush1.msra.mxu0 0.0
    %4097 = vmatprep.subr.mxu0 0.0
    %4098 = vmatpush1.msra.mxu0 0.0
    %4099 = vmatprep.subr.mxu0 0.0
    %4100 = vmatpush1.msra.mxu0 0.0
    %4101 = vmatprep.subr.mxu0 0.0
    %4102 = vmatpush1.msra.mxu0 0.0
    %4103 = vmatprep.subr.mxu0 0.0
    %4104 = vmatpush1.msra.mxu0 0.0
    %4105 = vmatprep.subr.mxu0 0.0
    %4106 = vmatpush1.msra.mxu0 0.0
    %4107 = vmatprep.subr.mxu0 0.0
    %4108 = vmatpush1.msra.mxu0 0.0
    %4109 = vmatprep.mubr.f32.mxu0 0.0
    %v4110 = vand.u32 %v3865, 4294901760
    %v4111 = vsub.f32 %v3865, %v4110
    %4112 = vmatmul.mubr.f32.gmra.mrb[0].mxu0 %v4111
    %v4113 = vpop.f32.mrb[0].mxu0
    %v4114 = vadd.f32 %v4034, %v4113
    %v4115 = vpop.f32.mrb[0].mxu0
    %4116 = vdwg.mxu0
    %4117 = vmatprep.subr.mxu0 0.0
    %v4118 = vand.u32 %v1279, 4294901760
    %4119 = vmatpush1.msra.mxu0 %v4118
    %4120 = vmatprep.subr.mxu0 0.0
    %v4121 = vand.u32 %v1280, 4294901760
    %4122 = vmatpush1.msra.mxu0 %v4121
    %4123 = vmatprep.subr.mxu0 0.0
    %v4124 = vand.u32 %v1281, 4294901760
    %4125 = vmatpush1.msra.mxu0 %v4124
    %4126 = vmatprep.subr.mxu0 0.0
    %v4127 = vand.u32 %v1282, 4294901760
    %4128 = vmatpush1.msra.mxu0 %v4127
    %4129 = vmatprep.subr.mxu0 0.0
    %4130 = vmatpush1.msra.mxu0 0.0
    %4131 = vmatprep.subr.mxu0 0.0
    %4132 = vmatpush1.msra.mxu0 0.0
    %4133 = vmatprep.subr.mxu0 0.0
    %4134 = vmatpush1.msra.mxu0 0.0
    %4135 = vmatprep.subr.mxu0 0.0
    %4136 = vmatpush1.msra.mxu0 0.0
    %4137 = vmatprep.subr.mxu0 0.0
    %4138 = vmatpush1.msra.mxu0 0.0
    %4139 = vmatprep.subr.mxu0 0.0
    %4140 = vmatpush1.msra.mxu0 0.0
    %4141 = vmatprep.subr.mxu0 0.0
    %4142 = vmatpush1.msra.mxu0 0.0
    %4143 = vmatprep.subr.mxu0 0.0
    %4144 = vmatpush1.msra.mxu0 0.0
    %4145 = vmatprep.subr.mxu0 0.0
    %4146 = vmatpush1.msra.mxu0 0.0
    %4147 = vmatprep.subr.mxu0 0.0
    %4148 = vmatpush1.msra.mxu0 0.0
    %4149 = vmatprep.subr.mxu0 0.0
    %4150 = vmatpush1.msra.mxu0 0.0
    %4151 = vmatprep.subr.mxu0 0.0
    %4152 = vmatpush1.msra.mxu0 0.0
    %4153 = vmatprep.subr.mxu0 0.0
    %4154 = vmatpush1.msra.mxu0 0.0
    %4155 = vmatprep.subr.mxu0 0.0
    %4156 = vmatpush1.msra.mxu0 0.0
    %4157 = vmatprep.subr.mxu0 0.0
    %4158 = vmatpush1.msra.mxu0 0.0
    %4159 = vmatprep.subr.mxu0 0.0
    %4160 = vmatpush1.msra.mxu0 0.0
    %4161 = vmatprep.subr.mxu0 0.0
    %4162 = vmatpush1.msra.mxu0 0.0
    %4163 = vmatprep.subr.mxu0 0.0
    %4164 = vmatpush1.msra.mxu0 0.0
    %4165 = vmatprep.subr.mxu0 0.0
    %4166 = vmatpush1.msra.mxu0 0.0
    %4167 = vmatprep.subr.mxu0 0.0
    %4168 = vmatpush1.msra.mxu0 0.0
    %4169 = vmatprep.subr.mxu0 0.0
    %4170 = vmatpush1.msra.mxu0 0.0
    %4171 = vmatprep.subr.mxu0 0.0
    %4172 = vmatpush1.msra.mxu0 0.0
    %4173 = vmatprep.subr.mxu0 0.0
    %4174 = vmatpush1.msra.mxu0 0.0
    %4175 = vmatprep.subr.mxu0 0.0
    %4176 = vmatpush1.msra.mxu0 0.0
    %4177 = vmatprep.subr.mxu0 0.0
    %4178 = vmatpush1.msra.mxu0 0.0
    %4179 = vmatprep.subr.mxu0 0.0
    %4180 = vmatpush1.msra.mxu0 0.0
    %4181 = vmatprep.subr.mxu0 0.0
    %4182 = vmatpush1.msra.mxu0 0.0
    %4183 = vmatprep.subr.mxu0 0.0
    %4184 = vmatpush1.msra.mxu0 0.0
    %4185 = vmatprep.mubr.f32.mxu0 0.0
    %v4186 = vand.u32 %v3865, 4294901760
    %v4187 = vsub.f32 %v3865, %v4186
    %v4188 = vand.u32 %v4187, 4294901760
    %4189 = vmatmul.mubr.f32.gmra.mrb[0].mxu0 %v4188
    %v4190 = vpop.f32.mrb[0].mxu0
    %v4191 = vadd.f32 %v4114, %v4190
    %v4192 = vpop.f32.mrb[0].mxu0
    %4193 = vdwg.mxu0
    %4194 = vmatprep.subr.mxu0 0.0
    %v4195 = vand.u32 %v1279, 4294901760
    %v4196 = vsub.f32 %v1279, %v4195
    %v4197 = vand.u32 %v4196, 4294901760
    %4198 = vmatpush1.msra.mxu0 %v4197
    %4199 = vmatprep.subr.mxu0 0.0
    %v4200 = vand.u32 %v1280, 4294901760
    %v4201 = vsub.f32 %v1280, %v4200
    %v4202 = vand.u32 %v4201, 4294901760
    %4203 = vmatpush1.msra.mxu0 %v4202
    %4204 = vmatprep.subr.mxu0 0.0
    %v4205 = vand.u32 %v1281, 4294901760
    %v4206 = vsub.f32 %v1281, %v4205
    %v4207 = vand.u32 %v4206, 4294901760
    %4208 = vmatpush1.msra.mxu0 %v4207
    %4209 = vmatprep.subr.mxu0 0.0
    %v4210 = vand.u32 %v1282, 4294901760
    %v4211 = vsub.f32 %v1282, %v4210
    %v4212 = vand.u32 %v4211, 4294901760
    %4213 = vmatpush1.msra.mxu0 %v4212
    %4214 = vmatprep.subr.mxu0 0.0
    %4215 = vmatpush1.msra.mxu0 0.0
    %4216 = vmatprep.subr.mxu0 0.0
    %4217 = vmatpush1.msra.mxu0 0.0
    %4218 = vmatprep.subr.mxu0 0.0
    %4219 = vmatpush1.msra.mxu0 0.0
    %4220 = vmatprep.subr.mxu0 0.0
    %4221 = vmatpush1.msra.mxu0 0.0
    %4222 = vmatprep.subr.mxu0 0.0
    %4223 = vmatpush1.msra.mxu0 0.0
    %4224 = vmatprep.subr.mxu0 0.0
    %4225 = vmatpush1.msra.mxu0 0.0
    %4226 = vmatprep.subr.mxu0 0.0
    %4227 = vmatpush1.msra.mxu0 0.0
    %4228 = vmatprep.subr.mxu0 0.0
    %4229 = vmatpush1.msra.mxu0 0.0
    %4230 = vmatprep.subr.mxu0 0.0
    %4231 = vmatpush1.msra.mxu0 0.0
    %4232 = vmatprep.subr.mxu0 0.0
    %4233 = vmatpush1.msra.mxu0 0.0
    %4234 = vmatprep.subr.mxu0 0.0
    %4235 = vmatpush1.msra.mxu0 0.0
    %4236 = vmatprep.subr.mxu0 0.0
    %4237 = vmatpush1.msra.mxu0 0.0
    %4238 = vmatprep.subr.mxu0 0.0
    %4239 = vmatpush1.msra.mxu0 0.0
    %4240 = vmatprep.subr.mxu0 0.0
    %4241 = vmatpush1.msra.mxu0 0.0
    %4242 = vmatprep.subr.mxu0 0.0
    %4243 = vmatpush1.msra.mxu0 0.0
    %4244 = vmatprep.subr.mxu0 0.0
    %4245 = vmatpush1.msra.mxu0 0.0
    %4246 = vmatprep.subr.mxu0 0.0
    %4247 = vmatpush1.msra.mxu0 0.0
    %4248 = vmatprep.subr.mxu0 0.0
    %4249 = vmatpush1.msra.mxu0 0.0
    %4250 = vmatprep.subr.mxu0 0.0
    %4251 = vmatpush1.msra.mxu0 0.0
    %4252 = vmatprep.subr.mxu0 0.0
    %4253 = vmatpush1.msra.mxu0 0.0
    %4254 = vmatprep.subr.mxu0 0.0
    %4255 = vmatpush1.msra.mxu0 0.0
    %4256 = vmatprep.subr.mxu0 0.0
    %4257 = vmatpush1.msra.mxu0 0.0
    %4258 = vmatprep.subr.mxu0 0.0
    %4259 = vmatpush1.msra.mxu0 0.0
    %4260 = vmatprep.subr.mxu0 0.0
    %4261 = vmatpush1.msra.mxu0 0.0
    %4262 = vmatprep.subr.mxu0 0.0
    %4263 = vmatpush1.msra.mxu0 0.0
    %4264 = vmatprep.subr.mxu0 0.0
    %4265 = vmatpush1.msra.mxu0 0.0
    %4266 = vmatprep.subr.mxu0 0.0
    %4267 = vmatpush1.msra.mxu0 0.0
    %4268 = vmatprep.subr.mxu0 0.0
    %4269 = vmatpush1.msra.mxu0 0.0
    %4270 = vmatprep.mubr.f32.mxu0 0.0
    %v4271 = vand.u32 %v3865, 4294901760
    %4272 = vmatmul.mubr.f32.gmra.mrb[0].mxu0 %v4271
    %v4273 = vpop.f32.mrb[0].mxu0
    %v4274 = vadd.f32 %v4191, %v4273
    %v4275 = vpop.f32.mrb[0].mxu0
    %4276 = vdwg.mxu0
    %4277 = vmatprep.subr.mxu0 0.0
    %v4278 = vand.u32 %v1279, 4294901760
    %4279 = vmatpush1.msra.mxu0 %v4278
    %4280 = vmatprep.subr.mxu0 0.0
    %v4281 = vand.u32 %v1280, 4294901760
    %4282 = vmatpush1.msra.mxu0 %v4281
    %4283 = vmatprep.subr.mxu0 0.0
    %v4284 = vand.u32 %v1281, 4294901760
    %4285 = vmatpush1.msra.mxu0 %v4284
    %4286 = vmatprep.subr.mxu0 0.0
    %v4287 = vand.u32 %v1282, 4294901760
    %4288 = vmatpush1.msra.mxu0 %v4287
    %4289 = vmatprep.subr.mxu0 0.0
    %4290 = vmatpush1.msra.mxu0 0.0
    %4291 = vmatprep.subr.mxu0 0.0
    %4292 = vmatpush1.msra.mxu0 0.0
    %4293 = vmatprep.subr.mxu0 0.0
    %4294 = vmatpush1.msra.mxu0 0.0
    %4295 = vmatprep.subr.mxu0 0.0
    %4296 = vmatpush1.msra.mxu0 0.0
    %4297 = vmatprep.subr.mxu0 0.0
    %4298 = vmatpush1.msra.mxu0 0.0
    %4299 = vmatprep.subr.mxu0 0.0
    %4300 = vmatpush1.msra.mxu0 0.0
    %4301 = vmatprep.subr.mxu0 0.0
    %4302 = vmatpush1.msra.mxu0 0.0
    %4303 = vmatprep.subr.mxu0 0.0
    %4304 = vmatpush1.msra.mxu0 0.0
    %4305 = vmatprep.subr.mxu0 0.0
    %4306 = vmatpush1.msra.mxu0 0.0
    %4307 = vmatprep.subr.mxu0 0.0
    %4308 = vmatpush1.msra.mxu0 0.0
    %4309 = vmatprep.subr.mxu0 0.0
    %4310 = vmatpush1.msra.mxu0 0.0
    %4311 = vmatprep.subr.mxu0 0.0
    %4312 = vmatpush1.msra.mxu0 0.0
    %4313 = vmatprep.subr.mxu0 0.0
    %4314 = vmatpush1.msra.mxu0 0.0
    %4315 = vmatprep.subr.mxu0 0.0
    %4316 = vmatpush1.msra.mxu0 0.0
    %4317 = vmatprep.subr.mxu0 0.0
    %4318 = vmatpush1.msra.mxu0 0.0
    %4319 = vmatprep.subr.mxu0 0.0
    %4320 = vmatpush1.msra.mxu0 0.0
    %4321 = vmatprep.subr.mxu0 0.0
    %4322 = vmatpush1.msra.mxu0 0.0
    %4323 = vmatprep.subr.mxu0 0.0
    %4324 = vmatpush1.msra.mxu0 0.0
    %4325 = vmatprep.subr.mxu0 0.0
    %4326 = vmatpush1.msra.mxu0 0.0
    %4327 = vmatprep.subr.mxu0 0.0
    %4328 = vmatpush1.msra.mxu0 0.0
    %4329 = vmatprep.subr.mxu0 0.0
    %4330 = vmatpush1.msra.mxu0 0.0
    %4331 = vmatprep.subr.mxu0 0.0
    %4332 = vmatpush1.msra.mxu0 0.0
    %4333 = vmatprep.subr.mxu0 0.0
    %4334 = vmatpush1.msra.mxu0 0.0
    %4335 = vmatprep.subr.mxu0 0.0
    %4336 = vmatpush1.msra.mxu0 0.0
    %4337 = vmatprep.subr.mxu0 0.0
    %4338 = vmatpush1.msra.mxu0 0.0
    %4339 = vmatprep.subr.mxu0 0.0
    %4340 = vmatpush1.msra.mxu0 0.0
    %4341 = vmatprep.subr.mxu0 0.0
    %4342 = vmatpush1.msra.mxu0 0.0
    %4343 = vmatprep.subr.mxu0 0.0
    %4344 = vmatpush1.msra.mxu0 0.0
    %4345 = vmatprep.mubr.f32.mxu0 0.0
    %v4346 = vand.u32 %v3865, 4294901760
    %4347 = vmatmul.mubr.f32.gmra.mrb[0].mxu0 %v4346
    %v4348 = vpop.f32.mrb[0].mxu0
    %v4349 = vadd.f32 %v4274, %v4348
    %v4350 = vpop.f32.mrb[0].mxu0
    %4351 = vdwg.mxu0
    %v4352 = vadd.f32 %v3861, %v4349
    %v4353 = vxor.u32 %v4352, 2147483648
    %v4354 = vmul.f32 %v4353, 1.442695
    %v4355 = vpow.pop %v4354
    %v4356 = vadd.f32 %v4355, 1.0
    %v4357 = vrcp.pop %v4356
    %v4358 = vmul.f32 1.0, %v4357
    %v4359 = vtanh.pop %v4352
    %v4360 = vmul.f32 %v4358, %v3854
    %4362 = vrot.lane.b32.xlu0 %v4359, 64
    %v4363 = vpop.permute.xlu0 %4362
    %v4365 = vmul.f32 %v4358, %v4363
    %4367 = vrot.lane.b32.xlu0 %v4365, 32
    %v4368 = vpop.permute.xlu0 %4367
    %v4370 = vadd.f32 %v4360, %v4368
    %v4371 = vtanh.pop %v4370
    %4373 = vrot.lane.b32.xlu0 %v4371, 64
    %v4374 = vpop.permute.xlu0 %4373
    %v4376 = vmul.f32 %v4358, %v4374
    %v4377 = vld [vmem:[#allocation5 + $0x58] sm:$0xff]
    %v4378 = vld [vmem:[#allocation5 + $0x60] sm:$0xff]
    %v4379 = vld [vmem:[#allocation5 + $0x68] sm:$0xff]
    %v4380 = vld [vmem:[#allocation5 + $0x70] sm:$0xff]
    %v4381 = vld [vmem:[#allocation3] sm:$0xff]
    %4383 = vrot.lane.b32.xlu0 %v4376, 32
    %v4384 = vpop.permute.xlu0 %4383
    %v4385 = vsel %vm554, %v4384, 0
    %4387 = vmatprep.subr.mxu0 0.0
    %v4388 = vand.u32 %v4377, 4294901760
    %4389 = vmatpush1.msra.mxu0 %v4388
    %4390 = vmatprep.subr.mxu0 0.0
    %v4391 = vand.u32 %v4378, 4294901760
    %4392 = vmatpush1.msra.mxu0 %v4391
    %4393 = vmatprep.subr.mxu0 0.0
    %v4394 = vand.u32 %v4379, 4294901760
    %4395 = vmatpush1.msra.mxu0 %v4394
    %4396 = vmatprep.subr.mxu0 0.0
    %v4397 = vand.u32 %v4380, 4294901760
    %4398 = vmatpush1.msra.mxu0 %v4397
    %4399 = vmatprep.subr.mxu0 0.0
    %4400 = vmatpush1.msra.mxu0 0.0
    %4401 = vmatprep.subr.mxu0 0.0
    %4402 = vmatpush1.msra.mxu0 0.0
    %4403 = vmatprep.subr.mxu0 0.0
    %4404 = vmatpush1.msra.mxu0 0.0
    %4405 = vmatprep.subr.mxu0 0.0
    %4406 = vmatpush1.msra.mxu0 0.0
    %4407 = vmatprep.subr.mxu0 0.0
    %4408 = vmatpush1.msra.mxu0 0.0
    %4409 = vmatprep.subr.mxu0 0.0
    %4410 = vmatpush1.msra.mxu0 0.0
    %4411 = vmatprep.subr.mxu0 0.0
    %4412 = vmatpush1.msra.mxu0 0.0
    %4413 = vmatprep.subr.mxu0 0.0
    %4414 = vmatpush1.msra.mxu0 0.0
    %4415 = vmatprep.subr.mxu0 0.0
    %4416 = vmatpush1.msra.mxu0 0.0
    %4417 = vmatprep.subr.mxu0 0.0
    %4418 = vmatpush1.msra.mxu0 0.0
    %4419 = vmatprep.subr.mxu0 0.0
    %4420 = vmatpush1.msra.mxu0 0.0
    %4421 = vmatprep.subr.mxu0 0.0
    %4422 = vmatpush1.msra.mxu0 0.0
    %4423 = vmatprep.subr.mxu0 0.0
    %4424 = vmatpush1.msra.mxu0 0.0
    %4425 = vmatprep.subr.mxu0 0.0
    %4426 = vmatpush1.msra.mxu0 0.0
    %4427 = vmatprep.subr.mxu0 0.0
    %4428 = vmatpush1.msra.mxu0 0.0
    %4429 = vmatprep.subr.mxu0 0.0
    %4430 = vmatpush1.msra.mxu0 0.0
    %4431 = vmatprep.subr.mxu0 0.0
    %4432 = vmatpush1.msra.mxu0 0.0
    %4433 = vmatprep.subr.mxu0 0.0
    %4434 = vmatpush1.msra.mxu0 0.0
    %4435 = vmatprep.subr.mxu0 0.0
    %4436 = vmatpush1.msra.mxu0 0.0
    %4437 = vmatprep.subr.mxu0 0.0
    %4438 = vmatpush1.msra.mxu0 0.0
    %4439 = vmatprep.subr.mxu0 0.0
    %4440 = vmatpush1.msra.mxu0 0.0
    %4441 = vmatprep.subr.mxu0 0.0
    %4442 = vmatpush1.msra.mxu0 0.0
    %4443 = vmatprep.subr.mxu0 0.0
    %4444 = vmatpush1.msra.mxu0 0.0
    %4445 = vmatprep.subr.mxu0 0.0
    %4446 = vmatpush1.msra.mxu0 0.0
    %4447 = vmatprep.subr.mxu0 0.0
    %4448 = vmatpush1.msra.mxu0 0.0
    %4449 = vmatprep.subr.mxu0 0.0
    %4450 = vmatpush1.msra.mxu0 0.0
    %4451 = vmatprep.subr.mxu0 0.0
    %4452 = vmatpush1.msra.mxu0 0.0
    %4453 = vmatprep.subr.mxu0 0.0
    %4454 = vmatpush1.msra.mxu0 0.0
    %4455 = vmatprep.mubr.f32.mxu0 0.0
    %v4456 = vand.u32 %v4385, 4294901760
    %v4457 = vsub.f32 %v4385, %v4456
    %v4458 = vand.u32 %v4457, 4294901760
    %v4459 = vsub.f32 %v4457, %v4458
    %v4460 = vand.u32 %v4459, 4294901760
    %4461 = vmatmul.mubr.f32.gmra.mrb[0].mxu0 %v4460
    %v4462 = vpop.f32.mrb[0].mxu0
    %v4463 = vadd.f32 0.0, %v4462
    %v4464 = vpop.f32.mrb[0].mxu0
    %4465 = vdwg.mxu0
    %4466 = vmatprep.subr.mxu0 0.0
    %v4467 = vand.u32 %v4377, 4294901760
    %v4468 = vsub.f32 %v4377, %v4467
    %v4469 = vand.u32 %v4468, 4294901760
    %v4470 = vsub.f32 %v4468, %v4469
    %v4471 = vand.u32 %v4470, 4294901760
    %4472 = vmatpush1.msra.mxu0 %v4471
    %4473 = vmatprep.subr.mxu0 0.0
    %v4474 = vand.u32 %v4378, 4294901760
    %v4475 = vsub.f32 %v4378, %v4474
    %v4476 = vand.u32 %v4475, 4294901760
    %v4477 = vsub.f32 %v4475, %v4476
    %v4478 = vand.u32 %v4477, 4294901760
    %4479 = vmatpush1.msra.mxu0 %v4478
    %4480 = vmatprep.subr.mxu0 0.0
    %v4481 = vand.u32 %v4379, 4294901760
    %v4482 = vsub.f32 %v4379, %v4481
    %v4483 = vand.u32 %v4482, 4294901760
    %v4484 = vsub.f32 %v4482, %v4483
    %v4485 = vand.u32 %v4484, 4294901760
    %4486 = vmatpush1.msra.mxu0 %v4485
    %4487 = vmatprep.subr.mxu0 0.0
    %v4488 = vand.u32 %v4380, 4294901760
    %v4489 = vsub.f32 %v4380, %v4488
    %v4490 = vand.u32 %v4489, 4294901760
    %v4491 = vsub.f32 %v4489, %v4490
    %v4492 = vand.u32 %v4491, 4294901760
    %4493 = vmatpush1.msra.mxu0 %v4492
    %4494 = vmatprep.subr.mxu0 0.0
    %4495 = vmatpush1.msra.mxu0 0.0
    %4496 = vmatprep.subr.mxu0 0.0
    %4497 = vmatpush1.msra.mxu0 0.0
    %4498 = vmatprep.subr.mxu0 0.0
    %4499 = vmatpush1.msra.mxu0 0.0
    %4500 = vmatprep.subr.mxu0 0.0
    %4501 = vmatpush1.msra.mxu0 0.0
    %4502 = vmatprep.subr.mxu0 0.0
    %4503 = vmatpush1.msra.mxu0 0.0
    %4504 = vmatprep.subr.mxu0 0.0
    %4505 = vmatpush1.msra.mxu0 0.0
    %4506 = vmatprep.subr.mxu0 0.0
    %4507 = vmatpush1.msra.mxu0 0.0
    %4508 = vmatprep.subr.mxu0 0.0
    %4509 = vmatpush1.msra.mxu0 0.0
    %4510 = vmatprep.subr.mxu0 0.0
    %4511 = vmatpush1.msra.mxu0 0.0
    %4512 = vmatprep.subr.mxu0 0.0
    %4513 = vmatpush1.msra.mxu0 0.0
    %4514 = vmatprep.subr.mxu0 0.0
    %4515 = vmatpush1.msra.mxu0 0.0
    %4516 = vmatprep.subr.mxu0 0.0
    %4517 = vmatpush1.msra.mxu0 0.0
    %4518 = vmatprep.subr.mxu0 0.0
    %4519 = vmatpush1.msra.mxu0 0.0
    %4520 = vmatprep.subr.mxu0 0.0
    %4521 = vmatpush1.msra.mxu0 0.0
    %4522 = vmatprep.subr.mxu0 0.0
    %4523 = vmatpush1.msra.mxu0 0.0
    %4524 = vmatprep.subr.mxu0 0.0
    %4525 = vmatpush1.msra.mxu0 0.0
    %4526 = vmatprep.subr.mxu0 0.0
    %4527 = vmatpush1.msra.mxu0 0.0
    %4528 = vmatprep.subr.mxu0 0.0
    %4529 = vmatpush1.msra.mxu0 0.0
    %4530 = vmatprep.subr.mxu0 0.0
    %4531 = vmatpush1.msra.mxu0 0.0
    %4532 = vmatprep.subr.mxu0 0.0
    %4533 = vmatpush1.msra.mxu0 0.0
    %4534 = vmatprep.subr.mxu0 0.0
    %4535 = vmatpush1.msra.mxu0 0.0
    %4536 = vmatprep.subr.mxu0 0.0
    %4537 = vmatpush1.msra.mxu0 0.0
    %4538 = vmatprep.subr.mxu0 0.0
    %4539 = vmatpush1.msra.mxu0 0.0
    %4540 = vmatprep.subr.mxu0 0.0
    %4541 = vmatpush1.msra.mxu0 0.0
    %4542 = vmatprep.subr.mxu0 0.0
    %4543 = vmatpush1.msra.mxu0 0.0
    %4544 = vmatprep.subr.mxu0 0.0
    %4545 = vmatpush1.msra.mxu0 0.0
    %4546 = vmatprep.subr.mxu0 0.0
    %4547 = vmatpush1.msra.mxu0 0.0
    %4548 = vmatprep.subr.mxu0 0.0
    %4549 = vmatpush1.msra.mxu0 0.0
    %4550 = vmatprep.mubr.f32.mxu0 0.0
    %v4551 = vand.u32 %v4385, 4294901760
    %4552 = vmatmul.mubr.f32.gmra.mrb[0].mxu0 %v4551
    %v4553 = vpop.f32.mrb[0].mxu0
    %v4554 = vadd.f32 %v4463, %v4553
    %v4555 = vpop.f32.mrb[0].mxu0
    %4556 = vdwg.mxu0
    %4557 = vmatprep.subr.mxu0 0.0
    %v4558 = vand.u32 %v4377, 4294901760
    %v4559 = vsub.f32 %v4377, %v4558
    %4560 = vmatpush1.msra.mxu0 %v4559
    %4561 = vmatprep.subr.mxu0 0.0
    %v4562 = vand.u32 %v4378, 4294901760
    %v4563 = vsub.f32 %v4378, %v4562
    %4564 = vmatpush1.msra.mxu0 %v4563
    %4565 = vmatprep.subr.mxu0 0.0
    %v4566 = vand.u32 %v4379, 4294901760
    %v4567 = vsub.f32 %v4379, %v4566
    %4568 = vmatpush1.msra.mxu0 %v4567
    %4569 = vmatprep.subr.mxu0 0.0
    %v4570 = vand.u32 %v4380, 4294901760
    %v4571 = vsub.f32 %v4380, %v4570
    %4572 = vmatpush1.msra.mxu0 %v4571
    %4573 = vmatprep.subr.mxu0 0.0
    %4574 = vmatpush1.msra.mxu0 0.0
    %4575 = vmatprep.subr.mxu0 0.0
    %4576 = vmatpush1.msra.mxu0 0.0
    %4577 = vmatprep.subr.mxu0 0.0
    %4578 = vmatpush1.msra.mxu0 0.0
    %4579 = vmatprep.subr.mxu0 0.0
    %4580 = vmatpush1.msra.mxu0 0.0
    %4581 = vmatprep.subr.mxu0 0.0
    %4582 = vmatpush1.msra.mxu0 0.0
    %4583 = vmatprep.subr.mxu0 0.0
    %4584 = vmatpush1.msra.mxu0 0.0
    %4585 = vmatprep.subr.mxu0 0.0
    %4586 = vmatpush1.msra.mxu0 0.0
    %4587 = vmatprep.subr.mxu0 0.0
    %4588 = vmatpush1.msra.mxu0 0.0
    %4589 = vmatprep.subr.mxu0 0.0
    %4590 = vmatpush1.msra.mxu0 0.0
    %4591 = vmatprep.subr.mxu0 0.0
    %4592 = vmatpush1.msra.mxu0 0.0
    %4593 = vmatprep.subr.mxu0 0.0
    %4594 = vmatpush1.msra.mxu0 0.0
    %4595 = vmatprep.subr.mxu0 0.0
    %4596 = vmatpush1.msra.mxu0 0.0
    %4597 = vmatprep.subr.mxu0 0.0
    %4598 = vmatpush1.msra.mxu0 0.0
    %4599 = vmatprep.subr.mxu0 0.0
    %4600 = vmatpush1.msra.mxu0 0.0
    %4601 = vmatprep.subr.mxu0 0.0
    %4602 = vmatpush1.msra.mxu0 0.0
    %4603 = vmatprep.subr.mxu0 0.0
    %4604 = vmatpush1.msra.mxu0 0.0
    %4605 = vmatprep.subr.mxu0 0.0
    %4606 = vmatpush1.msra.mxu0 0.0
    %4607 = vmatprep.subr.mxu0 0.0
    %4608 = vmatpush1.msra.mxu0 0.0
    %4609 = vmatprep.subr.mxu0 0.0
    %4610 = vmatpush1.msra.mxu0 0.0
    %4611 = vmatprep.subr.mxu0 0.0
    %4612 = vmatpush1.msra.mxu0 0.0
    %4613 = vmatprep.subr.mxu0 0.0
    %4614 = vmatpush1.msra.mxu0 0.0
    %4615 = vmatprep.subr.mxu0 0.0
    %4616 = vmatpush1.msra.mxu0 0.0
    %4617 = vmatprep.subr.mxu0 0.0
    %4618 = vmatpush1.msra.mxu0 0.0
    %4619 = vmatprep.subr.mxu0 0.0
    %4620 = vmatpush1.msra.mxu0 0.0
    %4621 = vmatprep.subr.mxu0 0.0
    %4622 = vmatpush1.msra.mxu0 0.0
    %4623 = vmatprep.subr.mxu0 0.0
    %4624 = vmatpush1.msra.mxu0 0.0
    %4625 = vmatprep.subr.mxu0 0.0
    %4626 = vmatpush1.msra.mxu0 0.0
    %4627 = vmatprep.subr.mxu0 0.0
    %4628 = vmatpush1.msra.mxu0 0.0
    %4629 = vmatprep.mubr.f32.mxu0 0.0
    %v4630 = vand.u32 %v4385, 4294901760
    %v4631 = vsub.f32 %v4385, %v4630
    %4632 = vmatmul.mubr.f32.gmra.mrb[0].mxu0 %v4631
    %v4633 = vpop.f32.mrb[0].mxu0
    %v4634 = vadd.f32 %v4554, %v4633
    %v4635 = vpop.f32.mrb[0].mxu0
    %4636 = vdwg.mxu0
    %4637 = vmatprep.subr.mxu0 0.0
    %v4638 = vand.u32 %v4377, 4294901760
    %4639 = vmatpush1.msra.mxu0 %v4638
    %4640 = vmatprep.subr.mxu0 0.0
    %v4641 = vand.u32 %v4378, 4294901760
    %4642 = vmatpush1.msra.mxu0 %v4641
    %4643 = vmatprep.subr.mxu0 0.0
    %v4644 = vand.u32 %v4379, 4294901760
    %4645 = vmatpush1.msra.mxu0 %v4644
    %4646 = vmatprep.subr.mxu0 0.0
    %v4647 = vand.u32 %v4380, 4294901760
    %4648 = vmatpush1.msra.mxu0 %v4647
    %4649 = vmatprep.subr.mxu0 0.0
    %4650 = vmatpush1.msra.mxu0 0.0
    %4651 = vmatprep.subr.mxu0 0.0
    %4652 = vmatpush1.msra.mxu0 0.0
    %4653 = vmatprep.subr.mxu0 0.0
    %4654 = vmatpush1.msra.mxu0 0.0
    %4655 = vmatprep.subr.mxu0 0.0
    %4656 = vmatpush1.msra.mxu0 0.0
    %4657 = vmatprep.subr.mxu0 0.0
    %4658 = vmatpush1.msra.mxu0 0.0
    %4659 = vmatprep.subr.mxu0 0.0
    %4660 = vmatpush1.msra.mxu0 0.0
    %4661 = vmatprep.subr.mxu0 0.0
    %4662 = vmatpush1.msra.mxu0 0.0
    %4663 = vmatprep.subr.mxu0 0.0
    %4664 = vmatpush1.msra.mxu0 0.0
    %4665 = vmatprep.subr.mxu0 0.0
    %4666 = vmatpush1.msra.mxu0 0.0
    %4667 = vmatprep.subr.mxu0 0.0
    %4668 = vmatpush1.msra.mxu0 0.0
    %4669 = vmatprep.subr.mxu0 0.0
    %4670 = vmatpush1.msra.mxu0 0.0
    %4671 = vmatprep.subr.mxu0 0.0
    %4672 = vmatpush1.msra.mxu0 0.0
    %4673 = vmatprep.subr.mxu0 0.0
    %4674 = vmatpush1.msra.mxu0 0.0
    %4675 = vmatprep.subr.mxu0 0.0
    %4676 = vmatpush1.msra.mxu0 0.0
    %4677 = vmatprep.subr.mxu0 0.0
    %4678 = vmatpush1.msra.mxu0 0.0
    %4679 = vmatprep.subr.mxu0 0.0
    %4680 = vmatpush1.msra.mxu0 0.0
    %4681 = vmatprep.subr.mxu0 0.0
    %4682 = vmatpush1.msra.mxu0 0.0
    %4683 = vmatprep.subr.mxu0 0.0
    %4684 = vmatpush1.msra.mxu0 0.0
    %4685 = vmatprep.subr.mxu0 0.0
    %4686 = vmatpush1.msra.mxu0 0.0
    %4687 = vmatprep.subr.mxu0 0.0
    %4688 = vmatpush1.msra.mxu0 0.0
    %4689 = vmatprep.subr.mxu0 0.0
    %4690 = vmatpush1.msra.mxu0 0.0
    %4691 = vmatprep.subr.mxu0 0.0
    %4692 = vmatpush1.msra.mxu0 0.0
    %4693 = vmatprep.subr.mxu0 0.0
    %4694 = vmatpush1.msra.mxu0 0.0
    %4695 = vmatprep.subr.mxu0 0.0
    %4696 = vmatpush1.msra.mxu0 0.0
    %4697 = vmatprep.subr.mxu0 0.0
    %4698 = vmatpush1.msra.mxu0 0.0
    %4699 = vmatprep.subr.mxu0 0.0
    %4700 = vmatpush1.msra.mxu0 0.0
    %4701 = vmatprep.subr.mxu0 0.0
    %4702 = vmatpush1.msra.mxu0 0.0
    %4703 = vmatprep.subr.mxu0 0.0
    %4704 = vmatpush1.msra.mxu0 0.0
    %4705 = vmatprep.mubr.f32.mxu0 0.0
    %v4706 = vand.u32 %v4385, 4294901760
    %v4707 = vsub.f32 %v4385, %v4706
    %v4708 = vand.u32 %v4707, 4294901760
    %4709 = vmatmul.mubr.f32.gmra.mrb[0].mxu0 %v4708
    %v4710 = vpop.f32.mrb[0].mxu0
    %v4711 = vadd.f32 %v4634, %v4710
    %v4712 = vpop.f32.mrb[0].mxu0
    %4713 = vdwg.mxu0
    %4714 = vmatprep.subr.mxu0 0.0
    %v4715 = vand.u32 %v4377, 4294901760
    %v4716 = vsub.f32 %v4377, %v4715
    %v4717 = vand.u32 %v4716, 4294901760
    %4718 = vmatpush1.msra.mxu0 %v4717
    %4719 = vmatprep.subr.mxu0 0.0
    %v4720 = vand.u32 %v4378, 4294901760
    %v4721 = vsub.f32 %v4378, %v4720
    %v4722 = vand.u32 %v4721, 4294901760
    %4723 = vmatpush1.msra.mxu0 %v4722
    %4724 = vmatprep.subr.mxu0 0.0
    %v4725 = vand.u32 %v4379, 4294901760
    %v4726 = vsub.f32 %v4379, %v4725
    %v4727 = vand.u32 %v4726, 4294901760
    %4728 = vmatpush1.msra.mxu0 %v4727
    %4729 = vmatprep.subr.mxu0 0.0
    %v4730 = vand.u32 %v4380, 4294901760
    %v4731 = vsub.f32 %v4380, %v4730
    %v4732 = vand.u32 %v4731, 4294901760
    %4733 = vmatpush1.msra.mxu0 %v4732
    %4734 = vmatprep.subr.mxu0 0.0
    %4735 = vmatpush1.msra.mxu0 0.0
    %4736 = vmatprep.subr.mxu0 0.0
    %4737 = vmatpush1.msra.mxu0 0.0
    %4738 = vmatprep.subr.mxu0 0.0
    %4739 = vmatpush1.msra.mxu0 0.0
    %4740 = vmatprep.subr.mxu0 0.0
    %4741 = vmatpush1.msra.mxu0 0.0
    %4742 = vmatprep.subr.mxu0 0.0
    %4743 = vmatpush1.msra.mxu0 0.0
    %4744 = vmatprep.subr.mxu0 0.0
    %4745 = vmatpush1.msra.mxu0 0.0
    %4746 = vmatprep.subr.mxu0 0.0
    %4747 = vmatpush1.msra.mxu0 0.0
    %4748 = vmatprep.subr.mxu0 0.0
    %4749 = vmatpush1.msra.mxu0 0.0
    %4750 = vmatprep.subr.mxu0 0.0
    %4751 = vmatpush1.msra.mxu0 0.0
    %4752 = vmatprep.subr.mxu0 0.0
    %4753 = vmatpush1.msra.mxu0 0.0
    %4754 = vmatprep.subr.mxu0 0.0
    %4755 = vmatpush1.msra.mxu0 0.0
    %4756 = vmatprep.subr.mxu0 0.0
    %4757 = vmatpush1.msra.mxu0 0.0
    %4758 = vmatprep.subr.mxu0 0.0
    %4759 = vmatpush1.msra.mxu0 0.0
    %4760 = vmatprep.subr.mxu0 0.0
    %4761 = vmatpush1.msra.mxu0 0.0
    %4762 = vmatprep.subr.mxu0 0.0
    %4763 = vmatpush1.msra.mxu0 0.0
    %4764 = vmatprep.subr.mxu0 0.0
    %4765 = vmatpush1.msra.mxu0 0.0
    %4766 = vmatprep.subr.mxu0 0.0
    %4767 = vmatpush1.msra.mxu0 0.0
    %4768 = vmatprep.subr.mxu0 0.0
    %4769 = vmatpush1.msra.mxu0 0.0
    %4770 = vmatprep.subr.mxu0 0.0
    %4771 = vmatpush1.msra.mxu0 0.0
    %4772 = vmatprep.subr.mxu0 0.0
    %4773 = vmatpush1.msra.mxu0 0.0
    %4774 = vmatprep.subr.mxu0 0.0
    %4775 = vmatpush1.msra.mxu0 0.0
    %4776 = vmatprep.subr.mxu0 0.0
    %4777 = vmatpush1.msra.mxu0 0.0
    %4778 = vmatprep.subr.mxu0 0.0
    %4779 = vmatpush1.msra.mxu0 0.0
    %4780 = vmatprep.subr.mxu0 0.0
    %4781 = vmatpush1.msra.mxu0 0.0
    %4782 = vmatprep.subr.mxu0 0.0
    %4783 = vmatpush1.msra.mxu0 0.0
    %4784 = vmatprep.subr.mxu0 0.0
    %4785 = vmatpush1.msra.mxu0 0.0
    %4786 = vmatprep.subr.mxu0 0.0
    %4787 = vmatpush1.msra.mxu0 0.0
    %4788 = vmatprep.subr.mxu0 0.0
    %4789 = vmatpush1.msra.mxu0 0.0
    %4790 = vmatprep.mubr.f32.mxu0 0.0
    %v4791 = vand.u32 %v4385, 4294901760
    %4792 = vmatmul.mubr.f32.gmra.mrb[0].mxu0 %v4791
    %v4793 = vpop.f32.mrb[0].mxu0
    %v4794 = vadd.f32 %v4711, %v4793
    %v4795 = vpop.f32.mrb[0].mxu0
    %4796 = vdwg.mxu0
    %4797 = vmatprep.subr.mxu0 0.0
    %v4798 = vand.u32 %v4377, 4294901760
    %4799 = vmatpush1.msra.mxu0 %v4798
    %4800 = vmatprep.subr.mxu0 0.0
    %v4801 = vand.u32 %v4378, 4294901760
    %4802 = vmatpush1.msra.mxu0 %v4801
    %4803 = vmatprep.subr.mxu0 0.0
    %v4804 = vand.u32 %v4379, 4294901760
    %4805 = vmatpush1.msra.mxu0 %v4804
    %4806 = vmatprep.subr.mxu0 0.0
    %v4807 = vand.u32 %v4380, 4294901760
    %4808 = vmatpush1.msra.mxu0 %v4807
    %4809 = vmatprep.subr.mxu0 0.0
    %4810 = vmatpush1.msra.mxu0 0.0
    %4811 = vmatprep.subr.mxu0 0.0
    %4812 = vmatpush1.msra.mxu0 0.0
    %4813 = vmatprep.subr.mxu0 0.0
    %4814 = vmatpush1.msra.mxu0 0.0
    %4815 = vmatprep.subr.mxu0 0.0
    %4816 = vmatpush1.msra.mxu0 0.0
    %4817 = vmatprep.subr.mxu0 0.0
    %4818 = vmatpush1.msra.mxu0 0.0
    %4819 = vmatprep.subr.mxu0 0.0
    %4820 = vmatpush1.msra.mxu0 0.0
    %4821 = vmatprep.subr.mxu0 0.0
    %4822 = vmatpush1.msra.mxu0 0.0
    %4823 = vmatprep.subr.mxu0 0.0
    %4824 = vmatpush1.msra.mxu0 0.0
    %4825 = vmatprep.subr.mxu0 0.0
    %4826 = vmatpush1.msra.mxu0 0.0
    %4827 = vmatprep.subr.mxu0 0.0
    %4828 = vmatpush1.msra.mxu0 0.0
    %4829 = vmatprep.subr.mxu0 0.0
    %4830 = vmatpush1.msra.mxu0 0.0
    %4831 = vmatprep.subr.mxu0 0.0
    %4832 = vmatpush1.msra.mxu0 0.0
    %4833 = vmatprep.subr.mxu0 0.0
    %4834 = vmatpush1.msra.mxu0 0.0
    %4835 = vmatprep.subr.mxu0 0.0
    %4836 = vmatpush1.msra.mxu0 0.0
    %4837 = vmatprep.subr.mxu0 0.0
    %4838 = vmatpush1.msra.mxu0 0.0
    %4839 = vmatprep.subr.mxu0 0.0
    %4840 = vmatpush1.msra.mxu0 0.0
    %4841 = vmatprep.subr.mxu0 0.0
    %4842 = vmatpush1.msra.mxu0 0.0
    %4843 = vmatprep.subr.mxu0 0.0
    %4844 = vmatpush1.msra.mxu0 0.0
    %4845 = vmatprep.subr.mxu0 0.0
    %4846 = vmatpush1.msra.mxu0 0.0
    %4847 = vmatprep.subr.mxu0 0.0
    %4848 = vmatpush1.msra.mxu0 0.0
    %4849 = vmatprep.subr.mxu0 0.0
    %4850 = vmatpush1.msra.mxu0 0.0
    %4851 = vmatprep.subr.mxu0 0.0
    %4852 = vmatpush1.msra.mxu0 0.0
    %4853 = vmatprep.subr.mxu0 0.0
    %4854 = vmatpush1.msra.mxu0 0.0
    %4855 = vmatprep.subr.mxu0 0.0
    %4856 = vmatpush1.msra.mxu0 0.0
    %4857 = vmatprep.subr.mxu0 0.0
    %4858 = vmatpush1.msra.mxu0 0.0
    %4859 = vmatprep.subr.mxu0 0.0
    %4860 = vmatpush1.msra.mxu0 0.0
    %4861 = vmatprep.subr.mxu0 0.0
    %4862 = vmatpush1.msra.mxu0 0.0
    %4863 = vmatprep.subr.mxu0 0.0
    %4864 = vmatpush1.msra.mxu0 0.0
    %4865 = vmatprep.mubr.f32.mxu0 0.0
    %v4866 = vand.u32 %v4385, 4294901760
    %4867 = vmatmul.mubr.f32.gmra.mrb[0].mxu0 %v4866
    %v4868 = vpop.f32.mrb[0].mxu0
    %v4869 = vadd.f32 %v4794, %v4868
    %v4870 = vpop.f32.mrb[0].mxu0
    %4871 = vdwg.mxu0
    %v4872 = vadd.f32 %v4381, %v4869
    %4873 = vst [vmem:[#allocation3] sm:$0xff] %v4872
    %v4874 = vld [vmem:[#allocation5 + $0x78] sm:$0xff]
    %v4875 = vld [vmem:[#allocation5 + $0x80] sm:$0xff]
    %v4876 = vld [vmem:[#allocation5 + $0x88] sm:$0xff]
    %v4877 = vld [vmem:[#allocation5 + $0x90] sm:$0xff]
    %v4878 = vld [vmem:[#allocation3] sm:$0x1]
    %4879 = vmatprep.subr.mxu0 0.0
    %v4880 = vand.u32 %v4874, 4294901760
    %4881 = vmatpush1.msra.mxu0 %v4880
    %4882 = vmatprep.subr.mxu0 0.0
    %v4883 = vand.u32 %v4875, 4294901760
    %4884 = vmatpush1.msra.mxu0 %v4883
    %4885 = vmatprep.subr.mxu0 0.0
    %v4886 = vand.u32 %v4876, 4294901760
    %4887 = vmatpush1.msra.mxu0 %v4886
    %4888 = vmatprep.subr.mxu0 0.0
    %v4889 = vand.u32 %v4877, 4294901760
    %4890 = vmatpush1.msra.mxu0 %v4889
    %4891 = vmatprep.subr.mxu0 0.0
    %4892 = vmatpush1.msra.mxu0 0.0
    %4893 = vmatprep.subr.mxu0 0.0
    %4894 = vmatpush1.msra.mxu0 0.0
    %4895 = vmatprep.subr.mxu0 0.0
    %4896 = vmatpush1.msra.mxu0 0.0
    %4897 = vmatprep.subr.mxu0 0.0
    %4898 = vmatpush1.msra.mxu0 0.0
    %4899 = vmatprep.subr.mxu0 0.0
    %4900 = vmatpush1.msra.mxu0 0.0
    %4901 = vmatprep.subr.mxu0 0.0
    %4902 = vmatpush1.msra.mxu0 0.0
    %4903 = vmatprep.subr.mxu0 0.0
    %4904 = vmatpush1.msra.mxu0 0.0
    %4905 = vmatprep.subr.mxu0 0.0
    %4906 = vmatpush1.msra.mxu0 0.0
    %4907 = vmatprep.subr.mxu0 0.0
    %4908 = vmatpush1.msra.mxu0 0.0
    %4909 = vmatprep.subr.mxu0 0.0
    %4910 = vmatpush1.msra.mxu0 0.0
    %4911 = vmatprep.subr.mxu0 0.0
    %4912 = vmatpush1.msra.mxu0 0.0
    %4913 = vmatprep.subr.mxu0 0.0
    %4914 = vmatpush1.msra.mxu0 0.0
    %4915 = vmatprep.subr.mxu0 0.0
    %4916 = vmatpush1.msra.mxu0 0.0
    %4917 = vmatprep.subr.mxu0 0.0
    %4918 = vmatpush1.msra.mxu0 0.0
    %4919 = vmatprep.subr.mxu0 0.0
    %4920 = vmatpush1.msra.mxu0 0.0
    %4921 = vmatprep.subr.mxu0 0.0
    %4922 = vmatpush1.msra.mxu0 0.0
    %4923 = vmatprep.subr.mxu0 0.0
    %4924 = vmatpush1.msra.mxu0 0.0
    %4925 = vmatprep.subr.mxu0 0.0
    %4926 = vmatpush1.msra.mxu0 0.0
    %4927 = vmatprep.subr.mxu0 0.0
    %4928 = vmatpush1.msra.mxu0 0.0
    %4929 = vmatprep.subr.mxu0 0.0
    %4930 = vmatpush1.msra.mxu0 0.0
    %4931 = vmatprep.subr.mxu0 0.0
    %4932 = vmatpush1.msra.mxu0 0.0
    %4933 = vmatprep.subr.mxu0 0.0
    %4934 = vmatpush1.msra.mxu0 0.0
    %4935 = vmatprep.subr.mxu0 0.0
    %4936 = vmatpush1.msra.mxu0 0.0
    %4937 = vmatprep.subr.mxu0 0.0
    %4938 = vmatpush1.msra.mxu0 0.0
    %4939 = vmatprep.subr.mxu0 0.0
    %4940 = vmatpush1.msra.mxu0 0.0
    %4941 = vmatprep.subr.mxu0 0.0
    %4942 = vmatpush1.msra.mxu0 0.0
    %4943 = vmatprep.subr.mxu0 0.0
    %4944 = vmatpush1.msra.mxu0 0.0
    %4945 = vmatprep.subr.mxu0 0.0
    %4946 = vmatpush1.msra.mxu0 0.0
    %4947 = vmatprep.mubr.f32.mxu0 0.0
    %v4948 = vand.u32 %v1285, 4294901760
    %v4949 = vsub.f32 %v1285, %v4948
    %v4950 = vand.u32 %v4949, 4294901760
    %v4951 = vsub.f32 %v4949, %v4950
    %v4952 = vand.u32 %v4951, 4294901760
    %4953 = vmatmul.mubr.f32.gmra.mrb[0].mxu0 %v4952
    %v4954 = vpop.f32.mrb[0].mxu0
    %v4955 = vadd.f32 0.0, %v4954
    %v4956 = vpop.f32.mrb[0].mxu0
    %4957 = vdwg.mxu0
    %4958 = vmatprep.subr.mxu0 0.0
    %v4959 = vand.u32 %v4874, 4294901760
    %v4960 = vsub.f32 %v4874, %v4959
    %v4961 = vand.u32 %v4960, 4294901760
    %v4962 = vsub.f32 %v4960, %v4961
    %v4963 = vand.u32 %v4962, 4294901760
    %4964 = vmatpush1.msra.mxu0 %v4963
    %4965 = vmatprep.subr.mxu0 0.0
    %v4966 = vand.u32 %v4875, 4294901760
    %v4967 = vsub.f32 %v4875, %v4966
    %v4968 = vand.u32 %v4967, 4294901760
    %v4969 = vsub.f32 %v4967, %v4968
    %v4970 = vand.u32 %v4969, 4294901760
    %4971 = vmatpush1.msra.mxu0 %v4970
    %4972 = vmatprep.subr.mxu0 0.0
    %v4973 = vand.u32 %v4876, 4294901760
    %v4974 = vsub.f32 %v4876, %v4973
    %v4975 = vand.u32 %v4974, 4294901760
    %v4976 = vsub.f32 %v4974, %v4975
    %v4977 = vand.u32 %v4976, 4294901760
    %4978 = vmatpush1.msra.mxu0 %v4977
    %4979 = vmatprep.subr.mxu0 0.0
    %v4980 = vand.u32 %v4877, 4294901760
    %v4981 = vsub.f32 %v4877, %v4980
    %v4982 = vand.u32 %v4981, 4294901760
    %v4983 = vsub.f32 %v4981, %v4982
    %v4984 = vand.u32 %v4983, 4294901760
    %4985 = vmatpush1.msra.mxu0 %v4984
    %4986 = vmatprep.subr.mxu0 0.0
    %4987 = vmatpush1.msra.mxu0 0.0
    %4988 = vmatprep.subr.mxu0 0.0
    %4989 = vmatpush1.msra.mxu0 0.0
    %4990 = vmatprep.subr.mxu0 0.0
    %4991 = vmatpush1.msra.mxu0 0.0
    %4992 = vmatprep.subr.mxu0 0.0
    %4993 = vmatpush1.msra.mxu0 0.0
    %4994 = vmatprep.subr.mxu0 0.0
    %4995 = vmatpush1.msra.mxu0 0.0
    %4996 = vmatprep.subr.mxu0 0.0
    %4997 = vmatpush1.msra.mxu0 0.0
    %4998 = vmatprep.subr.mxu0 0.0
    %4999 = vmatpush1.msra.mxu0 0.0
    %5000 = vmatprep.subr.mxu0 0.0
    %5001 = vmatpush1.msra.mxu0 0.0
    %5002 = vmatprep.subr.mxu0 0.0
    %5003 = vmatpush1.msra.mxu0 0.0
    %5004 = vmatprep.subr.mxu0 0.0
    %5005 = vmatpush1.msra.mxu0 0.0
    %5006 = vmatprep.subr.mxu0 0.0
    %5007 = vmatpush1.msra.mxu0 0.0
    %5008 = vmatprep.subr.mxu0 0.0
    %5009 = vmatpush1.msra.mxu0 0.0
    %5010 = vmatprep.subr.mxu0 0.0
    %5011 = vmatpush1.msra.mxu0 0.0
    %5012 = vmatprep.subr.mxu0 0.0
    %5013 = vmatpush1.msra.mxu0 0.0
    %5014 = vmatprep.subr.mxu0 0.0
    %5015 = vmatpush1.msra.mxu0 0.0
    %5016 = vmatprep.subr.mxu0 0.0
    %5017 = vmatpush1.msra.mxu0 0.0
    %5018 = vmatprep.subr.mxu0 0.0
    %5019 = vmatpush1.msra.mxu0 0.0
    %5020 = vmatprep.subr.mxu0 0.0
    %5021 = vmatpush1.msra.mxu0 0.0
    %5022 = vmatprep.subr.mxu0 0.0
    %5023 = vmatpush1.msra.mxu0 0.0
    %5024 = vmatprep.subr.mxu0 0.0
    %5025 = vmatpush1.msra.mxu0 0.0
    %5026 = vmatprep.subr.mxu0 0.0
    %5027 = vmatpush1.msra.mxu0 0.0
    %5028 = vmatprep.subr.mxu0 0.0
    %5029 = vmatpush1.msra.mxu0 0.0
    %5030 = vmatprep.subr.mxu0 0.0
    %5031 = vmatpush1.msra.mxu0 0.0
    %5032 = vmatprep.subr.mxu0 0.0
    %5033 = vmatpush1.msra.mxu0 0.0
    %5034 = vmatprep.subr.mxu0 0.0
    %5035 = vmatpush1.msra.mxu0 0.0
    %5036 = vmatprep.subr.mxu0 0.0
    %5037 = vmatpush1.msra.mxu0 0.0
    %5038 = vmatprep.subr.mxu0 0.0
    %5039 = vmatpush1.msra.mxu0 0.0
    %5040 = vmatprep.subr.mxu0 0.0
    %5041 = vmatpush1.msra.mxu0 0.0
    %5042 = vmatprep.mubr.f32.mxu0 0.0
    %v5043 = vand.u32 %v1285, 4294901760
    %5044 = vmatmul.mubr.f32.gmra.mrb[0].mxu0 %v5043
    %v5045 = vpop.f32.mrb[0].mxu0
    %v5046 = vadd.f32 %v4955, %v5045
    %v5047 = vpop.f32.mrb[0].mxu0
    %5048 = vdwg.mxu0
    %5049 = vmatprep.subr.mxu0 0.0
    %v5050 = vand.u32 %v4874, 4294901760
    %v5051 = vsub.f32 %v4874, %v5050
    %5052 = vmatpush1.msra.mxu0 %v5051
    %5053 = vmatprep.subr.mxu0 0.0
    %v5054 = vand.u32 %v4875, 4294901760
    %v5055 = vsub.f32 %v4875, %v5054
    %5056 = vmatpush1.msra.mxu0 %v5055
    %5057 = vmatprep.subr.mxu0 0.0
    %v5058 = vand.u32 %v4876, 4294901760
    %v5059 = vsub.f32 %v4876, %v5058
    %5060 = vmatpush1.msra.mxu0 %v5059
    %5061 = vmatprep.subr.mxu0 0.0
    %v5062 = vand.u32 %v4877, 4294901760
    %v5063 = vsub.f32 %v4877, %v5062
    %5064 = vmatpush1.msra.mxu0 %v5063
    %5065 = vmatprep.subr.mxu0 0.0
    %5066 = vmatpush1.msra.mxu0 0.0
    %5067 = vmatprep.subr.mxu0 0.0
    %5068 = vmatpush1.msra.mxu0 0.0
    %5069 = vmatprep.subr.mxu0 0.0
    %5070 = vmatpush1.msra.mxu0 0.0
    %5071 = vmatprep.subr.mxu0 0.0
    %5072 = vmatpush1.msra.mxu0 0.0
    %5073 = vmatprep.subr.mxu0 0.0
    %5074 = vmatpush1.msra.mxu0 0.0
    %5075 = vmatprep.subr.mxu0 0.0
    %5076 = vmatpush1.msra.mxu0 0.0
    %5077 = vmatprep.subr.mxu0 0.0
    %5078 = vmatpush1.msra.mxu0 0.0
    %5079 = vmatprep.subr.mxu0 0.0
    %5080 = vmatpush1.msra.mxu0 0.0
    %5081 = vmatprep.subr.mxu0 0.0
    %5082 = vmatpush1.msra.mxu0 0.0
    %5083 = vmatprep.subr.mxu0 0.0
    %5084 = vmatpush1.msra.mxu0 0.0
    %5085 = vmatprep.subr.mxu0 0.0
    %5086 = vmatpush1.msra.mxu0 0.0
    %5087 = vmatprep.subr.mxu0 0.0
    %5088 = vmatpush1.msra.mxu0 0.0
    %5089 = vmatprep.subr.mxu0 0.0
    %5090 = vmatpush1.msra.mxu0 0.0
    %5091 = vmatprep.subr.mxu0 0.0
    %5092 = vmatpush1.msra.mxu0 0.0
    %5093 = vmatprep.subr.mxu0 0.0
    %5094 = vmatpush1.msra.mxu0 0.0
    %5095 = vmatprep.subr.mxu0 0.0
    %5096 = vmatpush1.msra.mxu0 0.0
    %5097 = vmatprep.subr.mxu0 0.0
    %5098 = vmatpush1.msra.mxu0 0.0
    %5099 = vmatprep.subr.mxu0 0.0
    %5100 = vmatpush1.msra.mxu0 0.0
    %5101 = vmatprep.subr.mxu0 0.0
    %5102 = vmatpush1.msra.mxu0 0.0
    %5103 = vmatprep.subr.mxu0 0.0
    %5104 = vmatpush1.msra.mxu0 0.0
    %5105 = vmatprep.subr.mxu0 0.0
    %5106 = vmatpush1.msra.mxu0 0.0
    %5107 = vmatprep.subr.mxu0 0.0
    %5108 = vmatpush1.msra.mxu0 0.0
    %5109 = vmatprep.subr.mxu0 0.0
    %5110 = vmatpush1.msra.mxu0 0.0
    %5111 = vmatprep.subr.mxu0 0.0
    %5112 = vmatpush1.msra.mxu0 0.0
    %5113 = vmatprep.subr.mxu0 0.0
    %5114 = vmatpush1.msra.mxu0 0.0
    %5115 = vmatprep.subr.mxu0 0.0
    %5116 = vmatpush1.msra.mxu0 0.0
    %5117 = vmatprep.subr.mxu0 0.0
    %5118 = vmatpush1.msra.mxu0 0.0
    %5119 = vmatprep.subr.mxu0 0.0
    %5120 = vmatpush1.msra.mxu0 0.0
    %5121 = vmatprep.mubr.f32.mxu0 0.0
    %v5122 = vand.u32 %v1285, 4294901760
    %v5123 = vsub.f32 %v1285, %v5122
    %5124 = vmatmul.mubr.f32.gmra.mrb[0].mxu0 %v5123
    %v5125 = vpop.f32.mrb[0].mxu0
    %v5126 = vadd.f32 %v5046, %v5125
    %v5127 = vpop.f32.mrb[0].mxu0
    %5128 = vdwg.mxu0
    %5129 = vmatprep.subr.mxu0 0.0
    %v5130 = vand.u32 %v4874, 4294901760
    %5131 = vmatpush1.msra.mxu0 %v5130
    %5132 = vmatprep.subr.mxu0 0.0
    %v5133 = vand.u32 %v4875, 4294901760
    %5134 = vmatpush1.msra.mxu0 %v5133
    %5135 = vmatprep.subr.mxu0 0.0
    %v5136 = vand.u32 %v4876, 4294901760
    %5137 = vmatpush1.msra.mxu0 %v5136
    %5138 = vmatprep.subr.mxu0 0.0
    %v5139 = vand.u32 %v4877, 4294901760
    %5140 = vmatpush1.msra.mxu0 %v5139
    %5141 = vmatprep.subr.mxu0 0.0
    %5142 = vmatpush1.msra.mxu0 0.0
    %5143 = vmatprep.subr.mxu0 0.0
    %5144 = vmatpush1.msra.mxu0 0.0
    %5145 = vmatprep.subr.mxu0 0.0
    %5146 = vmatpush1.msra.mxu0 0.0
    %5147 = vmatprep.subr.mxu0 0.0
    %5148 = vmatpush1.msra.mxu0 0.0
    %5149 = vmatprep.subr.mxu0 0.0
    %5150 = vmatpush1.msra.mxu0 0.0
    %5151 = vmatprep.subr.mxu0 0.0
    %5152 = vmatpush1.msra.mxu0 0.0
    %5153 = vmatprep.subr.mxu0 0.0
    %5154 = vmatpush1.msra.mxu0 0.0
    %5155 = vmatprep.subr.mxu0 0.0
    %5156 = vmatpush1.msra.mxu0 0.0
    %5157 = vmatprep.subr.mxu0 0.0
    %5158 = vmatpush1.msra.mxu0 0.0
    %5159 = vmatprep.subr.mxu0 0.0
    %5160 = vmatpush1.msra.mxu0 0.0
    %5161 = vmatprep.subr.mxu0 0.0
    %5162 = vmatpush1.msra.mxu0 0.0
    %5163 = vmatprep.subr.mxu0 0.0
    %5164 = vmatpush1.msra.mxu0 0.0
    %5165 = vmatprep.subr.mxu0 0.0
    %5166 = vmatpush1.msra.mxu0 0.0
    %5167 = vmatprep.subr.mxu0 0.0
    %5168 = vmatpush1.msra.mxu0 0.0
    %5169 = vmatprep.subr.mxu0 0.0
    %5170 = vmatpush1.msra.mxu0 0.0
    %5171 = vmatprep.subr.mxu0 0.0
    %5172 = vmatpush1.msra.mxu0 0.0
    %5173 = vmatprep.subr.mxu0 0.0
    %5174 = vmatpush1.msra.mxu0 0.0
    %5175 = vmatprep.subr.mxu0 0.0
    %5176 = vmatpush1.msra.mxu0 0.0
    %5177 = vmatprep.subr.mxu0 0.0
    %5178 = vmatpush1.msra.mxu0 0.0
    %5179 = vmatprep.subr.mxu0 0.0
    %5180 = vmatpush1.msra.mxu0 0.0
    %5181 = vmatprep.subr.mxu0 0.0
    %5182 = vmatpush1.msra.mxu0 0.0
    %5183 = vmatprep.subr.mxu0 0.0
    %5184 = vmatpush1.msra.mxu0 0.0
    %5185 = vmatprep.subr.mxu0 0.0
    %5186 = vmatpush1.msra.mxu0 0.0
    %5187 = vmatprep.subr.mxu0 0.0
    %5188 = vmatpush1.msra.mxu0 0.0
    %5189 = vmatprep.subr.mxu0 0.0
    %5190 = vmatpush1.msra.mxu0 0.0
    %5191 = vmatprep.subr.mxu0 0.0
    %5192 = vmatpush1.msra.mxu0 0.0
    %5193 = vmatprep.subr.mxu0 0.0
    %5194 = vmatpush1.msra.mxu0 0.0
    %5195 = vmatprep.subr.mxu0 0.0
    %5196 = vmatpush1.msra.mxu0 0.0
    %5197 = vmatprep.mubr.f32.mxu0 0.0
    %v5198 = vand.u32 %v1285, 4294901760
    %v5199 = vsub.f32 %v1285, %v5198
    %v5200 = vand.u32 %v5199, 4294901760
    %5201 = vmatmul.mubr.f32.gmra.mrb[0].mxu0 %v5200
    %v5202 = vpop.f32.mrb[0].mxu0
    %v5203 = vadd.f32 %v5126, %v5202
    %v5204 = vpop.f32.mrb[0].mxu0
    %5205 = vdwg.mxu0
    %5206 = vmatprep.subr.mxu0 0.0
    %v5207 = vand.u32 %v4874, 4294901760
    %v5208 = vsub.f32 %v4874, %v5207
    %v5209 = vand.u32 %v5208, 4294901760
    %5210 = vmatpush1.msra.mxu0 %v5209
    %5211 = vmatprep.subr.mxu0 0.0
    %v5212 = vand.u32 %v4875, 4294901760
    %v5213 = vsub.f32 %v4875, %v5212
    %v5214 = vand.u32 %v5213, 4294901760
    %5215 = vmatpush1.msra.mxu0 %v5214
    %5216 = vmatprep.subr.mxu0 0.0
    %v5217 = vand.u32 %v4876, 4294901760
    %v5218 = vsub.f32 %v4876, %v5217
    %v5219 = vand.u32 %v5218, 4294901760
    %5220 = vmatpush1.msra.mxu0 %v5219
    %5221 = vmatprep.subr.mxu0 0.0
    %v5222 = vand.u32 %v4877, 4294901760
    %v5223 = vsub.f32 %v4877, %v5222
    %v5224 = vand.u32 %v5223, 4294901760
    %5225 = vmatpush1.msra.mxu0 %v5224
    %5226 = vmatprep.subr.mxu0 0.0
    %5227 = vmatpush1.msra.mxu0 0.0
    %5228 = vmatprep.subr.mxu0 0.0
    %5229 = vmatpush1.msra.mxu0 0.0
    %5230 = vmatprep.subr.mxu0 0.0
    %5231 = vmatpush1.msra.mxu0 0.0
    %5232 = vmatprep.subr.mxu0 0.0
    %5233 = vmatpush1.msra.mxu0 0.0
    %5234 = vmatprep.subr.mxu0 0.0
    %5235 = vmatpush1.msra.mxu0 0.0
    %5236 = vmatprep.subr.mxu0 0.0
    %5237 = vmatpush1.msra.mxu0 0.0
    %5238 = vmatprep.subr.mxu0 0.0
    %5239 = vmatpush1.msra.mxu0 0.0
    %5240 = vmatprep.subr.mxu0 0.0
    %5241 = vmatpush1.msra.mxu0 0.0
    %5242 = vmatprep.subr.mxu0 0.0
    %5243 = vmatpush1.msra.mxu0 0.0
    %5244 = vmatprep.subr.mxu0 0.0
    %5245 = vmatpush1.msra.mxu0 0.0
    %5246 = vmatprep.subr.mxu0 0.0
    %5247 = vmatpush1.msra.mxu0 0.0
    %5248 = vmatprep.subr.mxu0 0.0
    %5249 = vmatpush1.msra.mxu0 0.0
    %5250 = vmatprep.subr.mxu0 0.0
    %5251 = vmatpush1.msra.mxu0 0.0
    %5252 = vmatprep.subr.mxu0 0.0
    %5253 = vmatpush1.msra.mxu0 0.0
    %5254 = vmatprep.subr.mxu0 0.0
    %5255 = vmatpush1.msra.mxu0 0.0
    %5256 = vmatprep.subr.mxu0 0.0
    %5257 = vmatpush1.msra.mxu0 0.0
    %5258 = vmatprep.subr.mxu0 0.0
    %5259 = vmatpush1.msra.mxu0 0.0
    %5260 = vmatprep.subr.mxu0 0.0
    %5261 = vmatpush1.msra.mxu0 0.0
    %5262 = vmatprep.subr.mxu0 0.0
    %5263 = vmatpush1.msra.mxu0 0.0
    %5264 = vmatprep.subr.mxu0 0.0
    %5265 = vmatpush1.msra.mxu0 0.0
    %5266 = vmatprep.subr.mxu0 0.0
    %5267 = vmatpush1.msra.mxu0 0.0
    %5268 = vmatprep.subr.mxu0 0.0
    %5269 = vmatpush1.msra.mxu0 0.0
    %5270 = vmatprep.subr.mxu0 0.0
    %5271 = vmatpush1.msra.mxu0 0.0
    %5272 = vmatprep.subr.mxu0 0.0
    %5273 = vmatpush1.msra.mxu0 0.0
    %5274 = vmatprep.subr.mxu0 0.0
    %5275 = vmatpush1.msra.mxu0 0.0
    %5276 = vmatprep.subr.mxu0 0.0
    %5277 = vmatpush1.msra.mxu0 0.0
    %5278 = vmatprep.subr.mxu0 0.0
    %5279 = vmatpush1.msra.mxu0 0.0
    %5280 = vmatprep.subr.mxu0 0.0
    %5281 = vmatpush1.msra.mxu0 0.0
    %5282 = vmatprep.mubr.f32.mxu0 0.0
    %v5283 = vand.u32 %v1285, 4294901760
    %5284 = vmatmul.mubr.f32.gmra.mrb[0].mxu0 %v5283
    %v5285 = vpop.f32.mrb[0].mxu0
    %v5286 = vadd.f32 %v5203, %v5285
    %v5287 = vpop.f32.mrb[0].mxu0
    %5288 = vdwg.mxu0
    %5289 = vmatprep.subr.mxu0 0.0
    %v5290 = vand.u32 %v4874, 4294901760
    %5291 = vmatpush1.msra.mxu0 %v5290
    %5292 = vmatprep.subr.mxu0 0.0
    %v5293 = vand.u32 %v4875, 4294901760
    %5294 = vmatpush1.msra.mxu0 %v5293
    %5295 = vmatprep.subr.mxu0 0.0
    %v5296 = vand.u32 %v4876, 4294901760
    %5297 = vmatpush1.msra.mxu0 %v5296
    %5298 = vmatprep.subr.mxu0 0.0
    %v5299 = vand.u32 %v4877, 4294901760
    %5300 = vmatpush1.msra.mxu0 %v5299
    %5301 = vmatprep.subr.mxu0 0.0
    %5302 = vmatpush1.msra.mxu0 0.0
    %5303 = vmatprep.subr.mxu0 0.0
    %5304 = vmatpush1.msra.mxu0 0.0
    %5305 = vmatprep.subr.mxu0 0.0
    %5306 = vmatpush1.msra.mxu0 0.0
    %5307 = vmatprep.subr.mxu0 0.0
    %5308 = vmatpush1.msra.mxu0 0.0
    %5309 = vmatprep.subr.mxu0 0.0
    %5310 = vmatpush1.msra.mxu0 0.0
    %5311 = vmatprep.subr.mxu0 0.0
    %5312 = vmatpush1.msra.mxu0 0.0
    %5313 = vmatprep.subr.mxu0 0.0
    %5314 = vmatpush1.msra.mxu0 0.0
    %5315 = vmatprep.subr.mxu0 0.0
    %5316 = vmatpush1.msra.mxu0 0.0
    %5317 = vmatprep.subr.mxu0 0.0
    %5318 = vmatpush1.msra.mxu0 0.0
    %5319 = vmatprep.subr.mxu0 0.0
    %5320 = vmatpush1.msra.mxu0 0.0
    %5321 = vmatprep.subr.mxu0 0.0
    %5322 = vmatpush1.msra.mxu0 0.0
    %5323 = vmatprep.subr.mxu0 0.0
    %5324 = vmatpush1.msra.mxu0 0.0
    %5325 = vmatprep.subr.mxu0 0.0
    %5326 = vmatpush1.msra.mxu0 0.0
    %5327 = vmatprep.subr.mxu0 0.0
    %5328 = vmatpush1.msra.mxu0 0.0
    %5329 = vmatprep.subr.mxu0 0.0
    %5330 = vmatpush1.msra.mxu0 0.0
    %5331 = vmatprep.subr.mxu0 0.0
    %5332 = vmatpush1.msra.mxu0 0.0
    %5333 = vmatprep.subr.mxu0 0.0
    %5334 = vmatpush1.msra.mxu0 0.0
    %5335 = vmatprep.subr.mxu0 0.0
    %5336 = vmatpush1.msra.mxu0 0.0
    %5337 = vmatprep.subr.mxu0 0.0
    %5338 = vmatpush1.msra.mxu0 0.0
    %5339 = vmatprep.subr.mxu0 0.0
    %5340 = vmatpush1.msra.mxu0 0.0
    %5341 = vmatprep.subr.mxu0 0.0
    %5342 = vmatpush1.msra.mxu0 0.0
    %5343 = vmatprep.subr.mxu0 0.0
    %5344 = vmatpush1.msra.mxu0 0.0
    %5345 = vmatprep.subr.mxu0 0.0
    %5346 = vmatpush1.msra.mxu0 0.0
    %5347 = vmatprep.subr.mxu0 0.0
    %5348 = vmatpush1.msra.mxu0 0.0
    %5349 = vmatprep.subr.mxu0 0.0
    %5350 = vmatpush1.msra.mxu0 0.0
    %5351 = vmatprep.subr.mxu0 0.0
    %5352 = vmatpush1.msra.mxu0 0.0
    %5353 = vmatprep.subr.mxu0 0.0
    %5354 = vmatpush1.msra.mxu0 0.0
    %5355 = vmatprep.subr.mxu0 0.0
    %5356 = vmatpush1.msra.mxu0 0.0
    %5357 = vmatprep.mubr.f32.mxu0 0.0
    %v5358 = vand.u32 %v1285, 4294901760
    %5359 = vmatmul.mubr.f32.gmra.mrb[0].mxu0 %v5358
    %v5360 = vpop.f32.mrb[0].mxu0
    %v5361 = vadd.f32 %v5286, %v5360
    %v5362 = vpop.f32.mrb[0].mxu0
    %5363 = vdwg.mxu0
    %v5364 = vadd.f32 %v4878, %v5361
    %v5365 = vxor.u32 %v5364, 2147483648
    %v5366 = vmul.f32 %v5365, 1.442695
    %v5367 = vpow.pop %v5366
    %v5368 = vadd.f32 %v5367, 1.0
    %v5369 = vrcp.pop %v5368
    %v5370 = vmul.f32 1.0, %v5369
    %v5371 = vtanh.pop %v5364
    %v5372 = vmul.f32 %v5370, 0.0
    %5374 = vrot.lane.b32.xlu0 %v5371, 64
    %v5375 = vpop.permute.xlu0 %5374
    %v5377 = vmul.f32 %v5370, %v5375
    %5379 = vrot.lane.b32.xlu0 %v5377, 32
    %v5380 = vpop.permute.xlu0 %5379
    %v5382 = vadd.f32 %v5372, %v5380
    %v5383 = vtanh.pop %v5382
    %5385 = vrot.lane.b32.xlu0 %v5383, 64
    %v5386 = vpop.permute.xlu0 %5385
    %v5388 = vmul.f32 %v5370, %v5386
    %5390 = vrot.lane.b32.xlu0 %v5388, 32
    %v5391 = vpop.permute.xlu0 %5390
    %vm5393 = vcmask 253952
    %5394 = vst.msk [vmem:[#allocation4] sm:$0x1] %vm5393, %v5391
    %v5395 = vld [vmem:[#allocation3 + $0x1] sm:$0x1]
    %v5396 = vsel %vm554, %v5391, 0
    %5398 = vmatprep.subr.mxu0 0.0
    %v5399 = vand.u32 %v4874, 4294901760
    %5400 = vmatpush1.msra.mxu0 %v5399
    %5401 = vmatprep.subr.mxu0 0.0
    %v5402 = vand.u32 %v4875, 4294901760
    %5403 = vmatpush1.msra.mxu0 %v5402
    %5404 = vmatprep.subr.mxu0 0.0
    %v5405 = vand.u32 %v4876, 4294901760
    %5406 = vmatpush1.msra.mxu0 %v5405
    %5407 = vmatprep.subr.mxu0 0.0
    %v5408 = vand.u32 %v4877, 4294901760
    %5409 = vmatpush1.msra.mxu0 %v5408
    %5410 = vmatprep.subr.mxu0 0.0
    %5411 = vmatpush1.msra.mxu0 0.0
    %5412 = vmatprep.subr.mxu0 0.0
    %5413 = vmatpush1.msra.mxu0 0.0
    %5414 = vmatprep.subr.mxu0 0.0
    %5415 = vmatpush1.msra.mxu0 0.0
    %5416 = vmatprep.subr.mxu0 0.0
    %5417 = vmatpush1.msra.mxu0 0.0
    %5418 = vmatprep.subr.mxu0 0.0
    %5419 = vmatpush1.msra.mxu0 0.0
    %5420 = vmatprep.subr.mxu0 0.0
    %5421 = vmatpush1.msra.mxu0 0.0
    %5422 = vmatprep.subr.mxu0 0.0
    %5423 = vmatpush1.msra.mxu0 0.0
    %5424 = vmatprep.subr.mxu0 0.0
    %5425 = vmatpush1.msra.mxu0 0.0
    %5426 = vmatprep.subr.mxu0 0.0
    %5427 = vmatpush1.msra.mxu0 0.0
    %5428 = vmatprep.subr.mxu0 0.0
    %5429 = vmatpush1.msra.mxu0 0.0
    %5430 = vmatprep.subr.mxu0 0.0
    %5431 = vmatpush1.msra.mxu0 0.0
    %5432 = vmatprep.subr.mxu0 0.0
    %5433 = vmatpush1.msra.mxu0 0.0
    %5434 = vmatprep.subr.mxu0 0.0
    %5435 = vmatpush1.msra.mxu0 0.0
    %5436 = vmatprep.subr.mxu0 0.0
    %5437 = vmatpush1.msra.mxu0 0.0
    %5438 = vmatprep.subr.mxu0 0.0
    %5439 = vmatpush1.msra.mxu0 0.0
    %5440 = vmatprep.subr.mxu0 0.0
    %5441 = vmatpush1.msra.mxu0 0.0
    %5442 = vmatprep.subr.mxu0 0.0
    %5443 = vmatpush1.msra.mxu0 0.0
    %5444 = vmatprep.subr.mxu0 0.0
    %5445 = vmatpush1.msra.mxu0 0.0
    %5446 = vmatprep.subr.mxu0 0.0
    %5447 = vmatpush1.msra.mxu0 0.0
    %5448 = vmatprep.subr.mxu0 0.0
    %5449 = vmatpush1.msra.mxu0 0.0
    %5450 = vmatprep.subr.mxu0 0.0
    %5451 = vmatpush1.msra.mxu0 0.0
    %5452 = vmatprep.subr.mxu0 0.0
    %5453 = vmatpush1.msra.mxu0 0.0
    %5454 = vmatprep.subr.mxu0 0.0
    %5455 = vmatpush1.msra.mxu0 0.0
    %5456 = vmatprep.subr.mxu0 0.0
    %5457 = vmatpush1.msra.mxu0 0.0
    %5458 = vmatprep.subr.mxu0 0.0
    %5459 = vmatpush1.msra.mxu0 0.0
    %5460 = vmatprep.subr.mxu0 0.0
    %5461 = vmatpush1.msra.mxu0 0.0
    %5462 = vmatprep.subr.mxu0 0.0
    %5463 = vmatpush1.msra.mxu0 0.0
    %5464 = vmatprep.subr.mxu0 0.0
    %5465 = vmatpush1.msra.mxu0 0.0
    %5466 = vmatprep.mubr.f32.mxu0 0.0
    %v5467 = vand.u32 %v5396, 4294901760
    %v5468 = vsub.f32 %v5396, %v5467
    %v5469 = vand.u32 %v5468, 4294901760
    %v5470 = vsub.f32 %v5468, %v5469
    %v5471 = vand.u32 %v5470, 4294901760
    %5472 = vmatmul.mubr.f32.gmra.mrb[0].mxu0 %v5471
    %v5473 = vpop.f32.mrb[0].mxu0
    %v5474 = vadd.f32 0.0, %v5473
    %v5475 = vpop.f32.mrb[0].mxu0
    %5476 = vdwg.mxu0
    %5477 = vmatprep.subr.mxu0 0.0
    %v5478 = vand.u32 %v4874, 4294901760
    %v5479 = vsub.f32 %v4874, %v5478
    %v5480 = vand.u32 %v5479, 4294901760
    %v5481 = vsub.f32 %v5479, %v5480
    %v5482 = vand.u32 %v5481, 4294901760
    %5483 = vmatpush1.msra.mxu0 %v5482
    %5484 = vmatprep.subr.mxu0 0.0
    %v5485 = vand.u32 %v4875, 4294901760
    %v5486 = vsub.f32 %v4875, %v5485
    %v5487 = vand.u32 %v5486, 4294901760
    %v5488 = vsub.f32 %v5486, %v5487
    %v5489 = vand.u32 %v5488, 4294901760
    %5490 = vmatpush1.msra.mxu0 %v5489
    %5491 = vmatprep.subr.mxu0 0.0
    %v5492 = vand.u32 %v4876, 4294901760
    %v5493 = vsub.f32 %v4876, %v5492
    %v5494 = vand.u32 %v5493, 4294901760
    %v5495 = vsub.f32 %v5493, %v5494
    %v5496 = vand.u32 %v5495, 4294901760
    %5497 = vmatpush1.msra.mxu0 %v5496
    %5498 = vmatprep.subr.mxu0 0.0
    %v5499 = vand.u32 %v4877, 4294901760
    %v5500 = vsub.f32 %v4877, %v5499
    %v5501 = vand.u32 %v5500, 4294901760
    %v5502 = vsub.f32 %v5500, %v5501
    %v5503 = vand.u32 %v5502, 4294901760
    %5504 = vmatpush1.msra.mxu0 %v5503
    %5505 = vmatprep.subr.mxu0 0.0
    %5506 = vmatpush1.msra.mxu0 0.0
    %5507 = vmatprep.subr.mxu0 0.0
    %5508 = vmatpush1.msra.mxu0 0.0
    %5509 = vmatprep.subr.mxu0 0.0
    %5510 = vmatpush1.msra.mxu0 0.0
    %5511 = vmatprep.subr.mxu0 0.0
    %5512 = vmatpush1.msra.mxu0 0.0
    %5513 = vmatprep.subr.mxu0 0.0
    %5514 = vmatpush1.msra.mxu0 0.0
    %5515 = vmatprep.subr.mxu0 0.0
    %5516 = vmatpush1.msra.mxu0 0.0
    %5517 = vmatprep.subr.mxu0 0.0
    %5518 = vmatpush1.msra.mxu0 0.0
    %5519 = vmatprep.subr.mxu0 0.0
    %5520 = vmatpush1.msra.mxu0 0.0
    %5521 = vmatprep.subr.mxu0 0.0
    %5522 = vmatpush1.msra.mxu0 0.0
    %5523 = vmatprep.subr.mxu0 0.0
    %5524 = vmatpush1.msra.mxu0 0.0
    %5525 = vmatprep.subr.mxu0 0.0
    %5526 = vmatpush1.msra.mxu0 0.0
    %5527 = vmatprep.subr.mxu0 0.0
    %5528 = vmatpush1.msra.mxu0 0.0
    %5529 = vmatprep.subr.mxu0 0.0
    %5530 = vmatpush1.msra.mxu0 0.0
    %5531 = vmatprep.subr.mxu0 0.0
    %5532 = vmatpush1.msra.mxu0 0.0
    %5533 = vmatprep.subr.mxu0 0.0
    %5534 = vmatpush1.msra.mxu0 0.0
    %5535 = vmatprep.subr.mxu0 0.0
    %5536 = vmatpush1.msra.mxu0 0.0
    %5537 = vmatprep.subr.mxu0 0.0
    %5538 = vmatpush1.msra.mxu0 0.0
    %5539 = vmatprep.subr.mxu0 0.0
    %5540 = vmatpush1.msra.mxu0 0.0
    %5541 = vmatprep.subr.mxu0 0.0
    %5542 = vmatpush1.msra.mxu0 0.0
    %5543 = vmatprep.subr.mxu0 0.0
    %5544 = vmatpush1.msra.mxu0 0.0
    %5545 = vmatprep.subr.mxu0 0.0
    %5546 = vmatpush1.msra.mxu0 0.0
    %5547 = vmatprep.subr.mxu0 0.0
    %5548 = vmatpush1.msra.mxu0 0.0
    %5549 = vmatprep.subr.mxu0 0.0
    %5550 = vmatpush1.msra.mxu0 0.0
    %5551 = vmatprep.subr.mxu0 0.0
    %5552 = vmatpush1.msra.mxu0 0.0
    %5553 = vmatprep.subr.mxu0 0.0
    %5554 = vmatpush1.msra.mxu0 0.0
    %5555 = vmatprep.subr.mxu0 0.0
    %5556 = vmatpush1.msra.mxu0 0.0
    %5557 = vmatprep.subr.mxu0 0.0
    %5558 = vmatpush1.msra.mxu0 0.0
    %5559 = vmatprep.subr.mxu0 0.0
    %5560 = vmatpush1.msra.mxu0 0.0
    %5561 = vmatprep.mubr.f32.mxu0 0.0
    %v5562 = vand.u32 %v5396, 4294901760
    %5563 = vmatmul.mubr.f32.gmra.mrb[0].mxu0 %v5562
    %v5564 = vpop.f32.mrb[0].mxu0
    %v5565 = vadd.f32 %v5474, %v5564
    %v5566 = vpop.f32.mrb[0].mxu0
    %5567 = vdwg.mxu0
    %5568 = vmatprep.subr.mxu0 0.0
    %v5569 = vand.u32 %v4874, 4294901760
    %v5570 = vsub.f32 %v4874, %v5569
    %5571 = vmatpush1.msra.mxu0 %v5570
    %5572 = vmatprep.subr.mxu0 0.0
    %v5573 = vand.u32 %v4875, 4294901760
    %v5574 = vsub.f32 %v4875, %v5573
    %5575 = vmatpush1.msra.mxu0 %v5574
    %5576 = vmatprep.subr.mxu0 0.0
    %v5577 = vand.u32 %v4876, 4294901760
    %v5578 = vsub.f32 %v4876, %v5577
    %5579 = vmatpush1.msra.mxu0 %v5578
    %5580 = vmatprep.subr.mxu0 0.0
    %v5581 = vand.u32 %v4877, 4294901760
    %v5582 = vsub.f32 %v4877, %v5581
    %5583 = vmatpush1.msra.mxu0 %v5582
    %5584 = vmatprep.subr.mxu0 0.0
    %5585 = vmatpush1.msra.mxu0 0.0
    %5586 = vmatprep.subr.mxu0 0.0
    %5587 = vmatpush1.msra.mxu0 0.0
    %5588 = vmatprep.subr.mxu0 0.0
    %5589 = vmatpush1.msra.mxu0 0.0
    %5590 = vmatprep.subr.mxu0 0.0
    %5591 = vmatpush1.msra.mxu0 0.0
    %5592 = vmatprep.subr.mxu0 0.0
    %5593 = vmatpush1.msra.mxu0 0.0
    %5594 = vmatprep.subr.mxu0 0.0
    %5595 = vmatpush1.msra.mxu0 0.0
    %5596 = vmatprep.subr.mxu0 0.0
    %5597 = vmatpush1.msra.mxu0 0.0
    %5598 = vmatprep.subr.mxu0 0.0
    %5599 = vmatpush1.msra.mxu0 0.0
    %5600 = vmatprep.subr.mxu0 0.0
    %5601 = vmatpush1.msra.mxu0 0.0
    %5602 = vmatprep.subr.mxu0 0.0
    %5603 = vmatpush1.msra.mxu0 0.0
    %5604 = vmatprep.subr.mxu0 0.0
    %5605 = vmatpush1.msra.mxu0 0.0
    %5606 = vmatprep.subr.mxu0 0.0
    %5607 = vmatpush1.msra.mxu0 0.0
    %5608 = vmatprep.subr.mxu0 0.0
    %5609 = vmatpush1.msra.mxu0 0.0
    %5610 = vmatprep.subr.mxu0 0.0
    %5611 = vmatpush1.msra.mxu0 0.0
    %5612 = vmatprep.subr.mxu0 0.0
    %5613 = vmatpush1.msra.mxu0 0.0
    %5614 = vmatprep.subr.mxu0 0.0
    %5615 = vmatpush1.msra.mxu0 0.0
    %5616 = vmatprep.subr.mxu0 0.0
    %5617 = vmatpush1.msra.mxu0 0.0
    %5618 = vmatprep.subr.mxu0 0.0
    %5619 = vmatpush1.msra.mxu0 0.0
    %5620 = vmatprep.subr.mxu0 0.0
    %5621 = vmatpush1.msra.mxu0 0.0
    %5622 = vmatprep.subr.mxu0 0.0
    %5623 = vmatpush1.msra.mxu0 0.0
    %5624 = vmatprep.subr.mxu0 0.0
    %5625 = vmatpush1.msra.mxu0 0.0
    %5626 = vmatprep.subr.mxu0 0.0
    %5627 = vmatpush1.msra.mxu0 0.0
    %5628 = vmatprep.subr.mxu0 0.0
    %5629 = vmatpush1.msra.mxu0 0.0
    %5630 = vmatprep.subr.mxu0 0.0
    %5631 = vmatpush1.msra.mxu0 0.0
    %5632 = vmatprep.subr.mxu0 0.0
    %5633 = vmatpush1.msra.mxu0 0.0
    %5634 = vmatprep.subr.mxu0 0.0
    %5635 = vmatpush1.msra.mxu0 0.0
    %5636 = vmatprep.subr.mxu0 0.0
    %5637 = vmatpush1.msra.mxu0 0.0
    %5638 = vmatprep.subr.mxu0 0.0
    %5639 = vmatpush1.msra.mxu0 0.0
    %5640 = vmatprep.mubr.f32.mxu0 0.0
    %v5641 = vand.u32 %v5396, 4294901760
    %v5642 = vsub.f32 %v5396, %v5641
    %5643 = vmatmul.mubr.f32.gmra.mrb[0].mxu0 %v5642
    %v5644 = vpop.f32.mrb[0].mxu0
    %v5645 = vadd.f32 %v5565, %v5644
    %v5646 = vpop.f32.mrb[0].mxu0
    %5647 = vdwg.mxu0
    %5648 = vmatprep.subr.mxu0 0.0
    %v5649 = vand.u32 %v4874, 4294901760
    %5650 = vmatpush1.msra.mxu0 %v5649
    %5651 = vmatprep.subr.mxu0 0.0
    %v5652 = vand.u32 %v4875, 4294901760
    %5653 = vmatpush1.msra.mxu0 %v5652
    %5654 = vmatprep.subr.mxu0 0.0
    %v5655 = vand.u32 %v4876, 4294901760
    %5656 = vmatpush1.msra.mxu0 %v5655
    %5657 = vmatprep.subr.mxu0 0.0
    %v5658 = vand.u32 %v4877, 4294901760
    %5659 = vmatpush1.msra.mxu0 %v5658
    %5660 = vmatprep.subr.mxu0 0.0
    %5661 = vmatpush1.msra.mxu0 0.0
    %5662 = vmatprep.subr.mxu0 0.0
    %5663 = vmatpush1.msra.mxu0 0.0
    %5664 = vmatprep.subr.mxu0 0.0
    %5665 = vmatpush1.msra.mxu0 0.0
    %5666 = vmatprep.subr.mxu0 0.0
    %5667 = vmatpush1.msra.mxu0 0.0
    %5668 = vmatprep.subr.mxu0 0.0
    %5669 = vmatpush1.msra.mxu0 0.0
    %5670 = vmatprep.subr.mxu0 0.0
    %5671 = vmatpush1.msra.mxu0 0.0
    %5672 = vmatprep.subr.mxu0 0.0
    %5673 = vmatpush1.msra.mxu0 0.0
    %5674 = vmatprep.subr.mxu0 0.0
    %5675 = vmatpush1.msra.mxu0 0.0
    %5676 = vmatprep.subr.mxu0 0.0
    %5677 = vmatpush1.msra.mxu0 0.0
    %5678 = vmatprep.subr.mxu0 0.0
    %5679 = vmatpush1.msra.mxu0 0.0
    %5680 = vmatprep.subr.mxu0 0.0
    %5681 = vmatpush1.msra.mxu0 0.0
    %5682 = vmatprep.subr.mxu0 0.0
    %5683 = vmatpush1.msra.mxu0 0.0
    %5684 = vmatprep.subr.mxu0 0.0
    %5685 = vmatpush1.msra.mxu0 0.0
    %5686 = vmatprep.subr.mxu0 0.0
    %5687 = vmatpush1.msra.mxu0 0.0
    %5688 = vmatprep.subr.mxu0 0.0
    %5689 = vmatpush1.msra.mxu0 0.0
    %5690 = vmatprep.subr.mxu0 0.0
    %5691 = vmatpush1.msra.mxu0 0.0
    %5692 = vmatprep.subr.mxu0 0.0
    %5693 = vmatpush1.msra.mxu0 0.0
    %5694 = vmatprep.subr.mxu0 0.0
    %5695 = vmatpush1.msra.mxu0 0.0
    %5696 = vmatprep.subr.mxu0 0.0
    %5697 = vmatpush1.msra.mxu0 0.0
    %5698 = vmatprep.subr.mxu0 0.0
    %5699 = vmatpush1.msra.mxu0 0.0
    %5700 = vmatprep.subr.mxu0 0.0
    %5701 = vmatpush1.msra.mxu0 0.0
    %5702 = vmatprep.subr.mxu0 0.0
    %5703 = vmatpush1.msra.mxu0 0.0
    %5704 = vmatprep.subr.mxu0 0.0
    %5705 = vmatpush1.msra.mxu0 0.0
    %5706 = vmatprep.subr.mxu0 0.0
    %5707 = vmatpush1.msra.mxu0 0.0
    %5708 = vmatprep.subr.mxu0 0.0
    %5709 = vmatpush1.msra.mxu0 0.0
    %5710 = vmatprep.subr.mxu0 0.0
    %5711 = vmatpush1.msra.mxu0 0.0
    %5712 = vmatprep.subr.mxu0 0.0
    %5713 = vmatpush1.msra.mxu0 0.0
    %5714 = vmatprep.subr.mxu0 0.0
    %5715 = vmatpush1.msra.mxu0 0.0
    %5716 = vmatprep.mubr.f32.mxu0 0.0
    %v5717 = vand.u32 %v5396, 4294901760
    %v5718 = vsub.f32 %v5396, %v5717
    %v5719 = vand.u32 %v5718, 4294901760
    %5720 = vmatmul.mubr.f32.gmra.mrb[0].mxu0 %v5719
    %v5721 = vpop.f32.mrb[0].mxu0
    %v5722 = vadd.f32 %v5645, %v5721
    %v5723 = vpop.f32.mrb[0].mxu0
    %5724 = vdwg.mxu0
    %5725 = vmatprep.subr.mxu0 0.0
    %v5726 = vand.u32 %v4874, 4294901760
    %v5727 = vsub.f32 %v4874, %v5726
    %v5728 = vand.u32 %v5727, 4294901760
    %5729 = vmatpush1.msra.mxu0 %v5728
    %5730 = vmatprep.subr.mxu0 0.0
    %v5731 = vand.u32 %v4875, 4294901760
    %v5732 = vsub.f32 %v4875, %v5731
    %v5733 = vand.u32 %v5732, 4294901760
    %5734 = vmatpush1.msra.mxu0 %v5733
    %5735 = vmatprep.subr.mxu0 0.0
    %v5736 = vand.u32 %v4876, 4294901760
    %v5737 = vsub.f32 %v4876, %v5736
    %v5738 = vand.u32 %v5737, 4294901760
    %5739 = vmatpush1.msra.mxu0 %v5738
    %5740 = vmatprep.subr.mxu0 0.0
    %v5741 = vand.u32 %v4877, 4294901760
    %v5742 = vsub.f32 %v4877, %v5741
    %v5743 = vand.u32 %v5742, 4294901760
    %5744 = vmatpush1.msra.mxu0 %v5743
    %5745 = vmatprep.subr.mxu0 0.0
    %5746 = vmatpush1.msra.mxu0 0.0
    %5747 = vmatprep.subr.mxu0 0.0
    %5748 = vmatpush1.msra.mxu0 0.0
    %5749 = vmatprep.subr.mxu0 0.0
    %5750 = vmatpush1.msra.mxu0 0.0
    %5751 = vmatprep.subr.mxu0 0.0
    %5752 = vmatpush1.msra.mxu0 0.0
    %5753 = vmatprep.subr.mxu0 0.0
    %5754 = vmatpush1.msra.mxu0 0.0
    %5755 = vmatprep.subr.mxu0 0.0
    %5756 = vmatpush1.msra.mxu0 0.0
    %5757 = vmatprep.subr.mxu0 0.0
    %5758 = vmatpush1.msra.mxu0 0.0
    %5759 = vmatprep.subr.mxu0 0.0
    %5760 = vmatpush1.msra.mxu0 0.0
    %5761 = vmatprep.subr.mxu0 0.0
    %5762 = vmatpush1.msra.mxu0 0.0
    %5763 = vmatprep.subr.mxu0 0.0
    %5764 = vmatpush1.msra.mxu0 0.0
    %5765 = vmatprep.subr.mxu0 0.0
    %5766 = vmatpush1.msra.mxu0 0.0
    %5767 = vmatprep.subr.mxu0 0.0
    %5768 = vmatpush1.msra.mxu0 0.0
    %5769 = vmatprep.subr.mxu0 0.0
    %5770 = vmatpush1.msra.mxu0 0.0
    %5771 = vmatprep.subr.mxu0 0.0
    %5772 = vmatpush1.msra.mxu0 0.0
    %5773 = vmatprep.subr.mxu0 0.0
    %5774 = vmatpush1.msra.mxu0 0.0
    %5775 = vmatprep.subr.mxu0 0.0
    %5776 = vmatpush1.msra.mxu0 0.0
    %5777 = vmatprep.subr.mxu0 0.0
    %5778 = vmatpush1.msra.mxu0 0.0
    %5779 = vmatprep.subr.mxu0 0.0
    %5780 = vmatpush1.msra.mxu0 0.0
    %5781 = vmatprep.subr.mxu0 0.0
    %5782 = vmatpush1.msra.mxu0 0.0
    %5783 = vmatprep.subr.mxu0 0.0
    %5784 = vmatpush1.msra.mxu0 0.0
    %5785 = vmatprep.subr.mxu0 0.0
    %5786 = vmatpush1.msra.mxu0 0.0
    %5787 = vmatprep.subr.mxu0 0.0
    %5788 = vmatpush1.msra.mxu0 0.0
    %5789 = vmatprep.subr.mxu0 0.0
    %5790 = vmatpush1.msra.mxu0 0.0
    %5791 = vmatprep.subr.mxu0 0.0
    %5792 = vmatpush1.msra.mxu0 0.0
    %5793 = vmatprep.subr.mxu0 0.0
    %5794 = vmatpush1.msra.mxu0 0.0
    %5795 = vmatprep.subr.mxu0 0.0
    %5796 = vmatpush1.msra.mxu0 0.0
    %5797 = vmatprep.subr.mxu0 0.0
    %5798 = vmatpush1.msra.mxu0 0.0
    %5799 = vmatprep.subr.mxu0 0.0
    %5800 = vmatpush1.msra.mxu0 0.0
    %5801 = vmatprep.mubr.f32.mxu0 0.0
    %v5802 = vand.u32 %v5396, 4294901760
    %5803 = vmatmul.mubr.f32.gmra.mrb[0].mxu0 %v5802
    %v5804 = vpop.f32.mrb[0].mxu0
    %v5805 = vadd.f32 %v5722, %v5804
    %v5806 = vpop.f32.mrb[0].mxu0
    %5807 = vdwg.mxu0
    %5808 = vmatprep.subr.mxu0 0.0
    %v5809 = vand.u32 %v4874, 4294901760
    %5810 = vmatpush1.msra.mxu0 %v5809
    %5811 = vmatprep.subr.mxu0 0.0
    %v5812 = vand.u32 %v4875, 4294901760
    %5813 = vmatpush1.msra.mxu0 %v5812
    %5814 = vmatprep.subr.mxu0 0.0
    %v5815 = vand.u32 %v4876, 4294901760
    %5816 = vmatpush1.msra.mxu0 %v5815
    %5817 = vmatprep.subr.mxu0 0.0
    %v5818 = vand.u32 %v4877, 4294901760
    %5819 = vmatpush1.msra.mxu0 %v5818
    %5820 = vmatprep.subr.mxu0 0.0
    %5821 = vmatpush1.msra.mxu0 0.0
    %5822 = vmatprep.subr.mxu0 0.0
    %5823 = vmatpush1.msra.mxu0 0.0
    %5824 = vmatprep.subr.mxu0 0.0
    %5825 = vmatpush1.msra.mxu0 0.0
    %5826 = vmatprep.subr.mxu0 0.0
    %5827 = vmatpush1.msra.mxu0 0.0
    %5828 = vmatprep.subr.mxu0 0.0
    %5829 = vmatpush1.msra.mxu0 0.0
    %5830 = vmatprep.subr.mxu0 0.0
    %5831 = vmatpush1.msra.mxu0 0.0
    %5832 = vmatprep.subr.mxu0 0.0
    %5833 = vmatpush1.msra.mxu0 0.0
    %5834 = vmatprep.subr.mxu0 0.0
    %5835 = vmatpush1.msra.mxu0 0.0
    %5836 = vmatprep.subr.mxu0 0.0
    %5837 = vmatpush1.msra.mxu0 0.0
    %5838 = vmatprep.subr.mxu0 0.0
    %5839 = vmatpush1.msra.mxu0 0.0
    %5840 = vmatprep.subr.mxu0 0.0
    %5841 = vmatpush1.msra.mxu0 0.0
    %5842 = vmatprep.subr.mxu0 0.0
    %5843 = vmatpush1.msra.mxu0 0.0
    %5844 = vmatprep.subr.mxu0 0.0
    %5845 = vmatpush1.msra.mxu0 0.0
    %5846 = vmatprep.subr.mxu0 0.0
    %5847 = vmatpush1.msra.mxu0 0.0
    %5848 = vmatprep.subr.mxu0 0.0
    %5849 = vmatpush1.msra.mxu0 0.0
    %5850 = vmatprep.subr.mxu0 0.0
    %5851 = vmatpush1.msra.mxu0 0.0
    %5852 = vmatprep.subr.mxu0 0.0
    %5853 = vmatpush1.msra.mxu0 0.0
    %5854 = vmatprep.subr.mxu0 0.0
    %5855 = vmatpush1.msra.mxu0 0.0
    %5856 = vmatprep.subr.mxu0 0.0
    %5857 = vmatpush1.msra.mxu0 0.0
    %5858 = vmatprep.subr.mxu0 0.0
    %5859 = vmatpush1.msra.mxu0 0.0
    %5860 = vmatprep.subr.mxu0 0.0
    %5861 = vmatpush1.msra.mxu0 0.0
    %5862 = vmatprep.subr.mxu0 0.0
    %5863 = vmatpush1.msra.mxu0 0.0
    %5864 = vmatprep.subr.mxu0 0.0
    %5865 = vmatpush1.msra.mxu0 0.0
    %5866 = vmatprep.subr.mxu0 0.0
    %5867 = vmatpush1.msra.mxu0 0.0
    %5868 = vmatprep.subr.mxu0 0.0
    %5869 = vmatpush1.msra.mxu0 0.0
    %5870 = vmatprep.subr.mxu0 0.0
    %5871 = vmatpush1.msra.mxu0 0.0
    %5872 = vmatprep.subr.mxu0 0.0
    %5873 = vmatpush1.msra.mxu0 0.0
    %5874 = vmatprep.subr.mxu0 0.0
    %5875 = vmatpush1.msra.mxu0 0.0
    %5876 = vmatprep.mubr.f32.mxu0 0.0
    %v5877 = vand.u32 %v5396, 4294901760
    %5878 = vmatmul.mubr.f32.gmra.mrb[0].mxu0 %v5877
    %v5879 = vpop.f32.mrb[0].mxu0
    %v5880 = vadd.f32 %v5805, %v5879
    %v5881 = vpop.f32.mrb[0].mxu0
    %5882 = vdwg.mxu0
    %v5883 = vadd.f32 %v5395, %v5880
    %v5884 = vxor.u32 %v5883, 2147483648
    %v5885 = vmul.f32 %v5884, 1.442695
    %v5886 = vpow.pop %v5885
    %v5887 = vadd.f32 %v5886, 1.0
    %v5888 = vrcp.pop %v5887
    %v5889 = vmul.f32 1.0, %v5888
    %v5890 = vtanh.pop %v5883
    %v5891 = vmul.f32 %v5889, %v5382
    %5893 = vrot.lane.b32.xlu0 %v5890, 64
    %v5894 = vpop.permute.xlu0 %5893
    %v5896 = vmul.f32 %v5889, %v5894
    %5898 = vrot.lane.b32.xlu0 %v5896, 32
    %v5899 = vpop.permute.xlu0 %5898
    %v5901 = vadd.f32 %v5891, %v5899
    %v5902 = vtanh.pop %v5901
    %5904 = vrot.lane.b32.xlu0 %v5902, 64
    %v5905 = vpop.permute.xlu0 %5904
    %v5907 = vmul.f32 %v5889, %v5905
    %5909 = vrot.lane.b32.xlu0 %v5907, 32
    %v5910 = vpop.permute.xlu0 %5909
    %5912 = vst.msk [vmem:[#allocation4 + $0x1] sm:$0x1] %vm5393, %v5910
    %v5913 = vld [vmem:[#allocation3 + $0x2] sm:$0x1]
    %v5914 = vsel %vm554, %v5910, 0
    %5916 = vmatprep.subr.mxu0 0.0
    %v5917 = vand.u32 %v4874, 4294901760
    %5918 = vmatpush1.msra.mxu0 %v5917
    %5919 = vmatprep.subr.mxu0 0.0
    %v5920 = vand.u32 %v4875, 4294901760
    %5921 = vmatpush1.msra.mxu0 %v5920
    %5922 = vmatprep.subr.mxu0 0.0
    %v5923 = vand.u32 %v4876, 4294901760
    %5924 = vmatpush1.msra.mxu0 %v5923
    %5925 = vmatprep.subr.mxu0 0.0
    %v5926 = vand.u32 %v4877, 4294901760
    %5927 = vmatpush1.msra.mxu0 %v5926
    %5928 = vmatprep.subr.mxu0 0.0
    %5929 = vmatpush1.msra.mxu0 0.0
    %5930 = vmatprep.subr.mxu0 0.0
    %5931 = vmatpush1.msra.mxu0 0.0
    %5932 = vmatprep.subr.mxu0 0.0
    %5933 = vmatpush1.msra.mxu0 0.0
    %5934 = vmatprep.subr.mxu0 0.0
    %5935 = vmatpush1.msra.mxu0 0.0
    %5936 = vmatprep.subr.mxu0 0.0
    %5937 = vmatpush1.msra.mxu0 0.0
    %5938 = vmatprep.subr.mxu0 0.0
    %5939 = vmatpush1.msra.mxu0 0.0
    %5940 = vmatprep.subr.mxu0 0.0
    %5941 = vmatpush1.msra.mxu0 0.0
    %5942 = vmatprep.subr.mxu0 0.0
    %5943 = vmatpush1.msra.mxu0 0.0
    %5944 = vmatprep.subr.mxu0 0.0
    %5945 = vmatpush1.msra.mxu0 0.0
    %5946 = vmatprep.subr.mxu0 0.0
    %5947 = vmatpush1.msra.mxu0 0.0
    %5948 = vmatprep.subr.mxu0 0.0
    %5949 = vmatpush1.msra.mxu0 0.0
    %5950 = vmatprep.subr.mxu0 0.0
    %5951 = vmatpush1.msra.mxu0 0.0
    %5952 = vmatprep.subr.mxu0 0.0
    %5953 = vmatpush1.msra.mxu0 0.0
    %5954 = vmatprep.subr.mxu0 0.0
    %5955 = vmatpush1.msra.mxu0 0.0
    %5956 = vmatprep.subr.mxu0 0.0
    %5957 = vmatpush1.msra.mxu0 0.0
    %5958 = vmatprep.subr.mxu0 0.0
    %5959 = vmatpush1.msra.mxu0 0.0
    %5960 = vmatprep.subr.mxu0 0.0
    %5961 = vmatpush1.msra.mxu0 0.0
    %5962 = vmatprep.subr.mxu0 0.0
    %5963 = vmatpush1.msra.mxu0 0.0
    %5964 = vmatprep.subr.mxu0 0.0
    %5965 = vmatpush1.msra.mxu0 0.0
    %5966 = vmatprep.subr.mxu0 0.0
    %5967 = vmatpush1.msra.mxu0 0.0
    %5968 = vmatprep.subr.mxu0 0.0
    %5969 = vmatpush1.msra.mxu0 0.0
    %5970 = vmatprep.subr.mxu0 0.0
    %5971 = vmatpush1.msra.mxu0 0.0
    %5972 = vmatprep.subr.mxu0 0.0
    %5973 = vmatpush1.msra.mxu0 0.0
    %5974 = vmatprep.subr.mxu0 0.0
    %5975 = vmatpush1.msra.mxu0 0.0
    %5976 = vmatprep.subr.mxu0 0.0
    %5977 = vmatpush1.msra.mxu0 0.0
    %5978 = vmatprep.subr.mxu0 0.0
    %5979 = vmatpush1.msra.mxu0 0.0
    %5980 = vmatprep.subr.mxu0 0.0
    %5981 = vmatpush1.msra.mxu0 0.0
    %5982 = vmatprep.subr.mxu0 0.0
    %5983 = vmatpush1.msra.mxu0 0.0
    %5984 = vmatprep.mubr.f32.mxu0 0.0
    %v5985 = vand.u32 %v5914, 4294901760
    %v5986 = vsub.f32 %v5914, %v5985
    %v5987 = vand.u32 %v5986, 4294901760
    %v5988 = vsub.f32 %v5986, %v5987
    %v5989 = vand.u32 %v5988, 4294901760
    %5990 = vmatmul.mubr.f32.gmra.mrb[0].mxu0 %v5989
    %v5991 = vpop.f32.mrb[0].mxu0
    %v5992 = vadd.f32 0.0, %v5991
    %v5993 = vpop.f32.mrb[0].mxu0
    %5994 = vdwg.mxu0
    %5995 = vmatprep.subr.mxu0 0.0
    %v5996 = vand.u32 %v4874, 4294901760
    %v5997 = vsub.f32 %v4874, %v5996
    %v5998 = vand.u32 %v5997, 4294901760
    %v5999 = vsub.f32 %v5997, %v5998
    %v6000 = vand.u32 %v5999, 4294901760
    %6001 = vmatpush1.msra.mxu0 %v6000
    %6002 = vmatprep.subr.mxu0 0.0
    %v6003 = vand.u32 %v4875, 4294901760
    %v6004 = vsub.f32 %v4875, %v6003
    %v6005 = vand.u32 %v6004, 4294901760
    %v6006 = vsub.f32 %v6004, %v6005
    %v6007 = vand.u32 %v6006, 4294901760
    %6008 = vmatpush1.msra.mxu0 %v6007
    %6009 = vmatprep.subr.mxu0 0.0
    %v6010 = vand.u32 %v4876, 4294901760
    %v6011 = vsub.f32 %v4876, %v6010
    %v6012 = vand.u32 %v6011, 4294901760
    %v6013 = vsub.f32 %v6011, %v6012
    %v6014 = vand.u32 %v6013, 4294901760
    %6015 = vmatpush1.msra.mxu0 %v6014
    %6016 = vmatprep.subr.mxu0 0.0
    %v6017 = vand.u32 %v4877, 4294901760
    %v6018 = vsub.f32 %v4877, %v6017
    %v6019 = vand.u32 %v6018, 4294901760
    %v6020 = vsub.f32 %v6018, %v6019
    %v6021 = vand.u32 %v6020, 4294901760
    %6022 = vmatpush1.msra.mxu0 %v6021
    %6023 = vmatprep.subr.mxu0 0.0
    %6024 = vmatpush1.msra.mxu0 0.0
    %6025 = vmatprep.subr.mxu0 0.0
    %6026 = vmatpush1.msra.mxu0 0.0
    %6027 = vmatprep.subr.mxu0 0.0
    %6028 = vmatpush1.msra.mxu0 0.0
    %6029 = vmatprep.subr.mxu0 0.0
    %6030 = vmatpush1.msra.mxu0 0.0
    %6031 = vmatprep.subr.mxu0 0.0
    %6032 = vmatpush1.msra.mxu0 0.0
    %6033 = vmatprep.subr.mxu0 0.0
    %6034 = vmatpush1.msra.mxu0 0.0
    %6035 = vmatprep.subr.mxu0 0.0
    %6036 = vmatpush1.msra.mxu0 0.0
    %6037 = vmatprep.subr.mxu0 0.0
    %6038 = vmatpush1.msra.mxu0 0.0
    %6039 = vmatprep.subr.mxu0 0.0
    %6040 = vmatpush1.msra.mxu0 0.0
    %6041 = vmatprep.subr.mxu0 0.0
    %6042 = vmatpush1.msra.mxu0 0.0
    %6043 = vmatprep.subr.mxu0 0.0
    %6044 = vmatpush1.msra.mxu0 0.0
    %6045 = vmatprep.subr.mxu0 0.0
    %6046 = vmatpush1.msra.mxu0 0.0
    %6047 = vmatprep.subr.mxu0 0.0
    %6048 = vmatpush1.msra.mxu0 0.0
    %6049 = vmatprep.subr.mxu0 0.0
    %6050 = vmatpush1.msra.mxu0 0.0
    %6051 = vmatprep.subr.mxu0 0.0
    %6052 = vmatpush1.msra.mxu0 0.0
    %6053 = vmatprep.subr.mxu0 0.0
    %6054 = vmatpush1.msra.mxu0 0.0
    %6055 = vmatprep.subr.mxu0 0.0
    %6056 = vmatpush1.msra.mxu0 0.0
    %6057 = vmatprep.subr.mxu0 0.0
    %6058 = vmatpush1.msra.mxu0 0.0
    %6059 = vmatprep.subr.mxu0 0.0
    %6060 = vmatpush1.msra.mxu0 0.0
    %6061 = vmatprep.subr.mxu0 0.0
    %6062 = vmatpush1.msra.mxu0 0.0
    %6063 = vmatprep.subr.mxu0 0.0
    %6064 = vmatpush1.msra.mxu0 0.0
    %6065 = vmatprep.subr.mxu0 0.0
    %6066 = vmatpush1.msra.mxu0 0.0
    %6067 = vmatprep.subr.mxu0 0.0
    %6068 = vmatpush1.msra.mxu0 0.0
    %6069 = vmatprep.subr.mxu0 0.0
    %6070 = vmatpush1.msra.mxu0 0.0
    %6071 = vmatprep.subr.mxu0 0.0
    %6072 = vmatpush1.msra.mxu0 0.0
    %6073 = vmatprep.subr.mxu0 0.0
    %6074 = vmatpush1.msra.mxu0 0.0
    %6075 = vmatprep.subr.mxu0 0.0
    %6076 = vmatpush1.msra.mxu0 0.0
    %6077 = vmatprep.subr.mxu0 0.0
    %6078 = vmatpush1.msra.mxu0 0.0
    %6079 = vmatprep.mubr.f32.mxu0 0.0
    %v6080 = vand.u32 %v5914, 4294901760
    %6081 = vmatmul.mubr.f32.gmra.mrb[0].mxu0 %v6080
    %v6082 = vpop.f32.mrb[0].mxu0
    %v6083 = vadd.f32 %v5992, %v6082
    %v6084 = vpop.f32.mrb[0].mxu0
    %6085 = vdwg.mxu0
    %6086 = vmatprep.subr.mxu0 0.0
    %v6087 = vand.u32 %v4874, 4294901760
    %v6088 = vsub.f32 %v4874, %v6087
    %6089 = vmatpush1.msra.mxu0 %v6088
    %6090 = vmatprep.subr.mxu0 0.0
    %v6091 = vand.u32 %v4875, 4294901760
    %v6092 = vsub.f32 %v4875, %v6091
    %6093 = vmatpush1.msra.mxu0 %v6092
    %6094 = vmatprep.subr.mxu0 0.0
    %v6095 = vand.u32 %v4876, 4294901760
    %v6096 = vsub.f32 %v4876, %v6095
    %6097 = vmatpush1.msra.mxu0 %v6096
    %6098 = vmatprep.subr.mxu0 0.0
    %v6099 = vand.u32 %v4877, 4294901760
    %v6100 = vsub.f32 %v4877, %v6099
    %6101 = vmatpush1.msra.mxu0 %v6100
    %6102 = vmatprep.subr.mxu0 0.0
    %6103 = vmatpush1.msra.mxu0 0.0
    %6104 = vmatprep.subr.mxu0 0.0
    %6105 = vmatpush1.msra.mxu0 0.0
    %6106 = vmatprep.subr.mxu0 0.0
    %6107 = vmatpush1.msra.mxu0 0.0
    %6108 = vmatprep.subr.mxu0 0.0
    %6109 = vmatpush1.msra.mxu0 0.0
    %6110 = vmatprep.subr.mxu0 0.0
    %6111 = vmatpush1.msra.mxu0 0.0
    %6112 = vmatprep.subr.mxu0 0.0
    %6113 = vmatpush1.msra.mxu0 0.0
    %6114 = vmatprep.subr.mxu0 0.0
    %6115 = vmatpush1.msra.mxu0 0.0
    %6116 = vmatprep.subr.mxu0 0.0
    %6117 = vmatpush1.msra.mxu0 0.0
    %6118 = vmatprep.subr.mxu0 0.0
    %6119 = vmatpush1.msra.mxu0 0.0
    %6120 = vmatprep.subr.mxu0 0.0
    %6121 = vmatpush1.msra.mxu0 0.0
    %6122 = vmatprep.subr.mxu0 0.0
    %6123 = vmatpush1.msra.mxu0 0.0
    %6124 = vmatprep.subr.mxu0 0.0
    %6125 = vmatpush1.msra.mxu0 0.0
    %6126 = vmatprep.subr.mxu0 0.0
    %6127 = vmatpush1.msra.mxu0 0.0
    %6128 = vmatprep.subr.mxu0 0.0
    %6129 = vmatpush1.msra.mxu0 0.0
    %6130 = vmatprep.subr.mxu0 0.0
    %6131 = vmatpush1.msra.mxu0 0.0
    %6132 = vmatprep.subr.mxu0 0.0
    %6133 = vmatpush1.msra.mxu0 0.0
    %6134 = vmatprep.subr.mxu0 0.0
    %6135 = vmatpush1.msra.mxu0 0.0
    %6136 = vmatprep.subr.mxu0 0.0
    %6137 = vmatpush1.msra.mxu0 0.0
    %6138 = vmatprep.subr.mxu0 0.0
    %6139 = vmatpush1.msra.mxu0 0.0
    %6140 = vmatprep.subr.mxu0 0.0
    %6141 = vmatpush1.msra.mxu0 0.0
    %6142 = vmatprep.subr.mxu0 0.0
    %6143 = vmatpush1.msra.mxu0 0.0
    %6144 = vmatprep.subr.mxu0 0.0
    %6145 = vmatpush1.msra.mxu0 0.0
    %6146 = vmatprep.subr.mxu0 0.0
    %6147 = vmatpush1.msra.mxu0 0.0
    %6148 = vmatprep.subr.mxu0 0.0
    %6149 = vmatpush1.msra.mxu0 0.0
    %6150 = vmatprep.subr.mxu0 0.0
    %6151 = vmatpush1.msra.mxu0 0.0
    %6152 = vmatprep.subr.mxu0 0.0
    %6153 = vmatpush1.msra.mxu0 0.0
    %6154 = vmatprep.subr.mxu0 0.0
    %6155 = vmatpush1.msra.mxu0 0.0
    %6156 = vmatprep.subr.mxu0 0.0
    %6157 = vmatpush1.msra.mxu0 0.0
    %6158 = vmatprep.mubr.f32.mxu0 0.0
    %v6159 = vand.u32 %v5914, 4294901760
    %v6160 = vsub.f32 %v5914, %v6159
    %6161 = vmatmul.mubr.f32.gmra.mrb[0].mxu0 %v6160
    %v6162 = vpop.f32.mrb[0].mxu0
    %v6163 = vadd.f32 %v6083, %v6162
    %v6164 = vpop.f32.mrb[0].mxu0
    %6165 = vdwg.mxu0
    %6166 = vmatprep.subr.mxu0 0.0
    %v6167 = vand.u32 %v4874, 4294901760
    %6168 = vmatpush1.msra.mxu0 %v6167
    %6169 = vmatprep.subr.mxu0 0.0
    %v6170 = vand.u32 %v4875, 4294901760
    %6171 = vmatpush1.msra.mxu0 %v6170
    %6172 = vmatprep.subr.mxu0 0.0
    %v6173 = vand.u32 %v4876, 4294901760
    %6174 = vmatpush1.msra.mxu0 %v6173
    %6175 = vmatprep.subr.mxu0 0.0
    %v6176 = vand.u32 %v4877, 4294901760
    %6177 = vmatpush1.msra.mxu0 %v6176
    %6178 = vmatprep.subr.mxu0 0.0
    %6179 = vmatpush1.msra.mxu0 0.0
    %6180 = vmatprep.subr.mxu0 0.0
    %6181 = vmatpush1.msra.mxu0 0.0
    %6182 = vmatprep.subr.mxu0 0.0
    %6183 = vmatpush1.msra.mxu0 0.0
    %6184 = vmatprep.subr.mxu0 0.0
    %6185 = vmatpush1.msra.mxu0 0.0
    %6186 = vmatprep.subr.mxu0 0.0
    %6187 = vmatpush1.msra.mxu0 0.0
    %6188 = vmatprep.subr.mxu0 0.0
    %6189 = vmatpush1.msra.mxu0 0.0
    %6190 = vmatprep.subr.mxu0 0.0
    %6191 = vmatpush1.msra.mxu0 0.0
    %6192 = vmatprep.subr.mxu0 0.0
    %6193 = vmatpush1.msra.mxu0 0.0
    %6194 = vmatprep.subr.mxu0 0.0
    %6195 = vmatpush1.msra.mxu0 0.0
    %6196 = vmatprep.subr.mxu0 0.0
    %6197 = vmatpush1.msra.mxu0 0.0
    %6198 = vmatprep.subr.mxu0 0.0
    %6199 = vmatpush1.msra.mxu0 0.0
    %6200 = vmatprep.subr.mxu0 0.0
    %6201 = vmatpush1.msra.mxu0 0.0
    %6202 = vmatprep.subr.mxu0 0.0
    %6203 = vmatpush1.msra.mxu0 0.0
    %6204 = vmatprep.subr.mxu0 0.0
    %6205 = vmatpush1.msra.mxu0 0.0
    %6206 = vmatprep.subr.mxu0 0.0
    %6207 = vmatpush1.msra.mxu0 0.0
    %6208 = vmatprep.subr.mxu0 0.0
    %6209 = vmatpush1.msra.mxu0 0.0
    %6210 = vmatprep.subr.mxu0 0.0
    %6211 = vmatpush1.msra.mxu0 0.0
    %6212 = vmatprep.subr.mxu0 0.0
    %6213 = vmatpush1.msra.mxu0 0.0
    %6214 = vmatprep.subr.mxu0 0.0
    %6215 = vmatpush1.msra.mxu0 0.0
    %6216 = vmatprep.subr.mxu0 0.0
    %6217 = vmatpush1.msra.mxu0 0.0
    %6218 = vmatprep.subr.mxu0 0.0
    %6219 = vmatpush1.msra.mxu0 0.0
    %6220 = vmatprep.subr.mxu0 0.0
    %6221 = vmatpush1.msra.mxu0 0.0
    %6222 = vmatprep.subr.mxu0 0.0
    %6223 = vmatpush1.msra.mxu0 0.0
    %6224 = vmatprep.subr.mxu0 0.0
    %6225 = vmatpush1.msra.mxu0 0.0
    %6226 = vmatprep.subr.mxu0 0.0
    %6227 = vmatpush1.msra.mxu0 0.0
    %6228 = vmatprep.subr.mxu0 0.0
    %6229 = vmatpush1.msra.mxu0 0.0
    %6230 = vmatprep.subr.mxu0 0.0
    %6231 = vmatpush1.msra.mxu0 0.0
    %6232 = vmatprep.subr.mxu0 0.0
    %6233 = vmatpush1.msra.mxu0 0.0
    %6234 = vmatprep.mubr.f32.mxu0 0.0
    %v6235 = vand.u32 %v5914, 4294901760
    %v6236 = vsub.f32 %v5914, %v6235
    %v6237 = vand.u32 %v6236, 4294901760
    %6238 = vmatmul.mubr.f32.gmra.mrb[0].mxu0 %v6237
    %v6239 = vpop.f32.mrb[0].mxu0
    %v6240 = vadd.f32 %v6163, %v6239
    %v6241 = vpop.f32.mrb[0].mxu0
    %6242 = vdwg.mxu0
    %6243 = vmatprep.subr.mxu0 0.0
    %v6244 = vand.u32 %v4874, 4294901760
    %v6245 = vsub.f32 %v4874, %v6244
    %v6246 = vand.u32 %v6245, 4294901760
    %6247 = vmatpush1.msra.mxu0 %v6246
    %6248 = vmatprep.subr.mxu0 0.0
    %v6249 = vand.u32 %v4875, 4294901760
    %v6250 = vsub.f32 %v4875, %v6249
    %v6251 = vand.u32 %v6250, 4294901760
    %6252 = vmatpush1.msra.mxu0 %v6251
    %6253 = vmatprep.subr.mxu0 0.0
    %v6254 = vand.u32 %v4876, 4294901760
    %v6255 = vsub.f32 %v4876, %v6254
    %v6256 = vand.u32 %v6255, 4294901760
    %6257 = vmatpush1.msra.mxu0 %v6256
    %6258 = vmatprep.subr.mxu0 0.0
    %v6259 = vand.u32 %v4877, 4294901760
    %v6260 = vsub.f32 %v4877, %v6259
    %v6261 = vand.u32 %v6260, 4294901760
    %6262 = vmatpush1.msra.mxu0 %v6261
    %6263 = vmatprep.subr.mxu0 0.0
    %6264 = vmatpush1.msra.mxu0 0.0
    %6265 = vmatprep.subr.mxu0 0.0
    %6266 = vmatpush1.msra.mxu0 0.0
    %6267 = vmatprep.subr.mxu0 0.0
    %6268 = vmatpush1.msra.mxu0 0.0
    %6269 = vmatprep.subr.mxu0 0.0
    %6270 = vmatpush1.msra.mxu0 0.0
    %6271 = vmatprep.subr.mxu0 0.0
    %6272 = vmatpush1.msra.mxu0 0.0
    %6273 = vmatprep.subr.mxu0 0.0
    %6274 = vmatpush1.msra.mxu0 0.0
    %6275 = vmatprep.subr.mxu0 0.0
    %6276 = vmatpush1.msra.mxu0 0.0
    %6277 = vmatprep.subr.mxu0 0.0
    %6278 = vmatpush1.msra.mxu0 0.0
    %6279 = vmatprep.subr.mxu0 0.0
    %6280 = vmatpush1.msra.mxu0 0.0
    %6281 = vmatprep.subr.mxu0 0.0
    %6282 = vmatpush1.msra.mxu0 0.0
    %6283 = vmatprep.subr.mxu0 0.0
    %6284 = vmatpush1.msra.mxu0 0.0
    %6285 = vmatprep.subr.mxu0 0.0
    %6286 = vmatpush1.msra.mxu0 0.0
    %6287 = vmatprep.subr.mxu0 0.0
    %6288 = vmatpush1.msra.mxu0 0.0
    %6289 = vmatprep.subr.mxu0 0.0
    %6290 = vmatpush1.msra.mxu0 0.0
    %6291 = vmatprep.subr.mxu0 0.0
    %6292 = vmatpush1.msra.mxu0 0.0
    %6293 = vmatprep.subr.mxu0 0.0
    %6294 = vmatpush1.msra.mxu0 0.0
    %6295 = vmatprep.subr.mxu0 0.0
    %6296 = vmatpush1.msra.mxu0 0.0
    %6297 = vmatprep.subr.mxu0 0.0
    %6298 = vmatpush1.msra.mxu0 0.0
    %6299 = vmatprep.subr.mxu0 0.0
    %6300 = vmatpush1.msra.mxu0 0.0
    %6301 = vmatprep.subr.mxu0 0.0
    %6302 = vmatpush1.msra.mxu0 0.0
    %6303 = vmatprep.subr.mxu0 0.0
    %6304 = vmatpush1.msra.mxu0 0.0
    %6305 = vmatprep.subr.mxu0 0.0
    %6306 = vmatpush1.msra.mxu0 0.0
    %6307 = vmatprep.subr.mxu0 0.0
    %6308 = vmatpush1.msra.mxu0 0.0
    %6309 = vmatprep.subr.mxu0 0.0
    %6310 = vmatpush1.msra.mxu0 0.0
    %6311 = vmatprep.subr.mxu0 0.0
    %6312 = vmatpush1.msra.mxu0 0.0
    %6313 = vmatprep.subr.mxu0 0.0
    %6314 = vmatpush1.msra.mxu0 0.0
    %6315 = vmatprep.subr.mxu0 0.0
    %6316 = vmatpush1.msra.mxu0 0.0
    %6317 = vmatprep.subr.mxu0 0.0
    %6318 = vmatpush1.msra.mxu0 0.0
    %6319 = vmatprep.mubr.f32.mxu0 0.0
    %v6320 = vand.u32 %v5914, 4294901760
    %6321 = vmatmul.mubr.f32.gmra.mrb[0].mxu0 %v6320
    %v6322 = vpop.f32.mrb[0].mxu0
    %v6323 = vadd.f32 %v6240, %v6322
    %v6324 = vpop.f32.mrb[0].mxu0
    %6325 = vdwg.mxu0
    %6326 = vmatprep.subr.mxu0 0.0
    %v6327 = vand.u32 %v4874, 4294901760
    %6328 = vmatpush1.msra.mxu0 %v6327
    %6329 = vmatprep.subr.mxu0 0.0
    %v6330 = vand.u32 %v4875, 4294901760
    %6331 = vmatpush1.msra.mxu0 %v6330
    %6332 = vmatprep.subr.mxu0 0.0
    %v6333 = vand.u32 %v4876, 4294901760
    %6334 = vmatpush1.msra.mxu0 %v6333
    %6335 = vmatprep.subr.mxu0 0.0
    %v6336 = vand.u32 %v4877, 4294901760
    %6337 = vmatpush1.msra.mxu0 %v6336
    %6338 = vmatprep.subr.mxu0 0.0
    %6339 = vmatpush1.msra.mxu0 0.0
    %6340 = vmatprep.subr.mxu0 0.0
    %6341 = vmatpush1.msra.mxu0 0.0
    %6342 = vmatprep.subr.mxu0 0.0
    %6343 = vmatpush1.msra.mxu0 0.0
    %6344 = vmatprep.subr.mxu0 0.0
    %6345 = vmatpush1.msra.mxu0 0.0
    %6346 = vmatprep.subr.mxu0 0.0
    %6347 = vmatpush1.msra.mxu0 0.0
    %6348 = vmatprep.subr.mxu0 0.0
    %6349 = vmatpush1.msra.mxu0 0.0
    %6350 = vmatprep.subr.mxu0 0.0
    %6351 = vmatpush1.msra.mxu0 0.0
    %6352 = vmatprep.subr.mxu0 0.0
    %6353 = vmatpush1.msra.mxu0 0.0
    %6354 = vmatprep.subr.mxu0 0.0
    %6355 = vmatpush1.msra.mxu0 0.0
    %6356 = vmatprep.subr.mxu0 0.0
    %6357 = vmatpush1.msra.mxu0 0.0
    %6358 = vmatprep.subr.mxu0 0.0
    %6359 = vmatpush1.msra.mxu0 0.0
    %6360 = vmatprep.subr.mxu0 0.0
    %6361 = vmatpush1.msra.mxu0 0.0
    %6362 = vmatprep.subr.mxu0 0.0
    %6363 = vmatpush1.msra.mxu0 0.0
    %6364 = vmatprep.subr.mxu0 0.0
    %6365 = vmatpush1.msra.mxu0 0.0
    %6366 = vmatprep.subr.mxu0 0.0
    %6367 = vmatpush1.msra.mxu0 0.0
    %6368 = vmatprep.subr.mxu0 0.0
    %6369 = vmatpush1.msra.mxu0 0.0
    %6370 = vmatprep.subr.mxu0 0.0
    %6371 = vmatpush1.msra.mxu0 0.0
    %6372 = vmatprep.subr.mxu0 0.0
    %6373 = vmatpush1.msra.mxu0 0.0
    %6374 = vmatprep.subr.mxu0 0.0
    %6375 = vmatpush1.msra.mxu0 0.0
    %6376 = vmatprep.subr.mxu0 0.0
    %6377 = vmatpush1.msra.mxu0 0.0
    %6378 = vmatprep.subr.mxu0 0.0
    %6379 = vmatpush1.msra.mxu0 0.0
    %6380 = vmatprep.subr.mxu0 0.0
    %6381 = vmatpush1.msra.mxu0 0.0
    %6382 = vmatprep.subr.mxu0 0.0
    %6383 = vmatpush1.msra.mxu0 0.0
    %6384 = vmatprep.subr.mxu0 0.0
    %6385 = vmatpush1.msra.mxu0 0.0
    %6386 = vmatprep.subr.mxu0 0.0
    %6387 = vmatpush1.msra.mxu0 0.0
    %6388 = vmatprep.subr.mxu0 0.0
    %6389 = vmatpush1.msra.mxu0 0.0
    %6390 = vmatprep.subr.mxu0 0.0
    %6391 = vmatpush1.msra.mxu0 0.0
    %6392 = vmatprep.subr.mxu0 0.0
    %6393 = vmatpush1.msra.mxu0 0.0
    %6394 = vmatprep.mubr.f32.mxu0 0.0
    %v6395 = vand.u32 %v5914, 4294901760
    %6396 = vmatmul.mubr.f32.gmra.mrb[0].mxu0 %v6395
    %v6397 = vpop.f32.mrb[0].mxu0
    %v6398 = vadd.f32 %v6323, %v6397
    %v6399 = vpop.f32.mrb[0].mxu0
    %6400 = vdwg.mxu0
    %v6401 = vadd.f32 %v5913, %v6398
    %v6402 = vxor.u32 %v6401, 2147483648
    %v6403 = vmul.f32 %v6402, 1.442695
    %v6404 = vpow.pop %v6403
    %v6405 = vadd.f32 %v6404, 1.0
    %v6406 = vrcp.pop %v6405
    %v6407 = vmul.f32 1.0, %v6406
    %v6408 = vtanh.pop %v6401
    %v6409 = vmul.f32 %v6407, %v5901
    %6411 = vrot.lane.b32.xlu0 %v6408, 64
    %v6412 = vpop.permute.xlu0 %6411
    %v6414 = vmul.f32 %v6407, %v6412
    %6416 = vrot.lane.b32.xlu0 %v6414, 32
    %v6417 = vpop.permute.xlu0 %6416
    %v6419 = vadd.f32 %v6409, %v6417
    %v6420 = vtanh.pop %v6419
    %6422 = vrot.lane.b32.xlu0 %v6420, 64
    %v6423 = vpop.permute.xlu0 %6422
    %v6425 = vmul.f32 %v6407, %v6423
    %6427 = vrot.lane.b32.xlu0 %v6425, 32
    %v6428 = vpop.permute.xlu0 %6427
    %6430 = vst.msk [vmem:[#allocation4 + $0x2] sm:$0x1] %vm5393, %v6428
    %v6431 = vld [vmem:[#allocation3 + $0x3] sm:$0x1]
    %v6432 = vsel %vm554, %v6428, 0
    %6434 = vmatprep.subr.mxu0 0.0
    %v6435 = vand.u32 %v4874, 4294901760
    %6436 = vmatpush1.msra.mxu0 %v6435
    %6437 = vmatprep.subr.mxu0 0.0
    %v6438 = vand.u32 %v4875, 4294901760
    %6439 = vmatpush1.msra.mxu0 %v6438
    %6440 = vmatprep.subr.mxu0 0.0
    %v6441 = vand.u32 %v4876, 4294901760
    %6442 = vmatpush1.msra.mxu0 %v6441
    %6443 = vmatprep.subr.mxu0 0.0
    %v6444 = vand.u32 %v4877, 4294901760
    %6445 = vmatpush1.msra.mxu0 %v6444
    %6446 = vmatprep.subr.mxu0 0.0
    %6447 = vmatpush1.msra.mxu0 0.0
    %6448 = vmatprep.subr.mxu0 0.0
    %6449 = vmatpush1.msra.mxu0 0.0
    %6450 = vmatprep.subr.mxu0 0.0
    %6451 = vmatpush1.msra.mxu0 0.0
    %6452 = vmatprep.subr.mxu0 0.0
    %6453 = vmatpush1.msra.mxu0 0.0
    %6454 = vmatprep.subr.mxu0 0.0
    %6455 = vmatpush1.msra.mxu0 0.0
    %6456 = vmatprep.subr.mxu0 0.0
    %6457 = vmatpush1.msra.mxu0 0.0
    %6458 = vmatprep.subr.mxu0 0.0
    %6459 = vmatpush1.msra.mxu0 0.0
    %6460 = vmatprep.subr.mxu0 0.0
    %6461 = vmatpush1.msra.mxu0 0.0
    %6462 = vmatprep.subr.mxu0 0.0
    %6463 = vmatpush1.msra.mxu0 0.0
    %6464 = vmatprep.subr.mxu0 0.0
    %6465 = vmatpush1.msra.mxu0 0.0
    %6466 = vmatprep.subr.mxu0 0.0
    %6467 = vmatpush1.msra.mxu0 0.0
    %6468 = vmatprep.subr.mxu0 0.0
    %6469 = vmatpush1.msra.mxu0 0.0
    %6470 = vmatprep.subr.mxu0 0.0
    %6471 = vmatpush1.msra.mxu0 0.0
    %6472 = vmatprep.subr.mxu0 0.0
    %6473 = vmatpush1.msra.mxu0 0.0
    %6474 = vmatprep.subr.mxu0 0.0
    %6475 = vmatpush1.msra.mxu0 0.0
    %6476 = vmatprep.subr.mxu0 0.0
    %6477 = vmatpush1.msra.mxu0 0.0
    %6478 = vmatprep.subr.mxu0 0.0
    %6479 = vmatpush1.msra.mxu0 0.0
    %6480 = vmatprep.subr.mxu0 0.0
    %6481 = vmatpush1.msra.mxu0 0.0
    %6482 = vmatprep.subr.mxu0 0.0
    %6483 = vmatpush1.msra.mxu0 0.0
    %6484 = vmatprep.subr.mxu0 0.0
    %6485 = vmatpush1.msra.mxu0 0.0
    %6486 = vmatprep.subr.mxu0 0.0
    %6487 = vmatpush1.msra.mxu0 0.0
    %6488 = vmatprep.subr.mxu0 0.0
    %6489 = vmatpush1.msra.mxu0 0.0
    %6490 = vmatprep.subr.mxu0 0.0
    %6491 = vmatpush1.msra.mxu0 0.0
    %6492 = vmatprep.subr.mxu0 0.0
    %6493 = vmatpush1.msra.mxu0 0.0
    %6494 = vmatprep.subr.mxu0 0.0
    %6495 = vmatpush1.msra.mxu0 0.0
    %6496 = vmatprep.subr.mxu0 0.0
    %6497 = vmatpush1.msra.mxu0 0.0
    %6498 = vmatprep.subr.mxu0 0.0
    %6499 = vmatpush1.msra.mxu0 0.0
    %6500 = vmatprep.subr.mxu0 0.0
    %6501 = vmatpush1.msra.mxu0 0.0
    %6502 = vmatprep.mubr.f32.mxu0 0.0
    %v6503 = vand.u32 %v6432, 4294901760
    %v6504 = vsub.f32 %v6432, %v6503
    %v6505 = vand.u32 %v6504, 4294901760
    %v6506 = vsub.f32 %v6504, %v6505
    %v6507 = vand.u32 %v6506, 4294901760
    %6508 = vmatmul.mubr.f32.gmra.mrb[0].mxu0 %v6507
    %v6509 = vpop.f32.mrb[0].mxu0
    %v6510 = vadd.f32 0.0, %v6509
    %v6511 = vpop.f32.mrb[0].mxu0
    %6512 = vdwg.mxu0
    %6513 = vmatprep.subr.mxu0 0.0
    %v6514 = vand.u32 %v4874, 4294901760
    %v6515 = vsub.f32 %v4874, %v6514
    %v6516 = vand.u32 %v6515, 4294901760
    %v6517 = vsub.f32 %v6515, %v6516
    %v6518 = vand.u32 %v6517, 4294901760
    %6519 = vmatpush1.msra.mxu0 %v6518
    %6520 = vmatprep.subr.mxu0 0.0
    %v6521 = vand.u32 %v4875, 4294901760
    %v6522 = vsub.f32 %v4875, %v6521
    %v6523 = vand.u32 %v6522, 4294901760
    %v6524 = vsub.f32 %v6522, %v6523
    %v6525 = vand.u32 %v6524, 4294901760
    %6526 = vmatpush1.msra.mxu0 %v6525
    %6527 = vmatprep.subr.mxu0 0.0
    %v6528 = vand.u32 %v4876, 4294901760
    %v6529 = vsub.f32 %v4876, %v6528
    %v6530 = vand.u32 %v6529, 4294901760
    %v6531 = vsub.f32 %v6529, %v6530
    %v6532 = vand.u32 %v6531, 4294901760
    %6533 = vmatpush1.msra.mxu0 %v6532
    %6534 = vmatprep.subr.mxu0 0.0
    %v6535 = vand.u32 %v4877, 4294901760
    %v6536 = vsub.f32 %v4877, %v6535
    %v6537 = vand.u32 %v6536, 4294901760
    %v6538 = vsub.f32 %v6536, %v6537
    %v6539 = vand.u32 %v6538, 4294901760
    %6540 = vmatpush1.msra.mxu0 %v6539
    %6541 = vmatprep.subr.mxu0 0.0
    %6542 = vmatpush1.msra.mxu0 0.0
    %6543 = vmatprep.subr.mxu0 0.0
    %6544 = vmatpush1.msra.mxu0 0.0
    %6545 = vmatprep.subr.mxu0 0.0
    %6546 = vmatpush1.msra.mxu0 0.0
    %6547 = vmatprep.subr.mxu0 0.0
    %6548 = vmatpush1.msra.mxu0 0.0
    %6549 = vmatprep.subr.mxu0 0.0
    %6550 = vmatpush1.msra.mxu0 0.0
    %6551 = vmatprep.subr.mxu0 0.0
    %6552 = vmatpush1.msra.mxu0 0.0
    %6553 = vmatprep.subr.mxu0 0.0
    %6554 = vmatpush1.msra.mxu0 0.0
    %6555 = vmatprep.subr.mxu0 0.0
    %6556 = vmatpush1.msra.mxu0 0.0
    %6557 = vmatprep.subr.mxu0 0.0
    %6558 = vmatpush1.msra.mxu0 0.0
    %6559 = vmatprep.subr.mxu0 0.0
    %6560 = vmatpush1.msra.mxu0 0.0
    %6561 = vmatprep.subr.mxu0 0.0
    %6562 = vmatpush1.msra.mxu0 0.0
    %6563 = vmatprep.subr.mxu0 0.0
    %6564 = vmatpush1.msra.mxu0 0.0
    %6565 = vmatprep.subr.mxu0 0.0
    %6566 = vmatpush1.msra.mxu0 0.0
    %6567 = vmatprep.subr.mxu0 0.0
    %6568 = vmatpush1.msra.mxu0 0.0
    %6569 = vmatprep.subr.mxu0 0.0
    %6570 = vmatpush1.msra.mxu0 0.0
    %6571 = vmatprep.subr.mxu0 0.0
    %6572 = vmatpush1.msra.mxu0 0.0
    %6573 = vmatprep.subr.mxu0 0.0
    %6574 = vmatpush1.msra.mxu0 0.0
    %6575 = vmatprep.subr.mxu0 0.0
    %6576 = vmatpush1.msra.mxu0 0.0
    %6577 = vmatprep.subr.mxu0 0.0
    %6578 = vmatpush1.msra.mxu0 0.0
    %6579 = vmatprep.subr.mxu0 0.0
    %6580 = vmatpush1.msra.mxu0 0.0
    %6581 = vmatprep.subr.mxu0 0.0
    %6582 = vmatpush1.msra.mxu0 0.0
    %6583 = vmatprep.subr.mxu0 0.0
    %6584 = vmatpush1.msra.mxu0 0.0
    %6585 = vmatprep.subr.mxu0 0.0
    %6586 = vmatpush1.msra.mxu0 0.0
    %6587 = vmatprep.subr.mxu0 0.0
    %6588 = vmatpush1.msra.mxu0 0.0
    %6589 = vmatprep.subr.mxu0 0.0
    %6590 = vmatpush1.msra.mxu0 0.0
    %6591 = vmatprep.subr.mxu0 0.0
    %6592 = vmatpush1.msra.mxu0 0.0
    %6593 = vmatprep.subr.mxu0 0.0
    %6594 = vmatpush1.msra.mxu0 0.0
    %6595 = vmatprep.subr.mxu0 0.0
    %6596 = vmatpush1.msra.mxu0 0.0
    %6597 = vmatprep.mubr.f32.mxu0 0.0
    %v6598 = vand.u32 %v6432, 4294901760
    %6599 = vmatmul.mubr.f32.gmra.mrb[0].mxu0 %v6598
    %v6600 = vpop.f32.mrb[0].mxu0
    %v6601 = vadd.f32 %v6510, %v6600
    %v6602 = vpop.f32.mrb[0].mxu0
    %6603 = vdwg.mxu0
    %6604 = vmatprep.subr.mxu0 0.0
    %v6605 = vand.u32 %v4874, 4294901760
    %v6606 = vsub.f32 %v4874, %v6605
    %6607 = vmatpush1.msra.mxu0 %v6606
    %6608 = vmatprep.subr.mxu0 0.0
    %v6609 = vand.u32 %v4875, 4294901760
    %v6610 = vsub.f32 %v4875, %v6609
    %6611 = vmatpush1.msra.mxu0 %v6610
    %6612 = vmatprep.subr.mxu0 0.0
    %v6613 = vand.u32 %v4876, 4294901760
    %v6614 = vsub.f32 %v4876, %v6613
    %6615 = vmatpush1.msra.mxu0 %v6614
    %6616 = vmatprep.subr.mxu0 0.0
    %v6617 = vand.u32 %v4877, 4294901760
    %v6618 = vsub.f32 %v4877, %v6617
    %6619 = vmatpush1.msra.mxu0 %v6618
    %6620 = vmatprep.subr.mxu0 0.0
    %6621 = vmatpush1.msra.mxu0 0.0
    %6622 = vmatprep.subr.mxu0 0.0
    %6623 = vmatpush1.msra.mxu0 0.0
    %6624 = vmatprep.subr.mxu0 0.0
    %6625 = vmatpush1.msra.mxu0 0.0
    %6626 = vmatprep.subr.mxu0 0.0
    %6627 = vmatpush1.msra.mxu0 0.0
    %6628 = vmatprep.subr.mxu0 0.0
    %6629 = vmatpush1.msra.mxu0 0.0
    %6630 = vmatprep.subr.mxu0 0.0
    %6631 = vmatpush1.msra.mxu0 0.0
    %6632 = vmatprep.subr.mxu0 0.0
    %6633 = vmatpush1.msra.mxu0 0.0
    %6634 = vmatprep.subr.mxu0 0.0
    %6635 = vmatpush1.msra.mxu0 0.0
    %6636 = vmatprep.subr.mxu0 0.0
    %6637 = vmatpush1.msra.mxu0 0.0
    %6638 = vmatprep.subr.mxu0 0.0
    %6639 = vmatpush1.msra.mxu0 0.0
    %6640 = vmatprep.subr.mxu0 0.0
    %6641 = vmatpush1.msra.mxu0 0.0
    %6642 = vmatprep.subr.mxu0 0.0
    %6643 = vmatpush1.msra.mxu0 0.0
    %6644 = vmatprep.subr.mxu0 0.0
    %6645 = vmatpush1.msra.mxu0 0.0
    %6646 = vmatprep.subr.mxu0 0.0
    %6647 = vmatpush1.msra.mxu0 0.0
    %6648 = vmatprep.subr.mxu0 0.0
    %6649 = vmatpush1.msra.mxu0 0.0
    %6650 = vmatprep.subr.mxu0 0.0
    %6651 = vmatpush1.msra.mxu0 0.0
    %6652 = vmatprep.subr.mxu0 0.0
    %6653 = vmatpush1.msra.mxu0 0.0
    %6654 = vmatprep.subr.mxu0 0.0
    %6655 = vmatpush1.msra.mxu0 0.0
    %6656 = vmatprep.subr.mxu0 0.0
    %6657 = vmatpush1.msra.mxu0 0.0
    %6658 = vmatprep.subr.mxu0 0.0
    %6659 = vmatpush1.msra.mxu0 0.0
    %6660 = vmatprep.subr.mxu0 0.0
    %6661 = vmatpush1.msra.mxu0 0.0
    %6662 = vmatprep.subr.mxu0 0.0
    %6663 = vmatpush1.msra.mxu0 0.0
    %6664 = vmatprep.subr.mxu0 0.0
    %6665 = vmatpush1.msra.mxu0 0.0
    %6666 = vmatprep.subr.mxu0 0.0
    %6667 = vmatpush1.msra.mxu0 0.0
    %6668 = vmatprep.subr.mxu0 0.0
    %6669 = vmatpush1.msra.mxu0 0.0
    %6670 = vmatprep.subr.mxu0 0.0
    %6671 = vmatpush1.msra.mxu0 0.0
    %6672 = vmatprep.subr.mxu0 0.0
    %6673 = vmatpush1.msra.mxu0 0.0
    %6674 = vmatprep.subr.mxu0 0.0
    %6675 = vmatpush1.msra.mxu0 0.0
    %6676 = vmatprep.mubr.f32.mxu0 0.0
    %v6677 = vand.u32 %v6432, 4294901760
    %v6678 = vsub.f32 %v6432, %v6677
    %6679 = vmatmul.mubr.f32.gmra.mrb[0].mxu0 %v6678
    %v6680 = vpop.f32.mrb[0].mxu0
    %v6681 = vadd.f32 %v6601, %v6680
    %v6682 = vpop.f32.mrb[0].mxu0
    %6683 = vdwg.mxu0
    %6684 = vmatprep.subr.mxu0 0.0
    %v6685 = vand.u32 %v4874, 4294901760
    %6686 = vmatpush1.msra.mxu0 %v6685
    %6687 = vmatprep.subr.mxu0 0.0
    %v6688 = vand.u32 %v4875, 4294901760
    %6689 = vmatpush1.msra.mxu0 %v6688
    %6690 = vmatprep.subr.mxu0 0.0
    %v6691 = vand.u32 %v4876, 4294901760
    %6692 = vmatpush1.msra.mxu0 %v6691
    %6693 = vmatprep.subr.mxu0 0.0
    %v6694 = vand.u32 %v4877, 4294901760
    %6695 = vmatpush1.msra.mxu0 %v6694
    %6696 = vmatprep.subr.mxu0 0.0
    %6697 = vmatpush1.msra.mxu0 0.0
    %6698 = vmatprep.subr.mxu0 0.0
    %6699 = vmatpush1.msra.mxu0 0.0
    %6700 = vmatprep.subr.mxu0 0.0
    %6701 = vmatpush1.msra.mxu0 0.0
    %6702 = vmatprep.subr.mxu0 0.0
    %6703 = vmatpush1.msra.mxu0 0.0
    %6704 = vmatprep.subr.mxu0 0.0
    %6705 = vmatpush1.msra.mxu0 0.0
    %6706 = vmatprep.subr.mxu0 0.0
    %6707 = vmatpush1.msra.mxu0 0.0
    %6708 = vmatprep.subr.mxu0 0.0
    %6709 = vmatpush1.msra.mxu0 0.0
    %6710 = vmatprep.subr.mxu0 0.0
    %6711 = vmatpush1.msra.mxu0 0.0
    %6712 = vmatprep.subr.mxu0 0.0
    %6713 = vmatpush1.msra.mxu0 0.0
    %6714 = vmatprep.subr.mxu0 0.0
    %6715 = vmatpush1.msra.mxu0 0.0
    %6716 = vmatprep.subr.mxu0 0.0
    %6717 = vmatpush1.msra.mxu0 0.0
    %6718 = vmatprep.subr.mxu0 0.0
    %6719 = vmatpush1.msra.mxu0 0.0
    %6720 = vmatprep.subr.mxu0 0.0
    %6721 = vmatpush1.msra.mxu0 0.0
    %6722 = vmatprep.subr.mxu0 0.0
    %6723 = vmatpush1.msra.mxu0 0.0
    %6724 = vmatprep.subr.mxu0 0.0
    %6725 = vmatpush1.msra.mxu0 0.0
    %6726 = vmatprep.subr.mxu0 0.0
    %6727 = vmatpush1.msra.mxu0 0.0
    %6728 = vmatprep.subr.mxu0 0.0
    %6729 = vmatpush1.msra.mxu0 0.0
    %6730 = vmatprep.subr.mxu0 0.0
    %6731 = vmatpush1.msra.mxu0 0.0
    %6732 = vmatprep.subr.mxu0 0.0
    %6733 = vmatpush1.msra.mxu0 0.0
    %6734 = vmatprep.subr.mxu0 0.0
    %6735 = vmatpush1.msra.mxu0 0.0
    %6736 = vmatprep.subr.mxu0 0.0
    %6737 = vmatpush1.msra.mxu0 0.0
    %6738 = vmatprep.subr.mxu0 0.0
    %6739 = vmatpush1.msra.mxu0 0.0
    %6740 = vmatprep.subr.mxu0 0.0
    %6741 = vmatpush1.msra.mxu0 0.0
    %6742 = vmatprep.subr.mxu0 0.0
    %6743 = vmatpush1.msra.mxu0 0.0
    %6744 = vmatprep.subr.mxu0 0.0
    %6745 = vmatpush1.msra.mxu0 0.0
    %6746 = vmatprep.subr.mxu0 0.0
    %6747 = vmatpush1.msra.mxu0 0.0
    %6748 = vmatprep.subr.mxu0 0.0
    %6749 = vmatpush1.msra.mxu0 0.0
    %6750 = vmatprep.subr.mxu0 0.0
    %6751 = vmatpush1.msra.mxu0 0.0
    %6752 = vmatprep.mubr.f32.mxu0 0.0
    %v6753 = vand.u32 %v6432, 4294901760
    %v6754 = vsub.f32 %v6432, %v6753
    %v6755 = vand.u32 %v6754, 4294901760
    %6756 = vmatmul.mubr.f32.gmra.mrb[0].mxu0 %v6755
    %v6757 = vpop.f32.mrb[0].mxu0
    %v6758 = vadd.f32 %v6681, %v6757
    %v6759 = vpop.f32.mrb[0].mxu0
    %6760 = vdwg.mxu0
    %6761 = vmatprep.subr.mxu0 0.0
    %v6762 = vand.u32 %v4874, 4294901760
    %v6763 = vsub.f32 %v4874, %v6762
    %v6764 = vand.u32 %v6763, 4294901760
    %6765 = vmatpush1.msra.mxu0 %v6764
    %6766 = vmatprep.subr.mxu0 0.0
    %v6767 = vand.u32 %v4875, 4294901760
    %v6768 = vsub.f32 %v4875, %v6767
    %v6769 = vand.u32 %v6768, 4294901760
    %6770 = vmatpush1.msra.mxu0 %v6769
    %6771 = vmatprep.subr.mxu0 0.0
    %v6772 = vand.u32 %v4876, 4294901760
    %v6773 = vsub.f32 %v4876, %v6772
    %v6774 = vand.u32 %v6773, 4294901760
    %6775 = vmatpush1.msra.mxu0 %v6774
    %6776 = vmatprep.subr.mxu0 0.0
    %v6777 = vand.u32 %v4877, 4294901760
    %v6778 = vsub.f32 %v4877, %v6777
    %v6779 = vand.u32 %v6778, 4294901760
    %6780 = vmatpush1.msra.mxu0 %v6779
    %6781 = vmatprep.subr.mxu0 0.0
    %6782 = vmatpush1.msra.mxu0 0.0
    %6783 = vmatprep.subr.mxu0 0.0
    %6784 = vmatpush1.msra.mxu0 0.0
    %6785 = vmatprep.subr.mxu0 0.0
    %6786 = vmatpush1.msra.mxu0 0.0
    %6787 = vmatprep.subr.mxu0 0.0
    %6788 = vmatpush1.msra.mxu0 0.0
    %6789 = vmatprep.subr.mxu0 0.0
    %6790 = vmatpush1.msra.mxu0 0.0
    %6791 = vmatprep.subr.mxu0 0.0
    %6792 = vmatpush1.msra.mxu0 0.0
    %6793 = vmatprep.subr.mxu0 0.0
    %6794 = vmatpush1.msra.mxu0 0.0
    %6795 = vmatprep.subr.mxu0 0.0
    %6796 = vmatpush1.msra.mxu0 0.0
    %6797 = vmatprep.subr.mxu0 0.0
    %6798 = vmatpush1.msra.mxu0 0.0
    %6799 = vmatprep.subr.mxu0 0.0
    %6800 = vmatpush1.msra.mxu0 0.0
    %6801 = vmatprep.subr.mxu0 0.0
    %6802 = vmatpush1.msra.mxu0 0.0
    %6803 = vmatprep.subr.mxu0 0.0
    %6804 = vmatpush1.msra.mxu0 0.0
    %6805 = vmatprep.subr.mxu0 0.0
    %6806 = vmatpush1.msra.mxu0 0.0
    %6807 = vmatprep.subr.mxu0 0.0
    %6808 = vmatpush1.msra.mxu0 0.0
    %6809 = vmatprep.subr.mxu0 0.0
    %6810 = vmatpush1.msra.mxu0 0.0
    %6811 = vmatprep.subr.mxu0 0.0
    %6812 = vmatpush1.msra.mxu0 0.0
    %6813 = vmatprep.subr.mxu0 0.0
    %6814 = vmatpush1.msra.mxu0 0.0
    %6815 = vmatprep.subr.mxu0 0.0
    %6816 = vmatpush1.msra.mxu0 0.0
    %6817 = vmatprep.subr.mxu0 0.0
    %6818 = vmatpush1.msra.mxu0 0.0
    %6819 = vmatprep.subr.mxu0 0.0
    %6820 = vmatpush1.msra.mxu0 0.0
    %6821 = vmatprep.subr.mxu0 0.0
    %6822 = vmatpush1.msra.mxu0 0.0
    %6823 = vmatprep.subr.mxu0 0.0
    %6824 = vmatpush1.msra.mxu0 0.0
    %6825 = vmatprep.subr.mxu0 0.0
    %6826 = vmatpush1.msra.mxu0 0.0
    %6827 = vmatprep.subr.mxu0 0.0
    %6828 = vmatpush1.msra.mxu0 0.0
    %6829 = vmatprep.subr.mxu0 0.0
    %6830 = vmatpush1.msra.mxu0 0.0
    %6831 = vmatprep.subr.mxu0 0.0
    %6832 = vmatpush1.msra.mxu0 0.0
    %6833 = vmatprep.subr.mxu0 0.0
    %6834 = vmatpush1.msra.mxu0 0.0
    %6835 = vmatprep.subr.mxu0 0.0
    %6836 = vmatpush1.msra.mxu0 0.0
    %6837 = vmatprep.mubr.f32.mxu0 0.0
    %v6838 = vand.u32 %v6432, 4294901760
    %6839 = vmatmul.mubr.f32.gmra.mrb[0].mxu0 %v6838
    %v6840 = vpop.f32.mrb[0].mxu0
    %v6841 = vadd.f32 %v6758, %v6840
    %v6842 = vpop.f32.mrb[0].mxu0
    %6843 = vdwg.mxu0
    %6844 = vmatprep.subr.mxu0 0.0
    %v6845 = vand.u32 %v4874, 4294901760
    %6846 = vmatpush1.msra.mxu0 %v6845
    %6847 = vmatprep.subr.mxu0 0.0
    %v6848 = vand.u32 %v4875, 4294901760
    %6849 = vmatpush1.msra.mxu0 %v6848
    %6850 = vmatprep.subr.mxu0 0.0
    %v6851 = vand.u32 %v4876, 4294901760
    %6852 = vmatpush1.msra.mxu0 %v6851
    %6853 = vmatprep.subr.mxu0 0.0
    %v6854 = vand.u32 %v4877, 4294901760
    %6855 = vmatpush1.msra.mxu0 %v6854
    %6856 = vmatprep.subr.mxu0 0.0
    %6857 = vmatpush1.msra.mxu0 0.0
    %6858 = vmatprep.subr.mxu0 0.0
    %6859 = vmatpush1.msra.mxu0 0.0
    %6860 = vmatprep.subr.mxu0 0.0
    %6861 = vmatpush1.msra.mxu0 0.0
    %6862 = vmatprep.subr.mxu0 0.0
    %6863 = vmatpush1.msra.mxu0 0.0
    %6864 = vmatprep.subr.mxu0 0.0
    %6865 = vmatpush1.msra.mxu0 0.0
    %6866 = vmatprep.subr.mxu0 0.0
    %6867 = vmatpush1.msra.mxu0 0.0
    %6868 = vmatprep.subr.mxu0 0.0
    %6869 = vmatpush1.msra.mxu0 0.0
    %6870 = vmatprep.subr.mxu0 0.0
    %6871 = vmatpush1.msra.mxu0 0.0
    %6872 = vmatprep.subr.mxu0 0.0
    %6873 = vmatpush1.msra.mxu0 0.0
    %6874 = vmatprep.subr.mxu0 0.0
    %6875 = vmatpush1.msra.mxu0 0.0
    %6876 = vmatprep.subr.mxu0 0.0
    %6877 = vmatpush1.msra.mxu0 0.0
    %6878 = vmatprep.subr.mxu0 0.0
    %6879 = vmatpush1.msra.mxu0 0.0
    %6880 = vmatprep.subr.mxu0 0.0
    %6881 = vmatpush1.msra.mxu0 0.0
    %6882 = vmatprep.subr.mxu0 0.0
    %6883 = vmatpush1.msra.mxu0 0.0
    %6884 = vmatprep.subr.mxu0 0.0
    %6885 = vmatpush1.msra.mxu0 0.0
    %6886 = vmatprep.subr.mxu0 0.0
    %6887 = vmatpush1.msra.mxu0 0.0
    %6888 = vmatprep.subr.mxu0 0.0
    %6889 = vmatpush1.msra.mxu0 0.0
    %6890 = vmatprep.subr.mxu0 0.0
    %6891 = vmatpush1.msra.mxu0 0.0
    %6892 = vmatprep.subr.mxu0 0.0
    %6893 = vmatpush1.msra.mxu0 0.0
    %6894 = vmatprep.subr.mxu0 0.0
    %6895 = vmatpush1.msra.mxu0 0.0
    %6896 = vmatprep.subr.mxu0 0.0
    %6897 = vmatpush1.msra.mxu0 0.0
    %6898 = vmatprep.subr.mxu0 0.0
    %6899 = vmatpush1.msra.mxu0 0.0
    %6900 = vmatprep.subr.mxu0 0.0
    %6901 = vmatpush1.msra.mxu0 0.0
    %6902 = vmatprep.subr.mxu0 0.0
    %6903 = vmatpush1.msra.mxu0 0.0
    %6904 = vmatprep.subr.mxu0 0.0
    %6905 = vmatpush1.msra.mxu0 0.0
    %6906 = vmatprep.subr.mxu0 0.0
    %6907 = vmatpush1.msra.mxu0 0.0
    %6908 = vmatprep.subr.mxu0 0.0
    %6909 = vmatpush1.msra.mxu0 0.0
    %6910 = vmatprep.subr.mxu0 0.0
    %6911 = vmatpush1.msra.mxu0 0.0
    %6912 = vmatprep.mubr.f32.mxu0 0.0
    %v6913 = vand.u32 %v6432, 4294901760
    %6914 = vmatmul.mubr.f32.gmra.mrb[0].mxu0 %v6913
    %v6915 = vpop.f32.mrb[0].mxu0
    %v6916 = vadd.f32 %v6841, %v6915
    %v6917 = vpop.f32.mrb[0].mxu0
    %6918 = vdwg.mxu0
    %v6919 = vadd.f32 %v6431, %v6916
    %v6920 = vxor.u32 %v6919, 2147483648
    %v6921 = vmul.f32 %v6920, 1.442695
    %v6922 = vpow.pop %v6921
    %v6923 = vadd.f32 %v6922, 1.0
    %v6924 = vrcp.pop %v6923
    %v6925 = vmul.f32 1.0, %v6924
    %v6926 = vtanh.pop %v6919
    %v6927 = vmul.f32 %v6925, %v6419
    %6929 = vrot.lane.b32.xlu0 %v6926, 64
    %v6930 = vpop.permute.xlu0 %6929
    %v6932 = vmul.f32 %v6925, %v6930
    %6934 = vrot.lane.b32.xlu0 %v6932, 32
    %v6935 = vpop.permute.xlu0 %6934
    %v6937 = vadd.f32 %v6927, %v6935
    %v6938 = vtanh.pop %v6937
    %6940 = vrot.lane.b32.xlu0 %v6938, 64
    %v6941 = vpop.permute.xlu0 %6940
    %v6943 = vmul.f32 %v6925, %v6941
    %6945 = vrot.lane.b32.xlu0 %v6943, 32
    %v6946 = vpop.permute.xlu0 %6945
    %6948 = vst.msk [vmem:[#allocation4 + $0x3] sm:$0x1] %vm5393, %v6946
    %v6949 = vld [vmem:[#allocation3 + $0x4] sm:$0x1]
    %v6950 = vsel %vm554, %v6946, 0
    %6952 = vmatprep.subr.mxu0 0.0
    %v6953 = vand.u32 %v4874, 4294901760
    %6954 = vmatpush1.msra.mxu0 %v6953
    %6955 = vmatprep.subr.mxu0 0.0
    %v6956 = vand.u32 %v4875, 4294901760
    %6957 = vmatpush1.msra.mxu0 %v6956
    %6958 = vmatprep.subr.mxu0 0.0
    %v6959 = vand.u32 %v4876, 4294901760
    %6960 = vmatpush1.msra.mxu0 %v6959
    %6961 = vmatprep.subr.mxu0 0.0
    %v6962 = vand.u32 %v4877, 4294901760
    %6963 = vmatpush1.msra.mxu0 %v6962
    %6964 = vmatprep.subr.mxu0 0.0
    %6965 = vmatpush1.msra.mxu0 0.0
    %6966 = vmatprep.subr.mxu0 0.0
    %6967 = vmatpush1.msra.mxu0 0.0
    %6968 = vmatprep.subr.mxu0 0.0
    %6969 = vmatpush1.msra.mxu0 0.0
    %6970 = vmatprep.subr.mxu0 0.0
    %6971 = vmatpush1.msra.mxu0 0.0
    %6972 = vmatprep.subr.mxu0 0.0
    %6973 = vmatpush1.msra.mxu0 0.0
    %6974 = vmatprep.subr.mxu0 0.0
    %6975 = vmatpush1.msra.mxu0 0.0
    %6976 = vmatprep.subr.mxu0 0.0
    %6977 = vmatpush1.msra.mxu0 0.0
    %6978 = vmatprep.subr.mxu0 0.0
    %6979 = vmatpush1.msra.mxu0 0.0
    %6980 = vmatprep.subr.mxu0 0.0
    %6981 = vmatpush1.msra.mxu0 0.0
    %6982 = vmatprep.subr.mxu0 0.0
    %6983 = vmatpush1.msra.mxu0 0.0
    %6984 = vmatprep.subr.mxu0 0.0
    %6985 = vmatpush1.msra.mxu0 0.0
    %6986 = vmatprep.subr.mxu0 0.0
    %6987 = vmatpush1.msra.mxu0 0.0
    %6988 = vmatprep.subr.mxu0 0.0
    %6989 = vmatpush1.msra.mxu0 0.0
    %6990 = vmatprep.subr.mxu0 0.0
    %6991 = vmatpush1.msra.mxu0 0.0
    %6992 = vmatprep.subr.mxu0 0.0
    %6993 = vmatpush1.msra.mxu0 0.0
    %6994 = vmatprep.subr.mxu0 0.0
    %6995 = vmatpush1.msra.mxu0 0.0
    %6996 = vmatprep.subr.mxu0 0.0
    %6997 = vmatpush1.msra.mxu0 0.0
    %6998 = vmatprep.subr.mxu0 0.0
    %6999 = vmatpush1.msra.mxu0 0.0
    %7000 = vmatprep.subr.mxu0 0.0
    %7001 = vmatpush1.msra.mxu0 0.0
    %7002 = vmatprep.subr.mxu0 0.0
    %7003 = vmatpush1.msra.mxu0 0.0
    %7004 = vmatprep.subr.mxu0 0.0
    %7005 = vmatpush1.msra.mxu0 0.0
    %7006 = vmatprep.subr.mxu0 0.0
    %7007 = vmatpush1.msra.mxu0 0.0
    %7008 = vmatprep.subr.mxu0 0.0
    %7009 = vmatpush1.msra.mxu0 0.0
    %7010 = vmatprep.subr.mxu0 0.0
    %7011 = vmatpush1.msra.mxu0 0.0
    %7012 = vmatprep.subr.mxu0 0.0
    %7013 = vmatpush1.msra.mxu0 0.0
    %7014 = vmatprep.subr.mxu0 0.0
    %7015 = vmatpush1.msra.mxu0 0.0
    %7016 = vmatprep.subr.mxu0 0.0
    %7017 = vmatpush1.msra.mxu0 0.0
    %7018 = vmatprep.subr.mxu0 0.0
    %7019 = vmatpush1.msra.mxu0 0.0
    %7020 = vmatprep.mubr.f32.mxu0 0.0
    %v7021 = vand.u32 %v6950, 4294901760
    %v7022 = vsub.f32 %v6950, %v7021
    %v7023 = vand.u32 %v7022, 4294901760
    %v7024 = vsub.f32 %v7022, %v7023
    %v7025 = vand.u32 %v7024, 4294901760
    %7026 = vmatmul.mubr.f32.gmra.mrb[0].mxu0 %v7025
    %v7027 = vpop.f32.mrb[0].mxu0
    %v7028 = vadd.f32 0.0, %v7027
    %v7029 = vpop.f32.mrb[0].mxu0
    %7030 = vdwg.mxu0
    %7031 = vmatprep.subr.mxu0 0.0
    %v7032 = vand.u32 %v4874, 4294901760
    %v7033 = vsub.f32 %v4874, %v7032
    %v7034 = vand.u32 %v7033, 4294901760
    %v7035 = vsub.f32 %v7033, %v7034
    %v7036 = vand.u32 %v7035, 4294901760
    %7037 = vmatpush1.msra.mxu0 %v7036
    %7038 = vmatprep.subr.mxu0 0.0
    %v7039 = vand.u32 %v4875, 4294901760
    %v7040 = vsub.f32 %v4875, %v7039
    %v7041 = vand.u32 %v7040, 4294901760
    %v7042 = vsub.f32 %v7040, %v7041
    %v7043 = vand.u32 %v7042, 4294901760
    %7044 = vmatpush1.msra.mxu0 %v7043
    %7045 = vmatprep.subr.mxu0 0.0
    %v7046 = vand.u32 %v4876, 4294901760
    %v7047 = vsub.f32 %v4876, %v7046
    %v7048 = vand.u32 %v7047, 4294901760
    %v7049 = vsub.f32 %v7047, %v7048
    %v7050 = vand.u32 %v7049, 4294901760
    %7051 = vmatpush1.msra.mxu0 %v7050
    %7052 = vmatprep.subr.mxu0 0.0
    %v7053 = vand.u32 %v4877, 4294901760
    %v7054 = vsub.f32 %v4877, %v7053
    %v7055 = vand.u32 %v7054, 4294901760
    %v7056 = vsub.f32 %v7054, %v7055
    %v7057 = vand.u32 %v7056, 4294901760
    %7058 = vmatpush1.msra.mxu0 %v7057
    %7059 = vmatprep.subr.mxu0 0.0
    %7060 = vmatpush1.msra.mxu0 0.0
    %7061 = vmatprep.subr.mxu0 0.0
    %7062 = vmatpush1.msra.mxu0 0.0
    %7063 = vmatprep.subr.mxu0 0.0
    %7064 = vmatpush1.msra.mxu0 0.0
    %7065 = vmatprep.subr.mxu0 0.0
    %7066 = vmatpush1.msra.mxu0 0.0
    %7067 = vmatprep.subr.mxu0 0.0
    %7068 = vmatpush1.msra.mxu0 0.0
    %7069 = vmatprep.subr.mxu0 0.0
    %7070 = vmatpush1.msra.mxu0 0.0
    %7071 = vmatprep.subr.mxu0 0.0
    %7072 = vmatpush1.msra.mxu0 0.0
    %7073 = vmatprep.subr.mxu0 0.0
    %7074 = vmatpush1.msra.mxu0 0.0
    %7075 = vmatprep.subr.mxu0 0.0
    %7076 = vmatpush1.msra.mxu0 0.0
    %7077 = vmatprep.subr.mxu0 0.0
    %7078 = vmatpush1.msra.mxu0 0.0
    %7079 = vmatprep.subr.mxu0 0.0
    %7080 = vmatpush1.msra.mxu0 0.0
    %7081 = vmatprep.subr.mxu0 0.0
    %7082 = vmatpush1.msra.mxu0 0.0
    %7083 = vmatprep.subr.mxu0 0.0
    %7084 = vmatpush1.msra.mxu0 0.0
    %7085 = vmatprep.subr.mxu0 0.0
    %7086 = vmatpush1.msra.mxu0 0.0
    %7087 = vmatprep.subr.mxu0 0.0
    %7088 = vmatpush1.msra.mxu0 0.0
    %7089 = vmatprep.subr.mxu0 0.0
    %7090 = vmatpush1.msra.mxu0 0.0
    %7091 = vmatprep.subr.mxu0 0.0
    %7092 = vmatpush1.msra.mxu0 0.0
    %7093 = vmatprep.subr.mxu0 0.0
    %7094 = vmatpush1.msra.mxu0 0.0
    %7095 = vmatprep.subr.mxu0 0.0
    %7096 = vmatpush1.msra.mxu0 0.0
    %7097 = vmatprep.subr.mxu0 0.0
    %7098 = vmatpush1.msra.mxu0 0.0
    %7099 = vmatprep.subr.mxu0 0.0
    %7100 = vmatpush1.msra.mxu0 0.0
    %7101 = vmatprep.subr.mxu0 0.0
    %7102 = vmatpush1.msra.mxu0 0.0
    %7103 = vmatprep.subr.mxu0 0.0
    %7104 = vmatpush1.msra.mxu0 0.0
    %7105 = vmatprep.subr.mxu0 0.0
    %7106 = vmatpush1.msra.mxu0 0.0
    %7107 = vmatprep.subr.mxu0 0.0
    %7108 = vmatpush1.msra.mxu0 0.0
    %7109 = vmatprep.subr.mxu0 0.0
    %7110 = vmatpush1.msra.mxu0 0.0
    %7111 = vmatprep.subr.mxu0 0.0
    %7112 = vmatpush1.msra.mxu0 0.0
    %7113 = vmatprep.subr.mxu0 0.0
    %7114 = vmatpush1.msra.mxu0 0.0
    %7115 = vmatprep.mubr.f32.mxu0 0.0
    %v7116 = vand.u32 %v6950, 4294901760
    %7117 = vmatmul.mubr.f32.gmra.mrb[0].mxu0 %v7116
    %v7118 = vpop.f32.mrb[0].mxu0
    %v7119 = vadd.f32 %v7028, %v7118
    %v7120 = vpop.f32.mrb[0].mxu0
    %7121 = vdwg.mxu0
    %7122 = vmatprep.subr.mxu0 0.0
    %v7123 = vand.u32 %v4874, 4294901760
    %v7124 = vsub.f32 %v4874, %v7123
    %7125 = vmatpush1.msra.mxu0 %v7124
    %7126 = vmatprep.subr.mxu0 0.0
    %v7127 = vand.u32 %v4875, 4294901760
    %v7128 = vsub.f32 %v4875, %v7127
    %7129 = vmatpush1.msra.mxu0 %v7128
    %7130 = vmatprep.subr.mxu0 0.0
    %v7131 = vand.u32 %v4876, 4294901760
    %v7132 = vsub.f32 %v4876, %v7131
    %7133 = vmatpush1.msra.mxu0 %v7132
    %7134 = vmatprep.subr.mxu0 0.0
    %v7135 = vand.u32 %v4877, 4294901760
    %v7136 = vsub.f32 %v4877, %v7135
    %7137 = vmatpush1.msra.mxu0 %v7136
    %7138 = vmatprep.subr.mxu0 0.0
    %7139 = vmatpush1.msra.mxu0 0.0
    %7140 = vmatprep.subr.mxu0 0.0
    %7141 = vmatpush1.msra.mxu0 0.0
    %7142 = vmatprep.subr.mxu0 0.0
    %7143 = vmatpush1.msra.mxu0 0.0
    %7144 = vmatprep.subr.mxu0 0.0
    %7145 = vmatpush1.msra.mxu0 0.0
    %7146 = vmatprep.subr.mxu0 0.0
    %7147 = vmatpush1.msra.mxu0 0.0
    %7148 = vmatprep.subr.mxu0 0.0
    %7149 = vmatpush1.msra.mxu0 0.0
    %7150 = vmatprep.subr.mxu0 0.0
    %7151 = vmatpush1.msra.mxu0 0.0
    %7152 = vmatprep.subr.mxu0 0.0
    %7153 = vmatpush1.msra.mxu0 0.0
    %7154 = vmatprep.subr.mxu0 0.0
    %7155 = vmatpush1.msra.mxu0 0.0
    %7156 = vmatprep.subr.mxu0 0.0
    %7157 = vmatpush1.msra.mxu0 0.0
    %7158 = vmatprep.subr.mxu0 0.0
    %7159 = vmatpush1.msra.mxu0 0.0
    %7160 = vmatprep.subr.mxu0 0.0
    %7161 = vmatpush1.msra.mxu0 0.0
    %7162 = vmatprep.subr.mxu0 0.0
    %7163 = vmatpush1.msra.mxu0 0.0
    %7164 = vmatprep.subr.mxu0 0.0
    %7165 = vmatpush1.msra.mxu0 0.0
    %7166 = vmatprep.subr.mxu0 0.0
    %7167 = vmatpush1.msra.mxu0 0.0
    %7168 = vmatprep.subr.mxu0 0.0
    %7169 = vmatpush1.msra.mxu0 0.0
    %7170 = vmatprep.subr.mxu0 0.0
    %7171 = vmatpush1.msra.mxu0 0.0
    %7172 = vmatprep.subr.mxu0 0.0
    %7173 = vmatpush1.msra.mxu0 0.0
    %7174 = vmatprep.subr.mxu0 0.0
    %7175 = vmatpush1.msra.mxu0 0.0
    %7176 = vmatprep.subr.mxu0 0.0
    %7177 = vmatpush1.msra.mxu0 0.0
    %7178 = vmatprep.subr.mxu0 0.0
    %7179 = vmatpush1.msra.mxu0 0.0
    %7180 = vmatprep.subr.mxu0 0.0
    %7181 = vmatpush1.msra.mxu0 0.0
    %7182 = vmatprep.subr.mxu0 0.0
    %7183 = vmatpush1.msra.mxu0 0.0
    %7184 = vmatprep.subr.mxu0 0.0
    %7185 = vmatpush1.msra.mxu0 0.0
    %7186 = vmatprep.subr.mxu0 0.0
    %7187 = vmatpush1.msra.mxu0 0.0
    %7188 = vmatprep.subr.mxu0 0.0
    %7189 = vmatpush1.msra.mxu0 0.0
    %7190 = vmatprep.subr.mxu0 0.0
    %7191 = vmatpush1.msra.mxu0 0.0
    %7192 = vmatprep.subr.mxu0 0.0
    %7193 = vmatpush1.msra.mxu0 0.0
    %7194 = vmatprep.mubr.f32.mxu0 0.0
    %v7195 = vand.u32 %v6950, 4294901760
    %v7196 = vsub.f32 %v6950, %v7195
    %7197 = vmatmul.mubr.f32.gmra.mrb[0].mxu0 %v7196
    %v7198 = vpop.f32.mrb[0].mxu0
    %v7199 = vadd.f32 %v7119, %v7198
    %v7200 = vpop.f32.mrb[0].mxu0
    %7201 = vdwg.mxu0
    %7202 = vmatprep.subr.mxu0 0.0
    %v7203 = vand.u32 %v4874, 4294901760
    %7204 = vmatpush1.msra.mxu0 %v7203
    %7205 = vmatprep.subr.mxu0 0.0
    %v7206 = vand.u32 %v4875, 4294901760
    %7207 = vmatpush1.msra.mxu0 %v7206
    %7208 = vmatprep.subr.mxu0 0.0
    %v7209 = vand.u32 %v4876, 4294901760
    %7210 = vmatpush1.msra.mxu0 %v7209
    %7211 = vmatprep.subr.mxu0 0.0
    %v7212 = vand.u32 %v4877, 4294901760
    %7213 = vmatpush1.msra.mxu0 %v7212
    %7214 = vmatprep.subr.mxu0 0.0
    %7215 = vmatpush1.msra.mxu0 0.0
    %7216 = vmatprep.subr.mxu0 0.0
    %7217 = vmatpush1.msra.mxu0 0.0
    %7218 = vmatprep.subr.mxu0 0.0
    %7219 = vmatpush1.msra.mxu0 0.0
    %7220 = vmatprep.subr.mxu0 0.0
    %7221 = vmatpush1.msra.mxu0 0.0
    %7222 = vmatprep.subr.mxu0 0.0
    %7223 = vmatpush1.msra.mxu0 0.0
    %7224 = vmatprep.subr.mxu0 0.0
    %7225 = vmatpush1.msra.mxu0 0.0
    %7226 = vmatprep.subr.mxu0 0.0
    %7227 = vmatpush1.msra.mxu0 0.0
    %7228 = vmatprep.subr.mxu0 0.0
    %7229 = vmatpush1.msra.mxu0 0.0
    %7230 = vmatprep.subr.mxu0 0.0
    %7231 = vmatpush1.msra.mxu0 0.0
    %7232 = vmatprep.subr.mxu0 0.0
    %7233 = vmatpush1.msra.mxu0 0.0
    %7234 = vmatprep.subr.mxu0 0.0
    %7235 = vmatpush1.msra.mxu0 0.0
    %7236 = vmatprep.subr.mxu0 0.0
    %7237 = vmatpush1.msra.mxu0 0.0
    %7238 = vmatprep.subr.mxu0 0.0
    %7239 = vmatpush1.msra.mxu0 0.0
    %7240 = vmatprep.subr.mxu0 0.0
    %7241 = vmatpush1.msra.mxu0 0.0
    %7242 = vmatprep.subr.mxu0 0.0
    %7243 = vmatpush1.msra.mxu0 0.0
    %7244 = vmatprep.subr.mxu0 0.0
    %7245 = vmatpush1.msra.mxu0 0.0
    %7246 = vmatprep.subr.mxu0 0.0
    %7247 = vmatpush1.msra.mxu0 0.0
    %7248 = vmatprep.subr.mxu0 0.0
    %7249 = vmatpush1.msra.mxu0 0.0
    %7250 = vmatprep.subr.mxu0 0.0
    %7251 = vmatpush1.msra.mxu0 0.0
    %7252 = vmatprep.subr.mxu0 0.0
    %7253 = vmatpush1.msra.mxu0 0.0
    %7254 = vmatprep.subr.mxu0 0.0
    %7255 = vmatpush1.msra.mxu0 0.0
    %7256 = vmatprep.subr.mxu0 0.0
    %7257 = vmatpush1.msra.mxu0 0.0
    %7258 = vmatprep.subr.mxu0 0.0
    %7259 = vmatpush1.msra.mxu0 0.0
    %7260 = vmatprep.subr.mxu0 0.0
    %7261 = vmatpush1.msra.mxu0 0.0
    %7262 = vmatprep.subr.mxu0 0.0
    %7263 = vmatpush1.msra.mxu0 0.0
    %7264 = vmatprep.subr.mxu0 0.0
    %7265 = vmatpush1.msra.mxu0 0.0
    %7266 = vmatprep.subr.mxu0 0.0
    %7267 = vmatpush1.msra.mxu0 0.0
    %7268 = vmatprep.subr.mxu0 0.0
    %7269 = vmatpush1.msra.mxu0 0.0
    %7270 = vmatprep.mubr.f32.mxu0 0.0
    %v7271 = vand.u32 %v6950, 4294901760
    %v7272 = vsub.f32 %v6950, %v7271
    %v7273 = vand.u32 %v7272, 4294901760
    %7274 = vmatmul.mubr.f32.gmra.mrb[0].mxu0 %v7273
    %v7275 = vpop.f32.mrb[0].mxu0
    %v7276 = vadd.f32 %v7199, %v7275
    %v7277 = vpop.f32.mrb[0].mxu0
    %7278 = vdwg.mxu0
    %7279 = vmatprep.subr.mxu0 0.0
    %v7280 = vand.u32 %v4874, 4294901760
    %v7281 = vsub.f32 %v4874, %v7280
    %v7282 = vand.u32 %v7281, 4294901760
    %7283 = vmatpush1.msra.mxu0 %v7282
    %7284 = vmatprep.subr.mxu0 0.0
    %v7285 = vand.u32 %v4875, 4294901760
    %v7286 = vsub.f32 %v4875, %v7285
    %v7287 = vand.u32 %v7286, 4294901760
    %7288 = vmatpush1.msra.mxu0 %v7287
    %7289 = vmatprep.subr.mxu0 0.0
    %v7290 = vand.u32 %v4876, 4294901760
    %v7291 = vsub.f32 %v4876, %v7290
    %v7292 = vand.u32 %v7291, 4294901760
    %7293 = vmatpush1.msra.mxu0 %v7292
    %7294 = vmatprep.subr.mxu0 0.0
    %v7295 = vand.u32 %v4877, 4294901760
    %v7296 = vsub.f32 %v4877, %v7295
    %v7297 = vand.u32 %v7296, 4294901760
    %7298 = vmatpush1.msra.mxu0 %v7297
    %7299 = vmatprep.subr.mxu0 0.0
    %7300 = vmatpush1.msra.mxu0 0.0
    %7301 = vmatprep.subr.mxu0 0.0
    %7302 = vmatpush1.msra.mxu0 0.0
    %7303 = vmatprep.subr.mxu0 0.0
    %7304 = vmatpush1.msra.mxu0 0.0
    %7305 = vmatprep.subr.mxu0 0.0
    %7306 = vmatpush1.msra.mxu0 0.0
    %7307 = vmatprep.subr.mxu0 0.0
    %7308 = vmatpush1.msra.mxu0 0.0
    %7309 = vmatprep.subr.mxu0 0.0
    %7310 = vmatpush1.msra.mxu0 0.0
    %7311 = vmatprep.subr.mxu0 0.0
    %7312 = vmatpush1.msra.mxu0 0.0
    %7313 = vmatprep.subr.mxu0 0.0
    %7314 = vmatpush1.msra.mxu0 0.0
    %7315 = vmatprep.subr.mxu0 0.0
    %7316 = vmatpush1.msra.mxu0 0.0
    %7317 = vmatprep.subr.mxu0 0.0
    %7318 = vmatpush1.msra.mxu0 0.0
    %7319 = vmatprep.subr.mxu0 0.0
    %7320 = vmatpush1.msra.mxu0 0.0
    %7321 = vmatprep.subr.mxu0 0.0
    %7322 = vmatpush1.msra.mxu0 0.0
    %7323 = vmatprep.subr.mxu0 0.0
    %7324 = vmatpush1.msra.mxu0 0.0
    %7325 = vmatprep.subr.mxu0 0.0
    %7326 = vmatpush1.msra.mxu0 0.0
    %7327 = vmatprep.subr.mxu0 0.0
    %7328 = vmatpush1.msra.mxu0 0.0
    %7329 = vmatprep.subr.mxu0 0.0
    %7330 = vmatpush1.msra.mxu0 0.0
    %7331 = vmatprep.subr.mxu0 0.0
    %7332 = vmatpush1.msra.mxu0 0.0
    %7333 = vmatprep.subr.mxu0 0.0
    %7334 = vmatpush1.msra.mxu0 0.0
    %7335 = vmatprep.subr.mxu0 0.0
    %7336 = vmatpush1.msra.mxu0 0.0
    %7337 = vmatprep.subr.mxu0 0.0
    %7338 = vmatpush1.msra.mxu0 0.0
    %7339 = vmatprep.subr.mxu0 0.0
    %7340 = vmatpush1.msra.mxu0 0.0
    %7341 = vmatprep.subr.mxu0 0.0
    %7342 = vmatpush1.msra.mxu0 0.0
    %7343 = vmatprep.subr.mxu0 0.0
    %7344 = vmatpush1.msra.mxu0 0.0
    %7345 = vmatprep.subr.mxu0 0.0
    %7346 = vmatpush1.msra.mxu0 0.0
    %7347 = vmatprep.subr.mxu0 0.0
    %7348 = vmatpush1.msra.mxu0 0.0
    %7349 = vmatprep.subr.mxu0 0.0
    %7350 = vmatpush1.msra.mxu0 0.0
    %7351 = vmatprep.subr.mxu0 0.0
    %7352 = vmatpush1.msra.mxu0 0.0
    %7353 = vmatprep.subr.mxu0 0.0
    %7354 = vmatpush1.msra.mxu0 0.0
    %7355 = vmatprep.mubr.f32.mxu0 0.0
    %v7356 = vand.u32 %v6950, 4294901760
    %7357 = vmatmul.mubr.f32.gmra.mrb[0].mxu0 %v7356
    %v7358 = vpop.f32.mrb[0].mxu0
    %v7359 = vadd.f32 %v7276, %v7358
    %v7360 = vpop.f32.mrb[0].mxu0
    %7361 = vdwg.mxu0
    %7362 = vmatprep.subr.mxu0 0.0
    %v7363 = vand.u32 %v4874, 4294901760
    %7364 = vmatpush1.msra.mxu0 %v7363
    %7365 = vmatprep.subr.mxu0 0.0
    %v7366 = vand.u32 %v4875, 4294901760
    %7367 = vmatpush1.msra.mxu0 %v7366
    %7368 = vmatprep.subr.mxu0 0.0
    %v7369 = vand.u32 %v4876, 4294901760
    %7370 = vmatpush1.msra.mxu0 %v7369
    %7371 = vmatprep.subr.mxu0 0.0
    %v7372 = vand.u32 %v4877, 4294901760
    %7373 = vmatpush1.msra.mxu0 %v7372
    %7374 = vmatprep.subr.mxu0 0.0
    %7375 = vmatpush1.msra.mxu0 0.0
    %7376 = vmatprep.subr.mxu0 0.0
    %7377 = vmatpush1.msra.mxu0 0.0
    %7378 = vmatprep.subr.mxu0 0.0
    %7379 = vmatpush1.msra.mxu0 0.0
    %7380 = vmatprep.subr.mxu0 0.0
    %7381 = vmatpush1.msra.mxu0 0.0
    %7382 = vmatprep.subr.mxu0 0.0
    %7383 = vmatpush1.msra.mxu0 0.0
    %7384 = vmatprep.subr.mxu0 0.0
    %7385 = vmatpush1.msra.mxu0 0.0
    %7386 = vmatprep.subr.mxu0 0.0
    %7387 = vmatpush1.msra.mxu0 0.0
    %7388 = vmatprep.subr.mxu0 0.0
    %7389 = vmatpush1.msra.mxu0 0.0
    %7390 = vmatprep.subr.mxu0 0.0
    %7391 = vmatpush1.msra.mxu0 0.0
    %7392 = vmatprep.subr.mxu0 0.0
    %7393 = vmatpush1.msra.mxu0 0.0
    %7394 = vmatprep.subr.mxu0 0.0
    %7395 = vmatpush1.msra.mxu0 0.0
    %7396 = vmatprep.subr.mxu0 0.0
    %7397 = vmatpush1.msra.mxu0 0.0
    %7398 = vmatprep.subr.mxu0 0.0
    %7399 = vmatpush1.msra.mxu0 0.0
    %7400 = vmatprep.subr.mxu0 0.0
    %7401 = vmatpush1.msra.mxu0 0.0
    %7402 = vmatprep.subr.mxu0 0.0
    %7403 = vmatpush1.msra.mxu0 0.0
    %7404 = vmatprep.subr.mxu0 0.0
    %7405 = vmatpush1.msra.mxu0 0.0
    %7406 = vmatprep.subr.mxu0 0.0
    %7407 = vmatpush1.msra.mxu0 0.0
    %7408 = vmatprep.subr.mxu0 0.0
    %7409 = vmatpush1.msra.mxu0 0.0
    %7410 = vmatprep.subr.mxu0 0.0
    %7411 = vmatpush1.msra.mxu0 0.0
    %7412 = vmatprep.subr.mxu0 0.0
    %7413 = vmatpush1.msra.mxu0 0.0
    %7414 = vmatprep.subr.mxu0 0.0
    %7415 = vmatpush1.msra.mxu0 0.0
    %7416 = vmatprep.subr.mxu0 0.0
    %7417 = vmatpush1.msra.mxu0 0.0
    %7418 = vmatprep.subr.mxu0 0.0
    %7419 = vmatpush1.msra.mxu0 0.0
    %7420 = vmatprep.subr.mxu0 0.0
    %7421 = vmatpush1.msra.mxu0 0.0
    %7422 = vmatprep.subr.mxu0 0.0
    %7423 = vmatpush1.msra.mxu0 0.0
    %7424 = vmatprep.subr.mxu0 0.0
    %7425 = vmatpush1.msra.mxu0 0.0
    %7426 = vmatprep.subr.mxu0 0.0
    %7427 = vmatpush1.msra.mxu0 0.0
    %7428 = vmatprep.subr.mxu0 0.0
    %7429 = vmatpush1.msra.mxu0 0.0
    %7430 = vmatprep.mubr.f32.mxu0 0.0
    %v7431 = vand.u32 %v6950, 4294901760
    %7432 = vmatmul.mubr.f32.gmra.mrb[0].mxu0 %v7431
    %v7433 = vpop.f32.mrb[0].mxu0
    %v7434 = vadd.f32 %v7359, %v7433
    %v7435 = vpop.f32.mrb[0].mxu0
    %7436 = vdwg.mxu0
    %v7437 = vadd.f32 %v6949, %v7434
    %v7438 = vxor.u32 %v7437, 2147483648
    %v7439 = vmul.f32 %v7438, 1.442695
    %v7440 = vpow.pop %v7439
    %v7441 = vadd.f32 %v7440, 1.0
    %v7442 = vrcp.pop %v7441
    %v7443 = vmul.f32 1.0, %v7442
    %v7444 = vtanh.pop %v7437
    %v7445 = vmul.f32 %v7443, %v6937
    %7447 = vrot.lane.b32.xlu0 %v7444, 64
    %v7448 = vpop.permute.xlu0 %7447
    %v7450 = vmul.f32 %v7443, %v7448
    %7452 = vrot.lane.b32.xlu0 %v7450, 32
    %v7453 = vpop.permute.xlu0 %7452
    %v7455 = vadd.f32 %v7445, %v7453
    %v7456 = vtanh.pop %v7455
    %7458 = vrot.lane.b32.xlu0 %v7456, 64
    %v7459 = vpop.permute.xlu0 %7458
    %v7461 = vmul.f32 %v7443, %v7459
    %7463 = vrot.lane.b32.xlu0 %v7461, 32
    %v7464 = vpop.permute.xlu0 %7463
    %7466 = vst.msk [vmem:[#allocation4 + $0x4] sm:$0x1] %vm5393, %v7464
    %v7467 = vld [vmem:[#allocation3 + $0x5] sm:$0x1]
    %v7468 = vsel %vm554, %v7464, 0
    %7470 = vmatprep.subr.mxu0 0.0
    %v7471 = vand.u32 %v4874, 4294901760
    %7472 = vmatpush1.msra.mxu0 %v7471
    %7473 = vmatprep.subr.mxu0 0.0
    %v7474 = vand.u32 %v4875, 4294901760
    %7475 = vmatpush1.msra.mxu0 %v7474
    %7476 = vmatprep.subr.mxu0 0.0
    %v7477 = vand.u32 %v4876, 4294901760
    %7478 = vmatpush1.msra.mxu0 %v7477
    %7479 = vmatprep.subr.mxu0 0.0
    %v7480 = vand.u32 %v4877, 4294901760
    %7481 = vmatpush1.msra.mxu0 %v7480
    %7482 = vmatprep.subr.mxu0 0.0
    %7483 = vmatpush1.msra.mxu0 0.0
    %7484 = vmatprep.subr.mxu0 0.0
    %7485 = vmatpush1.msra.mxu0 0.0
    %7486 = vmatprep.subr.mxu0 0.0
    %7487 = vmatpush1.msra.mxu0 0.0
    %7488 = vmatprep.subr.mxu0 0.0
    %7489 = vmatpush1.msra.mxu0 0.0
    %7490 = vmatprep.subr.mxu0 0.0
    %7491 = vmatpush1.msra.mxu0 0.0
    %7492 = vmatprep.subr.mxu0 0.0
    %7493 = vmatpush1.msra.mxu0 0.0
    %7494 = vmatprep.subr.mxu0 0.0
    %7495 = vmatpush1.msra.mxu0 0.0
    %7496 = vmatprep.subr.mxu0 0.0
    %7497 = vmatpush1.msra.mxu0 0.0
    %7498 = vmatprep.subr.mxu0 0.0
    %7499 = vmatpush1.msra.mxu0 0.0
    %7500 = vmatprep.subr.mxu0 0.0
    %7501 = vmatpush1.msra.mxu0 0.0
    %7502 = vmatprep.subr.mxu0 0.0
    %7503 = vmatpush1.msra.mxu0 0.0
    %7504 = vmatprep.subr.mxu0 0.0
    %7505 = vmatpush1.msra.mxu0 0.0
    %7506 = vmatprep.subr.mxu0 0.0
    %7507 = vmatpush1.msra.mxu0 0.0
    %7508 = vmatprep.subr.mxu0 0.0
    %7509 = vmatpush1.msra.mxu0 0.0
    %7510 = vmatprep.subr.mxu0 0.0
    %7511 = vmatpush1.msra.mxu0 0.0
    %7512 = vmatprep.subr.mxu0 0.0
    %7513 = vmatpush1.msra.mxu0 0.0
    %7514 = vmatprep.subr.mxu0 0.0
    %7515 = vmatpush1.msra.mxu0 0.0
    %7516 = vmatprep.subr.mxu0 0.0
    %7517 = vmatpush1.msra.mxu0 0.0
    %7518 = vmatprep.subr.mxu0 0.0
    %7519 = vmatpush1.msra.mxu0 0.0
    %7520 = vmatprep.subr.mxu0 0.0
    %7521 = vmatpush1.msra.mxu0 0.0
    %7522 = vmatprep.subr.mxu0 0.0
    %7523 = vmatpush1.msra.mxu0 0.0
    %7524 = vmatprep.subr.mxu0 0.0
    %7525 = vmatpush1.msra.mxu0 0.0
    %7526 = vmatprep.subr.mxu0 0.0
    %7527 = vmatpush1.msra.mxu0 0.0
    %7528 = vmatprep.subr.mxu0 0.0
    %7529 = vmatpush1.msra.mxu0 0.0
    %7530 = vmatprep.subr.mxu0 0.0
    %7531 = vmatpush1.msra.mxu0 0.0
    %7532 = vmatprep.subr.mxu0 0.0
    %7533 = vmatpush1.msra.mxu0 0.0
    %7534 = vmatprep.subr.mxu0 0.0
    %7535 = vmatpush1.msra.mxu0 0.0
    %7536 = vmatprep.subr.mxu0 0.0
    %7537 = vmatpush1.msra.mxu0 0.0
    %7538 = vmatprep.mubr.f32.mxu0 0.0
    %v7539 = vand.u32 %v7468, 4294901760
    %v7540 = vsub.f32 %v7468, %v7539
    %v7541 = vand.u32 %v7540, 4294901760
    %v7542 = vsub.f32 %v7540, %v7541
    %v7543 = vand.u32 %v7542, 4294901760
    %7544 = vmatmul.mubr.f32.gmra.mrb[0].mxu0 %v7543
    %v7545 = vpop.f32.mrb[0].mxu0
    %v7546 = vadd.f32 0.0, %v7545
    %v7547 = vpop.f32.mrb[0].mxu0
    %7548 = vdwg.mxu0
    %7549 = vmatprep.subr.mxu0 0.0
    %v7550 = vand.u32 %v4874, 4294901760
    %v7551 = vsub.f32 %v4874, %v7550
    %v7552 = vand.u32 %v7551, 4294901760
    %v7553 = vsub.f32 %v7551, %v7552
    %v7554 = vand.u32 %v7553, 4294901760
    %7555 = vmatpush1.msra.mxu0 %v7554
    %7556 = vmatprep.subr.mxu0 0.0
    %v7557 = vand.u32 %v4875, 4294901760
    %v7558 = vsub.f32 %v4875, %v7557
    %v7559 = vand.u32 %v7558, 4294901760
    %v7560 = vsub.f32 %v7558, %v7559
    %v7561 = vand.u32 %v7560, 4294901760
    %7562 = vmatpush1.msra.mxu0 %v7561
    %7563 = vmatprep.subr.mxu0 0.0
    %v7564 = vand.u32 %v4876, 4294901760
    %v7565 = vsub.f32 %v4876, %v7564
    %v7566 = vand.u32 %v7565, 4294901760
    %v7567 = vsub.f32 %v7565, %v7566
    %v7568 = vand.u32 %v7567, 4294901760
    %7569 = vmatpush1.msra.mxu0 %v7568
    %7570 = vmatprep.subr.mxu0 0.0
    %v7571 = vand.u32 %v4877, 4294901760
    %v7572 = vsub.f32 %v4877, %v7571
    %v7573 = vand.u32 %v7572, 4294901760
    %v7574 = vsub.f32 %v7572, %v7573
    %v7575 = vand.u32 %v7574, 4294901760
    %7576 = vmatpush1.msra.mxu0 %v7575
    %7577 = vmatprep.subr.mxu0 0.0
    %7578 = vmatpush1.msra.mxu0 0.0
    %7579 = vmatprep.subr.mxu0 0.0
    %7580 = vmatpush1.msra.mxu0 0.0
    %7581 = vmatprep.subr.mxu0 0.0
    %7582 = vmatpush1.msra.mxu0 0.0
    %7583 = vmatprep.subr.mxu0 0.0
    %7584 = vmatpush1.msra.mxu0 0.0
    %7585 = vmatprep.subr.mxu0 0.0
    %7586 = vmatpush1.msra.mxu0 0.0
    %7587 = vmatprep.subr.mxu0 0.0
    %7588 = vmatpush1.msra.mxu0 0.0
    %7589 = vmatprep.subr.mxu0 0.0
    %7590 = vmatpush1.msra.mxu0 0.0
    %7591 = vmatprep.subr.mxu0 0.0
    %7592 = vmatpush1.msra.mxu0 0.0
    %7593 = vmatprep.subr.mxu0 0.0
    %7594 = vmatpush1.msra.mxu0 0.0
    %7595 = vmatprep.subr.mxu0 0.0
    %7596 = vmatpush1.msra.mxu0 0.0
    %7597 = vmatprep.subr.mxu0 0.0
    %7598 = vmatpush1.msra.mxu0 0.0
    %7599 = vmatprep.subr.mxu0 0.0
    %7600 = vmatpush1.msra.mxu0 0.0
    %7601 = vmatprep.subr.mxu0 0.0
    %7602 = vmatpush1.msra.mxu0 0.0
    %7603 = vmatprep.subr.mxu0 0.0
    %7604 = vmatpush1.msra.mxu0 0.0
    %7605 = vmatprep.subr.mxu0 0.0
    %7606 = vmatpush1.msra.mxu0 0.0
    %7607 = vmatprep.subr.mxu0 0.0
    %7608 = vmatpush1.msra.mxu0 0.0
    %7609 = vmatprep.subr.mxu0 0.0
    %7610 = vmatpush1.msra.mxu0 0.0
    %7611 = vmatprep.subr.mxu0 0.0
    %7612 = vmatpush1.msra.mxu0 0.0
    %7613 = vmatprep.subr.mxu0 0.0
    %7614 = vmatpush1.msra.mxu0 0.0
    %7615 = vmatprep.subr.mxu0 0.0
    %7616 = vmatpush1.msra.mxu0 0.0
    %7617 = vmatprep.subr.mxu0 0.0
    %7618 = vmatpush1.msra.mxu0 0.0
    %7619 = vmatprep.subr.mxu0 0.0
    %7620 = vmatpush1.msra.mxu0 0.0
    %7621 = vmatprep.subr.mxu0 0.0
    %7622 = vmatpush1.msra.mxu0 0.0
    %7623 = vmatprep.subr.mxu0 0.0
    %7624 = vmatpush1.msra.mxu0 0.0
    %7625 = vmatprep.subr.mxu0 0.0
    %7626 = vmatpush1.msra.mxu0 0.0
    %7627 = vmatprep.subr.mxu0 0.0
    %7628 = vmatpush1.msra.mxu0 0.0
    %7629 = vmatprep.subr.mxu0 0.0
    %7630 = vmatpush1.msra.mxu0 0.0
    %7631 = vmatprep.subr.mxu0 0.0
    %7632 = vmatpush1.msra.mxu0 0.0
    %7633 = vmatprep.mubr.f32.mxu0 0.0
    %v7634 = vand.u32 %v7468, 4294901760
    %7635 = vmatmul.mubr.f32.gmra.mrb[0].mxu0 %v7634
    %v7636 = vpop.f32.mrb[0].mxu0
    %v7637 = vadd.f32 %v7546, %v7636
    %v7638 = vpop.f32.mrb[0].mxu0
    %7639 = vdwg.mxu0
    %7640 = vmatprep.subr.mxu0 0.0
    %v7641 = vand.u32 %v4874, 4294901760
    %v7642 = vsub.f32 %v4874, %v7641
    %7643 = vmatpush1.msra.mxu0 %v7642
    %7644 = vmatprep.subr.mxu0 0.0
    %v7645 = vand.u32 %v4875, 4294901760
    %v7646 = vsub.f32 %v4875, %v7645
    %7647 = vmatpush1.msra.mxu0 %v7646
    %7648 = vmatprep.subr.mxu0 0.0
    %v7649 = vand.u32 %v4876, 4294901760
    %v7650 = vsub.f32 %v4876, %v7649
    %7651 = vmatpush1.msra.mxu0 %v7650
    %7652 = vmatprep.subr.mxu0 0.0
    %v7653 = vand.u32 %v4877, 4294901760
    %v7654 = vsub.f32 %v4877, %v7653
    %7655 = vmatpush1.msra.mxu0 %v7654
    %7656 = vmatprep.subr.mxu0 0.0
    %7657 = vmatpush1.msra.mxu0 0.0
    %7658 = vmatprep.subr.mxu0 0.0
    %7659 = vmatpush1.msra.mxu0 0.0
    %7660 = vmatprep.subr.mxu0 0.0
    %7661 = vmatpush1.msra.mxu0 0.0
    %7662 = vmatprep.subr.mxu0 0.0
    %7663 = vmatpush1.msra.mxu0 0.0
    %7664 = vmatprep.subr.mxu0 0.0
    %7665 = vmatpush1.msra.mxu0 0.0
    %7666 = vmatprep.subr.mxu0 0.0
    %7667 = vmatpush1.msra.mxu0 0.0
    %7668 = vmatprep.subr.mxu0 0.0
    %7669 = vmatpush1.msra.mxu0 0.0
    %7670 = vmatprep.subr.mxu0 0.0
    %7671 = vmatpush1.msra.mxu0 0.0
    %7672 = vmatprep.subr.mxu0 0.0
    %7673 = vmatpush1.msra.mxu0 0.0
    %7674 = vmatprep.subr.mxu0 0.0
    %7675 = vmatpush1.msra.mxu0 0.0
    %7676 = vmatprep.subr.mxu0 0.0
    %7677 = vmatpush1.msra.mxu0 0.0
    %7678 = vmatprep.subr.mxu0 0.0
    %7679 = vmatpush1.msra.mxu0 0.0
    %7680 = vmatprep.subr.mxu0 0.0
    %7681 = vmatpush1.msra.mxu0 0.0
    %7682 = vmatprep.subr.mxu0 0.0
    %7683 = vmatpush1.msra.mxu0 0.0
    %7684 = vmatprep.subr.mxu0 0.0
    %7685 = vmatpush1.msra.mxu0 0.0
    %7686 = vmatprep.subr.mxu0 0.0
    %7687 = vmatpush1.msra.mxu0 0.0
    %7688 = vmatprep.subr.mxu0 0.0
    %7689 = vmatpush1.msra.mxu0 0.0
    %7690 = vmatprep.subr.mxu0 0.0
    %7691 = vmatpush1.msra.mxu0 0.0
    %7692 = vmatprep.subr.mxu0 0.0
    %7693 = vmatpush1.msra.mxu0 0.0
    %7694 = vmatprep.subr.mxu0 0.0
    %7695 = vmatpush1.msra.mxu0 0.0
    %7696 = vmatprep.subr.mxu0 0.0
    %7697 = vmatpush1.msra.mxu0 0.0
    %7698 = vmatprep.subr.mxu0 0.0
    %7699 = vmatpush1.msra.mxu0 0.0
    %7700 = vmatprep.subr.mxu0 0.0
    %7701 = vmatpush1.msra.mxu0 0.0
    %7702 = vmatprep.subr.mxu0 0.0
    %7703 = vmatpush1.msra.mxu0 0.0
    %7704 = vmatprep.subr.mxu0 0.0
    %7705 = vmatpush1.msra.mxu0 0.0
    %7706 = vmatprep.subr.mxu0 0.0
    %7707 = vmatpush1.msra.mxu0 0.0
    %7708 = vmatprep.subr.mxu0 0.0
    %7709 = vmatpush1.msra.mxu0 0.0
    %7710 = vmatprep.subr.mxu0 0.0
    %7711 = vmatpush1.msra.mxu0 0.0
    %7712 = vmatprep.mubr.f32.mxu0 0.0
    %v7713 = vand.u32 %v7468, 4294901760
    %v7714 = vsub.f32 %v7468, %v7713
    %7715 = vmatmul.mubr.f32.gmra.mrb[0].mxu0 %v7714
    %v7716 = vpop.f32.mrb[0].mxu0
    %v7717 = vadd.f32 %v7637, %v7716
    %v7718 = vpop.f32.mrb[0].mxu0
    %7719 = vdwg.mxu0
    %7720 = vmatprep.subr.mxu0 0.0
    %v7721 = vand.u32 %v4874, 4294901760
    %7722 = vmatpush1.msra.mxu0 %v7721
    %7723 = vmatprep.subr.mxu0 0.0
    %v7724 = vand.u32 %v4875, 4294901760
    %7725 = vmatpush1.msra.mxu0 %v7724
    %7726 = vmatprep.subr.mxu0 0.0
    %v7727 = vand.u32 %v4876, 4294901760
    %7728 = vmatpush1.msra.mxu0 %v7727
    %7729 = vmatprep.subr.mxu0 0.0
    %v7730 = vand.u32 %v4877, 4294901760
    %7731 = vmatpush1.msra.mxu0 %v7730
    %7732 = vmatprep.subr.mxu0 0.0
    %7733 = vmatpush1.msra.mxu0 0.0
    %7734 = vmatprep.subr.mxu0 0.0
    %7735 = vmatpush1.msra.mxu0 0.0
    %7736 = vmatprep.subr.mxu0 0.0
    %7737 = vmatpush1.msra.mxu0 0.0
    %7738 = vmatprep.subr.mxu0 0.0
    %7739 = vmatpush1.msra.mxu0 0.0
    %7740 = vmatprep.subr.mxu0 0.0
    %7741 = vmatpush1.msra.mxu0 0.0
    %7742 = vmatprep.subr.mxu0 0.0
    %7743 = vmatpush1.msra.mxu0 0.0
    %7744 = vmatprep.subr.mxu0 0.0
    %7745 = vmatpush1.msra.mxu0 0.0
    %7746 = vmatprep.subr.mxu0 0.0
    %7747 = vmatpush1.msra.mxu0 0.0
    %7748 = vmatprep.subr.mxu0 0.0
    %7749 = vmatpush1.msra.mxu0 0.0
    %7750 = vmatprep.subr.mxu0 0.0
    %7751 = vmatpush1.msra.mxu0 0.0
    %7752 = vmatprep.subr.mxu0 0.0
    %7753 = vmatpush1.msra.mxu0 0.0
    %7754 = vmatprep.subr.mxu0 0.0
    %7755 = vmatpush1.msra.mxu0 0.0
    %7756 = vmatprep.subr.mxu0 0.0
    %7757 = vmatpush1.msra.mxu0 0.0
    %7758 = vmatprep.subr.mxu0 0.0
    %7759 = vmatpush1.msra.mxu0 0.0
    %7760 = vmatprep.subr.mxu0 0.0
    %7761 = vmatpush1.msra.mxu0 0.0
    %7762 = vmatprep.subr.mxu0 0.0
    %7763 = vmatpush1.msra.mxu0 0.0
    %7764 = vmatprep.subr.mxu0 0.0
    %7765 = vmatpush1.msra.mxu0 0.0
    %7766 = vmatprep.subr.mxu0 0.0
    %7767 = vmatpush1.msra.mxu0 0.0
    %7768 = vmatprep.subr.mxu0 0.0
    %7769 = vmatpush1.msra.mxu0 0.0
    %7770 = vmatprep.subr.mxu0 0.0
    %7771 = vmatpush1.msra.mxu0 0.0
    %7772 = vmatprep.subr.mxu0 0.0
    %7773 = vmatpush1.msra.mxu0 0.0
    %7774 = vmatprep.subr.mxu0 0.0
    %7775 = vmatpush1.msra.mxu0 0.0
    %7776 = vmatprep.subr.mxu0 0.0
    %7777 = vmatpush1.msra.mxu0 0.0
    %7778 = vmatprep.subr.mxu0 0.0
    %7779 = vmatpush1.msra.mxu0 0.0
    %7780 = vmatprep.subr.mxu0 0.0
    %7781 = vmatpush1.msra.mxu0 0.0
    %7782 = vmatprep.subr.mxu0 0.0
    %7783 = vmatpush1.msra.mxu0 0.0
    %7784 = vmatprep.subr.mxu0 0.0
    %7785 = vmatpush1.msra.mxu0 0.0
    %7786 = vmatprep.subr.mxu0 0.0
    %7787 = vmatpush1.msra.mxu0 0.0
    %7788 = vmatprep.mubr.f32.mxu0 0.0
    %v7789 = vand.u32 %v7468, 4294901760
    %v7790 = vsub.f32 %v7468, %v7789
    %v7791 = vand.u32 %v7790, 4294901760
    %7792 = vmatmul.mubr.f32.gmra.mrb[0].mxu0 %v7791
    %v7793 = vpop.f32.mrb[0].mxu0
    %v7794 = vadd.f32 %v7717, %v7793
    %v7795 = vpop.f32.mrb[0].mxu0
    %7796 = vdwg.mxu0
    %7797 = vmatprep.subr.mxu0 0.0
    %v7798 = vand.u32 %v4874, 4294901760
    %v7799 = vsub.f32 %v4874, %v7798
    %v7800 = vand.u32 %v7799, 4294901760
    %7801 = vmatpush1.msra.mxu0 %v7800
    %7802 = vmatprep.subr.mxu0 0.0
    %v7803 = vand.u32 %v4875, 4294901760
    %v7804 = vsub.f32 %v4875, %v7803
    %v7805 = vand.u32 %v7804, 4294901760
    %7806 = vmatpush1.msra.mxu0 %v7805
    %7807 = vmatprep.subr.mxu0 0.0
    %v7808 = vand.u32 %v4876, 4294901760
    %v7809 = vsub.f32 %v4876, %v7808
    %v7810 = vand.u32 %v7809, 4294901760
    %7811 = vmatpush1.msra.mxu0 %v7810
    %7812 = vmatprep.subr.mxu0 0.0
    %v7813 = vand.u32 %v4877, 4294901760
    %v7814 = vsub.f32 %v4877, %v7813
    %v7815 = vand.u32 %v7814, 4294901760
    %7816 = vmatpush1.msra.mxu0 %v7815
    %7817 = vmatprep.subr.mxu0 0.0
    %7818 = vmatpush1.msra.mxu0 0.0
    %7819 = vmatprep.subr.mxu0 0.0
    %7820 = vmatpush1.msra.mxu0 0.0
    %7821 = vmatprep.subr.mxu0 0.0
    %7822 = vmatpush1.msra.mxu0 0.0
    %7823 = vmatprep.subr.mxu0 0.0
    %7824 = vmatpush1.msra.mxu0 0.0
    %7825 = vmatprep.subr.mxu0 0.0
    %7826 = vmatpush1.msra.mxu0 0.0
    %7827 = vmatprep.subr.mxu0 0.0
    %7828 = vmatpush1.msra.mxu0 0.0
    %7829 = vmatprep.subr.mxu0 0.0
    %7830 = vmatpush1.msra.mxu0 0.0
    %7831 = vmatprep.subr.mxu0 0.0
    %7832 = vmatpush1.msra.mxu0 0.0
    %7833 = vmatprep.subr.mxu0 0.0
    %7834 = vmatpush1.msra.mxu0 0.0
    %7835 = vmatprep.subr.mxu0 0.0
    %7836 = vmatpush1.msra.mxu0 0.0
    %7837 = vmatprep.subr.mxu0 0.0
    %7838 = vmatpush1.msra.mxu0 0.0
    %7839 = vmatprep.subr.mxu0 0.0
    %7840 = vmatpush1.msra.mxu0 0.0
    %7841 = vmatprep.subr.mxu0 0.0
    %7842 = vmatpush1.msra.mxu0 0.0
    %7843 = vmatprep.subr.mxu0 0.0
    %7844 = vmatpush1.msra.mxu0 0.0
    %7845 = vmatprep.subr.mxu0 0.0
    %7846 = vmatpush1.msra.mxu0 0.0
    %7847 = vmatprep.subr.mxu0 0.0
    %7848 = vmatpush1.msra.mxu0 0.0
    %7849 = vmatprep.subr.mxu0 0.0
    %7850 = vmatpush1.msra.mxu0 0.0
    %7851 = vmatprep.subr.mxu0 0.0
    %7852 = vmatpush1.msra.mxu0 0.0
    %7853 = vmatprep.subr.mxu0 0.0
    %7854 = vmatpush1.msra.mxu0 0.0
    %7855 = vmatprep.subr.mxu0 0.0
    %7856 = vmatpush1.msra.mxu0 0.0
    %7857 = vmatprep.subr.mxu0 0.0
    %7858 = vmatpush1.msra.mxu0 0.0
    %7859 = vmatprep.subr.mxu0 0.0
    %7860 = vmatpush1.msra.mxu0 0.0
    %7861 = vmatprep.subr.mxu0 0.0
    %7862 = vmatpush1.msra.mxu0 0.0
    %7863 = vmatprep.subr.mxu0 0.0
    %7864 = vmatpush1.msra.mxu0 0.0
    %7865 = vmatprep.subr.mxu0 0.0
    %7866 = vmatpush1.msra.mxu0 0.0
    %7867 = vmatprep.subr.mxu0 0.0
    %7868 = vmatpush1.msra.mxu0 0.0
    %7869 = vmatprep.subr.mxu0 0.0
    %7870 = vmatpush1.msra.mxu0 0.0
    %7871 = vmatprep.subr.mxu0 0.0
    %7872 = vmatpush1.msra.mxu0 0.0
    %7873 = vmatprep.mubr.f32.mxu0 0.0
    %v7874 = vand.u32 %v7468, 4294901760
    %7875 = vmatmul.mubr.f32.gmra.mrb[0].mxu0 %v7874
    %v7876 = vpop.f32.mrb[0].mxu0
    %v7877 = vadd.f32 %v7794, %v7876
    %v7878 = vpop.f32.mrb[0].mxu0
    %7879 = vdwg.mxu0
    %7880 = vmatprep.subr.mxu0 0.0
    %v7881 = vand.u32 %v4874, 4294901760
    %7882 = vmatpush1.msra.mxu0 %v7881
    %7883 = vmatprep.subr.mxu0 0.0
    %v7884 = vand.u32 %v4875, 4294901760
    %7885 = vmatpush1.msra.mxu0 %v7884
    %7886 = vmatprep.subr.mxu0 0.0
    %v7887 = vand.u32 %v4876, 4294901760
    %7888 = vmatpush1.msra.mxu0 %v7887
    %7889 = vmatprep.subr.mxu0 0.0
    %v7890 = vand.u32 %v4877, 4294901760
    %7891 = vmatpush1.msra.mxu0 %v7890
    %7892 = vmatprep.subr.mxu0 0.0
    %7893 = vmatpush1.msra.mxu0 0.0
    %7894 = vmatprep.subr.mxu0 0.0
    %7895 = vmatpush1.msra.mxu0 0.0
    %7896 = vmatprep.subr.mxu0 0.0
    %7897 = vmatpush1.msra.mxu0 0.0
    %7898 = vmatprep.subr.mxu0 0.0
    %7899 = vmatpush1.msra.mxu0 0.0
    %7900 = vmatprep.subr.mxu0 0.0
    %7901 = vmatpush1.msra.mxu0 0.0
    %7902 = vmatprep.subr.mxu0 0.0
    %7903 = vmatpush1.msra.mxu0 0.0
    %7904 = vmatprep.subr.mxu0 0.0
    %7905 = vmatpush1.msra.mxu0 0.0
    %7906 = vmatprep.subr.mxu0 0.0
    %7907 = vmatpush1.msra.mxu0 0.0
    %7908 = vmatprep.subr.mxu0 0.0
    %7909 = vmatpush1.msra.mxu0 0.0
    %7910 = vmatprep.subr.mxu0 0.0
    %7911 = vmatpush1.msra.mxu0 0.0
    %7912 = vmatprep.subr.mxu0 0.0
    %7913 = vmatpush1.msra.mxu0 0.0
    %7914 = vmatprep.subr.mxu0 0.0
    %7915 = vmatpush1.msra.mxu0 0.0
    %7916 = vmatprep.subr.mxu0 0.0
    %7917 = vmatpush1.msra.mxu0 0.0
    %7918 = vmatprep.subr.mxu0 0.0
    %7919 = vmatpush1.msra.mxu0 0.0
    %7920 = vmatprep.subr.mxu0 0.0
    %7921 = vmatpush1.msra.mxu0 0.0
    %7922 = vmatprep.subr.mxu0 0.0
    %7923 = vmatpush1.msra.mxu0 0.0
    %7924 = vmatprep.subr.mxu0 0.0
    %7925 = vmatpush1.msra.mxu0 0.0
    %7926 = vmatprep.subr.mxu0 0.0
    %7927 = vmatpush1.msra.mxu0 0.0
    %7928 = vmatprep.subr.mxu0 0.0
    %7929 = vmatpush1.msra.mxu0 0.0
    %7930 = vmatprep.subr.mxu0 0.0
    %7931 = vmatpush1.msra.mxu0 0.0
    %7932 = vmatprep.subr.mxu0 0.0
    %7933 = vmatpush1.msra.mxu0 0.0
    %7934 = vmatprep.subr.mxu0 0.0
    %7935 = vmatpush1.msra.mxu0 0.0
    %7936 = vmatprep.subr.mxu0 0.0
    %7937 = vmatpush1.msra.mxu0 0.0
    %7938 = vmatprep.subr.mxu0 0.0
    %7939 = vmatpush1.msra.mxu0 0.0
    %7940 = vmatprep.subr.mxu0 0.0
    %7941 = vmatpush1.msra.mxu0 0.0
    %7942 = vmatprep.subr.mxu0 0.0
    %7943 = vmatpush1.msra.mxu0 0.0
    %7944 = vmatprep.subr.mxu0 0.0
    %7945 = vmatpush1.msra.mxu0 0.0
    %7946 = vmatprep.subr.mxu0 0.0
    %7947 = vmatpush1.msra.mxu0 0.0
    %7948 = vmatprep.mubr.f32.mxu0 0.0
    %v7949 = vand.u32 %v7468, 4294901760
    %7950 = vmatmul.mubr.f32.gmra.mrb[0].mxu0 %v7949
    %v7951 = vpop.f32.mrb[0].mxu0
    %v7952 = vadd.f32 %v7877, %v7951
    %v7953 = vpop.f32.mrb[0].mxu0
    %7954 = vdwg.mxu0
    %v7955 = vadd.f32 %v7467, %v7952
    %v7956 = vxor.u32 %v7955, 2147483648
    %v7957 = vmul.f32 %v7956, 1.442695
    %v7958 = vpow.pop %v7957
    %v7959 = vadd.f32 %v7958, 1.0
    %v7960 = vrcp.pop %v7959
    %v7961 = vmul.f32 1.0, %v7960
    %v7962 = vtanh.pop %v7955
    %v7963 = vmul.f32 %v7961, %v7455
    %7965 = vrot.lane.b32.xlu0 %v7962, 64
    %v7966 = vpop.permute.xlu0 %7965
    %v7968 = vmul.f32 %v7961, %v7966
    %7970 = vrot.lane.b32.xlu0 %v7968, 32
    %v7971 = vpop.permute.xlu0 %7970
    %v7973 = vadd.f32 %v7963, %v7971
    %v7974 = vtanh.pop %v7973
    %7976 = vrot.lane.b32.xlu0 %v7974, 64
    %v7977 = vpop.permute.xlu0 %7976
    %v7979 = vmul.f32 %v7961, %v7977
    %7981 = vrot.lane.b32.xlu0 %v7979, 32
    %v7982 = vpop.permute.xlu0 %7981
    %7984 = vst.msk [vmem:[#allocation4 + $0x5] sm:$0x1] %vm5393, %v7982
    %v7985 = vld [vmem:[#allocation3 + $0x6] sm:$0x1]
    %v7986 = vsel %vm554, %v7982, 0
    %7988 = vmatprep.subr.mxu0 0.0
    %v7989 = vand.u32 %v4874, 4294901760
    %7990 = vmatpush1.msra.mxu0 %v7989
    %7991 = vmatprep.subr.mxu0 0.0
    %v7992 = vand.u32 %v4875, 4294901760
    %7993 = vmatpush1.msra.mxu0 %v7992
    %7994 = vmatprep.subr.mxu0 0.0
    %v7995 = vand.u32 %v4876, 4294901760
    %7996 = vmatpush1.msra.mxu0 %v7995
    %7997 = vmatprep.subr.mxu0 0.0
    %v7998 = vand.u32 %v4877, 4294901760
    %7999 = vmatpush1.msra.mxu0 %v7998
    %8000 = vmatprep.subr.mxu0 0.0
    %8001 = vmatpush1.msra.mxu0 0.0
    %8002 = vmatprep.subr.mxu0 0.0
    %8003 = vmatpush1.msra.mxu0 0.0
    %8004 = vmatprep.subr.mxu0 0.0
    %8005 = vmatpush1.msra.mxu0 0.0
    %8006 = vmatprep.subr.mxu0 0.0
    %8007 = vmatpush1.msra.mxu0 0.0
    %8008 = vmatprep.subr.mxu0 0.0
    %8009 = vmatpush1.msra.mxu0 0.0
    %8010 = vmatprep.subr.mxu0 0.0
    %8011 = vmatpush1.msra.mxu0 0.0
    %8012 = vmatprep.subr.mxu0 0.0
    %8013 = vmatpush1.msra.mxu0 0.0
    %8014 = vmatprep.subr.mxu0 0.0
    %8015 = vmatpush1.msra.mxu0 0.0
    %8016 = vmatprep.subr.mxu0 0.0
    %8017 = vmatpush1.msra.mxu0 0.0
    %8018 = vmatprep.subr.mxu0 0.0
    %8019 = vmatpush1.msra.mxu0 0.0
    %8020 = vmatprep.subr.mxu0 0.0
    %8021 = vmatpush1.msra.mxu0 0.0
    %8022 = vmatprep.subr.mxu0 0.0
    %8023 = vmatpush1.msra.mxu0 0.0
    %8024 = vmatprep.subr.mxu0 0.0
    %8025 = vmatpush1.msra.mxu0 0.0
    %8026 = vmatprep.subr.mxu0 0.0
    %8027 = vmatpush1.msra.mxu0 0.0
    %8028 = vmatprep.subr.mxu0 0.0
    %8029 = vmatpush1.msra.mxu0 0.0
    %8030 = vmatprep.subr.mxu0 0.0
    %8031 = vmatpush1.msra.mxu0 0.0
    %8032 = vmatprep.subr.mxu0 0.0
    %8033 = vmatpush1.msra.mxu0 0.0
    %8034 = vmatprep.subr.mxu0 0.0
    %8035 = vmatpush1.msra.mxu0 0.0
    %8036 = vmatprep.subr.mxu0 0.0
    %8037 = vmatpush1.msra.mxu0 0.0
    %8038 = vmatprep.subr.mxu0 0.0
    %8039 = vmatpush1.msra.mxu0 0.0
    %8040 = vmatprep.subr.mxu0 0.0
    %8041 = vmatpush1.msra.mxu0 0.0
    %8042 = vmatprep.subr.mxu0 0.0
    %8043 = vmatpush1.msra.mxu0 0.0
    %8044 = vmatprep.subr.mxu0 0.0
    %8045 = vmatpush1.msra.mxu0 0.0
    %8046 = vmatprep.subr.mxu0 0.0
    %8047 = vmatpush1.msra.mxu0 0.0
    %8048 = vmatprep.subr.mxu0 0.0
    %8049 = vmatpush1.msra.mxu0 0.0
    %8050 = vmatprep.subr.mxu0 0.0
    %8051 = vmatpush1.msra.mxu0 0.0
    %8052 = vmatprep.subr.mxu0 0.0
    %8053 = vmatpush1.msra.mxu0 0.0
    %8054 = vmatprep.subr.mxu0 0.0
    %8055 = vmatpush1.msra.mxu0 0.0
    %8056 = vmatprep.mubr.f32.mxu0 0.0
    %v8057 = vand.u32 %v7986, 4294901760
    %v8058 = vsub.f32 %v7986, %v8057
    %v8059 = vand.u32 %v8058, 4294901760
    %v8060 = vsub.f32 %v8058, %v8059
    %v8061 = vand.u32 %v8060, 4294901760
    %8062 = vmatmul.mubr.f32.gmra.mrb[0].mxu0 %v8061
    %v8063 = vpop.f32.mrb[0].mxu0
    %v8064 = vadd.f32 0.0, %v8063
    %v8065 = vpop.f32.mrb[0].mxu0
    %8066 = vdwg.mxu0
    %8067 = vmatprep.subr.mxu0 0.0
    %v8068 = vand.u32 %v4874, 4294901760
    %v8069 = vsub.f32 %v4874, %v8068
    %v8070 = vand.u32 %v8069, 4294901760
    %v8071 = vsub.f32 %v8069, %v8070
    %v8072 = vand.u32 %v8071, 4294901760
    %8073 = vmatpush1.msra.mxu0 %v8072
    %8074 = vmatprep.subr.mxu0 0.0
    %v8075 = vand.u32 %v4875, 4294901760
    %v8076 = vsub.f32 %v4875, %v8075
    %v8077 = vand.u32 %v8076, 4294901760
    %v8078 = vsub.f32 %v8076, %v8077
    %v8079 = vand.u32 %v8078, 4294901760
    %8080 = vmatpush1.msra.mxu0 %v8079
    %8081 = vmatprep.subr.mxu0 0.0
    %v8082 = vand.u32 %v4876, 4294901760
    %v8083 = vsub.f32 %v4876, %v8082
    %v8084 = vand.u32 %v8083, 4294901760
    %v8085 = vsub.f32 %v8083, %v8084
    %v8086 = vand.u32 %v8085, 4294901760
    %8087 = vmatpush1.msra.mxu0 %v8086
    %8088 = vmatprep.subr.mxu0 0.0
    %v8089 = vand.u32 %v4877, 4294901760
    %v8090 = vsub.f32 %v4877, %v8089
    %v8091 = vand.u32 %v8090, 4294901760
    %v8092 = vsub.f32 %v8090, %v8091
    %v8093 = vand.u32 %v8092, 4294901760
    %8094 = vmatpush1.msra.mxu0 %v8093
    %8095 = vmatprep.subr.mxu0 0.0
    %8096 = vmatpush1.msra.mxu0 0.0
    %8097 = vmatprep.subr.mxu0 0.0
    %8098 = vmatpush1.msra.mxu0 0.0
    %8099 = vmatprep.subr.mxu0 0.0
    %8100 = vmatpush1.msra.mxu0 0.0
    %8101 = vmatprep.subr.mxu0 0.0
    %8102 = vmatpush1.msra.mxu0 0.0
    %8103 = vmatprep.subr.mxu0 0.0
    %8104 = vmatpush1.msra.mxu0 0.0
    %8105 = vmatprep.subr.mxu0 0.0
    %8106 = vmatpush1.msra.mxu0 0.0
    %8107 = vmatprep.subr.mxu0 0.0
    %8108 = vmatpush1.msra.mxu0 0.0
    %8109 = vmatprep.subr.mxu0 0.0
    %8110 = vmatpush1.msra.mxu0 0.0
    %8111 = vmatprep.subr.mxu0 0.0
    %8112 = vmatpush1.msra.mxu0 0.0
    %8113 = vmatprep.subr.mxu0 0.0
    %8114 = vmatpush1.msra.mxu0 0.0
    %8115 = vmatprep.subr.mxu0 0.0
    %8116 = vmatpush1.msra.mxu0 0.0
    %8117 = vmatprep.subr.mxu0 0.0
    %8118 = vmatpush1.msra.mxu0 0.0
    %8119 = vmatprep.subr.mxu0 0.0
    %8120 = vmatpush1.msra.mxu0 0.0
    %8121 = vmatprep.subr.mxu0 0.0
    %8122 = vmatpush1.msra.mxu0 0.0
    %8123 = vmatprep.subr.mxu0 0.0
    %8124 = vmatpush1.msra.mxu0 0.0
    %8125 = vmatprep.subr.mxu0 0.0
    %8126 = vmatpush1.msra.mxu0 0.0
    %8127 = vmatprep.subr.mxu0 0.0
    %8128 = vmatpush1.msra.mxu0 0.0
    %8129 = vmatprep.subr.mxu0 0.0
    %8130 = vmatpush1.msra.mxu0 0.0
    %8131 = vmatprep.subr.mxu0 0.0
    %8132 = vmatpush1.msra.mxu0 0.0
    %8133 = vmatprep.subr.mxu0 0.0
    %8134 = vmatpush1.msra.mxu0 0.0
    %8135 = vmatprep.subr.mxu0 0.0
    %8136 = vmatpush1.msra.mxu0 0.0
    %8137 = vmatprep.subr.mxu0 0.0
    %8138 = vmatpush1.msra.mxu0 0.0
    %8139 = vmatprep.subr.mxu0 0.0
    %8140 = vmatpush1.msra.mxu0 0.0
    %8141 = vmatprep.subr.mxu0 0.0
    %8142 = vmatpush1.msra.mxu0 0.0
    %8143 = vmatprep.subr.mxu0 0.0
    %8144 = vmatpush1.msra.mxu0 0.0
    %8145 = vmatprep.subr.mxu0 0.0
    %8146 = vmatpush1.msra.mxu0 0.0
    %8147 = vmatprep.subr.mxu0 0.0
    %8148 = vmatpush1.msra.mxu0 0.0
    %8149 = vmatprep.subr.mxu0 0.0
    %8150 = vmatpush1.msra.mxu0 0.0
    %8151 = vmatprep.mubr.f32.mxu0 0.0
    %v8152 = vand.u32 %v7986, 4294901760
    %8153 = vmatmul.mubr.f32.gmra.mrb[0].mxu0 %v8152
    %v8154 = vpop.f32.mrb[0].mxu0
    %v8155 = vadd.f32 %v8064, %v8154
    %v8156 = vpop.f32.mrb[0].mxu0
    %8157 = vdwg.mxu0
    %8158 = vmatprep.subr.mxu0 0.0
    %v8159 = vand.u32 %v4874, 4294901760
    %v8160 = vsub.f32 %v4874, %v8159
    %8161 = vmatpush1.msra.mxu0 %v8160
    %8162 = vmatprep.subr.mxu0 0.0
    %v8163 = vand.u32 %v4875, 4294901760
    %v8164 = vsub.f32 %v4875, %v8163
    %8165 = vmatpush1.msra.mxu0 %v8164
    %8166 = vmatprep.subr.mxu0 0.0
    %v8167 = vand.u32 %v4876, 4294901760
    %v8168 = vsub.f32 %v4876, %v8167
    %8169 = vmatpush1.msra.mxu0 %v8168
    %8170 = vmatprep.subr.mxu0 0.0
    %v8171 = vand.u32 %v4877, 4294901760
    %v8172 = vsub.f32 %v4877, %v8171
    %8173 = vmatpush1.msra.mxu0 %v8172
    %8174 = vmatprep.subr.mxu0 0.0
    %8175 = vmatpush1.msra.mxu0 0.0
    %8176 = vmatprep.subr.mxu0 0.0
    %8177 = vmatpush1.msra.mxu0 0.0
    %8178 = vmatprep.subr.mxu0 0.0
    %8179 = vmatpush1.msra.mxu0 0.0
    %8180 = vmatprep.subr.mxu0 0.0
    %8181 = vmatpush1.msra.mxu0 0.0
    %8182 = vmatprep.subr.mxu0 0.0
    %8183 = vmatpush1.msra.mxu0 0.0
    %8184 = vmatprep.subr.mxu0 0.0
    %8185 = vmatpush1.msra.mxu0 0.0
    %8186 = vmatprep.subr.mxu0 0.0
    %8187 = vmatpush1.msra.mxu0 0.0
    %8188 = vmatprep.subr.mxu0 0.0
    %8189 = vmatpush1.msra.mxu0 0.0
    %8190 = vmatprep.subr.mxu0 0.0
    %8191 = vmatpush1.msra.mxu0 0.0
    %8192 = vmatprep.subr.mxu0 0.0
    %8193 = vmatpush1.msra.mxu0 0.0
    %8194 = vmatprep.subr.mxu0 0.0
    %8195 = vmatpush1.msra.mxu0 0.0
    %8196 = vmatprep.subr.mxu0 0.0
    %8197 = vmatpush1.msra.mxu0 0.0
    %8198 = vmatprep.subr.mxu0 0.0
    %8199 = vmatpush1.msra.mxu0 0.0
    %8200 = vmatprep.subr.mxu0 0.0
    %8201 = vmatpush1.msra.mxu0 0.0
    %8202 = vmatprep.subr.mxu0 0.0
    %8203 = vmatpush1.msra.mxu0 0.0
    %8204 = vmatprep.subr.mxu0 0.0
    %8205 = vmatpush1.msra.mxu0 0.0
    %8206 = vmatprep.subr.mxu0 0.0
    %8207 = vmatpush1.msra.mxu0 0.0
    %8208 = vmatprep.subr.mxu0 0.0
    %8209 = vmatpush1.msra.mxu0 0.0
    %8210 = vmatprep.subr.mxu0 0.0
    %8211 = vmatpush1.msra.mxu0 0.0
    %8212 = vmatprep.subr.mxu0 0.0
    %8213 = vmatpush1.msra.mxu0 0.0
    %8214 = vmatprep.subr.mxu0 0.0
    %8215 = vmatpush1.msra.mxu0 0.0
    %8216 = vmatprep.subr.mxu0 0.0
    %8217 = vmatpush1.msra.mxu0 0.0
    %8218 = vmatprep.subr.mxu0 0.0
    %8219 = vmatpush1.msra.mxu0 0.0
    %8220 = vmatprep.subr.mxu0 0.0
    %8221 = vmatpush1.msra.mxu0 0.0
    %8222 = vmatprep.subr.mxu0 0.0
    %8223 = vmatpush1.msra.mxu0 0.0
    %8224 = vmatprep.subr.mxu0 0.0
    %8225 = vmatpush1.msra.mxu0 0.0
    %8226 = vmatprep.subr.mxu0 0.0
    %8227 = vmatpush1.msra.mxu0 0.0
    %8228 = vmatprep.subr.mxu0 0.0
    %8229 = vmatpush1.msra.mxu0 0.0
    %8230 = vmatprep.mubr.f32.mxu0 0.0
    %v8231 = vand.u32 %v7986, 4294901760
    %v8232 = vsub.f32 %v7986, %v8231
    %8233 = vmatmul.mubr.f32.gmra.mrb[0].mxu0 %v8232
    %v8234 = vpop.f32.mrb[0].mxu0
    %v8235 = vadd.f32 %v8155, %v8234
    %v8236 = vpop.f32.mrb[0].mxu0
    %8237 = vdwg.mxu0
    %8238 = vmatprep.subr.mxu0 0.0
    %v8239 = vand.u32 %v4874, 4294901760
    %8240 = vmatpush1.msra.mxu0 %v8239
    %8241 = vmatprep.subr.mxu0 0.0
    %v8242 = vand.u32 %v4875, 4294901760
    %8243 = vmatpush1.msra.mxu0 %v8242
    %8244 = vmatprep.subr.mxu0 0.0
    %v8245 = vand.u32 %v4876, 4294901760
    %8246 = vmatpush1.msra.mxu0 %v8245
    %8247 = vmatprep.subr.mxu0 0.0
    %v8248 = vand.u32 %v4877, 4294901760
    %8249 = vmatpush1.msra.mxu0 %v8248
    %8250 = vmatprep.subr.mxu0 0.0
    %8251 = vmatpush1.msra.mxu0 0.0
    %8252 = vmatprep.subr.mxu0 0.0
    %8253 = vmatpush1.msra.mxu0 0.0
    %8254 = vmatprep.subr.mxu0 0.0
    %8255 = vmatpush1.msra.mxu0 0.0
    %8256 = vmatprep.subr.mxu0 0.0
    %8257 = vmatpush1.msra.mxu0 0.0
    %8258 = vmatprep.subr.mxu0 0.0
    %8259 = vmatpush1.msra.mxu0 0.0
    %8260 = vmatprep.subr.mxu0 0.0
    %8261 = vmatpush1.msra.mxu0 0.0
    %8262 = vmatprep.subr.mxu0 0.0
    %8263 = vmatpush1.msra.mxu0 0.0
    %8264 = vmatprep.subr.mxu0 0.0
    %8265 = vmatpush1.msra.mxu0 0.0
    %8266 = vmatprep.subr.mxu0 0.0
    %8267 = vmatpush1.msra.mxu0 0.0
    %8268 = vmatprep.subr.mxu0 0.0
    %8269 = vmatpush1.msra.mxu0 0.0
    %8270 = vmatprep.subr.mxu0 0.0
    %8271 = vmatpush1.msra.mxu0 0.0
    %8272 = vmatprep.subr.mxu0 0.0
    %8273 = vmatpush1.msra.mxu0 0.0
    %8274 = vmatprep.subr.mxu0 0.0
    %8275 = vmatpush1.msra.mxu0 0.0
    %8276 = vmatprep.subr.mxu0 0.0
    %8277 = vmatpush1.msra.mxu0 0.0
    %8278 = vmatprep.subr.mxu0 0.0
    %8279 = vmatpush1.msra.mxu0 0.0
    %8280 = vmatprep.subr.mxu0 0.0
    %8281 = vmatpush1.msra.mxu0 0.0
    %8282 = vmatprep.subr.mxu0 0.0
    %8283 = vmatpush1.msra.mxu0 0.0
    %8284 = vmatprep.subr.mxu0 0.0
    %8285 = vmatpush1.msra.mxu0 0.0
    %8286 = vmatprep.subr.mxu0 0.0
    %8287 = vmatpush1.msra.mxu0 0.0
    %8288 = vmatprep.subr.mxu0 0.0
    %8289 = vmatpush1.msra.mxu0 0.0
    %8290 = vmatprep.subr.mxu0 0.0
    %8291 = vmatpush1.msra.mxu0 0.0
    %8292 = vmatprep.subr.mxu0 0.0
    %8293 = vmatpush1.msra.mxu0 0.0
    %8294 = vmatprep.subr.mxu0 0.0
    %8295 = vmatpush1.msra.mxu0 0.0
    %8296 = vmatprep.subr.mxu0 0.0
    %8297 = vmatpush1.msra.mxu0 0.0
    %8298 = vmatprep.subr.mxu0 0.0
    %8299 = vmatpush1.msra.mxu0 0.0
    %8300 = vmatprep.subr.mxu0 0.0
    %8301 = vmatpush1.msra.mxu0 0.0
    %8302 = vmatprep.subr.mxu0 0.0
    %8303 = vmatpush1.msra.mxu0 0.0
    %8304 = vmatprep.subr.mxu0 0.0
    %8305 = vmatpush1.msra.mxu0 0.0
    %8306 = vmatprep.mubr.f32.mxu0 0.0
    %v8307 = vand.u32 %v7986, 4294901760
    %v8308 = vsub.f32 %v7986, %v8307
    %v8309 = vand.u32 %v8308, 4294901760
    %8310 = vmatmul.mubr.f32.gmra.mrb[0].mxu0 %v8309
    %v8311 = vpop.f32.mrb[0].mxu0
    %v8312 = vadd.f32 %v8235, %v8311
    %v8313 = vpop.f32.mrb[0].mxu0
    %8314 = vdwg.mxu0
    %8315 = vmatprep.subr.mxu0 0.0
    %v8316 = vand.u32 %v4874, 4294901760
    %v8317 = vsub.f32 %v4874, %v8316
    %v8318 = vand.u32 %v8317, 4294901760
    %8319 = vmatpush1.msra.mxu0 %v8318
    %8320 = vmatprep.subr.mxu0 0.0
    %v8321 = vand.u32 %v4875, 4294901760
    %v8322 = vsub.f32 %v4875, %v8321
    %v8323 = vand.u32 %v8322, 4294901760
    %8324 = vmatpush1.msra.mxu0 %v8323
    %8325 = vmatprep.subr.mxu0 0.0
    %v8326 = vand.u32 %v4876, 4294901760
    %v8327 = vsub.f32 %v4876, %v8326
    %v8328 = vand.u32 %v8327, 4294901760
    %8329 = vmatpush1.msra.mxu0 %v8328
    %8330 = vmatprep.subr.mxu0 0.0
    %v8331 = vand.u32 %v4877, 4294901760
    %v8332 = vsub.f32 %v4877, %v8331
    %v8333 = vand.u32 %v8332, 4294901760
    %8334 = vmatpush1.msra.mxu0 %v8333
    %8335 = vmatprep.subr.mxu0 0.0
    %8336 = vmatpush1.msra.mxu0 0.0
    %8337 = vmatprep.subr.mxu0 0.0
    %8338 = vmatpush1.msra.mxu0 0.0
    %8339 = vmatprep.subr.mxu0 0.0
    %8340 = vmatpush1.msra.mxu0 0.0
    %8341 = vmatprep.subr.mxu0 0.0
    %8342 = vmatpush1.msra.mxu0 0.0
    %8343 = vmatprep.subr.mxu0 0.0
    %8344 = vmatpush1.msra.mxu0 0.0
    %8345 = vmatprep.subr.mxu0 0.0
    %8346 = vmatpush1.msra.mxu0 0.0
    %8347 = vmatprep.subr.mxu0 0.0
    %8348 = vmatpush1.msra.mxu0 0.0
    %8349 = vmatprep.subr.mxu0 0.0
    %8350 = vmatpush1.msra.mxu0 0.0
    %8351 = vmatprep.subr.mxu0 0.0
    %8352 = vmatpush1.msra.mxu0 0.0
    %8353 = vmatprep.subr.mxu0 0.0
    %8354 = vmatpush1.msra.mxu0 0.0
    %8355 = vmatprep.subr.mxu0 0.0
    %8356 = vmatpush1.msra.mxu0 0.0
    %8357 = vmatprep.subr.mxu0 0.0
    %8358 = vmatpush1.msra.mxu0 0.0
    %8359 = vmatprep.subr.mxu0 0.0
    %8360 = vmatpush1.msra.mxu0 0.0
    %8361 = vmatprep.subr.mxu0 0.0
    %8362 = vmatpush1.msra.mxu0 0.0
    %8363 = vmatprep.subr.mxu0 0.0
    %8364 = vmatpush1.msra.mxu0 0.0
    %8365 = vmatprep.subr.mxu0 0.0
    %8366 = vmatpush1.msra.mxu0 0.0
    %8367 = vmatprep.subr.mxu0 0.0
    %8368 = vmatpush1.msra.mxu0 0.0
    %8369 = vmatprep.subr.mxu0 0.0
    %8370 = vmatpush1.msra.mxu0 0.0
    %8371 = vmatprep.subr.mxu0 0.0
    %8372 = vmatpush1.msra.mxu0 0.0
    %8373 = vmatprep.subr.mxu0 0.0
    %8374 = vmatpush1.msra.mxu0 0.0
    %8375 = vmatprep.subr.mxu0 0.0
    %8376 = vmatpush1.msra.mxu0 0.0
    %8377 = vmatprep.subr.mxu0 0.0
    %8378 = vmatpush1.msra.mxu0 0.0
    %8379 = vmatprep.subr.mxu0 0.0
    %8380 = vmatpush1.msra.mxu0 0.0
    %8381 = vmatprep.subr.mxu0 0.0
    %8382 = vmatpush1.msra.mxu0 0.0
    %8383 = vmatprep.subr.mxu0 0.0
    %8384 = vmatpush1.msra.mxu0 0.0
    %8385 = vmatprep.subr.mxu0 0.0
    %8386 = vmatpush1.msra.mxu0 0.0
    %8387 = vmatprep.subr.mxu0 0.0
    %8388 = vmatpush1.msra.mxu0 0.0
    %8389 = vmatprep.subr.mxu0 0.0
    %8390 = vmatpush1.msra.mxu0 0.0
    %8391 = vmatprep.mubr.f32.mxu0 0.0
    %v8392 = vand.u32 %v7986, 4294901760
    %8393 = vmatmul.mubr.f32.gmra.mrb[0].mxu0 %v8392
    %v8394 = vpop.f32.mrb[0].mxu0
    %v8395 = vadd.f32 %v8312, %v8394
    %v8396 = vpop.f32.mrb[0].mxu0
    %8397 = vdwg.mxu0
    %8398 = vmatprep.subr.mxu0 0.0
    %v8399 = vand.u32 %v4874, 4294901760
    %8400 = vmatpush1.msra.mxu0 %v8399
    %8401 = vmatprep.subr.mxu0 0.0
    %v8402 = vand.u32 %v4875, 4294901760
    %8403 = vmatpush1.msra.mxu0 %v8402
    %8404 = vmatprep.subr.mxu0 0.0
    %v8405 = vand.u32 %v4876, 4294901760
    %8406 = vmatpush1.msra.mxu0 %v8405
    %8407 = vmatprep.subr.mxu0 0.0
    %v8408 = vand.u32 %v4877, 4294901760
    %8409 = vmatpush1.msra.mxu0 %v8408
    %8410 = vmatprep.subr.mxu0 0.0
    %8411 = vmatpush1.msra.mxu0 0.0
    %8412 = vmatprep.subr.mxu0 0.0
    %8413 = vmatpush1.msra.mxu0 0.0
    %8414 = vmatprep.subr.mxu0 0.0
    %8415 = vmatpush1.msra.mxu0 0.0
    %8416 = vmatprep.subr.mxu0 0.0
    %8417 = vmatpush1.msra.mxu0 0.0
    %8418 = vmatprep.subr.mxu0 0.0
    %8419 = vmatpush1.msra.mxu0 0.0
    %8420 = vmatprep.subr.mxu0 0.0
    %8421 = vmatpush1.msra.mxu0 0.0
    %8422 = vmatprep.subr.mxu0 0.0
    %8423 = vmatpush1.msra.mxu0 0.0
    %8424 = vmatprep.subr.mxu0 0.0
    %8425 = vmatpush1.msra.mxu0 0.0
    %8426 = vmatprep.subr.mxu0 0.0
    %8427 = vmatpush1.msra.mxu0 0.0
    %8428 = vmatprep.subr.mxu0 0.0
    %8429 = vmatpush1.msra.mxu0 0.0
    %8430 = vmatprep.subr.mxu0 0.0
    %8431 = vmatpush1.msra.mxu0 0.0
    %8432 = vmatprep.subr.mxu0 0.0
    %8433 = vmatpush1.msra.mxu0 0.0
    %8434 = vmatprep.subr.mxu0 0.0
    %8435 = vmatpush1.msra.mxu0 0.0
    %8436 = vmatprep.subr.mxu0 0.0
    %8437 = vmatpush1.msra.mxu0 0.0
    %8438 = vmatprep.subr.mxu0 0.0
    %8439 = vmatpush1.msra.mxu0 0.0
    %8440 = vmatprep.subr.mxu0 0.0
    %8441 = vmatpush1.msra.mxu0 0.0
    %8442 = vmatprep.subr.mxu0 0.0
    %8443 = vmatpush1.msra.mxu0 0.0
    %8444 = vmatprep.subr.mxu0 0.0
    %8445 = vmatpush1.msra.mxu0 0.0
    %8446 = vmatprep.subr.mxu0 0.0
    %8447 = vmatpush1.msra.mxu0 0.0
    %8448 = vmatprep.subr.mxu0 0.0
    %8449 = vmatpush1.msra.mxu0 0.0
    %8450 = vmatprep.subr.mxu0 0.0
    %8451 = vmatpush1.msra.mxu0 0.0
    %8452 = vmatprep.subr.mxu0 0.0
    %8453 = vmatpush1.msra.mxu0 0.0
    %8454 = vmatprep.subr.mxu0 0.0
    %8455 = vmatpush1.msra.mxu0 0.0
    %8456 = vmatprep.subr.mxu0 0.0
    %8457 = vmatpush1.msra.mxu0 0.0
    %8458 = vmatprep.subr.mxu0 0.0
    %8459 = vmatpush1.msra.mxu0 0.0
    %8460 = vmatprep.subr.mxu0 0.0
    %8461 = vmatpush1.msra.mxu0 0.0
    %8462 = vmatprep.subr.mxu0 0.0
    %8463 = vmatpush1.msra.mxu0 0.0
    %8464 = vmatprep.subr.mxu0 0.0
    %8465 = vmatpush1.msra.mxu0 0.0
    %8466 = vmatprep.mubr.f32.mxu0 0.0
    %v8467 = vand.u32 %v7986, 4294901760
    %8468 = vmatmul.mubr.f32.gmra.mrb[0].mxu0 %v8467
    %v8469 = vpop.f32.mrb[0].mxu0
    %v8470 = vadd.f32 %v8395, %v8469
    %v8471 = vpop.f32.mrb[0].mxu0
    %8472 = vdwg.mxu0
    %v8473 = vadd.f32 %v7985, %v8470
    %v8474 = vxor.u32 %v8473, 2147483648
    %v8475 = vmul.f32 %v8474, 1.442695
    %v8476 = vpow.pop %v8475
    %v8477 = vadd.f32 %v8476, 1.0
    %v8478 = vrcp.pop %v8477
    %v8479 = vmul.f32 1.0, %v8478
    %v8480 = vtanh.pop %v8473
    %v8481 = vmul.f32 %v8479, %v7973
    %8483 = vrot.lane.b32.xlu0 %v8480, 64
    %v8484 = vpop.permute.xlu0 %8483
    %v8486 = vmul.f32 %v8479, %v8484
    %8488 = vrot.lane.b32.xlu0 %v8486, 32
    %v8489 = vpop.permute.xlu0 %8488
    %v8491 = vadd.f32 %v8481, %v8489
    %v8492 = vtanh.pop %v8491
    %8494 = vrot.lane.b32.xlu0 %v8492, 64
    %v8495 = vpop.permute.xlu0 %8494
    %v8497 = vmul.f32 %v8479, %v8495
    %8499 = vrot.lane.b32.xlu0 %v8497, 32
    %v8500 = vpop.permute.xlu0 %8499
    %8502 = vst.msk [vmem:[#allocation4 + $0x6] sm:$0x1] %vm5393, %v8500
    %v8503 = vld [vmem:[#allocation3 + $0x7] sm:$0x1]
    %v8504 = vsel %vm554, %v8500, 0
    %8506 = vmatprep.subr.mxu0 0.0
    %v8507 = vand.u32 %v4874, 4294901760
    %8508 = vmatpush1.msra.mxu0 %v8507
    %8509 = vmatprep.subr.mxu0 0.0
    %v8510 = vand.u32 %v4875, 4294901760
    %8511 = vmatpush1.msra.mxu0 %v8510
    %8512 = vmatprep.subr.mxu0 0.0
    %v8513 = vand.u32 %v4876, 4294901760
    %8514 = vmatpush1.msra.mxu0 %v8513
    %8515 = vmatprep.subr.mxu0 0.0
    %v8516 = vand.u32 %v4877, 4294901760
    %8517 = vmatpush1.msra.mxu0 %v8516
    %8518 = vmatprep.subr.mxu0 0.0
    %8519 = vmatpush1.msra.mxu0 0.0
    %8520 = vmatprep.subr.mxu0 0.0
    %8521 = vmatpush1.msra.mxu0 0.0
    %8522 = vmatprep.subr.mxu0 0.0
    %8523 = vmatpush1.msra.mxu0 0.0
    %8524 = vmatprep.subr.mxu0 0.0
    %8525 = vmatpush1.msra.mxu0 0.0
    %8526 = vmatprep.subr.mxu0 0.0
    %8527 = vmatpush1.msra.mxu0 0.0
    %8528 = vmatprep.subr.mxu0 0.0
    %8529 = vmatpush1.msra.mxu0 0.0
    %8530 = vmatprep.subr.mxu0 0.0
    %8531 = vmatpush1.msra.mxu0 0.0
    %8532 = vmatprep.subr.mxu0 0.0
    %8533 = vmatpush1.msra.mxu0 0.0
    %8534 = vmatprep.subr.mxu0 0.0
    %8535 = vmatpush1.msra.mxu0 0.0
    %8536 = vmatprep.subr.mxu0 0.0
    %8537 = vmatpush1.msra.mxu0 0.0
    %8538 = vmatprep.subr.mxu0 0.0
    %8539 = vmatpush1.msra.mxu0 0.0
    %8540 = vmatprep.subr.mxu0 0.0
    %8541 = vmatpush1.msra.mxu0 0.0
    %8542 = vmatprep.subr.mxu0 0.0
    %8543 = vmatpush1.msra.mxu0 0.0
    %8544 = vmatprep.subr.mxu0 0.0
    %8545 = vmatpush1.msra.mxu0 0.0
    %8546 = vmatprep.subr.mxu0 0.0
    %8547 = vmatpush1.msra.mxu0 0.0
    %8548 = vmatprep.subr.mxu0 0.0
    %8549 = vmatpush1.msra.mxu0 0.0
    %8550 = vmatprep.subr.mxu0 0.0
    %8551 = vmatpush1.msra.mxu0 0.0
    %8552 = vmatprep.subr.mxu0 0.0
    %8553 = vmatpush1.msra.mxu0 0.0
    %8554 = vmatprep.subr.mxu0 0.0
    %8555 = vmatpush1.msra.mxu0 0.0
    %8556 = vmatprep.subr.mxu0 0.0
    %8557 = vmatpush1.msra.mxu0 0.0
    %8558 = vmatprep.subr.mxu0 0.0
    %8559 = vmatpush1.msra.mxu0 0.0
    %8560 = vmatprep.subr.mxu0 0.0
    %8561 = vmatpush1.msra.mxu0 0.0
    %8562 = vmatprep.subr.mxu0 0.0
    %8563 = vmatpush1.msra.mxu0 0.0
    %8564 = vmatprep.subr.mxu0 0.0
    %8565 = vmatpush1.msra.mxu0 0.0
    %8566 = vmatprep.subr.mxu0 0.0
    %8567 = vmatpush1.msra.mxu0 0.0
    %8568 = vmatprep.subr.mxu0 0.0
    %8569 = vmatpush1.msra.mxu0 0.0
    %8570 = vmatprep.subr.mxu0 0.0
    %8571 = vmatpush1.msra.mxu0 0.0
    %8572 = vmatprep.subr.mxu0 0.0
    %8573 = vmatpush1.msra.mxu0 0.0
    %8574 = vmatprep.mubr.f32.mxu0 0.0
    %v8575 = vand.u32 %v8504, 4294901760
    %v8576 = vsub.f32 %v8504, %v8575
    %v8577 = vand.u32 %v8576, 4294901760
    %v8578 = vsub.f32 %v8576, %v8577
    %v8579 = vand.u32 %v8578, 4294901760
    %8580 = vmatmul.mubr.f32.gmra.mrb[0].mxu0 %v8579
    %v8581 = vpop.f32.mrb[0].mxu0
    %v8582 = vadd.f32 0.0, %v8581
    %v8583 = vpop.f32.mrb[0].mxu0
    %8584 = vdwg.mxu0
    %8585 = vmatprep.subr.mxu0 0.0
    %v8586 = vand.u32 %v4874, 4294901760
    %v8587 = vsub.f32 %v4874, %v8586
    %v8588 = vand.u32 %v8587, 4294901760
    %v8589 = vsub.f32 %v8587, %v8588
    %v8590 = vand.u32 %v8589, 4294901760
    %8591 = vmatpush1.msra.mxu0 %v8590
    %8592 = vmatprep.subr.mxu0 0.0
    %v8593 = vand.u32 %v4875, 4294901760
    %v8594 = vsub.f32 %v4875, %v8593
    %v8595 = vand.u32 %v8594, 4294901760
    %v8596 = vsub.f32 %v8594, %v8595
    %v8597 = vand.u32 %v8596, 4294901760
    %8598 = vmatpush1.msra.mxu0 %v8597
    %8599 = vmatprep.subr.mxu0 0.0
    %v8600 = vand.u32 %v4876, 4294901760
    %v8601 = vsub.f32 %v4876, %v8600
    %v8602 = vand.u32 %v8601, 4294901760
    %v8603 = vsub.f32 %v8601, %v8602
    %v8604 = vand.u32 %v8603, 4294901760
    %8605 = vmatpush1.msra.mxu0 %v8604
    %8606 = vmatprep.subr.mxu0 0.0
    %v8607 = vand.u32 %v4877, 4294901760
    %v8608 = vsub.f32 %v4877, %v8607
    %v8609 = vand.u32 %v8608, 4294901760
    %v8610 = vsub.f32 %v8608, %v8609
    %v8611 = vand.u32 %v8610, 4294901760
    %8612 = vmatpush1.msra.mxu0 %v8611
    %8613 = vmatprep.subr.mxu0 0.0
    %8614 = vmatpush1.msra.mxu0 0.0
    %8615 = vmatprep.subr.mxu0 0.0
    %8616 = vmatpush1.msra.mxu0 0.0
    %8617 = vmatprep.subr.mxu0 0.0
    %8618 = vmatpush1.msra.mxu0 0.0
    %8619 = vmatprep.subr.mxu0 0.0
    %8620 = vmatpush1.msra.mxu0 0.0
    %8621 = vmatprep.subr.mxu0 0.0
    %8622 = vmatpush1.msra.mxu0 0.0
    %8623 = vmatprep.subr.mxu0 0.0
    %8624 = vmatpush1.msra.mxu0 0.0
    %8625 = vmatprep.subr.mxu0 0.0
    %8626 = vmatpush1.msra.mxu0 0.0
    %8627 = vmatprep.subr.mxu0 0.0
    %8628 = vmatpush1.msra.mxu0 0.0
    %8629 = vmatprep.subr.mxu0 0.0
    %8630 = vmatpush1.msra.mxu0 0.0
    %8631 = vmatprep.subr.mxu0 0.0
    %8632 = vmatpush1.msra.mxu0 0.0
    %8633 = vmatprep.subr.mxu0 0.0
    %8634 = vmatpush1.msra.mxu0 0.0
    %8635 = vmatprep.subr.mxu0 0.0
    %8636 = vmatpush1.msra.mxu0 0.0
    %8637 = vmatprep.subr.mxu0 0.0
    %8638 = vmatpush1.msra.mxu0 0.0
    %8639 = vmatprep.subr.mxu0 0.0
    %8640 = vmatpush1.msra.mxu0 0.0
    %8641 = vmatprep.subr.mxu0 0.0
    %8642 = vmatpush1.msra.mxu0 0.0
    %8643 = vmatprep.subr.mxu0 0.0
    %8644 = vmatpush1.msra.mxu0 0.0
    %8645 = vmatprep.subr.mxu0 0.0
    %8646 = vmatpush1.msra.mxu0 0.0
    %8647 = vmatprep.subr.mxu0 0.0
    %8648 = vmatpush1.msra.mxu0 0.0
    %8649 = vmatprep.subr.mxu0 0.0
    %8650 = vmatpush1.msra.mxu0 0.0
    %8651 = vmatprep.subr.mxu0 0.0
    %8652 = vmatpush1.msra.mxu0 0.0
    %8653 = vmatprep.subr.mxu0 0.0
    %8654 = vmatpush1.msra.mxu0 0.0
    %8655 = vmatprep.subr.mxu0 0.0
    %8656 = vmatpush1.msra.mxu0 0.0
    %8657 = vmatprep.subr.mxu0 0.0
    %8658 = vmatpush1.msra.mxu0 0.0
    %8659 = vmatprep.subr.mxu0 0.0
    %8660 = vmatpush1.msra.mxu0 0.0
    %8661 = vmatprep.subr.mxu0 0.0
    %8662 = vmatpush1.msra.mxu0 0.0
    %8663 = vmatprep.subr.mxu0 0.0
    %8664 = vmatpush1.msra.mxu0 0.0
    %8665 = vmatprep.subr.mxu0 0.0
    %8666 = vmatpush1.msra.mxu0 0.0
    %8667 = vmatprep.subr.mxu0 0.0
    %8668 = vmatpush1.msra.mxu0 0.0
    %8669 = vmatprep.mubr.f32.mxu0 0.0
    %v8670 = vand.u32 %v8504, 4294901760
    %8671 = vmatmul.mubr.f32.gmra.mrb[0].mxu0 %v8670
    %v8672 = vpop.f32.mrb[0].mxu0
    %v8673 = vadd.f32 %v8582, %v8672
    %v8674 = vpop.f32.mrb[0].mxu0
    %8675 = vdwg.mxu0
    %8676 = vmatprep.subr.mxu0 0.0
    %v8677 = vand.u32 %v4874, 4294901760
    %v8678 = vsub.f32 %v4874, %v8677
    %8679 = vmatpush1.msra.mxu0 %v8678
    %8680 = vmatprep.subr.mxu0 0.0
    %v8681 = vand.u32 %v4875, 4294901760
    %v8682 = vsub.f32 %v4875, %v8681
    %8683 = vmatpush1.msra.mxu0 %v8682
    %8684 = vmatprep.subr.mxu0 0.0
    %v8685 = vand.u32 %v4876, 4294901760
    %v8686 = vsub.f32 %v4876, %v8685
    %8687 = vmatpush1.msra.mxu0 %v8686
    %8688 = vmatprep.subr.mxu0 0.0
    %v8689 = vand.u32 %v4877, 4294901760
    %v8690 = vsub.f32 %v4877, %v8689
    %8691 = vmatpush1.msra.mxu0 %v8690
    %8692 = vmatprep.subr.mxu0 0.0
    %8693 = vmatpush1.msra.mxu0 0.0
    %8694 = vmatprep.subr.mxu0 0.0
    %8695 = vmatpush1.msra.mxu0 0.0
    %8696 = vmatprep.subr.mxu0 0.0
    %8697 = vmatpush1.msra.mxu0 0.0
    %8698 = vmatprep.subr.mxu0 0.0
    %8699 = vmatpush1.msra.mxu0 0.0
    %8700 = vmatprep.subr.mxu0 0.0
    %8701 = vmatpush1.msra.mxu0 0.0
    %8702 = vmatprep.subr.mxu0 0.0
    %8703 = vmatpush1.msra.mxu0 0.0
    %8704 = vmatprep.subr.mxu0 0.0
    %8705 = vmatpush1.msra.mxu0 0.0
    %8706 = vmatprep.subr.mxu0 0.0
    %8707 = vmatpush1.msra.mxu0 0.0
    %8708 = vmatprep.subr.mxu0 0.0
    %8709 = vmatpush1.msra.mxu0 0.0
    %8710 = vmatprep.subr.mxu0 0.0
    %8711 = vmatpush1.msra.mxu0 0.0
    %8712 = vmatprep.subr.mxu0 0.0
    %8713 = vmatpush1.msra.mxu0 0.0
    %8714 = vmatprep.subr.mxu0 0.0
    %8715 = vmatpush1.msra.mxu0 0.0
    %8716 = vmatprep.subr.mxu0 0.0
    %8717 = vmatpush1.msra.mxu0 0.0
    %8718 = vmatprep.subr.mxu0 0.0
    %8719 = vmatpush1.msra.mxu0 0.0
    %8720 = vmatprep.subr.mxu0 0.0
    %8721 = vmatpush1.msra.mxu0 0.0
    %8722 = vmatprep.subr.mxu0 0.0
    %8723 = vmatpush1.msra.mxu0 0.0
    %8724 = vmatprep.subr.mxu0 0.0
    %8725 = vmatpush1.msra.mxu0 0.0
    %8726 = vmatprep.subr.mxu0 0.0
    %8727 = vmatpush1.msra.mxu0 0.0
    %8728 = vmatprep.subr.mxu0 0.0
    %8729 = vmatpush1.msra.mxu0 0.0
    %8730 = vmatprep.subr.mxu0 0.0
    %8731 = vmatpush1.msra.mxu0 0.0
    %8732 = vmatprep.subr.mxu0 0.0
    %8733 = vmatpush1.msra.mxu0 0.0
    %8734 = vmatprep.subr.mxu0 0.0
    %8735 = vmatpush1.msra.mxu0 0.0
    %8736 = vmatprep.subr.mxu0 0.0
    %8737 = vmatpush1.msra.mxu0 0.0
    %8738 = vmatprep.subr.mxu0 0.0
    %8739 = vmatpush1.msra.mxu0 0.0
    %8740 = vmatprep.subr.mxu0 0.0
    %8741 = vmatpush1.msra.mxu0 0.0
    %8742 = vmatprep.subr.mxu0 0.0
    %8743 = vmatpush1.msra.mxu0 0.0
    %8744 = vmatprep.subr.mxu0 0.0
    %8745 = vmatpush1.msra.mxu0 0.0
    %8746 = vmatprep.subr.mxu0 0.0
    %8747 = vmatpush1.msra.mxu0 0.0
    %8748 = vmatprep.mubr.f32.mxu0 0.0
    %v8749 = vand.u32 %v8504, 4294901760
    %v8750 = vsub.f32 %v8504, %v8749
    %8751 = vmatmul.mubr.f32.gmra.mrb[0].mxu0 %v8750
    %v8752 = vpop.f32.mrb[0].mxu0
    %v8753 = vadd.f32 %v8673, %v8752
    %v8754 = vpop.f32.mrb[0].mxu0
    %8755 = vdwg.mxu0
    %8756 = vmatprep.subr.mxu0 0.0
    %v8757 = vand.u32 %v4874, 4294901760
    %8758 = vmatpush1.msra.mxu0 %v8757
    %8759 = vmatprep.subr.mxu0 0.0
    %v8760 = vand.u32 %v4875, 4294901760
    %8761 = vmatpush1.msra.mxu0 %v8760
    %8762 = vmatprep.subr.mxu0 0.0
    %v8763 = vand.u32 %v4876, 4294901760
    %8764 = vmatpush1.msra.mxu0 %v8763
    %8765 = vmatprep.subr.mxu0 0.0
    %v8766 = vand.u32 %v4877, 4294901760
    %8767 = vmatpush1.msra.mxu0 %v8766
    %8768 = vmatprep.subr.mxu0 0.0
    %8769 = vmatpush1.msra.mxu0 0.0
    %8770 = vmatprep.subr.mxu0 0.0
    %8771 = vmatpush1.msra.mxu0 0.0
    %8772 = vmatprep.subr.mxu0 0.0
    %8773 = vmatpush1.msra.mxu0 0.0
    %8774 = vmatprep.subr.mxu0 0.0
    %8775 = vmatpush1.msra.mxu0 0.0
    %8776 = vmatprep.subr.mxu0 0.0
    %8777 = vmatpush1.msra.mxu0 0.0
    %8778 = vmatprep.subr.mxu0 0.0
    %8779 = vmatpush1.msra.mxu0 0.0
    %8780 = vmatprep.subr.mxu0 0.0
    %8781 = vmatpush1.msra.mxu0 0.0
    %8782 = vmatprep.subr.mxu0 0.0
    %8783 = vmatpush1.msra.mxu0 0.0
    %8784 = vmatprep.subr.mxu0 0.0
    %8785 = vmatpush1.msra.mxu0 0.0
    %8786 = vmatprep.subr.mxu0 0.0
    %8787 = vmatpush1.msra.mxu0 0.0
    %8788 = vmatprep.subr.mxu0 0.0
    %8789 = vmatpush1.msra.mxu0 0.0
    %8790 = vmatprep.subr.mxu0 0.0
    %8791 = vmatpush1.msra.mxu0 0.0
    %8792 = vmatprep.subr.mxu0 0.0
    %8793 = vmatpush1.msra.mxu0 0.0
    %8794 = vmatprep.subr.mxu0 0.0
    %8795 = vmatpush1.msra.mxu0 0.0
    %8796 = vmatprep.subr.mxu0 0.0
    %8797 = vmatpush1.msra.mxu0 0.0
    %8798 = vmatprep.subr.mxu0 0.0
    %8799 = vmatpush1.msra.mxu0 0.0
    %8800 = vmatprep.subr.mxu0 0.0
    %8801 = vmatpush1.msra.mxu0 0.0
    %8802 = vmatprep.subr.mxu0 0.0
    %8803 = vmatpush1.msra.mxu0 0.0
    %8804 = vmatprep.subr.mxu0 0.0
    %8805 = vmatpush1.msra.mxu0 0.0
    %8806 = vmatprep.subr.mxu0 0.0
    %8807 = vmatpush1.msra.mxu0 0.0
    %8808 = vmatprep.subr.mxu0 0.0
    %8809 = vmatpush1.msra.mxu0 0.0
    %8810 = vmatprep.subr.mxu0 0.0
    %8811 = vmatpush1.msra.mxu0 0.0
    %8812 = vmatprep.subr.mxu0 0.0
    %8813 = vmatpush1.msra.mxu0 0.0
    %8814 = vmatprep.subr.mxu0 0.0
    %8815 = vmatpush1.msra.mxu0 0.0
    %8816 = vmatprep.subr.mxu0 0.0
    %8817 = vmatpush1.msra.mxu0 0.0
    %8818 = vmatprep.subr.mxu0 0.0
    %8819 = vmatpush1.msra.mxu0 0.0
    %8820 = vmatprep.subr.mxu0 0.0
    %8821 = vmatpush1.msra.mxu0 0.0
    %8822 = vmatprep.subr.mxu0 0.0
    %8823 = vmatpush1.msra.mxu0 0.0
    %8824 = vmatprep.mubr.f32.mxu0 0.0
    %v8825 = vand.u32 %v8504, 4294901760
    %v8826 = vsub.f32 %v8504, %v8825
    %v8827 = vand.u32 %v8826, 4294901760
    %8828 = vmatmul.mubr.f32.gmra.mrb[0].mxu0 %v8827
    %v8829 = vpop.f32.mrb[0].mxu0
    %v8830 = vadd.f32 %v8753, %v8829
    %v8831 = vpop.f32.mrb[0].mxu0
    %8832 = vdwg.mxu0
    %8833 = vmatprep.subr.mxu0 0.0
    %v8834 = vand.u32 %v4874, 4294901760
    %v8835 = vsub.f32 %v4874, %v8834
    %v8836 = vand.u32 %v8835, 4294901760
    %8837 = vmatpush1.msra.mxu0 %v8836
    %8838 = vmatprep.subr.mxu0 0.0
    %v8839 = vand.u32 %v4875, 4294901760
    %v8840 = vsub.f32 %v4875, %v8839
    %v8841 = vand.u32 %v8840, 4294901760
    %8842 = vmatpush1.msra.mxu0 %v8841
    %8843 = vmatprep.subr.mxu0 0.0
    %v8844 = vand.u32 %v4876, 4294901760
    %v8845 = vsub.f32 %v4876, %v8844
    %v8846 = vand.u32 %v8845, 4294901760
    %8847 = vmatpush1.msra.mxu0 %v8846
    %8848 = vmatprep.subr.mxu0 0.0
    %v8849 = vand.u32 %v4877, 4294901760
    %v8850 = vsub.f32 %v4877, %v8849
    %v8851 = vand.u32 %v8850, 4294901760
    %8852 = vmatpush1.msra.mxu0 %v8851
    %8853 = vmatprep.subr.mxu0 0.0
    %8854 = vmatpush1.msra.mxu0 0.0
    %8855 = vmatprep.subr.mxu0 0.0
    %8856 = vmatpush1.msra.mxu0 0.0
    %8857 = vmatprep.subr.mxu0 0.0
    %8858 = vmatpush1.msra.mxu0 0.0
    %8859 = vmatprep.subr.mxu0 0.0
    %8860 = vmatpush1.msra.mxu0 0.0
    %8861 = vmatprep.subr.mxu0 0.0
    %8862 = vmatpush1.msra.mxu0 0.0
    %8863 = vmatprep.subr.mxu0 0.0
    %8864 = vmatpush1.msra.mxu0 0.0
    %8865 = vmatprep.subr.mxu0 0.0
    %8866 = vmatpush1.msra.mxu0 0.0
    %8867 = vmatprep.subr.mxu0 0.0
    %8868 = vmatpush1.msra.mxu0 0.0
    %8869 = vmatprep.subr.mxu0 0.0
    %8870 = vmatpush1.msra.mxu0 0.0
    %8871 = vmatprep.subr.mxu0 0.0
    %8872 = vmatpush1.msra.mxu0 0.0
    %8873 = vmatprep.subr.mxu0 0.0
    %8874 = vmatpush1.msra.mxu0 0.0
    %8875 = vmatprep.subr.mxu0 0.0
    %8876 = vmatpush1.msra.mxu0 0.0
    %8877 = vmatprep.subr.mxu0 0.0
    %8878 = vmatpush1.msra.mxu0 0.0
    %8879 = vmatprep.subr.mxu0 0.0
    %8880 = vmatpush1.msra.mxu0 0.0
    %8881 = vmatprep.subr.mxu0 0.0
    %8882 = vmatpush1.msra.mxu0 0.0
    %8883 = vmatprep.subr.mxu0 0.0
    %8884 = vmatpush1.msra.mxu0 0.0
    %8885 = vmatprep.subr.mxu0 0.0
    %8886 = vmatpush1.msra.mxu0 0.0
    %8887 = vmatprep.subr.mxu0 0.0
    %8888 = vmatpush1.msra.mxu0 0.0
    %8889 = vmatprep.subr.mxu0 0.0
    %8890 = vmatpush1.msra.mxu0 0.0
    %8891 = vmatprep.subr.mxu0 0.0
    %8892 = vmatpush1.msra.mxu0 0.0
    %8893 = vmatprep.subr.mxu0 0.0
    %8894 = vmatpush1.msra.mxu0 0.0
    %8895 = vmatprep.subr.mxu0 0.0
    %8896 = vmatpush1.msra.mxu0 0.0
    %8897 = vmatprep.subr.mxu0 0.0
    %8898 = vmatpush1.msra.mxu0 0.0
    %8899 = vmatprep.subr.mxu0 0.0
    %8900 = vmatpush1.msra.mxu0 0.0
    %8901 = vmatprep.subr.mxu0 0.0
    %8902 = vmatpush1.msra.mxu0 0.0
    %8903 = vmatprep.subr.mxu0 0.0
    %8904 = vmatpush1.msra.mxu0 0.0
    %8905 = vmatprep.subr.mxu0 0.0
    %8906 = vmatpush1.msra.mxu0 0.0
    %8907 = vmatprep.subr.mxu0 0.0
    %8908 = vmatpush1.msra.mxu0 0.0
    %8909 = vmatprep.mubr.f32.mxu0 0.0
    %v8910 = vand.u32 %v8504, 4294901760
    %8911 = vmatmul.mubr.f32.gmra.mrb[0].mxu0 %v8910
    %v8912 = vpop.f32.mrb[0].mxu0
    %v8913 = vadd.f32 %v8830, %v8912
    %v8914 = vpop.f32.mrb[0].mxu0
    %8915 = vdwg.mxu0
    %8916 = vmatprep.subr.mxu0 0.0
    %v8917 = vand.u32 %v4874, 4294901760
    %8918 = vmatpush1.msra.mxu0 %v8917
    %8919 = vmatprep.subr.mxu0 0.0
    %v8920 = vand.u32 %v4875, 4294901760
    %8921 = vmatpush1.msra.mxu0 %v8920
    %8922 = vmatprep.subr.mxu0 0.0
    %v8923 = vand.u32 %v4876, 4294901760
    %8924 = vmatpush1.msra.mxu0 %v8923
    %8925 = vmatprep.subr.mxu0 0.0
    %v8926 = vand.u32 %v4877, 4294901760
    %8927 = vmatpush1.msra.mxu0 %v8926
    %8928 = vmatprep.subr.mxu0 0.0
    %8929 = vmatpush1.msra.mxu0 0.0
    %8930 = vmatprep.subr.mxu0 0.0
    %8931 = vmatpush1.msra.mxu0 0.0
    %8932 = vmatprep.subr.mxu0 0.0
    %8933 = vmatpush1.msra.mxu0 0.0
    %8934 = vmatprep.subr.mxu0 0.0
    %8935 = vmatpush1.msra.mxu0 0.0
    %8936 = vmatprep.subr.mxu0 0.0
    %8937 = vmatpush1.msra.mxu0 0.0
    %8938 = vmatprep.subr.mxu0 0.0
    %8939 = vmatpush1.msra.mxu0 0.0
    %8940 = vmatprep.subr.mxu0 0.0
    %8941 = vmatpush1.msra.mxu0 0.0
    %8942 = vmatprep.subr.mxu0 0.0
    %8943 = vmatpush1.msra.mxu0 0.0
    %8944 = vmatprep.subr.mxu0 0.0
    %8945 = vmatpush1.msra.mxu0 0.0
    %8946 = vmatprep.subr.mxu0 0.0
    %8947 = vmatpush1.msra.mxu0 0.0
    %8948 = vmatprep.subr.mxu0 0.0
    %8949 = vmatpush1.msra.mxu0 0.0
    %8950 = vmatprep.subr.mxu0 0.0
    %8951 = vmatpush1.msra.mxu0 0.0
    %8952 = vmatprep.subr.mxu0 0.0
    %8953 = vmatpush1.msra.mxu0 0.0
    %8954 = vmatprep.subr.mxu0 0.0
    %8955 = vmatpush1.msra.mxu0 0.0
    %8956 = vmatprep.subr.mxu0 0.0
    %8957 = vmatpush1.msra.mxu0 0.0
    %8958 = vmatprep.subr.mxu0 0.0
    %8959 = vmatpush1.msra.mxu0 0.0
    %8960 = vmatprep.subr.mxu0 0.0
    %8961 = vmatpush1.msra.mxu0 0.0
    %8962 = vmatprep.subr.mxu0 0.0
    %8963 = vmatpush1.msra.mxu0 0.0
    %8964 = vmatprep.subr.mxu0 0.0
    %8965 = vmatpush1.msra.mxu0 0.0
    %8966 = vmatprep.subr.mxu0 0.0
    %8967 = vmatpush1.msra.mxu0 0.0
    %8968 = vmatprep.subr.mxu0 0.0
    %8969 = vmatpush1.msra.mxu0 0.0
    %8970 = vmatprep.subr.mxu0 0.0
    %8971 = vmatpush1.msra.mxu0 0.0
    %8972 = vmatprep.subr.mxu0 0.0
    %8973 = vmatpush1.msra.mxu0 0.0
    %8974 = vmatprep.subr.mxu0 0.0
    %8975 = vmatpush1.msra.mxu0 0.0
    %8976 = vmatprep.subr.mxu0 0.0
    %8977 = vmatpush1.msra.mxu0 0.0
    %8978 = vmatprep.subr.mxu0 0.0
    %8979 = vmatpush1.msra.mxu0 0.0
    %8980 = vmatprep.subr.mxu0 0.0
    %8981 = vmatpush1.msra.mxu0 0.0
    %8982 = vmatprep.subr.mxu0 0.0
    %8983 = vmatpush1.msra.mxu0 0.0
    %8984 = vmatprep.mubr.f32.mxu0 0.0
    %v8985 = vand.u32 %v8504, 4294901760
    %8986 = vmatmul.mubr.f32.gmra.mrb[0].mxu0 %v8985
    %v8987 = vpop.f32.mrb[0].mxu0
    %v8988 = vadd.f32 %v8913, %v8987
    %v8989 = vpop.f32.mrb[0].mxu0
    %8990 = vdwg.mxu0
    %v8991 = vadd.f32 %v8503, %v8988
    %v8992 = vxor.u32 %v8991, 2147483648
    %v8993 = vmul.f32 %v8992, 1.442695
    %v8994 = vpow.pop %v8993
    %v8995 = vadd.f32 %v8994, 1.0
    %v8996 = vrcp.pop %v8995
    %v8997 = vmul.f32 1.0, %v8996
    %v8998 = vtanh.pop %v8991
    %v8999 = vmul.f32 %v8997, %v8491
    %9001 = vrot.lane.b32.xlu0 %v8998, 64
    %v9002 = vpop.permute.xlu0 %9001
    %v9004 = vmul.f32 %v8997, %v9002
    %9006 = vrot.lane.b32.xlu0 %v9004, 32
    %v9007 = vpop.permute.xlu0 %9006
    %v9009 = vadd.f32 %v8999, %v9007
    %v9010 = vtanh.pop %v9009
    %9012 = vrot.lane.b32.xlu0 %v9010, 64
    %v9013 = vpop.permute.xlu0 %9012
    %v9015 = vmul.f32 %v8997, %v9013
    %9017 = vrot.lane.b32.xlu0 %v9015, 32
    %v9018 = vpop.permute.xlu0 %9017
    %9020 = vst.msk [vmem:[#allocation4 + $0x7] sm:$0x1] %vm5393, %v9018
    %v9021 = vld [vmem:[#allocation5 + $0x98] sm:$0xff]
    %v9022 = vld [vmem:[#allocation5 + $0xa0] sm:$0xff]
    %v9023 = vld [vmem:[#allocation5 + $0xa8] sm:$0xff]
    %v9024 = vld [vmem:[#allocation5 + $0xb0] sm:$0xff]
    %v9025 = vld [vmem:[#allocation5 + $0xb8] sm:$0x1]
    %v9026 = vld [vmem:[#allocation4] sm:$0xff]
    %v9027 = vlaneseq
    %v9028 = vshrl.u32 %v9027, 7
    %v9029 = vsub.s32 0, %v9028
    %v9030 = vrot.slane %v9025, %v9029
    %v9032 = vsel %vm554, %v9026, 0
    %9034 = vmatprep.subr.mxu0 0.0
    %v9035 = vand.u32 %v9021, 4294901760
    %9036 = vmatpush1.msra.mxu0 %v9035
    %9037 = vmatprep.subr.mxu0 0.0
    %v9038 = vand.u32 %v9022, 4294901760
    %9039 = vmatpush1.msra.mxu0 %v9038
    %9040 = vmatprep.subr.mxu0 0.0
    %v9041 = vand.u32 %v9023, 4294901760
    %9042 = vmatpush1.msra.mxu0 %v9041
    %9043 = vmatprep.subr.mxu0 0.0
    %v9044 = vand.u32 %v9024, 4294901760
    %9045 = vmatpush1.msra.mxu0 %v9044
    %9046 = vmatprep.subr.mxu0 0.0
    %9047 = vmatpush1.msra.mxu0 0.0
    %9048 = vmatprep.subr.mxu0 0.0
    %9049 = vmatpush1.msra.mxu0 0.0
    %9050 = vmatprep.subr.mxu0 0.0
    %9051 = vmatpush1.msra.mxu0 0.0
    %9052 = vmatprep.subr.mxu0 0.0
    %9053 = vmatpush1.msra.mxu0 0.0
    %9054 = vmatprep.subr.mxu0 0.0
    %9055 = vmatpush1.msra.mxu0 0.0
    %9056 = vmatprep.subr.mxu0 0.0
    %9057 = vmatpush1.msra.mxu0 0.0
    %9058 = vmatprep.subr.mxu0 0.0
    %9059 = vmatpush1.msra.mxu0 0.0
    %9060 = vmatprep.subr.mxu0 0.0
    %9061 = vmatpush1.msra.mxu0 0.0
    %9062 = vmatprep.subr.mxu0 0.0
    %9063 = vmatpush1.msra.mxu0 0.0
    %9064 = vmatprep.subr.mxu0 0.0
    %9065 = vmatpush1.msra.mxu0 0.0
    %9066 = vmatprep.subr.mxu0 0.0
    %9067 = vmatpush1.msra.mxu0 0.0
    %9068 = vmatprep.subr.mxu0 0.0
    %9069 = vmatpush1.msra.mxu0 0.0
    %9070 = vmatprep.subr.mxu0 0.0
    %9071 = vmatpush1.msra.mxu0 0.0
    %9072 = vmatprep.subr.mxu0 0.0
    %9073 = vmatpush1.msra.mxu0 0.0
    %9074 = vmatprep.subr.mxu0 0.0
    %9075 = vmatpush1.msra.mxu0 0.0
    %9076 = vmatprep.subr.mxu0 0.0
    %9077 = vmatpush1.msra.mxu0 0.0
    %9078 = vmatprep.subr.mxu0 0.0
    %9079 = vmatpush1.msra.mxu0 0.0
    %9080 = vmatprep.subr.mxu0 0.0
    %9081 = vmatpush1.msra.mxu0 0.0
    %9082 = vmatprep.subr.mxu0 0.0
    %9083 = vmatpush1.msra.mxu0 0.0
    %9084 = vmatprep.subr.mxu0 0.0
    %9085 = vmatpush1.msra.mxu0 0.0
    %9086 = vmatprep.subr.mxu0 0.0
    %9087 = vmatpush1.msra.mxu0 0.0
    %9088 = vmatprep.subr.mxu0 0.0
    %9089 = vmatpush1.msra.mxu0 0.0
    %9090 = vmatprep.subr.mxu0 0.0
    %9091 = vmatpush1.msra.mxu0 0.0
    %9092 = vmatprep.subr.mxu0 0.0
    %9093 = vmatpush1.msra.mxu0 0.0
    %9094 = vmatprep.subr.mxu0 0.0
    %9095 = vmatpush1.msra.mxu0 0.0
    %9096 = vmatprep.subr.mxu0 0.0
    %9097 = vmatpush1.msra.mxu0 0.0
    %9098 = vmatprep.subr.mxu0 0.0
    %9099 = vmatpush1.msra.mxu0 0.0
    %9100 = vmatprep.subr.mxu0 0.0
    %9101 = vmatpush1.msra.mxu0 0.0
    %9102 = vmatprep.mubr.f32.mxu0 0.0
    %v9103 = vand.u32 %v9032, 4294901760
    %v9104 = vsub.f32 %v9032, %v9103
    %v9105 = vand.u32 %v9104, 4294901760
    %v9106 = vsub.f32 %v9104, %v9105
    %v9107 = vand.u32 %v9106, 4294901760
    %9108 = vmatmul.mubr.f32.gmra.mrb[0].mxu0 %v9107
    %v9109 = vpop.f32.mrb[0].mxu0
    %v9110 = vadd.f32 %v9030, %v9109
    %v9111 = vpop.f32.mrb[0].mxu0
    %9112 = vdwg.mxu0
    %9113 = vmatprep.subr.mxu0 0.0
    %v9114 = vand.u32 %v9021, 4294901760
    %v9115 = vsub.f32 %v9021, %v9114
    %v9116 = vand.u32 %v9115, 4294901760
    %v9117 = vsub.f32 %v9115, %v9116
    %v9118 = vand.u32 %v9117, 4294901760
    %9119 = vmatpush1.msra.mxu0 %v9118
    %9120 = vmatprep.subr.mxu0 0.0
    %v9121 = vand.u32 %v9022, 4294901760
    %v9122 = vsub.f32 %v9022, %v9121
    %v9123 = vand.u32 %v9122, 4294901760
    %v9124 = vsub.f32 %v9122, %v9123
    %v9125 = vand.u32 %v9124, 4294901760
    %9126 = vmatpush1.msra.mxu0 %v9125
    %9127 = vmatprep.subr.mxu0 0.0
    %v9128 = vand.u32 %v9023, 4294901760
    %v9129 = vsub.f32 %v9023, %v9128
    %v9130 = vand.u32 %v9129, 4294901760
    %v9131 = vsub.f32 %v9129, %v9130
    %v9132 = vand.u32 %v9131, 4294901760
    %9133 = vmatpush1.msra.mxu0 %v9132
    %9134 = vmatprep.subr.mxu0 0.0
    %v9135 = vand.u32 %v9024, 4294901760
    %v9136 = vsub.f32 %v9024, %v9135
    %v9137 = vand.u32 %v9136, 4294901760
    %v9138 = vsub.f32 %v9136, %v9137
    %v9139 = vand.u32 %v9138, 4294901760
    %9140 = vmatpush1.msra.mxu0 %v9139
    %9141 = vmatprep.subr.mxu0 0.0
    %9142 = vmatpush1.msra.mxu0 0.0
    %9143 = vmatprep.subr.mxu0 0.0
    %9144 = vmatpush1.msra.mxu0 0.0
    %9145 = vmatprep.subr.mxu0 0.0
    %9146 = vmatpush1.msra.mxu0 0.0
    %9147 = vmatprep.subr.mxu0 0.0
    %9148 = vmatpush1.msra.mxu0 0.0
    %9149 = vmatprep.subr.mxu0 0.0
    %9150 = vmatpush1.msra.mxu0 0.0
    %9151 = vmatprep.subr.mxu0 0.0
    %9152 = vmatpush1.msra.mxu0 0.0
    %9153 = vmatprep.subr.mxu0 0.0
    %9154 = vmatpush1.msra.mxu0 0.0
    %9155 = vmatprep.subr.mxu0 0.0
    %9156 = vmatpush1.msra.mxu0 0.0
    %9157 = vmatprep.subr.mxu0 0.0
    %9158 = vmatpush1.msra.mxu0 0.0
    %9159 = vmatprep.subr.mxu0 0.0
    %9160 = vmatpush1.msra.mxu0 0.0
    %9161 = vmatprep.subr.mxu0 0.0
    %9162 = vmatpush1.msra.mxu0 0.0
    %9163 = vmatprep.subr.mxu0 0.0
    %9164 = vmatpush1.msra.mxu0 0.0
    %9165 = vmatprep.subr.mxu0 0.0
    %9166 = vmatpush1.msra.mxu0 0.0
    %9167 = vmatprep.subr.mxu0 0.0
    %9168 = vmatpush1.msra.mxu0 0.0
    %9169 = vmatprep.subr.mxu0 0.0
    %9170 = vmatpush1.msra.mxu0 0.0
    %9171 = vmatprep.subr.mxu0 0.0
    %9172 = vmatpush1.msra.mxu0 0.0
    %9173 = vmatprep.subr.mxu0 0.0
    %9174 = vmatpush1.msra.mxu0 0.0
    %9175 = vmatprep.subr.mxu0 0.0
    %9176 = vmatpush1.msra.mxu0 0.0
    %9177 = vmatprep.subr.mxu0 0.0
    %9178 = vmatpush1.msra.mxu0 0.0
    %9179 = vmatprep.subr.mxu0 0.0
    %9180 = vmatpush1.msra.mxu0 0.0
    %9181 = vmatprep.subr.mxu0 0.0
    %9182 = vmatpush1.msra.mxu0 0.0
    %9183 = vmatprep.subr.mxu0 0.0
    %9184 = vmatpush1.msra.mxu0 0.0
    %9185 = vmatprep.subr.mxu0 0.0
    %9186 = vmatpush1.msra.mxu0 0.0
    %9187 = vmatprep.subr.mxu0 0.0
    %9188 = vmatpush1.msra.mxu0 0.0
    %9189 = vmatprep.subr.mxu0 0.0
    %9190 = vmatpush1.msra.mxu0 0.0
    %9191 = vmatprep.subr.mxu0 0.0
    %9192 = vmatpush1.msra.mxu0 0.0
    %9193 = vmatprep.subr.mxu0 0.0
    %9194 = vmatpush1.msra.mxu0 0.0
    %9195 = vmatprep.subr.mxu0 0.0
    %9196 = vmatpush1.msra.mxu0 0.0
    %9197 = vmatprep.mubr.f32.mxu0 0.0
    %v9198 = vand.u32 %v9032, 4294901760
    %9199 = vmatmul.mubr.f32.gmra.mrb[0].mxu0 %v9198
    %v9200 = vpop.f32.mrb[0].mxu0
    %v9201 = vadd.f32 %v9110, %v9200
    %v9202 = vpop.f32.mrb[0].mxu0
    %9203 = vdwg.mxu0
    %9204 = vmatprep.subr.mxu0 0.0
    %v9205 = vand.u32 %v9021, 4294901760
    %v9206 = vsub.f32 %v9021, %v9205
    %9207 = vmatpush1.msra.mxu0 %v9206
    %9208 = vmatprep.subr.mxu0 0.0
    %v9209 = vand.u32 %v9022, 4294901760
    %v9210 = vsub.f32 %v9022, %v9209
    %9211 = vmatpush1.msra.mxu0 %v9210
    %9212 = vmatprep.subr.mxu0 0.0
    %v9213 = vand.u32 %v9023, 4294901760
    %v9214 = vsub.f32 %v9023, %v9213
    %9215 = vmatpush1.msra.mxu0 %v9214
    %9216 = vmatprep.subr.mxu0 0.0
    %v9217 = vand.u32 %v9024, 4294901760
    %v9218 = vsub.f32 %v9024, %v9217
    %9219 = vmatpush1.msra.mxu0 %v9218
    %9220 = vmatprep.subr.mxu0 0.0
    %9221 = vmatpush1.msra.mxu0 0.0
    %9222 = vmatprep.subr.mxu0 0.0
    %9223 = vmatpush1.msra.mxu0 0.0
    %9224 = vmatprep.subr.mxu0 0.0
    %9225 = vmatpush1.msra.mxu0 0.0
    %9226 = vmatprep.subr.mxu0 0.0
    %9227 = vmatpush1.msra.mxu0 0.0
    %9228 = vmatprep.subr.mxu0 0.0
    %9229 = vmatpush1.msra.mxu0 0.0
    %9230 = vmatprep.subr.mxu0 0.0
    %9231 = vmatpush1.msra.mxu0 0.0
    %9232 = vmatprep.subr.mxu0 0.0
    %9233 = vmatpush1.msra.mxu0 0.0
    %9234 = vmatprep.subr.mxu0 0.0
    %9235 = vmatpush1.msra.mxu0 0.0
    %9236 = vmatprep.subr.mxu0 0.0
    %9237 = vmatpush1.msra.mxu0 0.0
    %9238 = vmatprep.subr.mxu0 0.0
    %9239 = vmatpush1.msra.mxu0 0.0
    %9240 = vmatprep.subr.mxu0 0.0
    %9241 = vmatpush1.msra.mxu0 0.0
    %9242 = vmatprep.subr.mxu0 0.0
    %9243 = vmatpush1.msra.mxu0 0.0
    %9244 = vmatprep.subr.mxu0 0.0
    %9245 = vmatpush1.msra.mxu0 0.0
    %9246 = vmatprep.subr.mxu0 0.0
    %9247 = vmatpush1.msra.mxu0 0.0
    %9248 = vmatprep.subr.mxu0 0.0
    %9249 = vmatpush1.msra.mxu0 0.0
    %9250 = vmatprep.subr.mxu0 0.0
    %9251 = vmatpush1.msra.mxu0 0.0
    %9252 = vmatprep.subr.mxu0 0.0
    %9253 = vmatpush1.msra.mxu0 0.0
    %9254 = vmatprep.subr.mxu0 0.0
    %9255 = vmatpush1.msra.mxu0 0.0
    %9256 = vmatprep.subr.mxu0 0.0
    %9257 = vmatpush1.msra.mxu0 0.0
    %9258 = vmatprep.subr.mxu0 0.0
    %9259 = vmatpush1.msra.mxu0 0.0
    %9260 = vmatprep.subr.mxu0 0.0
    %9261 = vmatpush1.msra.mxu0 0.0
    %9262 = vmatprep.subr.mxu0 0.0
    %9263 = vmatpush1.msra.mxu0 0.0
    %9264 = vmatprep.subr.mxu0 0.0
    %9265 = vmatpush1.msra.mxu0 0.0
    %9266 = vmatprep.subr.mxu0 0.0
    %9267 = vmatpush1.msra.mxu0 0.0
    %9268 = vmatprep.subr.mxu0 0.0
    %9269 = vmatpush1.msra.mxu0 0.0
    %9270 = vmatprep.subr.mxu0 0.0
    %9271 = vmatpush1.msra.mxu0 0.0
    %9272 = vmatprep.subr.mxu0 0.0
    %9273 = vmatpush1.msra.mxu0 0.0
    %9274 = vmatprep.subr.mxu0 0.0
    %9275 = vmatpush1.msra.mxu0 0.0
    %9276 = vmatprep.mubr.f32.mxu0 0.0
    %v9277 = vand.u32 %v9032, 4294901760
    %v9278 = vsub.f32 %v9032, %v9277
    %9279 = vmatmul.mubr.f32.gmra.mrb[0].mxu0 %v9278
    %v9280 = vpop.f32.mrb[0].mxu0
    %v9281 = vadd.f32 %v9201, %v9280
    %v9282 = vpop.f32.mrb[0].mxu0
    %9283 = vdwg.mxu0
    %9284 = vmatprep.subr.mxu0 0.0
    %v9285 = vand.u32 %v9021, 4294901760
    %9286 = vmatpush1.msra.mxu0 %v9285
    %9287 = vmatprep.subr.mxu0 0.0
    %v9288 = vand.u32 %v9022, 4294901760
    %9289 = vmatpush1.msra.mxu0 %v9288
    %9290 = vmatprep.subr.mxu0 0.0
    %v9291 = vand.u32 %v9023, 4294901760
    %9292 = vmatpush1.msra.mxu0 %v9291
    %9293 = vmatprep.subr.mxu0 0.0
    %v9294 = vand.u32 %v9024, 4294901760
    %9295 = vmatpush1.msra.mxu0 %v9294
    %9296 = vmatprep.subr.mxu0 0.0
    %9297 = vmatpush1.msra.mxu0 0.0
    %9298 = vmatprep.subr.mxu0 0.0
    %9299 = vmatpush1.msra.mxu0 0.0
    %9300 = vmatprep.subr.mxu0 0.0
    %9301 = vmatpush1.msra.mxu0 0.0
    %9302 = vmatprep.subr.mxu0 0.0
    %9303 = vmatpush1.msra.mxu0 0.0
    %9304 = vmatprep.subr.mxu0 0.0
    %9305 = vmatpush1.msra.mxu0 0.0
    %9306 = vmatprep.subr.mxu0 0.0
    %9307 = vmatpush1.msra.mxu0 0.0
    %9308 = vmatprep.subr.mxu0 0.0
    %9309 = vmatpush1.msra.mxu0 0.0
    %9310 = vmatprep.subr.mxu0 0.0
    %9311 = vmatpush1.msra.mxu0 0.0
    %9312 = vmatprep.subr.mxu0 0.0
    %9313 = vmatpush1.msra.mxu0 0.0
    %9314 = vmatprep.subr.mxu0 0.0
    %9315 = vmatpush1.msra.mxu0 0.0
    %9316 = vmatprep.subr.mxu0 0.0
    %9317 = vmatpush1.msra.mxu0 0.0
    %9318 = vmatprep.subr.mxu0 0.0
    %9319 = vmatpush1.msra.mxu0 0.0
    %9320 = vmatprep.subr.mxu0 0.0
    %9321 = vmatpush1.msra.mxu0 0.0
    %9322 = vmatprep.subr.mxu0 0.0
    %9323 = vmatpush1.msra.mxu0 0.0
    %9324 = vmatprep.subr.mxu0 0.0
    %9325 = vmatpush1.msra.mxu0 0.0
    %9326 = vmatprep.subr.mxu0 0.0
    %9327 = vmatpush1.msra.mxu0 0.0
    %9328 = vmatprep.subr.mxu0 0.0
    %9329 = vmatpush1.msra.mxu0 0.0
    %9330 = vmatprep.subr.mxu0 0.0
    %9331 = vmatpush1.msra.mxu0 0.0
    %9332 = vmatprep.subr.mxu0 0.0
    %9333 = vmatpush1.msra.mxu0 0.0
    %9334 = vmatprep.subr.mxu0 0.0
    %9335 = vmatpush1.msra.mxu0 0.0
    %9336 = vmatprep.subr.mxu0 0.0
    %9337 = vmatpush1.msra.mxu0 0.0
    %9338 = vmatprep.subr.mxu0 0.0
    %9339 = vmatpush1.msra.mxu0 0.0
    %9340 = vmatprep.subr.mxu0 0.0
    %9341 = vmatpush1.msra.mxu0 0.0
    %9342 = vmatprep.subr.mxu0 0.0
    %9343 = vmatpush1.msra.mxu0 0.0
    %9344 = vmatprep.subr.mxu0 0.0
    %9345 = vmatpush1.msra.mxu0 0.0
    %9346 = vmatprep.subr.mxu0 0.0
    %9347 = vmatpush1.msra.mxu0 0.0
    %9348 = vmatprep.subr.mxu0 0.0
    %9349 = vmatpush1.msra.mxu0 0.0
    %9350 = vmatprep.subr.mxu0 0.0
    %9351 = vmatpush1.msra.mxu0 0.0
    %9352 = vmatprep.mubr.f32.mxu0 0.0
    %v9353 = vand.u32 %v9032, 4294901760
    %v9354 = vsub.f32 %v9032, %v9353
    %v9355 = vand.u32 %v9354, 4294901760
    %9356 = vmatmul.mubr.f32.gmra.mrb[0].mxu0 %v9355
    %v9357 = vpop.f32.mrb[0].mxu0
    %v9358 = vadd.f32 %v9281, %v9357
    %v9359 = vpop.f32.mrb[0].mxu0
    %9360 = vdwg.mxu0
    %9361 = vmatprep.subr.mxu0 0.0
    %v9362 = vand.u32 %v9021, 4294901760
    %v9363 = vsub.f32 %v9021, %v9362
    %v9364 = vand.u32 %v9363, 4294901760
    %9365 = vmatpush1.msra.mxu0 %v9364
    %9366 = vmatprep.subr.mxu0 0.0
    %v9367 = vand.u32 %v9022, 4294901760
    %v9368 = vsub.f32 %v9022, %v9367
    %v9369 = vand.u32 %v9368, 4294901760
    %9370 = vmatpush1.msra.mxu0 %v9369
    %9371 = vmatprep.subr.mxu0 0.0
    %v9372 = vand.u32 %v9023, 4294901760
    %v9373 = vsub.f32 %v9023, %v9372
    %v9374 = vand.u32 %v9373, 4294901760
    %9375 = vmatpush1.msra.mxu0 %v9374
    %9376 = vmatprep.subr.mxu0 0.0
    %v9377 = vand.u32 %v9024, 4294901760
    %v9378 = vsub.f32 %v9024, %v9377
    %v9379 = vand.u32 %v9378, 4294901760
    %9380 = vmatpush1.msra.mxu0 %v9379
    %9381 = vmatprep.subr.mxu0 0.0
    %9382 = vmatpush1.msra.mxu0 0.0
    %9383 = vmatprep.subr.mxu0 0.0
    %9384 = vmatpush1.msra.mxu0 0.0
    %9385 = vmatprep.subr.mxu0 0.0
    %9386 = vmatpush1.msra.mxu0 0.0
    %9387 = vmatprep.subr.mxu0 0.0
    %9388 = vmatpush1.msra.mxu0 0.0
    %9389 = vmatprep.subr.mxu0 0.0
    %9390 = vmatpush1.msra.mxu0 0.0
    %9391 = vmatprep.subr.mxu0 0.0
    %9392 = vmatpush1.msra.mxu0 0.0
    %9393 = vmatprep.subr.mxu0 0.0
    %9394 = vmatpush1.msra.mxu0 0.0
    %9395 = vmatprep.subr.mxu0 0.0
    %9396 = vmatpush1.msra.mxu0 0.0
    %9397 = vmatprep.subr.mxu0 0.0
    %9398 = vmatpush1.msra.mxu0 0.0
    %9399 = vmatprep.subr.mxu0 0.0
    %9400 = vmatpush1.msra.mxu0 0.0
    %9401 = vmatprep.subr.mxu0 0.0
    %9402 = vmatpush1.msra.mxu0 0.0
    %9403 = vmatprep.subr.mxu0 0.0
    %9404 = vmatpush1.msra.mxu0 0.0
    %9405 = vmatprep.subr.mxu0 0.0
    %9406 = vmatpush1.msra.mxu0 0.0
    %9407 = vmatprep.subr.mxu0 0.0
    %9408 = vmatpush1.msra.mxu0 0.0
    %9409 = vmatprep.subr.mxu0 0.0
    %9410 = vmatpush1.msra.mxu0 0.0
    %9411 = vmatprep.subr.mxu0 0.0
    %9412 = vmatpush1.msra.mxu0 0.0
    %9413 = vmatprep.subr.mxu0 0.0
    %9414 = vmatpush1.msra.mxu0 0.0
    %9415 = vmatprep.subr.mxu0 0.0
    %9416 = vmatpush1.msra.mxu0 0.0
    %9417 = vmatprep.subr.mxu0 0.0
    %9418 = vmatpush1.msra.mxu0 0.0
    %9419 = vmatprep.subr.mxu0 0.0
    %9420 = vmatpush1.msra.mxu0 0.0
    %9421 = vmatprep.subr.mxu0 0.0
    %9422 = vmatpush1.msra.mxu0 0.0
    %9423 = vmatprep.subr.mxu0 0.0
    %9424 = vmatpush1.msra.mxu0 0.0
    %9425 = vmatprep.subr.mxu0 0.0
    %9426 = vmatpush1.msra.mxu0 0.0
    %9427 = vmatprep.subr.mxu0 0.0
    %9428 = vmatpush1.msra.mxu0 0.0
    %9429 = vmatprep.subr.mxu0 0.0
    %9430 = vmatpush1.msra.mxu0 0.0
    %9431 = vmatprep.subr.mxu0 0.0
    %9432 = vmatpush1.msra.mxu0 0.0
    %9433 = vmatprep.subr.mxu0 0.0
    %9434 = vmatpush1.msra.mxu0 0.0
    %9435 = vmatprep.subr.mxu0 0.0
    %9436 = vmatpush1.msra.mxu0 0.0
    %9437 = vmatprep.mubr.f32.mxu0 0.0
    %v9438 = vand.u32 %v9032, 4294901760
    %9439 = vmatmul.mubr.f32.gmra.mrb[0].mxu0 %v9438
    %v9440 = vpop.f32.mrb[0].mxu0
    %v9441 = vadd.f32 %v9358, %v9440
    %v9442 = vpop.f32.mrb[0].mxu0
    %9443 = vdwg.mxu0
    %9444 = vmatprep.subr.mxu0 0.0
    %v9445 = vand.u32 %v9021, 4294901760
    %9446 = vmatpush1.msra.mxu0 %v9445
    %9447 = vmatprep.subr.mxu0 0.0
    %v9448 = vand.u32 %v9022, 4294901760
    %9449 = vmatpush1.msra.mxu0 %v9448
    %9450 = vmatprep.subr.mxu0 0.0
    %v9451 = vand.u32 %v9023, 4294901760
    %9452 = vmatpush1.msra.mxu0 %v9451
    %9453 = vmatprep.subr.mxu0 0.0
    %v9454 = vand.u32 %v9024, 4294901760
    %9455 = vmatpush1.msra.mxu0 %v9454
    %9456 = vmatprep.subr.mxu0 0.0
    %9457 = vmatpush1.msra.mxu0 0.0
    %9458 = vmatprep.subr.mxu0 0.0
    %9459 = vmatpush1.msra.mxu0 0.0
    %9460 = vmatprep.subr.mxu0 0.0
    %9461 = vmatpush1.msra.mxu0 0.0
    %9462 = vmatprep.subr.mxu0 0.0
    %9463 = vmatpush1.msra.mxu0 0.0
    %9464 = vmatprep.subr.mxu0 0.0
    %9465 = vmatpush1.msra.mxu0 0.0
    %9466 = vmatprep.subr.mxu0 0.0
    %9467 = vmatpush1.msra.mxu0 0.0
    %9468 = vmatprep.subr.mxu0 0.0
    %9469 = vmatpush1.msra.mxu0 0.0
    %9470 = vmatprep.subr.mxu0 0.0
    %9471 = vmatpush1.msra.mxu0 0.0
    %9472 = vmatprep.subr.mxu0 0.0
    %9473 = vmatpush1.msra.mxu0 0.0
    %9474 = vmatprep.subr.mxu0 0.0
    %9475 = vmatpush1.msra.mxu0 0.0
    %9476 = vmatprep.subr.mxu0 0.0
    %9477 = vmatpush1.msra.mxu0 0.0
    %9478 = vmatprep.subr.mxu0 0.0
    %9479 = vmatpush1.msra.mxu0 0.0
    %9480 = vmatprep.subr.mxu0 0.0
    %9481 = vmatpush1.msra.mxu0 0.0
    %9482 = vmatprep.subr.mxu0 0.0
    %9483 = vmatpush1.msra.mxu0 0.0
    %9484 = vmatprep.subr.mxu0 0.0
    %9485 = vmatpush1.msra.mxu0 0.0
    %9486 = vmatprep.subr.mxu0 0.0
    %9487 = vmatpush1.msra.mxu0 0.0
    %9488 = vmatprep.subr.mxu0 0.0
    %9489 = vmatpush1.msra.mxu0 0.0
    %9490 = vmatprep.subr.mxu0 0.0
    %9491 = vmatpush1.msra.mxu0 0.0
    %9492 = vmatprep.subr.mxu0 0.0
    %9493 = vmatpush1.msra.mxu0 0.0
    %9494 = vmatprep.subr.mxu0 0.0
    %9495 = vmatpush1.msra.mxu0 0.0
    %9496 = vmatprep.subr.mxu0 0.0
    %9497 = vmatpush1.msra.mxu0 0.0
    %9498 = vmatprep.subr.mxu0 0.0
    %9499 = vmatpush1.msra.mxu0 0.0
    %9500 = vmatprep.subr.mxu0 0.0
    %9501 = vmatpush1.msra.mxu0 0.0
    %9502 = vmatprep.subr.mxu0 0.0
    %9503 = vmatpush1.msra.mxu0 0.0
    %9504 = vmatprep.subr.mxu0 0.0
    %9505 = vmatpush1.msra.mxu0 0.0
    %9506 = vmatprep.subr.mxu0 0.0
    %9507 = vmatpush1.msra.mxu0 0.0
    %9508 = vmatprep.subr.mxu0 0.0
    %9509 = vmatpush1.msra.mxu0 0.0
    %9510 = vmatprep.subr.mxu0 0.0
    %9511 = vmatpush1.msra.mxu0 0.0
    %9512 = vmatprep.mubr.f32.mxu0 0.0
    %v9513 = vand.u32 %v9032, 4294901760
    %9514 = vmatmul.mubr.f32.gmra.mrb[0].mxu0 %v9513
    %v9515 = vpop.f32.mrb[0].mxu0
    %v9516 = vadd.f32 %v9441, %v9515
    %v9517 = vpop.f32.mrb[0].mxu0
    %9518 = vdwg.mxu0
    %9519 = vmax.xlane.f32.xlu0 %v9516
    %v9520 = vpop.xlane.xlu0 %9519
    %v9521 = vsub.f32 %v9516, %v9520
    %v9522 = vmul.f32 %v9521, 1.442695
    %v9523 = vpow.pop %v9522
    %9524 = vadd.xlane.f32.xlu0 %v9523
    %v9525 = vpop.xlane.xlu0 %9524
    %v9526 = vlog2.pop %v9525
    %v9527 = vmul.f32 %v9526, 0.6931472
    %v9528 = vsub.f32 %v9521, %v9527
    %9529 = vst [vmem:[#allocation8] sm:$0xff] %v9528
    // Predicated region
    $region14: #{fwd.1} parent=1 // pred_check
      _
    $region15: #{fwd.1} parent=1 // pred_check_branch
      %9531 = sbr.rel (0) target = $region17
    $region16: #{fwd.1} parent=1 // pred_region
      %s9533 = ssub.s32 128, 128
      %9534 = vsyncadd [#allocation7], %s9533
      %s9536 = sshll.u32 [#allocation8], 4
      %s9537 = int_to_ptr.vmem [resolvable:$true] %s9536
      %9539 = dma.vmem_to_hbm [thread:$0]  %s9537, 128, %s2, [#allocation7]
    $region17: #{fwd.1} parent=1 // pred_fallthru
      _
    // Predicated region
    $region18: #{fwd.1} parent=1 // pred_check
      _
    $region19: #{fwd.1} parent=1 // pred_check_branch
      %9541 = sbr.rel (0) target = $region21
    $region20: #{fwd.1} parent=1 // pred_region
      %9542 = dma.done [#allocation7], 128
    $region21: #{fwd.1} parent=1 // pred_fallthru
      _
    %9543 = vsyncpa [#allocation6], 1
    %9544 = vsyncpa [#allocation7], 1

</llo_original>
